<compile_context>
chip_gen: v7x
topology: tpu7x:2x2x1
jax: 0.10.0
libtpu: 0.0.40
codegen_flags: <defaults>
</compile_context>

<pallas_src>
import functools

import jax
import jax.numpy as jnp
from jax import lax
from jax.experimental import pallas as pl
from jax.experimental.pallas import tpu as pltpu


# ------------------------------ tiling helpers --------------------------------

def _round_up(x: int, m: int) -> int:
    return ((x + m - 1) // m) * m


def _pick_tile(dim_size: int, preferred: int) -> int:
    """Largest multiple of 128 <= preferred that divides dim_size, else dim_size."""
    if dim_size <= preferred:
        return dim_size
    t = (preferred // 128) * 128
    while t >= 128:
        if dim_size % t == 0:
            return t
        t -= 128
    return dim_size  # whole axis in one block (callers pad to avoid this blowing up)


def _tile_and_pad(size: int, preferred: int):
    """Pick a tile for `size`, padding `size` up so the tile always divides it."""
    if size % 128 == 0:
        padded = size
    elif size > 128:
        padded = _round_up(size, 128)
    else:
        padded = _round_up(size, 8)  # small axis: one (sublane-aligned) block
    tile = _pick_tile(padded, preferred)
    return tile, padded


@functools.lru_cache(maxsize=None)
def _tpu_vmem_capacity() -> int:
    try:
        info = pltpu.get_tpu_info()
        cap = getattr(info, "vmem_capacity_bytes", None)
        if cap:
            return int(cap)
    except Exception:
        pass
    return 64 << 20  # conservative fallback (v7x-sized)


def _vmem_limit_bytes() -> int:
    # ~96 MiB on v5e/v6e (128 MiB physical), ~48 MiB on v7x (64 MiB physical).
    return min((_tpu_vmem_capacity() * 3) // 4, 96 << 20)


def _default_linear_tiles():
    if _tpu_vmem_capacity() >= (100 << 20):   # v5e / v6e: 128 MiB VMEM
        return 512, 512, 1024
    return 256, 256, 512                       # v7x: 64 MiB VMEM


# --------------------------- tiled linear (matmul) ----------------------------

def _matmul_kernel(x_ref, w_ref, o_ref, acc_ref):
    @pl.when(pl.program_id(2) == 0)
    def _():
        acc_ref[...] = jnp.zeros_like(acc_ref)

    acc_ref[...] += jnp.dot(x_ref[...], w_ref[...],
                            preferred_element_type=jnp.float32)

    @pl.when(pl.program_id(2) == pl.num_programs(2) - 1)
    def _():
        o_ref[...] = acc_ref[...].astype(o_ref.dtype)


def _matmul_bias_kernel(x_ref, w_ref, b_ref, o_ref, acc_ref):
    @pl.when(pl.program_id(2) == 0)
    def _():
        acc_ref[...] = jnp.zeros_like(acc_ref)

    acc_ref[...] += jnp.dot(x_ref[...], w_ref[...],
                            preferred_element_type=jnp.float32)

    @pl.when(pl.program_id(2) == pl.num_programs(2) - 1)
    def _():
        o_ref[...] = (acc_ref[...] + b_ref[...].astype(jnp.float32)).astype(o_ref.dtype)


def pallas_linear(x, w, b=None, *, tm=None, tn=None, tk=None):
    """x: (M, K), w: (K, N) [torch weight pre-transposed], b: (N,) or None."""
    M, K = x.shape
    Kw, N = w.shape
    assert K == Kw

    d_tm, d_tn, d_tk = _default_linear_tiles()
    tm = d_tm if tm is None else tm
    tn = d_tn if tn is None else tn
    tk = d_tk if tk is None else tk

    # Pad the (potentially large) row axis so it always tiles cleanly.
    M_orig = M
    tm, M_pad = _tile_and_pad(M, tm)
    tn = _pick_tile(N, tn)
    tk = _pick_tile(K, tk)
    assert M_pad % tm == 0 and N % tn == 0 and K % tk == 0
    if M_pad != M:
        x = jnp.pad(x, ((0, M_pad - M), (0, 0)))
    grid = (M_pad // tm, N // tn, K // tk)

    itemsize = jnp.dtype(x.dtype).itemsize
    cost = pl.CostEstimate(
        flops=2 * M_pad * N * K,
        transcendentals=0,
        bytes_accessed=(M_pad * K * (N // tn) + K * N * (M_pad // tm) + M_pad * N)
        * itemsize,
    )

    x_spec = pl.BlockSpec((tm, tk), lambda i, j, k: (i, k))
    w_spec = pl.BlockSpec((tk, tn), lambda i, j, k: (k, j))
    o_spec = pl.BlockSpec((tm, tn), lambda i, j, k: (i, j))
    cparams = pltpu.CompilerParams(
        dimension_semantics=("parallel", "parallel", "arbitrary"),
        vmem_limit_bytes=_vmem_limit_bytes(),
    )

    if b is None:
        out = pl.pallas_call(
            _matmul_kernel,
            out_shape=jax.ShapeDtypeStruct((M_pad, N), x.dtype),
            grid_spec=pltpu.PrefetchScalarGridSpec(
                num_scalar_prefetch=0,
                grid=grid,
                in_specs=[x_spec, w_spec],
                out_specs=o_spec,
                scratch_shapes=[pltpu.VMEM((tm, tn), jnp.float32)],
            ),
            compiler_params=cparams,
            cost_estimate=cost,
        )(x, w)
    else:
        b2 = b.reshape(1, N)
        b_spec = pl.BlockSpec((1, tn), lambda i, j, k: (0, j))
        out = pl.pallas_call(
            _matmul_bias_kernel,
            out_shape=jax.ShapeDtypeStruct((M_pad, N), x.dtype),
            grid_spec=pltpu.PrefetchScalarGridSpec(
                num_scalar_prefetch=0,
                grid=grid,
                in_specs=[x_spec, w_spec, b_spec],
                out_specs=o_spec,
                scratch_shapes=[pltpu.VMEM((tm, tn), jnp.float32)],
            ),
            compiler_params=cparams,
            cost_estimate=cost,
        )(x, w, b2)

    return out[:M_orig] if M_pad != M_orig else out


# ----------------- flash-style attention with fused output proj ---------------

def _flash_attn_kernel(q_ref, k_ref, v_ref, wo_ref, bo_ref, o_ref,
                       m_sc, l_sc, acc_sc, *,
                       heads, dim_head, tkv, kv_len, needs_mask):
    # Blocks: q_ref (1, tq, H*D), k_ref/v_ref (1, tkv, H*D),
    #         wo_ref (H*D, dim), bo_ref (1, dim), o_ref (1, tq, dim).
    j = pl.program_id(2)

    @pl.when(j == 0)
    def _():
        m_sc[...] = jnp.full_like(m_sc, -jnp.inf)
        l_sc[...] = jnp.zeros_like(l_sc)
        acc_sc[...] = jnp.zeros_like(acc_sc)

    tq = q_ref.shape[1]
    if needs_mask:
        col_ids = lax.broadcasted_iota(jnp.int32, (tq, tkv), 1) + j * tkv
        kv_mask = col_ids < kv_len

    # Heads live in the lane-dense last axis; address them with static slices.
    # Note: scale (dim_head**-0.5) is already folded into the Q weights.
    for h in range(heads):
        hs = pl.ds(h * dim_head, dim_head)
        qh = q_ref[0, :, hs]                    # (tq, D), input dtype
        kh = k_ref[0, :, hs]                    # (tkv, D)
        vh = v_ref[0, :, hs]                    # (tkv, D)

        # q k^T via contraction dimension numbers (no explicit transpose).
        s = lax.dot_general(qh, kh, (((1,), (1,)), ((), ())),
                            preferred_element_type=jnp.float32)   # (tq, tkv) f32
        if needs_mask:
            s = jnp.where(kv_mask, s, -jnp.inf)

        m_prev = m_sc[h]                                          # (tq, 1)
        m_new = jnp.maximum(m_prev, s.max(axis=-1, keepdims=True))
        alpha = jnp.exp(m_prev - m_new)                           # (tq, 1) f32
        p = jnp.exp(s - m_new)                                    # (tq, tkv) f32
        l_sc[h] = alpha * l_sc[h] + p.sum(axis=-1, keepdims=True)
        m_sc[h] = m_new

        pv = jnp.dot(p.astype(vh.dtype), vh,
                     preferred_element_type=jnp.float32)          # (tq, D) f32
        # Per-head in-place accumulator update: ends this head's live range,
        # no lane concatenation / broadcast materialization in the hot loop.
        acc_sc[:, hs] = alpha * acc_sc[:, hs] + pv

    @pl.when(j == pl.num_programs(2) - 1)
    def _():
        for h in range(heads):
            hs = pl.ds(h * dim_head, dim_head)
            l_h = l_sc[h]                                         # (tq, 1)
            inv = pl.reciprocal(l_h, approx=True)                 # EUP slot
            inv = inv * (2.0 - l_h * inv)                         # Newton refine
            acc_sc[:, hs] = acc_sc[:, hs] * inv
        # Fused output projection: (tq, H*D) @ (H*D, dim) + bo, no HBM round trip.
        o = jnp.dot(acc_sc[...].astype(wo_ref.dtype), wo_ref[...],
                    preferred_element_type=jnp.float32)
        o_ref[0] = (o + bo_ref[...].astype(jnp.float32)).astype(o_ref.dtype)


def pallas_flash_attention(qkv, wo, bo, *, heads, dim_head, tq=256, tkv=256):
    """qkv: (B, N, 3*heads*dim_head) fused [q|k|v] (scale folded into q weights),
    wo: (heads*dim_head, dim), bo: (dim,)  ->  (B, N, dim)."""
    B, N, three_inner = qkv.shape
    inner = heads * dim_head
    assert three_inner == 3 * inner
    assert inner % 128 == 0, "heads*dim_head must be a multiple of 128 (lane-dense tiles)"
    assert wo.shape[0] == inner
    dim = wo.shape[1]

    # Tile selection with padding so arbitrary sequence lengths work.
    tq, N_pad = _tile_and_pad(N, tq)
    tkv, _ = _tile_and_pad(N, tkv)
    # v7x megacore: keep at least 2 parallel grid iterations when possible.
    if B * (N_pad // tq) < 2 and tq % 256 == 0:
        tq //= 2
    assert N_pad % tq == 0 and N_pad % tkv == 0
    needs_mask = N_pad != N
    if needs_mask:
        qkv = jnp.pad(qkv, ((0, 0), (0, N_pad - N), (0, 0)))

    grid = (B, N_pad // tq, N_pad // tkv)
    n_q_tiles = N_pad // tq

    # q/k/v are carved out of the same fused array via block index maps
    # (block index along the last axis selects the q / k / v third).
    q_spec = pl.BlockSpec((1, tq, inner), lambda b, i, j: (b, i, 0))
    k_spec = pl.BlockSpec((1, tkv, inner), lambda b, i, j: (b, j, 1))
    v_spec = pl.BlockSpec((1, tkv, inner), lambda b, i, j: (b, j, 2))
    wo_spec = pl.BlockSpec((inner, dim), lambda b, i, j: (0, 0))    # VMEM-resident
    bo_spec = pl.BlockSpec((1, dim), lambda b, i, j: (0, 0))
    o_spec = pl.BlockSpec((1, tq, dim), lambda b, i, j: (b, i, 0))

    itemsize = jnp.dtype(qkv.dtype).itemsize
    cost = pl.CostEstimate(
        flops=4 * B * N_pad * N_pad * inner + 2 * B * N_pad * inner * dim,
        transcendentals=B * heads * N_pad * N_pad,
        bytes_accessed=(B * N_pad * inner                      # q
                        + 2 * B * N_pad * inner * n_q_tiles    # k/v re-streamed per q tile
                        + B * N_pad * dim                      # output
                        + inner * dim + dim) * itemsize,       # wo, bo
    )

    out = pl.pallas_call(
        functools.partial(_flash_attn_kernel, heads=heads, dim_head=dim_head,
                          tkv=tkv, kv_len=N, needs_mask=needs_mask),
        out_shape=jax.ShapeDtypeStruct((B, N_pad, dim), qkv.dtype),
        grid_spec=pltpu.PrefetchScalarGridSpec(
            num_scalar_prefetch=0,
            grid=grid,
            in_specs=[q_spec, k_spec, v_spec, wo_spec, bo_spec],
            out_specs=o_spec,
            scratch_shapes=[
                pltpu.VMEM((heads, tq, 1), jnp.float32),   # running max m
                pltpu.VMEM((heads, tq, 1), jnp.float32),   # running denom l
                pltpu.VMEM((tq, inner), jnp.float32),      # output accumulator
            ],
        ),
        compiler_params=pltpu.CompilerParams(
            dimension_semantics=("parallel", "parallel", "arbitrary"),
            vmem_limit_bytes=_vmem_limit_bytes(),
        ),
        cost_estimate=cost,
    )(qkv, qkv, qkv, wo, bo.reshape(1, dim))

    return out[:, :N, :] if needs_mask else out


# ------------------------------ full forward ----------------------------------

def prepare_attention_params(wq, wk, wv, wo, bo, *, dim_head):
    """One-time parameter prep: fuse [Wq|Wk|Wv] (torch chunk(2) order: k then v)
    and fold dim_head**-0.5 into the Q columns (done in the master dtype)."""
    scale = dim_head ** (-0.5)
    return {
        "wqkv": jnp.concatenate([wq * scale, wk, wv], axis=1),
        "wo": wo,
        "bo": bo,
    }


def attention_forward(x, params, *, heads, dim_head):
    """Attention.forward (self-attention, no mask / rotary / bias / dropout)."""
    B, N, dim = x.shape
    inner = heads * dim_head
    x2 = x.reshape(B * N, dim)
    # Fused q/k/v projection: reads x from HBM once, one kernel launch.
    qkv = pallas_linear(x2, params["wqkv"]).reshape(B, N, 3 * inner)
    # Flash attention with the output projection fused into the finalize.
    out = pallas_flash_attention(qkv, params["wo"], params["bo"],
                                 heads=heads, dim_head=dim_head)
    return out


# --------------------------- reference (plain JAX) -----------------------------

def attention_reference(x, wq, wk, wv, wo, bo, *, heads, dim_head):
    B, N, dim = x.shape
    inner = heads * dim_head
    scale = dim_head ** (-0.5)
    q, k, v = x @ wq, x @ wk, x @ wv
    sh = lambda t: t.reshape(B, N, heads, dim_head).transpose(0, 2, 1, 3)
    q, k, v = map(sh, (q, k, v))
    s = jnp.einsum("bhnd,bhmd->bhnm", q, k) * scale
    a = jax.nn.softmax(s, axis=-1)
    o = jnp.einsum("bhnm,bhmd->bhnd", a, v)
    o = o.transpose(0, 2, 1, 3).reshape(B, N, inner)
    return o @ wo + bo


# ----------------------------------- main --------------------------------------

if __name__ == "__main__":
    # Small shapes consistent with the module (heads*dim_head kept lane-dense).
    B, N, dim = 2, 256, 128
    heads, dim_head = 2, 64
    inner = heads * dim_head

    key = jax.random.PRNGKey(0)
    k_x, k_q, k_k, k_v, k_o, k_b = jax.random.split(key, 6)

    x = jax.random.normal(k_x, (B, N, dim), dtype=jnp.float32)

    # torch weights are (out, in); stored pre-transposed as (in, out).
    wq = jax.random.normal(k_q, (dim, inner), jnp.float32) * 0.05
    wk = jax.random.normal(k_k, (dim, inner), jnp.float32) * 0.05
    wv = jax.random.normal(k_v, (dim, inner), jnp.float32) * 0.05
    wo = jax.random.normal(k_o, (inner, dim), jnp.float32) * 0.05
    bo = jax.random.normal(k_b, (dim,), jnp.float32) * 0.05

    params = prepare_attention_params(wq, wk, wv, wo, bo, dim_head=dim_head)

    fwd = jax.jit(functools.partial(attention_forward, heads=heads, dim_head=dim_head))
    out = jax.block_until_ready(fwd(x, params))
    ref = attention_reference(x, wq, wk, wv, wo, bo, heads=heads, dim_head=dim_head)
    assert out.shape == (B, N, dim)
    assert jnp.allclose(out, ref, atol=2e-3, rtol=2e-3), (
        "fp32 mismatch, max abs err = %f" % float(jnp.max(jnp.abs(out - ref))))

    # bf16 operands (MXU-native on v6e/v7x); fp32 accumulation / softmax state
    # are kept inside the kernels, so only bf16 input quantization error remains.
    xb = x.astype(jnp.bfloat16)
    pb = jax.tree_util.tree_map(lambda t: t.astype(jnp.bfloat16), params)
    outb = jax.block_until_ready(
        attention_forward(xb, pb, heads=heads, dim_head=dim_head))
    assert jnp.allclose(outb.astype(jnp.float32), ref, atol=5e-2, rtol=5e-2), (
        "bf16 mismatch, max abs err = %f"
        % float(jnp.max(jnp.abs(outb.astype(jnp.float32) - ref))))

    print("KERNEL_OK")
</pallas_src>

<mosaic_0001>
module attributes {stable_mosaic.version = 11 : i64} {
  func.func @_flash_attn_kernel(%arg0: i32, %arg1: i32, %arg2: i32, %arg3: memref<1x256x128xf32, #tpu.memory_space<vmem>>, %arg4: memref<1x256x128xf32, #tpu.memory_space<vmem>>, %arg5: memref<1x256x128xf32, #tpu.memory_space<vmem>>, %arg6: memref<128x128xf32, #tpu.memory_space<vmem>>, %arg7: memref<1x128xf32, #tpu.memory_space<vmem>>, %arg8: memref<1x256x128xf32, #tpu.memory_space<vmem>>, %arg9: memref<2x256x1xf32, #tpu.memory_space<vmem>>, %arg10: memref<2x256x1xf32, #tpu.memory_space<vmem>>, %arg11: memref<256x128xf32, #tpu.memory_space<vmem>>) attributes {dimension_semantics = [#tpu.dimension_semantics<parallel>, #tpu.dimension_semantics<parallel>, #tpu.dimension_semantics<arbitrary>], iteration_bounds = array<i64: 2, 1, 1>, scalar_prefetch = 0 : i64, scratch_operands = 3 : i64, tpu.core_type = #tpu.core_type<tc>, window_params = [{transform_indices = @transform_0, window_bounds = array<i64: 1, 256, 128>}, {transform_indices = @transform_1, window_bounds = array<i64: 1, 256, 128>}, {transform_indices = @transform_2, window_bounds = array<i64: 1, 256, 128>}, {pipeline_mode = #tpu.pipeline_mode<synchronous>, transform_indices = @transform_3, window_bounds = array<i64: 128, 128>}, {pipeline_mode = #tpu.pipeline_mode<synchronous>, transform_indices = @transform_4, window_bounds = array<i64: 1, 128>}, {transform_indices = @transform_5, window_bounds = array<i64: 1, 256, 128>}]} {
    %c0_i32 = arith.constant 0 : i32
    %0 = arith.cmpi eq, %arg2, %c0_i32 : i32
    %1 = arith.extui %0 : i1 to i32
    %c0_i32_0 = arith.constant 0 : i32
    %2 = arith.cmpi ne, %1, %c0_i32_0 : i32
    scf.if %2 {
      %cst_57 = arith.constant 0xFF800000 : f32
      %76 = vector.broadcast %cst_57 : f32 to vector<2x256x1xf32>
      %c0_58 = arith.constant 0 : index
      %c0_59 = arith.constant 0 : index
      %c0_60 = arith.constant 0 : index
      %77 = vector.load %arg9[%c0_58, %c0_59, %c0_60] : memref<2x256x1xf32, #tpu.memory_space<vmem>>, vector<2x256x1xf32>
      tpu.vector_store %arg9[%c0_58, %c0_59, %c0_60], %76 {strides = array<i32>} : memref<2x256x1xf32, #tpu.memory_space<vmem>>, vector<2x256x1xf32>,
      %cst_61 = arith.constant 0.000000e+00 : f32
      %78 = vector.broadcast %cst_61 : f32 to vector<2x256x1xf32>
      %c0_62 = arith.constant 0 : index
      %c0_63 = arith.constant 0 : index
      %c0_64 = arith.constant 0 : index
      %79 = vector.load %arg10[%c0_62, %c0_63, %c0_64] : memref<2x256x1xf32, #tpu.memory_space<vmem>>, vector<2x256x1xf32>
      tpu.vector_store %arg10[%c0_62, %c0_63, %c0_64], %78 {strides = array<i32>} : memref<2x256x1xf32, #tpu.memory_space<vmem>>, vector<2x256x1xf32>,
      %cst_65 = arith.constant 0.000000e+00 : f32
      %80 = vector.broadcast %cst_65 : f32 to vector<256x128xf32>
      %c0_66 = arith.constant 0 : index
      %c0_67 = arith.constant 0 : index
      %81 = vector.load %arg11[%c0_66, %c0_67] : memref<256x128xf32, #tpu.memory_space<vmem>>, vector<256x128xf32>
      tpu.vector_store %arg11[%c0_66, %c0_67], %80 {strides = array<i32>} : memref<256x128xf32, #tpu.memory_space<vmem>>, vector<256x128xf32>,
    } else {
    }
    %c0 = arith.constant 0 : index
    %c0_1 = arith.constant 0 : index
    %c0_2 = arith.constant 0 : index
    %3 = vector.load %arg3[%c0, %c0_1, %c0_2] : memref<1x256x128xf32, #tpu.memory_space<vmem>>, vector<1x256x64xf32>
    %4 = vector.shape_cast %3 : vector<1x256x64xf32> to vector<256x64xf32>
    %c0_3 = arith.constant 0 : index
    %c0_4 = arith.constant 0 : index
    %c0_5 = arith.constant 0 : index
    %5 = vector.load %arg4[%c0_3, %c0_4, %c0_5] : memref<1x256x128xf32, #tpu.memory_space<vmem>>, vector<1x256x64xf32>
    %6 = vector.shape_cast %5 : vector<1x256x64xf32> to vector<256x64xf32>
    %c0_6 = arith.constant 0 : index
    %c0_7 = arith.constant 0 : index
    %c0_8 = arith.constant 0 : index
    %7 = vector.load %arg5[%c0_6, %c0_7, %c0_8] : memref<1x256x128xf32, #tpu.memory_space<vmem>>, vector<1x256x64xf32>
    %8 = vector.shape_cast %7 : vector<1x256x64xf32> to vector<256x64xf32>
    %cst = arith.constant dense<0.000000e+00> : vector<256x256xf32>
    %9 = tpu.matmul %4, %6, %cst {dimension_numbers = #tpu.dot_dimension_numbers<[1], [1], [0], [0], [0, 0, 1, 0], [], []>} : vector<256x64xf32>, vector<256x64xf32>, vector<256x256xf32> -> vector<256x256xf32>
    %c0_9 = arith.constant 0 : index
    %c0_10 = arith.constant 0 : index
    %c0_11 = arith.constant 0 : index
    %10 = vector.load %arg9[%c0_9, %c0_10, %c0_11] : memref<2x256x1xf32, #tpu.memory_space<vmem>>, vector<1x256x1xf32>
    %11 = vector.shape_cast %10 : vector<1x256x1xf32> to vector<256x1xf32>
    %cst_12 = arith.constant dense<0xFF800000> : vector<256xf32>
    %12 = vector.multi_reduction <maximumf>, %9, %cst_12 [1] : vector<256x256xf32> to vector<256xf32>
    %13 = vector.shape_cast %12 : vector<256xf32> to vector<256x1xf32>
    %14 = arith.maximumf %11, %13 : vector<256x1xf32>
    %15 = arith.subf %11, %14 : vector<256x1xf32>
    %16 = math.exp %15 : vector<256x1xf32>
    %17 = vector.broadcast %14 : vector<256x1xf32> to vector<256x256xf32>
    %18 = arith.subf %9, %17 : vector<256x256xf32>
    %19 = math.exp %18 : vector<256x256xf32>
    %c0_13 = arith.constant 0 : index
    %c0_14 = arith.constant 0 : index
    %c0_15 = arith.constant 0 : index
    %20 = vector.load %arg10[%c0_13, %c0_14, %c0_15] : memref<2x256x1xf32, #tpu.memory_space<vmem>>, vector<1x256x1xf32>
    %21 = vector.shape_cast %20 : vector<1x256x1xf32> to vector<256x1xf32>
    %22 = arith.mulf %16, %21 : vector<256x1xf32>
    %cst_16 = arith.constant dense<0.000000e+00> : vector<256xf32>
    %23 = vector.multi_reduction <add>, %19, %cst_16 [1] : vector<256x256xf32> to vector<256xf32>
    %24 = vector.shape_cast %23 : vector<256xf32> to vector<256x1xf32>
    %25 = arith.addf %22, %24 : vector<256x1xf32>
    %c0_17 = arith.constant 0 : index
    %c0_18 = arith.constant 0 : index
    %c0_19 = arith.constant 0 : index
    %26 = vector.load %arg10[%c0_17, %c0_18, %c0_19] : memref<2x256x1xf32, #tpu.memory_space<vmem>>, vector<1x256x1xf32>
    %27 = vector.shape_cast %26 : vector<1x256x1xf32> to vector<256x1xf32>
    %28 = vector.shape_cast %25 : vector<256x1xf32> to vector<1x256x1xf32>
    tpu.vector_store %arg10[%c0_17, %c0_18, %c0_19], %28 {strides = array<i32>} : memref<2x256x1xf32, #tpu.memory_space<vmem>>, vector<1x256x1xf32>,
    %c0_20 = arith.constant 0 : index
    %c0_21 = arith.constant 0 : index
    %c0_22 = arith.constant 0 : index
    %29 = vector.load %arg9[%c0_20, %c0_21, %c0_22] : memref<2x256x1xf32, #tpu.memory_space<vmem>>, vector<1x256x1xf32>
    %30 = vector.shape_cast %29 : vector<1x256x1xf32> to vector<256x1xf32>
    %31 = vector.shape_cast %14 : vector<256x1xf32> to vector<1x256x1xf32>
    tpu.vector_store %arg9[%c0_20, %c0_21, %c0_22], %31 {strides = array<i32>} : memref<2x256x1xf32, #tpu.memory_space<vmem>>, vector<1x256x1xf32>,
    %cst_23 = arith.constant dense<0.000000e+00> : vector<256x64xf32>
    %32 = tpu.matmul %19, %8, %cst_23 {dimension_numbers = #tpu.dot_dimension_numbers<[1], [0], [0], [1], [0, 0, 1, 1], [], []>} : vector<256x256xf32>, vector<256x64xf32>, vector<256x64xf32> -> vector<256x64xf32>
    %c0_24 = arith.constant 0 : index
    %c0_25 = arith.constant 0 : index
    %33 = vector.load %arg11[%c0_24, %c0_25] : memref<256x128xf32, #tpu.memory_space<vmem>>, vector<256x64xf32>
    %34 = vector.broadcast %16 : vector<256x1xf32> to vector<256x64xf32>
    %35 = arith.mulf %34, %33 : vector<256x64xf32>
    %36 = arith.addf %35, %32 : vector<256x64xf32>
    %c0_26 = arith.constant 0 : index
    %c0_27 = arith.constant 0 : index
    %37 = vector.load %arg11[%c0_26, %c0_27] : memref<256x128xf32, #tpu.memory_space<vmem>>, vector<256x64xf32>
    tpu.vector_store %arg11[%c0_26, %c0_27], %36 {strides = array<i32>} : memref<256x128xf32, #tpu.memory_space<vmem>>, vector<256x64xf32>,
    %c0_28 = arith.constant 0 : index
    %c0_29 = arith.constant 0 : index
    %c64 = arith.constant 64 : index
    %38 = vector.load %arg3[%c0_28, %c0_29, %c64] : memref<1x256x128xf32, #tpu.memory_space<vmem>>, vector<1x256x64xf32>
    %39 = vector.shape_cast %38 : vector<1x256x64xf32> to vector<256x64xf32>
    %c0_30 = arith.constant 0 : index
    %c0_31 = arith.constant 0 : index
    %c64_32 = arith.constant 64 : index
    %40 = vector.load %arg4[%c0_30, %c0_31, %c64_32] : memref<1x256x128xf32, #tpu.memory_space<vmem>>, vector<1x256x64xf32>
    %41 = vector.shape_cast %40 : vector<1x256x64xf32> to vector<256x64xf32>
    %c0_33 = arith.constant 0 : index
    %c0_34 = arith.constant 0 : index
    %c64_35 = arith.constant 64 : index
    %42 = vector.load %arg5[%c0_33, %c0_34, %c64_35] : memref<1x256x128xf32, #tpu.memory_space<vmem>>, vector<1x256x64xf32>
    %43 = vector.shape_cast %42 : vector<1x256x64xf32> to vector<256x64xf32>
    %cst_36 = arith.constant dense<0.000000e+00> : vector<256x256xf32>
    %44 = tpu.matmul %39, %41, %cst_36 {dimension_numbers = #tpu.dot_dimension_numbers<[1], [1], [0], [0], [0, 0, 1, 0], [], []>} : vector<256x64xf32>, vector<256x64xf32>, vector<256x256xf32> -> vector<256x256xf32>
    %c1 = arith.constant 1 : index
    %c0_37 = arith.constant 0 : index
    %c0_38 = arith.constant 0 : index
    %45 = vector.load %arg9[%c1, %c0_37, %c0_38] : memref<2x256x1xf32, #tpu.memory_space<vmem>>, vector<1x256x1xf32>
    %46 = vector.shape_cast %45 : vector<1x256x1xf32> to vector<256x1xf32>
    %cst_39 = arith.constant dense<0xFF800000> : vector<256xf32>
    %47 = vector.multi_reduction <maximumf>, %44, %cst_39 [1] : vector<256x256xf32> to vector<256xf32>
    %48 = vector.shape_cast %47 : vector<256xf32> to vector<256x1xf32>
    %49 = arith.maximumf %46, %48 : vector<256x1xf32>
    %50 = arith.subf %46, %49 : vector<256x1xf32>
    %51 = math.exp %50 : vector<256x1xf32>
    %52 = vector.broadcast %49 : vector<256x1xf32> to vector<256x256xf32>
    %53 = arith.subf %44, %52 : vector<256x256xf32>
    %54 = math.exp %53 : vector<256x256xf32>
    %c1_40 = arith.constant 1 : index
    %c0_41 = arith.constant 0 : index
    %c0_42 = arith.constant 0 : index
    %55 = vector.load %arg10[%c1_40, %c0_41, %c0_42] : memref<2x256x1xf32, #tpu.memory_space<vmem>>, vector<1x256x1xf32>
    %56 = vector.shape_cast %55 : vector<1x256x1xf32> to vector<256x1xf32>
    %57 = arith.mulf %51, %56 : vector<256x1xf32>
    %cst_43 = arith.constant dense<0.000000e+00> : vector<256xf32>
    %58 = vector.multi_reduction <add>, %54, %cst_43 [1] : vector<256x256xf32> to vector<256xf32>
    %59 = vector.shape_cast %58 : vector<256xf32> to vector<256x1xf32>
    %60 = arith.addf %57, %59 : vector<256x1xf32>
    %c1_44 = arith.constant 1 : index
    %c0_45 = arith.constant 0 : index
    %c0_46 = arith.constant 0 : index
    %61 = vector.load %arg10[%c1_44, %c0_45, %c0_46] : memref<2x256x1xf32, #tpu.memory_space<vmem>>, vector<1x256x1xf32>
    %62 = vector.shape_cast %61 : vector<1x256x1xf32> to vector<256x1xf32>
    %63 = vector.shape_cast %60 : vector<256x1xf32> to vector<1x256x1xf32>
    tpu.vector_store %arg10[%c1_44, %c0_45, %c0_46], %63 {strides = array<i32>} : memref<2x256x1xf32, #tpu.memory_space<vmem>>, vector<1x256x1xf32>,
    %c1_47 = arith.constant 1 : index
    %c0_48 = arith.constant 0 : index
    %c0_49 = arith.constant 0 : index
    %64 = vector.load %arg9[%c1_47, %c0_48, %c0_49] : memref<2x256x1xf32, #tpu.memory_space<vmem>>, vector<1x256x1xf32>
    %65 = vector.shape_cast %64 : vector<1x256x1xf32> to vector<256x1xf32>
    %66 = vector.shape_cast %49 : vector<256x1xf32> to vector<1x256x1xf32>
    tpu.vector_store %arg9[%c1_47, %c0_48, %c0_49], %66 {strides = array<i32>} : memref<2x256x1xf32, #tpu.memory_space<vmem>>, vector<1x256x1xf32>,
    %cst_50 = arith.constant dense<0.000000e+00> : vector<256x64xf32>
    %67 = tpu.matmul %54, %43, %cst_50 {dimension_numbers = #tpu.dot_dimension_numbers<[1], [0], [0], [1], [0, 0, 1, 1], [], []>} : vector<256x256xf32>, vector<256x64xf32>, vector<256x64xf32> -> vector<256x64xf32>
    %c0_51 = arith.constant 0 : index
    %c64_52 = arith.constant 64 : index
    %68 = vector.load %arg11[%c0_51, %c64_52] : memref<256x128xf32, #tpu.memory_space<vmem>>, vector<256x64xf32>
    %69 = vector.broadcast %51 : vector<256x1xf32> to vector<256x64xf32>
    %70 = arith.mulf %69, %68 : vector<256x64xf32>
    %71 = arith.addf %70, %67 : vector<256x64xf32>
    %c0_53 = arith.constant 0 : index
    %c64_54 = arith.constant 64 : index
    %72 = vector.load %arg11[%c0_53, %c64_54] : memref<256x128xf32, #tpu.memory_space<vmem>>, vector<256x64xf32>
    tpu.vector_store %arg11[%c0_53, %c64_54], %71 {strides = array<i32>} : memref<256x128xf32, #tpu.memory_space<vmem>>, vector<256x64xf32>,
    %c0_i32_55 = arith.constant 0 : i32
    %73 = arith.cmpi eq, %arg2, %c0_i32_55 : i32
    %74 = arith.extui %73 : i1 to i32
    %c0_i32_56 = arith.constant 0 : i32
    %75 = arith.cmpi ne, %74, %c0_i32_56 : i32
    scf.if %75 {
      %c0_57 = arith.constant 0 : index
      %c0_58 = arith.constant 0 : index
      %c0_59 = arith.constant 0 : index
      %76 = vector.load %arg10[%c0_57, %c0_58, %c0_59] : memref<2x256x1xf32, #tpu.memory_space<vmem>>, vector<1x256x1xf32>
      %77 = vector.shape_cast %76 : vector<1x256x1xf32> to vector<256x1xf32>
      %78 = tpu.reciprocal %77 {approx = true} : vector<256x1xf32> -> vector<256x1xf32>
      %79 = arith.mulf %77, %78 : vector<256x1xf32>
      %cst_60 = arith.constant 2.000000e+00 : f32
      %80 = vector.broadcast %cst_60 : f32 to vector<256x1xf32>
      %81 = arith.subf %80, %79 : vector<256x1xf32>
      %82 = arith.mulf %78, %81 : vector<256x1xf32>
      %c0_61 = arith.constant 0 : index
      %c0_62 = arith.constant 0 : index
      %83 = vector.load %arg11[%c0_61, %c0_62] : memref<256x128xf32, #tpu.memory_space<vmem>>, vector<256x64xf32>
      %84 = vector.broadcast %82 : vector<256x1xf32> to vector<256x64xf32>
      %85 = arith.mulf %83, %84 : vector<256x64xf32>
      %c0_63 = arith.constant 0 : index
      %c0_64 = arith.constant 0 : index
      %86 = vector.load %arg11[%c0_63, %c0_64] : memref<256x128xf32, #tpu.memory_space<vmem>>, vector<256x64xf32>
      tpu.vector_store %arg11[%c0_63, %c0_64], %85 {strides = array<i32>} : memref<256x128xf32, #tpu.memory_space<vmem>>, vector<256x64xf32>,
      %c1_65 = arith.constant 1 : index
      %c0_66 = arith.constant 0 : index
      %c0_67 = arith.constant 0 : index
      %87 = vector.load %arg10[%c1_65, %c0_66, %c0_67] : memref<2x256x1xf32, #tpu.memory_space<vmem>>, vector<1x256x1xf32>
      %88 = vector.shape_cast %87 : vector<1x256x1xf32> to vector<256x1xf32>
      %89 = tpu.reciprocal %88 {approx = true} : vector<256x1xf32> -> vector<256x1xf32>
      %90 = arith.mulf %88, %89 : vector<256x1xf32>
      %cst_68 = arith.constant 2.000000e+00 : f32
      %91 = vector.broadcast %cst_68 : f32 to vector<256x1xf32>
      %92 = arith.subf %91, %90 : vector<256x1xf32>
      %93 = arith.mulf %89, %92 : vector<256x1xf32>
      %c0_69 = arith.constant 0 : index
      %c64_70 = arith.constant 64 : index
      %94 = vector.load %arg11[%c0_69, %c64_70] : memref<256x128xf32, #tpu.memory_space<vmem>>, vector<256x64xf32>
      %95 = vector.broadcast %93 : vector<256x1xf32> to vector<256x64xf32>
      %96 = arith.mulf %94, %95 : vector<256x64xf32>
      %c0_71 = arith.constant 0 : index
      %c64_72 = arith.constant 64 : index
      %97 = vector.load %arg11[%c0_71, %c64_72] : memref<256x128xf32, #tpu.memory_space<vmem>>, vector<256x64xf32>
      tpu.vector_store %arg11[%c0_71, %c64_72], %96 {strides = array<i32>} : memref<256x128xf32, #tpu.memory_space<vmem>>, vector<256x64xf32>,
      %c0_73 = arith.constant 0 : index
      %c0_74 = arith.constant 0 : index
      %98 = vector.load %arg11[%c0_73, %c0_74] : memref<256x128xf32, #tpu.memory_space<vmem>>, vector<256x128xf32>
      %c0_75 = arith.constant 0 : index
      %c0_76 = arith.constant 0 : index
      %99 = vector.load %arg6[%c0_75, %c0_76] : memref<128x128xf32, #tpu.memory_space<vmem>>, vector<128x128xf32>
      %cst_77 = arith.constant dense<0.000000e+00> : vector<256x128xf32>
      %100 = tpu.matmul %98, %99, %cst_77 {dimension_numbers = #tpu.dot_dimension_numbers<[1], [0], [0], [1], [0, 0, 1, 1], [], []>} : vector<256x128xf32>, vector<128x128xf32>, vector<256x128xf32> -> vector<256x128xf32>
      %c0_78 = arith.constant 0 : index
      %c0_79 = arith.constant 0 : index
      %101 = vector.load %arg7[%c0_78, %c0_79] : memref<1x128xf32, #tpu.memory_space<vmem>>, vector<1x128xf32>
      %102 = vector.broadcast %101 : vector<1x128xf32> to vector<256x128xf32>
      %103 = arith.addf %100, %102 : vector<256x128xf32>
      %c0_80 = arith.constant 0 : index
      %c0_81 = arith.constant 0 : index
      %c0_82 = arith.constant 0 : index
      %104 = vector.load %arg8[%c0_80, %c0_81, %c0_82] : memref<1x256x128xf32, #tpu.memory_space<vmem>>, vector<1x256x128xf32>
      %105 = vector.shape_cast %104 : vector<1x256x128xf32> to vector<256x128xf32>
      %106 = vector.shape_cast %103 : vector<256x128xf32> to vector<1x256x128xf32>
      tpu.vector_store %arg8[%c0_80, %c0_81, %c0_82], %106 {strides = array<i32>} : memref<1x256x128xf32, #tpu.memory_space<vmem>>, vector<1x256x128xf32>,
    } else {
    }
    return
  }
  func.func @transform_0(%arg0: i32, %arg1: i32, %arg2: i32) -> (i32, i32, i32) {
    %c0_i32 = arith.constant 0 : i32
    %c0_i32_0 = arith.constant 0 : i32
    return %arg0, %arg1, %c0_i32 : i32, i32, i32
  }
  func.func @transform_1(%arg0: i32, %arg1: i32, %arg2: i32) -> (i32, i32, i32) {
    %c1_i32 = arith.constant 1 : i32
    %c0_i32 = arith.constant 0 : i32
    return %arg0, %arg2, %c1_i32 : i32, i32, i32
  }
  func.func @transform_2(%arg0: i32, %arg1: i32, %arg2: i32) -> (i32, i32, i32) {
    %c2_i32 = arith.constant 2 : i32
    %c0_i32 = arith.constant 0 : i32
    return %arg0, %arg2, %c2_i32 : i32, i32, i32
  }
  func.func @transform_3(%arg0: i32, %arg1: i32, %arg2: i32) -> (i32, i32) {
    %c0_i32 = arith.constant 0 : i32
    %c0_i32_0 = arith.constant 0 : i32
    %c0_i32_1 = arith.constant 0 : i32
    return %c0_i32, %c0_i32_0 : i32, i32
  }
  func.func @transform_4(%arg0: i32, %arg1: i32, %arg2: i32) -> (i32, i32) {
    %c0_i32 = arith.constant 0 : i32
    %c0_i32_0 = arith.constant 0 : i32
    %c0_i32_1 = arith.constant 0 : i32
    return %c0_i32, %c0_i32_0 : i32, i32
  }
  func.func @transform_5(%arg0: i32, %arg1: i32, %arg2: i32) -> (i32, i32, i32) {
    %c0_i32 = arith.constant 0 : i32
    %c0_i32_0 = arith.constant 0 : i32
    return %arg0, %arg1, %c0_i32 : i32, i32, i32
  }
}

module attributes {stable_mosaic.version = 11 : i64} {
  func.func @_matmul_kernel(%arg0: i32, %arg1: i32, %arg2: i32, %arg3: memref<256x128xf32, #tpu.memory_space<vmem>>, %arg4: memref<128x128xf32, #tpu.memory_space<vmem>>, %arg5: memref<256x128xf32, #tpu.memory_space<vmem>>, %arg6: memref<256x128xf32, #tpu.memory_space<vmem>>) attributes {dimension_semantics = [#tpu.dimension_semantics<parallel>, #tpu.dimension_semantics<parallel>, #tpu.dimension_semantics<arbitrary>], iteration_bounds = array<i64: 2, 3, 1>, scalar_prefetch = 0 : i64, scratch_operands = 1 : i64, tpu.core_type = #tpu.core_type<tc>, window_params = [{transform_indices = @transform_0, window_bounds = array<i64: 256, 128>}, {transform_indices = @transform_1, window_bounds = array<i64: 128, 128>}, {transform_indices = @transform_2, window_bounds = array<i64: 256, 128>}]} {
    %c0_i32 = arith.constant 0 : i32
    %0 = arith.cmpi eq, %arg2, %c0_i32 : i32
    %1 = arith.extui %0 : i1 to i32
    %c0_i32_0 = arith.constant 0 : i32
    %2 = arith.cmpi ne, %1, %c0_i32_0 : i32
    scf.if %2 {
      %cst_10 = arith.constant 0.000000e+00 : f32
      %12 = vector.broadcast %cst_10 : f32 to vector<256x128xf32>
      %c0_11 = arith.constant 0 : index
      %c0_12 = arith.constant 0 : index
      %13 = vector.load %arg6[%c0_11, %c0_12] : memref<256x128xf32, #tpu.memory_space<vmem>>, vector<256x128xf32>
      tpu.vector_store %arg6[%c0_11, %c0_12], %12 {strides = array<i32>} : memref<256x128xf32, #tpu.memory_space<vmem>>, vector<256x128xf32>,
    } else {
    }
    %c0 = arith.constant 0 : index
    %c0_1 = arith.constant 0 : index
    %3 = vector.load %arg6[%c0, %c0_1] : memref<256x128xf32, #tpu.memory_space<vmem>>, vector<256x128xf32>
    %c0_2 = arith.constant 0 : index
    %c0_3 = arith.constant 0 : index
    %4 = vector.load %arg3[%c0_2, %c0_3] : memref<256x128xf32, #tpu.memory_space<vmem>>, vector<256x128xf32>
    %c0_4 = arith.constant 0 : index
    %c0_5 = arith.constant 0 : index
    %5 = vector.load %arg4[%c0_4, %c0_5] : memref<128x128xf32, #tpu.memory_space<vmem>>, vector<128x128xf32>
    %cst = arith.constant dense<0.000000e+00> : vector<256x128xf32>
    %6 = tpu.matmul %4, %5, %cst {dimension_numbers = #tpu.dot_dimension_numbers<[1], [0], [0], [1], [0, 0, 1, 1], [], []>} : vector<256x128xf32>, vector<128x128xf32>, vector<256x128xf32> -> vector<256x128xf32>
    %7 = arith.addf %3, %6 : vector<256x128xf32>
    %c0_6 = arith.constant 0 : index
    %c0_7 = arith.constant 0 : index
    %8 = vector.load %arg6[%c0_6, %c0_7] : memref<256x128xf32, #tpu.memory_space<vmem>>, vector<256x128xf32>
    tpu.vector_store %arg6[%c0_6, %c0_7], %7 {strides = array<i32>} : memref<256x128xf32, #tpu.memory_space<vmem>>, vector<256x128xf32>,
    %c0_i32_8 = arith.constant 0 : i32
    %9 = arith.cmpi eq, %arg2, %c0_i32_8 : i32
    %10 = arith.extui %9 : i1 to i32
    %c0_i32_9 = arith.constant 0 : i32
    %11 = arith.cmpi ne, %10, %c0_i32_9 : i32
    scf.if %11 {
      %c0_10 = arith.constant 0 : index
      %c0_11 = arith.constant 0 : index
      %12 = vector.load %arg6[%c0_10, %c0_11] : memref<256x128xf32, #tpu.memory_space<vmem>>, vector<256x128xf32>
      %c0_12 = arith.constant 0 : index
      %c0_13 = arith.constant 0 : index
      %13 = vector.load %arg5[%c0_12, %c0_13] : memref<256x128xf32, #tpu.memory_space<vmem>>, vector<256x128xf32>
      tpu.vector_store %arg5[%c0_12, %c0_13], %12 {strides = array<i32>} : memref<256x128xf32, #tpu.memory_space<vmem>>, vector<256x128xf32>,
    } else {
    }
    return
  }
  func.func @transform_0(%arg0: i32, %arg1: i32, %arg2: i32) -> (i32, i32) {
    %c0_i32 = arith.constant 0 : i32
    return %arg0, %arg2 : i32, i32
  }
  func.func @transform_1(%arg0: i32, %arg1: i32, %arg2: i32) -> (i32, i32) {
    %c0_i32 = arith.constant 0 : i32
    return %arg2, %arg1 : i32, i32
  }
  func.func @transform_2(%arg0: i32, %arg1: i32, %arg2: i32) -> (i32, i32) {
    %c0_i32 = arith.constant 0 : i32
    return %arg0, %arg1 : i32, i32
  }
}

</mosaic_0001>

<llo_original>
// kernel: attention_forward.2
$region0: #{attention_forward.2}
  #allocation0 [shape = 'u32[]', space=smem, size = 0x4, offset = 0x4, fixed_abs, tag = 'smem constant byte address 0x4 - core index']
  #allocation1 [shape = 'u32[144,128]{1,0:T(1,128)}', space=vmem, size = 0x12000, scoped, tag = 'internal scratch']
  #allocation2 [shape = 'f32[256,128]{1,0:T(8,128)}', space=vmem, size = 0x20000, scoped, tag = 'scratch operand']
  %s0 = inlined_call_operand.hbm [shape: f32[512,128], index: 0, kind: input, shape index: {}]
  %s1 = inlined_call_operand.hbm [shape: f32[128,384], index: 1, kind: input, shape index: {}]
  %s2 = inlined_call_operand.vmem [shape: f32[512,384], index: 2, kind: output, shape index: {}]
  %s3 = sld [smem:[#allocation0]]
  $region91: #{attention_forward.2} parent=0
    _
  %s5 = ssub.s32 1, %s3
  %s6 = scalar_select 0, %s5, %s3
  $region1: #{attention_forward.2} parent=0
    #allocation3 [shape = 'u8[262144]{0}', space=vmem, size = 0x40000, scoped, tag = 'input window, operand 0']
    #allocation4 [shape = 's32[2]{0}', space=sflag, size = 0x8, scoped, tag = 'scoped memory for attention_forward.2']
    #allocation5 [shape = 'u8[131072]{0}', space=vmem, size = 0x20000, scoped, tag = 'input window, operand 1']
    #allocation6 [shape = 's32[2]{0}', space=sflag, size = 0x8, scoped, tag = 'scoped memory for attention_forward.2']
    #allocation7 [shape = 'u8[262144]{0}', space=vmem, size = 0x40000, scoped, tag = 'output window, operand 0']
    %7 = vsyncpa [#allocation4], 0
    %s8 = scalar_lea.sflag [#allocation4], 1
    %9 = vsyncpa %s8, 0
    %10 = vsyncpa [#allocation6], 0
    %s11 = scalar_lea.sflag [#allocation6], 1
    %12 = vsyncpa %s11, 0
    loop: start=0, step=1, limit=8
    $region2: #{attention_forward.2} parent=1 // loop_pre_header
      _
    $region3: #{attention_forward.2} parent=1 // loop_header
      %s14 = sphi 0, %s18
      %p15 = scmp.ge.s32.totalorder %s14, 8
      %s21 = sphi 0, %s40
      %s22 = sphi 0, %s36
      %s23 = sphi 0, %s32
      %s24 = sphi 0, %s21
      %s25 = sphi 0, %s22
      %s26 = sphi 0, %s23
      %s27 = sphi 0, %s24
      %s28 = sphi 0, %s25
      %s29 = sphi 0, %s26
      %s45 = sphi 0, %s47
      %s48 = sphi 0, %s45
      %s49 = sphi 0, %s48
      %s65 = sphi 0, %s49
      %s73 = sphi 0, %s75
      %s76 = sphi 0, %s73
      %s77 = sphi 0, %s76
      %s93 = sphi 0, %s77
      %s101 = sphi 0, %s103
      %s104 = sphi 0, %s101
      %s105 = sphi 0, %s104
      %s121 = sphi 0, %s105
    $region4: #{attention_forward.2} parent=1 // loop_header_branch
      %17 = sbr.rel (%p15) target = $region8
    $region5: #{attention_forward.2} parent=1 // loop_body
      %s19 = ssub.s32 %s14, 1
      %s20 = ssub.s32 %s14, 2
      %s30 = sadd.s32 1, %s23
      %p31 = scmp.ge.s32.totalorder %s30, 1
      %s32 = scalar_select %p31, 0, %s30
      %s33 = sadd.s32 1, %s22
      %s34 = scalar_select %p31, %s33, %s22
      %p35 = scmp.ge.s32.totalorder %s34, 3
      %s36 = scalar_select %p35, 0, %s34
      %s37 = sadd.s32 1, %s21
      %s38 = scalar_select %p35, %s37, %s21
      %p39 = scmp.ge.s32.totalorder %s38, 2
      %s40 = scalar_select %p39, 0, %s38
      %s41 = ssub.s32 %s21, %s40
      %s42 = ssub.s32 %s23, %s32
      %s43 = sor.u32 %s41, %s42
      %p44 = scmp.eq.s32.totalorder %s43, 0
      %s46 = sadd.s32 %s45, 1
      %s47 = scalar_select %p44, %s45, %s46
      %p50 = pneg %p44
      %p51 = scmp.eq.s32.totalorder %s14, 5
      %p52 = por %p50, %p51
      %p53 = scmp.ne.s32.totalorder %s45, %s48
      %p54 = scmp.eq.s32.totalorder %s14, 0
      %p55 = por %p53, %p54
      %p56 = scmp.ne.s32.totalorder %s45, %s48
      %p57 = scmp.eq.s32.totalorder %s19, 5
      %p58 = por %p56, %p57
      %p59 = scmp.ne.s32.totalorder %s48, %s49
      %p60 = scmp.eq.s32.totalorder %s19, 0
      %p61 = por %p59, %p60
      %p62 = scmp.ne.s32.totalorder %s48, %s49
      %p63 = scmp.eq.s32.totalorder %s20, 5
      %p64 = por %p62, %p63
      %p66 = scmp.ne.s32.totalorder %s49, %s65
      %p67 = scmp.eq.s32.totalorder %s20, 0
      %p68 = por %p66, %p67
      %s69 = ssub.s32 %s23, %s32
      %s70 = ssub.s32 %s22, %s36
      %s71 = sor.u32 %s69, %s70
      %p72 = scmp.eq.s32.totalorder %s71, 0
      %s74 = sadd.s32 %s73, 1
      %s75 = scalar_select %p72, %s73, %s74
      %p78 = pneg %p72
      %p79 = scmp.eq.s32.totalorder %s14, 5
      %p80 = por %p78, %p79
      %p81 = scmp.ne.s32.totalorder %s73, %s76
      %p82 = scmp.eq.s32.totalorder %s14, 0
      %p83 = por %p81, %p82
      %p84 = scmp.ne.s32.totalorder %s73, %s76
      %p85 = scmp.eq.s32.totalorder %s19, 5
      %p86 = por %p84, %p85
      %p87 = scmp.ne.s32.totalorder %s76, %s77
      %p88 = scmp.eq.s32.totalorder %s19, 0
      %p89 = por %p87, %p88
      %p90 = scmp.ne.s32.totalorder %s76, %s77
      %p91 = scmp.eq.s32.totalorder %s20, 5
      %p92 = por %p90, %p91
      %p94 = scmp.ne.s32.totalorder %s77, %s93
      %p95 = scmp.eq.s32.totalorder %s20, 0
      %p96 = por %p94, %p95
      %s97 = ssub.s32 %s21, %s40
      %s98 = ssub.s32 %s22, %s36
      %s99 = sor.u32 %s97, %s98
      %p100 = scmp.eq.s32.totalorder %s99, 0
      %s102 = sadd.s32 %s101, 1
      %s103 = scalar_select %p100, %s101, %s102
      %p106 = pneg %p100
      %p107 = scmp.eq.s32.totalorder %s14, 5
      %p108 = por %p106, %p107
      %p109 = scmp.ne.s32.totalorder %s101, %s104
      %p110 = scmp.eq.s32.totalorder %s14, 0
      %p111 = por %p109, %p110
      %p112 = scmp.ne.s32.totalorder %s101, %s104
      %p113 = scmp.eq.s32.totalorder %s19, 5
      %p114 = por %p112, %p113
      %p115 = scmp.ne.s32.totalorder %s104, %s105
      %p116 = scmp.eq.s32.totalorder %s19, 0
      %p117 = por %p115, %p116
      %p118 = scmp.ne.s32.totalorder %s104, %s105
      %p119 = scmp.eq.s32.totalorder %s20, 5
      %p120 = por %p118, %p119
      %p122 = scmp.ne.s32.totalorder %s105, %s121
      %p123 = scmp.eq.s32.totalorder %s20, 0
      %p124 = por %p122, %p123
      %p125 = scmp.le.s32.totalorder 1, %s14
      %p126 = scmp.lt.s32.totalorder %s14, 7
      %p127 = pnand %p125, %p126
      %p128 = pneg %p127
      // Predicated region
      $region9: #{attention_forward.2} parent=5 // pred_check
        _
      $region10: #{attention_forward.2} parent=5 // pred_check_branch
        %130 = sbr.rel (%p127) target = $region12
      $region11: #{attention_forward.2} parent=5 // pred_region
        %s131 = ssub.s32 %s14, 1
      $region12: #{attention_forward.2} parent=5 // pred_fallthru
        _
      %p132 = scmp.lt.s32.totalorder %s14, 6
      // Predicated region
      $region13: #{attention_forward.2} parent=5 // pred_check
        %p133 = pneg %p132
      $region14: #{attention_forward.2} parent=5 // pred_check_branch
        %135 = sbr.rel (%p133) target = $region16
      $region15: #{attention_forward.2} parent=5 // pred_region
        // Predicated region
        $region17: #{attention_forward.2} parent=15 // pred_check
          %p136 = pneg %p55
        $region18: #{attention_forward.2} parent=15 // pred_check_branch
          %138 = sbr.rel (%p136) target = $region20
        $region19: #{attention_forward.2} parent=15 // pred_region
          %s139 = sand.u32 %s45, 1
          %s140 = scalar_lea.sflag [#allocation4], %s139
          %s141 = sand.u32 %s45, 1
          %s142 = smul.addr %s141, 256
          %s143 = scalar_lea.vmem [#allocation3], %s142
          %s144 = smul.u32 32, %s21
          %s146 = ssub.s32 4096, 4096
          %147 = vsyncadd %s140, %s146
          %s148 = sadd.s32 %s23, %s144
          %s149 = smul.addr %s148, 128
          %s150 = scalar_lea.hbm %s0, %s149
          %s151 = sshll.u32 %s143, 4
          %s152 = int_to_ptr.vmem [resolvable:$true] %s151
          %157 = dma.hbm_to_vmem [thread:$0]  %s150, 4096, %s152, %s140, 128, 128, 8
        $region20: #{attention_forward.2} parent=15 // pred_fallthru
          _
        // Predicated region
        $region21: #{attention_forward.2} parent=15 // pred_check
          %p158 = pneg %p83
        $region22: #{attention_forward.2} parent=15 // pred_check_branch
          %160 = sbr.rel (%p158) target = $region24
        $region23: #{attention_forward.2} parent=15 // pred_region
          %s161 = sand.u32 %s73, 1
          %s162 = scalar_lea.sflag [#allocation6], %s161
          %s163 = sand.u32 %s73, 1
          %s164 = smul.addr %s163, 128
          %s165 = scalar_lea.vmem [#allocation5], %s164
          %s166 = smul.u32 16, %s23
          %s168 = ssub.s32 2048, 2048
          %169 = vsyncadd %s162, %s168
          %s170 = smul.addr %s166, 3
          %s171 = sadd.s32 %s22, %s170
          %s172 = smul.addr %s171, 128
          %s173 = scalar_lea.hbm %s1, %s172
          %s174 = sshll.u32 %s165, 4
          %s175 = int_to_ptr.vmem [resolvable:$true] %s174
          %180 = dma.hbm_to_vmem [thread:$0]  %s173, 2048, %s175, %s162, 384, 128, 8
        $region24: #{attention_forward.2} parent=15 // pred_fallthru
          _
      $region16: #{attention_forward.2} parent=5 // pred_fallthru
        _
      %p181 = scmp.le.s32.totalorder 1, %s14
      %p182 = scmp.lt.s32.totalorder %s14, 7
      %p183 = pnand %p181, %p182
      %p184 = pneg %p183
      // Predicated region
      $region25: #{attention_forward.2} parent=5 // pred_check
        _
      $region26: #{attention_forward.2} parent=5 // pred_check_branch
        %186 = sbr.rel (%p183) target = $region28
      $region27: #{attention_forward.2} parent=5 // pred_region
        %s187 = ssub.s32 %s14, 1
        %s188 = sand.u32 %s48, 1
        %s189 = scalar_lea.sflag [#allocation4], %s188
        %s190 = sand.u32 %s48, 1
        %s191 = smul.addr %s190, 256
        %s192 = scalar_lea.vmem [#allocation3], %s191
        // Predicated region
        $region29: #{attention_forward.2} parent=27 // pred_check
          %p193 = pneg %p61
        $region30: #{attention_forward.2} parent=27 // pred_check_branch
          %195 = sbr.rel (%p193) target = $region32
        $region31: #{attention_forward.2} parent=27 // pred_region
          %196 = dma.done %s189, 4096
        $region32: #{attention_forward.2} parent=27 // pred_fallthru
          _
        %s197 = sand.u32 %s76, 1
        %s198 = scalar_lea.sflag [#allocation6], %s197
        %s199 = sand.u32 %s76, 1
        %s200 = smul.addr %s199, 128
        %s201 = scalar_lea.vmem [#allocation5], %s200
        // Predicated region
        $region33: #{attention_forward.2} parent=27 // pred_check
          %p202 = pneg %p89
        $region34: #{attention_forward.2} parent=27 // pred_check_branch
          %204 = sbr.rel (%p202) target = $region36
        $region35: #{attention_forward.2} parent=27 // pred_region
          %205 = dma.done %s198, 2048
        $region36: #{attention_forward.2} parent=27 // pred_fallthru
          _
        %s206 = sand.u32 %s48, 1
        %s207 = scalar_lea.sflag [#allocation4], %s206
        %s208 = sand.u32 %s48, 1
        %s209 = smul.addr %s208, 256
        %s210 = scalar_lea.vmem [#allocation3], %s209
        %p211 = pneg %p61
        %p212 = pneg %p58
        %s213 = sand.u32 %s76, 1
        %s214 = scalar_lea.sflag [#allocation6], %s213
        %s215 = sand.u32 %s76, 1
        %s216 = smul.addr %s215, 128
        %s217 = scalar_lea.vmem [#allocation5], %s216
        %p218 = pneg %p89
        %p219 = pneg %p86
        %p220 = pneg %p117
        %p221 = pneg %p114
        %s222 = sand.u32 %s104, 1
        %s223 = sand.u32 %s104, 1
        %s224 = smul.addr %s223, 256
        %s225 = scalar_lea.vmem [#allocation7], %s224
        %s226 = smul.u32 32, %s24
        %s227 = smul.u32 16, %s26
        %s228 = smul.u32 32, %s24
        %p229 = scmp.eq.s32.totalorder %s26, 0
        // Predicated region
        $region37: #{attention_forward.2} parent=27 // pred_check
          %p230 = pneg %p229
        $region38: #{attention_forward.2} parent=27 // pred_check_branch
          %232 = sbr.rel (%p230) target = $region40
        $region39: #{attention_forward.2} parent=27 // pred_region
          %233 = vst [vmem:[#allocation2] sm:$0xff] 0.0
          %234 = vst [vmem:[#allocation2 + $0x8] sm:$0xff] 0.0
          %235 = vst [vmem:[#allocation2 + $0x10] sm:$0xff] 0.0
          %236 = vst [vmem:[#allocation2 + $0x18] sm:$0xff] 0.0
          %237 = vst [vmem:[#allocation2 + $0x20] sm:$0xff] 0.0
          %238 = vst [vmem:[#allocation2 + $0x28] sm:$0xff] 0.0
          %239 = vst [vmem:[#allocation2 + $0x30] sm:$0xff] 0.0
          %240 = vst [vmem:[#allocation2 + $0x38] sm:$0xff] 0.0
          %241 = vst [vmem:[#allocation2 + $0x40] sm:$0xff] 0.0
          %242 = vst [vmem:[#allocation2 + $0x48] sm:$0xff] 0.0
          %243 = vst [vmem:[#allocation2 + $0x50] sm:$0xff] 0.0
          %244 = vst [vmem:[#allocation2 + $0x58] sm:$0xff] 0.0
          %245 = vst [vmem:[#allocation2 + $0x60] sm:$0xff] 0.0
          %246 = vst [vmem:[#allocation2 + $0x68] sm:$0xff] 0.0
          %247 = vst [vmem:[#allocation2 + $0x70] sm:$0xff] 0.0
          %248 = vst [vmem:[#allocation2 + $0x78] sm:$0xff] 0.0
          %249 = vst [vmem:[#allocation2 + $0x80] sm:$0xff] 0.0
          %250 = vst [vmem:[#allocation2 + $0x88] sm:$0xff] 0.0
          %251 = vst [vmem:[#allocation2 + $0x90] sm:$0xff] 0.0
          %252 = vst [vmem:[#allocation2 + $0x98] sm:$0xff] 0.0
          %253 = vst [vmem:[#allocation2 + $0xa0] sm:$0xff] 0.0
          %254 = vst [vmem:[#allocation2 + $0xa8] sm:$0xff] 0.0
          %255 = vst [vmem:[#allocation2 + $0xb0] sm:$0xff] 0.0
          %256 = vst [vmem:[#allocation2 + $0xb8] sm:$0xff] 0.0
          %257 = vst [vmem:[#allocation2 + $0xc0] sm:$0xff] 0.0
          %258 = vst [vmem:[#allocation2 + $0xc8] sm:$0xff] 0.0
          %259 = vst [vmem:[#allocation2 + $0xd0] sm:$0xff] 0.0
          %260 = vst [vmem:[#allocation2 + $0xd8] sm:$0xff] 0.0
          %261 = vst [vmem:[#allocation2 + $0xe0] sm:$0xff] 0.0
          %262 = vst [vmem:[#allocation2 + $0xe8] sm:$0xff] 0.0
          %263 = vst [vmem:[#allocation2 + $0xf0] sm:$0xff] 0.0
          %264 = vst [vmem:[#allocation2 + $0xf8] sm:$0xff] 0.0
        $region40: #{attention_forward.2} parent=27 // pred_fallthru
          _
        %v265 = vld [vmem:[#allocation2] sm:$0xff]
        %v266 = vld [vmem:[#allocation2 + $0x8] sm:$0xff]
        %v267 = vld [vmem:[#allocation2 + $0x10] sm:$0xff]
        %v268 = vld [vmem:[#allocation2 + $0x18] sm:$0xff]
        %v269 = vld [vmem:[#allocation2 + $0x20] sm:$0xff]
        %v270 = vld [vmem:[#allocation2 + $0x28] sm:$0xff]
        %v271 = vld [vmem:[#allocation2 + $0x30] sm:$0xff]
        %v272 = vld [vmem:[#allocation2 + $0x38] sm:$0xff]
        %v273 = vld [vmem:[#allocation2 + $0x40] sm:$0xff]
        %v274 = vld [vmem:[#allocation2 + $0x48] sm:$0xff]
        %v275 = vld [vmem:[#allocation2 + $0x50] sm:$0xff]
        %v276 = vld [vmem:[#allocation2 + $0x58] sm:$0xff]
        %v277 = vld [vmem:[#allocation2 + $0x60] sm:$0xff]
        %v278 = vld [vmem:[#allocation2 + $0x68] sm:$0xff]
        %v279 = vld [vmem:[#allocation2 + $0x70] sm:$0xff]
        %v280 = vld [vmem:[#allocation2 + $0x78] sm:$0xff]
        %v281 = vld [vmem:[#allocation2 + $0x80] sm:$0xff]
        %v282 = vld [vmem:[#allocation2 + $0x88] sm:$0xff]
        %v283 = vld [vmem:[#allocation2 + $0x90] sm:$0xff]
        %v284 = vld [vmem:[#allocation2 + $0x98] sm:$0xff]
        %v285 = vld [vmem:[#allocation2 + $0xa0] sm:$0xff]
        %v286 = vld [vmem:[#allocation2 + $0xa8] sm:$0xff]
        %v287 = vld [vmem:[#allocation2 + $0xb0] sm:$0xff]
        %v288 = vld [vmem:[#allocation2 + $0xb8] sm:$0xff]
        %v289 = vld [vmem:[#allocation2 + $0xc0] sm:$0xff]
        %v290 = vld [vmem:[#allocation2 + $0xc8] sm:$0xff]
        %v291 = vld [vmem:[#allocation2 + $0xd0] sm:$0xff]
        %v292 = vld [vmem:[#allocation2 + $0xd8] sm:$0xff]
        %v293 = vld [vmem:[#allocation2 + $0xe0] sm:$0xff]
        %v294 = vld [vmem:[#allocation2 + $0xe8] sm:$0xff]
        %v295 = vld [vmem:[#allocation2 + $0xf0] sm:$0xff]
        %v296 = vld [vmem:[#allocation2 + $0xf8] sm:$0xff]
        %v297 = vld [vmem:[%s192] sm:$0xff]
        %v298 = vld [vmem:[%s192 + $0x8] sm:$0xff]
        %v299 = vld [vmem:[%s192 + $0x10] sm:$0xff]
        %v300 = vld [vmem:[%s192 + $0x18] sm:$0xff]
        %v301 = vld [vmem:[%s192 + $0x20] sm:$0xff]
        %v302 = vld [vmem:[%s192 + $0x28] sm:$0xff]
        %v303 = vld [vmem:[%s192 + $0x30] sm:$0xff]
        %v304 = vld [vmem:[%s192 + $0x38] sm:$0xff]
        %v305 = vld [vmem:[%s192 + $0x40] sm:$0xff]
        %v306 = vld [vmem:[%s192 + $0x48] sm:$0xff]
        %v307 = vld [vmem:[%s192 + $0x50] sm:$0xff]
        %v308 = vld [vmem:[%s192 + $0x58] sm:$0xff]
        %v309 = vld [vmem:[%s192 + $0x60] sm:$0xff]
        %v310 = vld [vmem:[%s192 + $0x68] sm:$0xff]
        %v311 = vld [vmem:[%s192 + $0x70] sm:$0xff]
        %v312 = vld [vmem:[%s192 + $0x78] sm:$0xff]
        %v313 = vld [vmem:[%s192 + $0x80] sm:$0xff]
        %v314 = vld [vmem:[%s192 + $0x88] sm:$0xff]
        %v315 = vld [vmem:[%s192 + $0x90] sm:$0xff]
        %v316 = vld [vmem:[%s192 + $0x98] sm:$0xff]
        %v317 = vld [vmem:[%s192 + $0xa0] sm:$0xff]
        %v318 = vld [vmem:[%s192 + $0xa8] sm:$0xff]
        %v319 = vld [vmem:[%s192 + $0xb0] sm:$0xff]
        %v320 = vld [vmem:[%s192 + $0xb8] sm:$0xff]
        %v321 = vld [vmem:[%s192 + $0xc0] sm:$0xff]
        %v322 = vld [vmem:[%s192 + $0xc8] sm:$0xff]
        %v323 = vld [vmem:[%s192 + $0xd0] sm:$0xff]
        %v324 = vld [vmem:[%s192 + $0xd8] sm:$0xff]
        %v325 = vld [vmem:[%s192 + $0xe0] sm:$0xff]
        %v326 = vld [vmem:[%s192 + $0xe8] sm:$0xff]
        %v327 = vld [vmem:[%s192 + $0xf0] sm:$0xff]
        %v328 = vld [vmem:[%s192 + $0xf8] sm:$0xff]
        %v329 = vld [vmem:[%s201] sm:$0xff]
        %v330 = vld [vmem:[%s201 + $0x8] sm:$0xff]
        %v331 = vld [vmem:[%s201 + $0x10] sm:$0xff]
        %v332 = vld [vmem:[%s201 + $0x18] sm:$0xff]
        %v333 = vld [vmem:[%s201 + $0x20] sm:$0xff]
        %v334 = vld [vmem:[%s201 + $0x28] sm:$0xff]
        %v335 = vld [vmem:[%s201 + $0x30] sm:$0xff]
        %v336 = vld [vmem:[%s201 + $0x38] sm:$0xff]
        %v337 = vld [vmem:[%s201 + $0x40] sm:$0xff]
        %v338 = vld [vmem:[%s201 + $0x48] sm:$0xff]
        %v339 = vld [vmem:[%s201 + $0x50] sm:$0xff]
        %v340 = vld [vmem:[%s201 + $0x58] sm:$0xff]
        %v341 = vld [vmem:[%s201 + $0x60] sm:$0xff]
        %v342 = vld [vmem:[%s201 + $0x68] sm:$0xff]
        %v343 = vld [vmem:[%s201 + $0x70] sm:$0xff]
        %v344 = vld [vmem:[%s201 + $0x78] sm:$0xff]
        %345 = vmatprep.subr.mxu0 0.0
        %346 = vmatpush1.msra.mxu0 %v329
        %347 = vmatprep.subr.mxu0 0.0
        %348 = vmatpush1.msra.mxu0 %v330
        %349 = vmatprep.subr.mxu0 0.0
        %350 = vmatpush1.msra.mxu0 %v331
        %351 = vmatprep.subr.mxu0 0.0
        %352 = vmatpush1.msra.mxu0 %v332
        %353 = vmatprep.subr.mxu0 0.0
        %354 = vmatpush1.msra.mxu0 %v333
        %355 = vmatprep.subr.mxu0 0.0
        %356 = vmatpush1.msra.mxu0 %v334
        %357 = vmatprep.subr.mxu0 0.0
        %358 = vmatpush1.msra.mxu0 %v335
        %359 = vmatprep.subr.mxu0 0.0
        %360 = vmatpush1.msra.mxu0 %v336
        %361 = vmatprep.subr.mxu0 0.0
        %362 = vmatpush1.msra.mxu0 %v337
        %363 = vmatprep.subr.mxu0 0.0
        %364 = vmatpush1.msra.mxu0 %v338
        %365 = vmatprep.subr.mxu0 0.0
        %366 = vmatpush1.msra.mxu0 %v339
        %367 = vmatprep.subr.mxu0 0.0
        %368 = vmatpush1.msra.mxu0 %v340
        %369 = vmatprep.subr.mxu0 0.0
        %370 = vmatpush1.msra.mxu0 %v341
        %371 = vmatprep.subr.mxu0 0.0
        %372 = vmatpush1.msra.mxu0 %v342
        %373 = vmatprep.subr.mxu0 0.0
        %374 = vmatpush1.msra.mxu0 %v343
        %375 = vmatprep.subr.mxu0 0.0
        %376 = vmatpush1.msra.mxu0 %v344
        %377 = vmatprep.subr.mxu0 0.0
        %378 = vmatpush1.msra.mxu0 0.0
        %379 = vmatprep.subr.mxu0 0.0
        %380 = vmatpush1.msra.mxu0 0.0
        %381 = vmatprep.subr.mxu0 0.0
        %382 = vmatpush1.msra.mxu0 0.0
        %383 = vmatprep.subr.mxu0 0.0
        %384 = vmatpush1.msra.mxu0 0.0
        %385 = vmatprep.subr.mxu0 0.0
        %386 = vmatpush1.msra.mxu0 0.0
        %387 = vmatprep.subr.mxu0 0.0
        %388 = vmatpush1.msra.mxu0 0.0
        %389 = vmatprep.subr.mxu0 0.0
        %390 = vmatpush1.msra.mxu0 0.0
        %391 = vmatprep.subr.mxu0 0.0
        %392 = vmatpush1.msra.mxu0 0.0
        %393 = vmatprep.subr.mxu0 0.0
        %394 = vmatpush1.msra.mxu0 0.0
        %395 = vmatprep.subr.mxu0 0.0
        %396 = vmatpush1.msra.mxu0 0.0
        %397 = vmatprep.subr.mxu0 0.0
        %398 = vmatpush1.msra.mxu0 0.0
        %399 = vmatprep.subr.mxu0 0.0
        %400 = vmatpush1.msra.mxu0 0.0
        %401 = vmatprep.subr.mxu0 0.0
        %402 = vmatpush1.msra.mxu0 0.0
        %403 = vmatprep.subr.mxu0 0.0
        %404 = vmatpush1.msra.mxu0 0.0
        %405 = vmatprep.subr.mxu0 0.0
        %406 = vmatpush1.msra.mxu0 0.0
        %407 = vmatprep.subr.mxu0 0.0
        %408 = vmatpush1.msra.mxu0 0.0
        %409 = vmatprep.mubr.f32.mxu0 0.0
        %410 = vmatmul.mubr.f32.gmra.mrb[0].mxu0 %v297
        %v411 = vpop.f32.mrb[0].mxu0
        %v412 = vadd.f32 0.0, %v411
        %v413 = vpop.f32.mrb[0].mxu0
        %414 = vmatprep.mubr.f32.mxu0 0.0
        %415 = vmatmul.mubr.f32.gmra.mrb[0].mxu0 %v298
        %v416 = vpop.f32.mrb[0].mxu0
        %v417 = vadd.f32 0.0, %v416
        %v418 = vpop.f32.mrb[0].mxu0
        %419 = vmatprep.mubr.f32.mxu0 0.0
        %420 = vmatmul.mubr.f32.gmra.mrb[0].mxu0 %v299
        %v421 = vpop.f32.mrb[0].mxu0
        %v422 = vadd.f32 0.0, %v421
        %v423 = vpop.f32.mrb[0].mxu0
        %424 = vmatprep.mubr.f32.mxu0 0.0
        %425 = vmatmul.mubr.f32.gmra.mrb[0].mxu0 %v300
        %v426 = vpop.f32.mrb[0].mxu0
        %v427 = vadd.f32 0.0, %v426
        %v428 = vpop.f32.mrb[0].mxu0
        %429 = vmatprep.mubr.f32.mxu0 0.0
        %430 = vmatmul.mubr.f32.gmra.mrb[0].mxu0 %v301
        %v431 = vpop.f32.mrb[0].mxu0
        %v432 = vadd.f32 0.0, %v431
        %v433 = vpop.f32.mrb[0].mxu0
        %434 = vmatprep.mubr.f32.mxu0 0.0
        %435 = vmatmul.mubr.f32.gmra.mrb[0].mxu0 %v302
        %v436 = vpop.f32.mrb[0].mxu0
        %v437 = vadd.f32 0.0, %v436
        %v438 = vpop.f32.mrb[0].mxu0
        %439 = vmatprep.mubr.f32.mxu0 0.0
        %440 = vmatmul.mubr.f32.gmra.mrb[0].mxu0 %v303
        %v441 = vpop.f32.mrb[0].mxu0
        %v442 = vadd.f32 0.0, %v441
        %v443 = vpop.f32.mrb[0].mxu0
        %444 = vmatprep.mubr.f32.mxu0 0.0
        %445 = vmatmul.mubr.f32.gmra.mrb[0].mxu0 %v304
        %v446 = vpop.f32.mrb[0].mxu0
        %v447 = vadd.f32 0.0, %v446
        %v448 = vpop.f32.mrb[0].mxu0
        %449 = vmatprep.mubr.f32.mxu0 0.0
        %450 = vmatmul.mubr.f32.gmra.mrb[0].mxu0 %v305
        %v451 = vpop.f32.mrb[0].mxu0
        %v452 = vadd.f32 0.0, %v451
        %v453 = vpop.f32.mrb[0].mxu0
        %454 = vmatprep.mubr.f32.mxu0 0.0
        %455 = vmatmul.mubr.f32.gmra.mrb[0].mxu0 %v306
        %v456 = vpop.f32.mrb[0].mxu0
        %v457 = vadd.f32 0.0, %v456
        %v458 = vpop.f32.mrb[0].mxu0
        %459 = vmatprep.mubr.f32.mxu0 0.0
        %460 = vmatmul.mubr.f32.gmra.mrb[0].mxu0 %v307
        %v461 = vpop.f32.mrb[0].mxu0
        %v462 = vadd.f32 0.0, %v461
        %v463 = vpop.f32.mrb[0].mxu0
        %464 = vmatprep.mubr.f32.mxu0 0.0
        %465 = vmatmul.mubr.f32.gmra.mrb[0].mxu0 %v308
        %v466 = vpop.f32.mrb[0].mxu0
        %v467 = vadd.f32 0.0, %v466
        %v468 = vpop.f32.mrb[0].mxu0
        %469 = vmatprep.mubr.f32.mxu0 0.0
        %470 = vmatmul.mubr.f32.gmra.mrb[0].mxu0 %v309
        %v471 = vpop.f32.mrb[0].mxu0
        %v472 = vadd.f32 0.0, %v471
        %v473 = vpop.f32.mrb[0].mxu0
        %474 = vmatprep.mubr.f32.mxu0 0.0
        %475 = vmatmul.mubr.f32.gmra.mrb[0].mxu0 %v310
        %v476 = vpop.f32.mrb[0].mxu0
        %v477 = vadd.f32 0.0, %v476
        %v478 = vpop.f32.mrb[0].mxu0
        %479 = vmatprep.mubr.f32.mxu0 0.0
        %480 = vmatmul.mubr.f32.gmra.mrb[0].mxu0 %v311
        %v481 = vpop.f32.mrb[0].mxu0
        %v482 = vadd.f32 0.0, %v481
        %v483 = vpop.f32.mrb[0].mxu0
        %484 = vmatprep.mubr.f32.mxu0 0.0
        %485 = vmatmul.mubr.f32.gmra.mrb[0].mxu0 %v312
        %v486 = vpop.f32.mrb[0].mxu0
        %v487 = vadd.f32 0.0, %v486
        %v488 = vpop.f32.mrb[0].mxu0
        %489 = vmatprep.mubr.f32.mxu0 0.0
        %490 = vmatmul.mubr.f32.gmra.mrb[0].mxu0 %v313
        %v491 = vpop.f32.mrb[0].mxu0
        %v492 = vadd.f32 0.0, %v491
        %v493 = vpop.f32.mrb[0].mxu0
        %494 = vmatprep.mubr.f32.mxu0 0.0
        %495 = vmatmul.mubr.f32.gmra.mrb[0].mxu0 %v314
        %v496 = vpop.f32.mrb[0].mxu0
        %v497 = vadd.f32 0.0, %v496
        %v498 = vpop.f32.mrb[0].mxu0
        %499 = vmatprep.mubr.f32.mxu0 0.0
        %500 = vmatmul.mubr.f32.gmra.mrb[0].mxu0 %v315
        %v501 = vpop.f32.mrb[0].mxu0
        %v502 = vadd.f32 0.0, %v501
        %v503 = vpop.f32.mrb[0].mxu0
        %504 = vmatprep.mubr.f32.mxu0 0.0
        %505 = vmatmul.mubr.f32.gmra.mrb[0].mxu0 %v316
        %v506 = vpop.f32.mrb[0].mxu0
        %v507 = vadd.f32 0.0, %v506
        %v508 = vpop.f32.mrb[0].mxu0
        %509 = vmatprep.mubr.f32.mxu0 0.0
        %510 = vmatmul.mubr.f32.gmra.mrb[0].mxu0 %v317
        %v511 = vpop.f32.mrb[0].mxu0
        %v512 = vadd.f32 0.0, %v511
        %v513 = vpop.f32.mrb[0].mxu0
        %514 = vmatprep.mubr.f32.mxu0 0.0
        %515 = vmatmul.mubr.f32.gmra.mrb[0].mxu0 %v318
        %v516 = vpop.f32.mrb[0].mxu0
        %v517 = vadd.f32 0.0, %v516
        %v518 = vpop.f32.mrb[0].mxu0
        %519 = vmatprep.mubr.f32.mxu0 0.0
        %520 = vmatmul.mubr.f32.gmra.mrb[0].mxu0 %v319
        %v521 = vpop.f32.mrb[0].mxu0
        %v522 = vadd.f32 0.0, %v521
        %v523 = vpop.f32.mrb[0].mxu0
        %524 = vmatprep.mubr.f32.mxu0 0.0
        %525 = vmatmul.mubr.f32.gmra.mrb[0].mxu0 %v320
        %v526 = vpop.f32.mrb[0].mxu0
        %v527 = vadd.f32 0.0, %v526
        %v528 = vpop.f32.mrb[0].mxu0
        %529 = vmatprep.mubr.f32.mxu0 0.0
        %530 = vmatmul.mubr.f32.gmra.mrb[0].mxu0 %v321
        %v531 = vpop.f32.mrb[0].mxu0
        %v532 = vadd.f32 0.0, %v531
        %v533 = vpop.f32.mrb[0].mxu0
        %534 = vmatprep.mubr.f32.mxu0 0.0
        %535 = vmatmul.mubr.f32.gmra.mrb[0].mxu0 %v322
        %v536 = vpop.f32.mrb[0].mxu0
        %v537 = vadd.f32 0.0, %v536
        %v538 = vpop.f32.mrb[0].mxu0
        %539 = vmatprep.mubr.f32.mxu0 0.0
        %540 = vmatmul.mubr.f32.gmra.mrb[0].mxu0 %v323
        %v541 = vpop.f32.mrb[0].mxu0
        %v542 = vadd.f32 0.0, %v541
        %v543 = vpop.f32.mrb[0].mxu0
        %544 = vmatprep.mubr.f32.mxu0 0.0
        %545 = vmatmul.mubr.f32.gmra.mrb[0].mxu0 %v324
        %v546 = vpop.f32.mrb[0].mxu0
        %v547 = vadd.f32 0.0, %v546
        %v548 = vpop.f32.mrb[0].mxu0
        %549 = vmatprep.mubr.f32.mxu0 0.0
        %550 = vmatmul.mubr.f32.gmra.mrb[0].mxu0 %v325
        %v551 = vpop.f32.mrb[0].mxu0
        %v552 = vadd.f32 0.0, %v551
        %v553 = vpop.f32.mrb[0].mxu0
        %554 = vmatprep.mubr.f32.mxu0 0.0
        %555 = vmatmul.mubr.f32.gmra.mrb[0].mxu0 %v326
        %v556 = vpop.f32.mrb[0].mxu0
        %v557 = vadd.f32 0.0, %v556
        %v558 = vpop.f32.mrb[0].mxu0
        %559 = vmatprep.mubr.f32.mxu0 0.0
        %560 = vmatmul.mubr.f32.gmra.mrb[0].mxu0 %v327
        %v561 = vpop.f32.mrb[0].mxu0
        %v562 = vadd.f32 0.0, %v561
        %v563 = vpop.f32.mrb[0].mxu0
        %564 = vmatprep.mubr.f32.mxu0 0.0
        %565 = vmatmul.mubr.f32.gmra.mrb[0].mxu0 %v328
        %v566 = vpop.f32.mrb[0].mxu0
        %v567 = vadd.f32 0.0, %v566
        %v568 = vpop.f32.mrb[0].mxu0
        %569 = vdwg.mxu0
        %v570 = vadd.f32 %v265, %v412
        %v571 = vadd.f32 %v266, %v417
        %v572 = vadd.f32 %v267, %v422
        %v573 = vadd.f32 %v268, %v427
        %v574 = vadd.f32 %v269, %v432
        %v575 = vadd.f32 %v270, %v437
        %v576 = vadd.f32 %v271, %v442
        %v577 = vadd.f32 %v272, %v447
        %v578 = vadd.f32 %v273, %v452
        %v579 = vadd.f32 %v274, %v457
        %v580 = vadd.f32 %v275, %v462
        %v581 = vadd.f32 %v276, %v467
        %v582 = vadd.f32 %v277, %v472
        %v583 = vadd.f32 %v278, %v477
        %v584 = vadd.f32 %v279, %v482
        %v585 = vadd.f32 %v280, %v487
        %v586 = vadd.f32 %v281, %v492
        %v587 = vadd.f32 %v282, %v497
        %v588 = vadd.f32 %v283, %v502
        %v589 = vadd.f32 %v284, %v507
        %v590 = vadd.f32 %v285, %v512
        %v591 = vadd.f32 %v286, %v517
        %v592 = vadd.f32 %v287, %v522
        %v593 = vadd.f32 %v288, %v527
        %v594 = vadd.f32 %v289, %v532
        %v595 = vadd.f32 %v290, %v537
        %v596 = vadd.f32 %v291, %v542
        %v597 = vadd.f32 %v292, %v547
        %v598 = vadd.f32 %v293, %v552
        %v599 = vadd.f32 %v294, %v557
        %v600 = vadd.f32 %v295, %v562
        %v601 = vadd.f32 %v296, %v567
        %602 = vst [vmem:[#allocation2] sm:$0xff] %v570
        %603 = vst [vmem:[#allocation2 + $0x8] sm:$0xff] %v571
        %604 = vst [vmem:[#allocation2 + $0x10] sm:$0xff] %v572
        %605 = vst [vmem:[#allocation2 + $0x18] sm:$0xff] %v573
        %606 = vst [vmem:[#allocation2 + $0x20] sm:$0xff] %v574
        %607 = vst [vmem:[#allocation2 + $0x28] sm:$0xff] %v575
        %608 = vst [vmem:[#allocation2 + $0x30] sm:$0xff] %v576
        %609 = vst [vmem:[#allocation2 + $0x38] sm:$0xff] %v577
        %610 = vst [vmem:[#allocation2 + $0x40] sm:$0xff] %v578
        %611 = vst [vmem:[#allocation2 + $0x48] sm:$0xff] %v579
        %612 = vst [vmem:[#allocation2 + $0x50] sm:$0xff] %v580
        %613 = vst [vmem:[#allocation2 + $0x58] sm:$0xff] %v581
        %614 = vst [vmem:[#allocation2 + $0x60] sm:$0xff] %v582
        %615 = vst [vmem:[#allocation2 + $0x68] sm:$0xff] %v583
        %616 = vst [vmem:[#allocation2 + $0x70] sm:$0xff] %v584
        %617 = vst [vmem:[#allocation2 + $0x78] sm:$0xff] %v585
        %618 = vst [vmem:[#allocation2 + $0x80] sm:$0xff] %v586
        %619 = vst [vmem:[#allocation2 + $0x88] sm:$0xff] %v587
        %620 = vst [vmem:[#allocation2 + $0x90] sm:$0xff] %v588
        %621 = vst [vmem:[#allocation2 + $0x98] sm:$0xff] %v589
        %622 = vst [vmem:[#allocation2 + $0xa0] sm:$0xff] %v590
        %623 = vst [vmem:[#allocation2 + $0xa8] sm:$0xff] %v591
        %624 = vst [vmem:[#allocation2 + $0xb0] sm:$0xff] %v592
        %625 = vst [vmem:[#allocation2 + $0xb8] sm:$0xff] %v593
        %626 = vst [vmem:[#allocation2 + $0xc0] sm:$0xff] %v594
        %627 = vst [vmem:[#allocation2 + $0xc8] sm:$0xff] %v595
        %628 = vst [vmem:[#allocation2 + $0xd0] sm:$0xff] %v596
        %629 = vst [vmem:[#allocation2 + $0xd8] sm:$0xff] %v597
        %630 = vst [vmem:[#allocation2 + $0xe0] sm:$0xff] %v598
        %631 = vst [vmem:[#allocation2 + $0xe8] sm:$0xff] %v599
        %632 = vst [vmem:[#allocation2 + $0xf0] sm:$0xff] %v600
        %633 = vst [vmem:[#allocation2 + $0xf8] sm:$0xff] %v601
        // Predicated region
        $region41: #{attention_forward.2} parent=27 // pred_check
          %p634 = pneg %p229
        $region42: #{attention_forward.2} parent=27 // pred_check_branch
          %636 = sbr.rel (%p634) target = $region44
        $region43: #{attention_forward.2} parent=27 // pred_region
          %v637 = vld [vmem:[#allocation2] sm:$0xff]
          %v638 = vld [vmem:[#allocation2 + $0x8] sm:$0xff]
          %v639 = vld [vmem:[#allocation2 + $0x10] sm:$0xff]
          %v640 = vld [vmem:[#allocation2 + $0x18] sm:$0xff]
          %v641 = vld [vmem:[#allocation2 + $0x20] sm:$0xff]
          %v642 = vld [vmem:[#allocation2 + $0x28] sm:$0xff]
          %v643 = vld [vmem:[#allocation2 + $0x30] sm:$0xff]
          %v644 = vld [vmem:[#allocation2 + $0x38] sm:$0xff]
          %v645 = vld [vmem:[#allocation2 + $0x40] sm:$0xff]
          %v646 = vld [vmem:[#allocation2 + $0x48] sm:$0xff]
          %v647 = vld [vmem:[#allocation2 + $0x50] sm:$0xff]
          %v648 = vld [vmem:[#allocation2 + $0x58] sm:$0xff]
          %v649 = vld [vmem:[#allocation2 + $0x60] sm:$0xff]
          %v650 = vld [vmem:[#allocation2 + $0x68] sm:$0xff]
          %v651 = vld [vmem:[#allocation2 + $0x70] sm:$0xff]
          %v652 = vld [vmem:[#allocation2 + $0x78] sm:$0xff]
          %v653 = vld [vmem:[#allocation2 + $0x80] sm:$0xff]
          %v654 = vld [vmem:[#allocation2 + $0x88] sm:$0xff]
          %v655 = vld [vmem:[#allocation2 + $0x90] sm:$0xff]
          %v656 = vld [vmem:[#allocation2 + $0x98] sm:$0xff]
          %v657 = vld [vmem:[#allocation2 + $0xa0] sm:$0xff]
          %v658 = vld [vmem:[#allocation2 + $0xa8] sm:$0xff]
          %v659 = vld [vmem:[#allocation2 + $0xb0] sm:$0xff]
          %v660 = vld [vmem:[#allocation2 + $0xb8] sm:$0xff]
          %v661 = vld [vmem:[#allocation2 + $0xc0] sm:$0xff]
          %v662 = vld [vmem:[#allocation2 + $0xc8] sm:$0xff]
          %v663 = vld [vmem:[#allocation2 + $0xd0] sm:$0xff]
          %v664 = vld [vmem:[#allocation2 + $0xd8] sm:$0xff]
          %v665 = vld [vmem:[#allocation2 + $0xe0] sm:$0xff]
          %v666 = vld [vmem:[#allocation2 + $0xe8] sm:$0xff]
          %v667 = vld [vmem:[#allocation2 + $0xf0] sm:$0xff]
          %v668 = vld [vmem:[#allocation2 + $0xf8] sm:$0xff]
          %669 = vst [vmem:[%s225] sm:$0xff] %v637
          %670 = vst [vmem:[%s225 + $0x8] sm:$0xff] %v638
          %671 = vst [vmem:[%s225 + $0x10] sm:$0xff] %v639
          %672 = vst [vmem:[%s225 + $0x18] sm:$0xff] %v640
          %673 = vst [vmem:[%s225 + $0x20] sm:$0xff] %v641
          %674 = vst [vmem:[%s225 + $0x28] sm:$0xff] %v642
          %675 = vst [vmem:[%s225 + $0x30] sm:$0xff] %v643
          %676 = vst [vmem:[%s225 + $0x38] sm:$0xff] %v644
          %677 = vst [vmem:[%s225 + $0x40] sm:$0xff] %v645
          %678 = vst [vmem:[%s225 + $0x48] sm:$0xff] %v646
          %679 = vst [vmem:[%s225 + $0x50] sm:$0xff] %v647
          %680 = vst [vmem:[%s225 + $0x58] sm:$0xff] %v648
          %681 = vst [vmem:[%s225 + $0x60] sm:$0xff] %v649
          %682 = vst [vmem:[%s225 + $0x68] sm:$0xff] %v650
          %683 = vst [vmem:[%s225 + $0x70] sm:$0xff] %v651
          %684 = vst [vmem:[%s225 + $0x78] sm:$0xff] %v652
          %685 = vst [vmem:[%s225 + $0x80] sm:$0xff] %v653
          %686 = vst [vmem:[%s225 + $0x88] sm:$0xff] %v654
          %687 = vst [vmem:[%s225 + $0x90] sm:$0xff] %v655
          %688 = vst [vmem:[%s225 + $0x98] sm:$0xff] %v656
          %689 = vst [vmem:[%s225 + $0xa0] sm:$0xff] %v657
          %690 = vst [vmem:[%s225 + $0xa8] sm:$0xff] %v658
          %691 = vst [vmem:[%s225 + $0xb0] sm:$0xff] %v659
          %692 = vst [vmem:[%s225 + $0xb8] sm:$0xff] %v660
          %693 = vst [vmem:[%s225 + $0xc0] sm:$0xff] %v661
          %694 = vst [vmem:[%s225 + $0xc8] sm:$0xff] %v662
          %695 = vst [vmem:[%s225 + $0xd0] sm:$0xff] %v663
          %696 = vst [vmem:[%s225 + $0xd8] sm:$0xff] %v664
          %697 = vst [vmem:[%s225 + $0xe0] sm:$0xff] %v665
          %698 = vst [vmem:[%s225 + $0xe8] sm:$0xff] %v666
          %699 = vst [vmem:[%s225 + $0xf0] sm:$0xff] %v667
          %700 = vst [vmem:[%s225 + $0xf8] sm:$0xff] %v668
        $region44: #{attention_forward.2} parent=27 // pred_fallthru
          _
        %s701 = sand.u32 %s104, 1
        %s702 = sand.u32 %s104, 1
        %s703 = smul.addr %s702, 256
        %s704 = scalar_lea.vmem [#allocation7], %s703
        // Predicated region
        $region45: #{attention_forward.2} parent=27 // pred_check
          %p705 = pneg %p114
        $region46: #{attention_forward.2} parent=27 // pred_check_branch
          %707 = sbr.rel (%p705) target = $region48
        $region47: #{attention_forward.2} parent=27 // pred_region
          %s708 = smul.u32 32, %s24
          %s709 = smul.addr %s708, 3
          %s710 = sadd.s32 %s25, %s709
          %s711 = smul.addr %s710, 8
          %s712 = scalar_lea.vmem %s2, %s711
          // Predicated region
          $region49: #{attention_forward.2} parent=47 // pred_check
            _
          $region50: #{attention_forward.2} parent=47 // pred_check_branch
            %714 = sbr.rel (0) target = $region52
          $region51: #{attention_forward.2} parent=47 // pred_region
            // Predicated region
            $region53: #{attention_forward.2} parent=51 // pred_check
              _
            $region54: #{attention_forward.2} parent=51 // pred_check_branch
              %716 = sbr.rel (0) target = $region56
            $region55: #{attention_forward.2} parent=51 // pred_region
              // Predicated region
              $region68: #{attention_forward.2} parent=55 // pred_check
                _
              $region69: #{attention_forward.2} parent=55 // pred_check_branch
                %793 = sbr.rel (0) target = $region71
              $region70: #{attention_forward.2} parent=55 // pred_region
                loop: start=0, step=1, limit=1
                $region72: #{attention_forward.2} parent=70 // loop_pre_header
                  _
                $region73: #{attention_forward.2} parent=70 // loop_header
                  %s795 = sphi 0, %s799
                  %p796 = scmp.ge.s32.totalorder %s795, 1
                  %s800 = sphi %s704, %s704
                  %s801 = sphi %s712, %s712
                $region74: #{attention_forward.2} parent=70 // loop_header_branch
                  %798 = sbr.rel (%p796) target = $region78
                $region75: #{attention_forward.2} parent=70 // loop_body
                  %v802 = vld [vmem:[%s800] sm:$0xff]
                  %803 = vst [vmem:[%s801] sm:$0xff] %v802
                  %v804 = vld [vmem:[%s800 + $0x8] sm:$0xff]
                  %805 = vst [vmem:[%s801 + $0x18] sm:$0xff] %v804
                  %v806 = vld [vmem:[%s800 + $0x10] sm:$0xff]
                  %807 = vst [vmem:[%s801 + $0x30] sm:$0xff] %v806
                  %v808 = vld [vmem:[%s800 + $0x18] sm:$0xff]
                  %809 = vst [vmem:[%s801 + $0x48] sm:$0xff] %v808
                  %v810 = vld [vmem:[%s800 + $0x20] sm:$0xff]
                  %811 = vst [vmem:[%s801 + $0x60] sm:$0xff] %v810
                  %v812 = vld [vmem:[%s800 + $0x28] sm:$0xff]
                  %813 = vst [vmem:[%s801 + $0x78] sm:$0xff] %v812
                  %v814 = vld [vmem:[%s800 + $0x30] sm:$0xff]
                  %815 = vst [vmem:[%s801 + $0x90] sm:$0xff] %v814
                  %v816 = vld [vmem:[%s800 + $0x38] sm:$0xff]
                  %817 = vst [vmem:[%s801 + $0xa8] sm:$0xff] %v816
                  %v818 = vld [vmem:[%s800 + $0x40] sm:$0xff]
                  %819 = vst [vmem:[%s801 + $0xc0] sm:$0xff] %v818
                  %v820 = vld [vmem:[%s800 + $0x48] sm:$0xff]
                  %821 = vst [vmem:[%s801 + $0xd8] sm:$0xff] %v820
                  %v822 = vld [vmem:[%s800 + $0x50] sm:$0xff]
                  %823 = vst [vmem:[%s801 + $0xf0] sm:$0xff] %v822
                  %v824 = vld [vmem:[%s800 + $0x58] sm:$0xff]
                  %825 = vst [vmem:[%s801 + $0x108] sm:$0xff] %v824
                  %v826 = vld [vmem:[%s800 + $0x60] sm:$0xff]
                  %827 = vst [vmem:[%s801 + $0x120] sm:$0xff] %v826
                  %v828 = vld [vmem:[%s800 + $0x68] sm:$0xff]
                  %829 = vst [vmem:[%s801 + $0x138] sm:$0xff] %v828
                  %v830 = vld [vmem:[%s800 + $0x70] sm:$0xff]
                  %831 = vst [vmem:[%s801 + $0x150] sm:$0xff] %v830
                  %v832 = vld [vmem:[%s800 + $0x78] sm:$0xff]
                  %833 = vst [vmem:[%s801 + $0x168] sm:$0xff] %v832
                  %v834 = vld [vmem:[%s800 + $0x80] sm:$0xff]
                  %835 = vst [vmem:[%s801 + $0x180] sm:$0xff] %v834
                  %v836 = vld [vmem:[%s800 + $0x88] sm:$0xff]
                  %837 = vst [vmem:[%s801 + $0x198] sm:$0xff] %v836
                  %v838 = vld [vmem:[%s800 + $0x90] sm:$0xff]
                  %839 = vst [vmem:[%s801 + $0x1b0] sm:$0xff] %v838
                  %v840 = vld [vmem:[%s800 + $0x98] sm:$0xff]
                  %841 = vst [vmem:[%s801 + $0x1c8] sm:$0xff] %v840
                  %v842 = vld [vmem:[%s800 + $0xa0] sm:$0xff]
                  %843 = vst [vmem:[%s801 + $0x1e0] sm:$0xff] %v842
                  %v844 = vld [vmem:[%s800 + $0xa8] sm:$0xff]
                  %845 = vst [vmem:[%s801 + $0x1f8] sm:$0xff] %v844
                  %v846 = vld [vmem:[%s800 + $0xb0] sm:$0xff]
                  %847 = vst [vmem:[%s801 + $0x210] sm:$0xff] %v846
                  %v848 = vld [vmem:[%s800 + $0xb8] sm:$0xff]
                  %849 = vst [vmem:[%s801 + $0x228] sm:$0xff] %v848
                  %v850 = vld [vmem:[%s800 + $0xc0] sm:$0xff]
                  %851 = vst [vmem:[%s801 + $0x240] sm:$0xff] %v850
                  %v852 = vld [vmem:[%s800 + $0xc8] sm:$0xff]
                  %853 = vst [vmem:[%s801 + $0x258] sm:$0xff] %v852
                  %v854 = vld [vmem:[%s800 + $0xd0] sm:$0xff]
                  %855 = vst [vmem:[%s801 + $0x270] sm:$0xff] %v854
                  %v856 = vld [vmem:[%s800 + $0xd8] sm:$0xff]
                  %857 = vst [vmem:[%s801 + $0x288] sm:$0xff] %v856
                  %v858 = vld [vmem:[%s800 + $0xe0] sm:$0xff]
                  %859 = vst [vmem:[%s801 + $0x2a0] sm:$0xff] %v858
                  %v860 = vld [vmem:[%s800 + $0xe8] sm:$0xff]
                  %861 = vst [vmem:[%s801 + $0x2b8] sm:$0xff] %v860
                  %v862 = vld [vmem:[%s800 + $0xf0] sm:$0xff]
                  %863 = vst [vmem:[%s801 + $0x2d0] sm:$0xff] %v862
                  %v864 = vld [vmem:[%s800 + $0xf8] sm:$0xff]
                  %865 = vst [vmem:[%s801 + $0x2e8] sm:$0xff] %v864
                $region76: #{attention_forward.2} parent=70 // loop_footer
                  %s799 = sadd.s32 1, %s795
                $region77: #{attention_forward.2} parent=70 // loop_footer_branch
                  %794 = sbr.rel target = $region73
                $region78: #{attention_forward.2} parent=70 // loop_exit
                  _
              $region71: #{attention_forward.2} parent=55 // pred_fallthru
                _
              // Predicated region
              $region79: #{attention_forward.2} parent=55 // pred_check
                _
              $region80: #{attention_forward.2} parent=55 // pred_check_branch
                %867 = sbr.rel target = $region82
              $region81: #{attention_forward.2} parent=55 // pred_region
                _
              $region82: #{attention_forward.2} parent=55 // pred_fallthru
                _
            $region56: #{attention_forward.2} parent=51 // pred_fallthru
              _
            // Predicated region
            $region57: #{attention_forward.2} parent=51 // pred_check
              _
            $region58: #{attention_forward.2} parent=51 // pred_check_branch
              %718 = sbr.rel target = $region60
            $region59: #{attention_forward.2} parent=51 // pred_region
              loop: start=0, step=1, limit=1
              $region61: #{attention_forward.2} parent=59 // loop_pre_header
                _
              $region62: #{attention_forward.2} parent=59 // loop_header
                %s721 = sphi 0, %s725
                %p722 = scmp.ge.s32.totalorder %s721, 1
                %s726 = sphi %s704, %s704
                %s727 = sphi %s712, %s712
              $region63: #{attention_forward.2} parent=59 // loop_header_branch
                %724 = sbr.rel (%p722) target = $region67
              $region64: #{attention_forward.2} parent=59 // loop_body
                %v728 = vld [vmem:[%s726] sm:$0xff]
                %729 = vst [vmem:[%s727] sm:$0xff] %v728
                %v730 = vld [vmem:[%s726 + $0x8] sm:$0xff]
                %731 = vst [vmem:[%s727 + $0x18] sm:$0xff] %v730
                %v732 = vld [vmem:[%s726 + $0x10] sm:$0xff]
                %733 = vst [vmem:[%s727 + $0x30] sm:$0xff] %v732
                %v734 = vld [vmem:[%s726 + $0x18] sm:$0xff]
                %735 = vst [vmem:[%s727 + $0x48] sm:$0xff] %v734
                %v736 = vld [vmem:[%s726 + $0x20] sm:$0xff]
                %737 = vst [vmem:[%s727 + $0x60] sm:$0xff] %v736
                %v738 = vld [vmem:[%s726 + $0x28] sm:$0xff]
                %739 = vst [vmem:[%s727 + $0x78] sm:$0xff] %v738
                %v740 = vld [vmem:[%s726 + $0x30] sm:$0xff]
                %741 = vst [vmem:[%s727 + $0x90] sm:$0xff] %v740
                %v742 = vld [vmem:[%s726 + $0x38] sm:$0xff]
                %743 = vst [vmem:[%s727 + $0xa8] sm:$0xff] %v742
                %v744 = vld [vmem:[%s726 + $0x40] sm:$0xff]
                %745 = vst [vmem:[%s727 + $0xc0] sm:$0xff] %v744
                %v746 = vld [vmem:[%s726 + $0x48] sm:$0xff]
                %747 = vst [vmem:[%s727 + $0xd8] sm:$0xff] %v746
                %v748 = vld [vmem:[%s726 + $0x50] sm:$0xff]
                %749 = vst [vmem:[%s727 + $0xf0] sm:$0xff] %v748
                %v750 = vld [vmem:[%s726 + $0x58] sm:$0xff]
                %751 = vst [vmem:[%s727 + $0x108] sm:$0xff] %v750
                %v752 = vld [vmem:[%s726 + $0x60] sm:$0xff]
                %753 = vst [vmem:[%s727 + $0x120] sm:$0xff] %v752
                %v754 = vld [vmem:[%s726 + $0x68] sm:$0xff]
                %755 = vst [vmem:[%s727 + $0x138] sm:$0xff] %v754
                %v756 = vld [vmem:[%s726 + $0x70] sm:$0xff]
                %757 = vst [vmem:[%s727 + $0x150] sm:$0xff] %v756
                %v758 = vld [vmem:[%s726 + $0x78] sm:$0xff]
                %759 = vst [vmem:[%s727 + $0x168] sm:$0xff] %v758
                %v760 = vld [vmem:[%s726 + $0x80] sm:$0xff]
                %761 = vst [vmem:[%s727 + $0x180] sm:$0xff] %v760
                %v762 = vld [vmem:[%s726 + $0x88] sm:$0xff]
                %763 = vst [vmem:[%s727 + $0x198] sm:$0xff] %v762
                %v764 = vld [vmem:[%s726 + $0x90] sm:$0xff]
                %765 = vst [vmem:[%s727 + $0x1b0] sm:$0xff] %v764
                %v766 = vld [vmem:[%s726 + $0x98] sm:$0xff]
                %767 = vst [vmem:[%s727 + $0x1c8] sm:$0xff] %v766
                %v768 = vld [vmem:[%s726 + $0xa0] sm:$0xff]
                %769 = vst [vmem:[%s727 + $0x1e0] sm:$0xff] %v768
                %v770 = vld [vmem:[%s726 + $0xa8] sm:$0xff]
                %771 = vst [vmem:[%s727 + $0x1f8] sm:$0xff] %v770
                %v772 = vld [vmem:[%s726 + $0xb0] sm:$0xff]
                %773 = vst [vmem:[%s727 + $0x210] sm:$0xff] %v772
                %v774 = vld [vmem:[%s726 + $0xb8] sm:$0xff]
                %775 = vst [vmem:[%s727 + $0x228] sm:$0xff] %v774
                %v776 = vld [vmem:[%s726 + $0xc0] sm:$0xff]
                %777 = vst [vmem:[%s727 + $0x240] sm:$0xff] %v776
                %v778 = vld [vmem:[%s726 + $0xc8] sm:$0xff]
                %779 = vst [vmem:[%s727 + $0x258] sm:$0xff] %v778
                %v780 = vld [vmem:[%s726 + $0xd0] sm:$0xff]
                %781 = vst [vmem:[%s727 + $0x270] sm:$0xff] %v780
                %v782 = vld [vmem:[%s726 + $0xd8] sm:$0xff]
                %783 = vst [vmem:[%s727 + $0x288] sm:$0xff] %v782
                %v784 = vld [vmem:[%s726 + $0xe0] sm:$0xff]
                %785 = vst [vmem:[%s727 + $0x2a0] sm:$0xff] %v784
                %v786 = vld [vmem:[%s726 + $0xe8] sm:$0xff]
                %787 = vst [vmem:[%s727 + $0x2b8] sm:$0xff] %v786
                %v788 = vld [vmem:[%s726 + $0xf0] sm:$0xff]
                %789 = vst [vmem:[%s727 + $0x2d0] sm:$0xff] %v788
                %v790 = vld [vmem:[%s726 + $0xf8] sm:$0xff]
                %791 = vst [vmem:[%s727 + $0x2e8] sm:$0xff] %v790
              $region65: #{attention_forward.2} parent=59 // loop_footer
                %s725 = sadd.s32 1, %s721
              $region66: #{attention_forward.2} parent=59 // loop_footer_branch
                %720 = sbr.rel target = $region62
              $region67: #{attention_forward.2} parent=59 // loop_exit
                _
            $region60: #{attention_forward.2} parent=51 // pred_fallthru
              _
          $region52: #{attention_forward.2} parent=47 // pred_fallthru
            _
          %868 = vnop
        $region48: #{attention_forward.2} parent=27 // pred_fallthru
          _
      $region28: #{attention_forward.2} parent=5 // pred_fallthru
        _
      %p869 = scmp.le.s32.totalorder 2, %s14
      // Predicated region
      $region83: #{attention_forward.2} parent=5 // pred_check
        %p870 = pneg %p869
      $region84: #{attention_forward.2} parent=5 // pred_check_branch
        %872 = sbr.rel (%p870) target = $region86
      $region85: #{attention_forward.2} parent=5 // pred_region
        %s873 = ssub.s32 %s14, 2
        // Predicated region
        $region87: #{attention_forward.2} parent=85 // pred_check
          %p874 = pneg %p120
        $region88: #{attention_forward.2} parent=85 // pred_check_branch
          %876 = sbr.rel (%p874) target = $region90
        $region89: #{attention_forward.2} parent=85 // pred_region
          %s877 = sand.u32 %s105, 1
          %s878 = sand.u32 %s105, 1
          %s879 = smul.addr %s878, 256
          %s880 = scalar_lea.vmem [#allocation7], %s879
        $region90: #{attention_forward.2} parent=85 // pred_fallthru
          _
      $region86: #{attention_forward.2} parent=5 // pred_fallthru
        _
    $region6: #{attention_forward.2} parent=1 // loop_footer
      %s18 = sadd.s32 1, %s14
    $region7: #{attention_forward.2} parent=1 // loop_footer_branch
      %13 = sbr.rel target = $region3
    $region8: #{attention_forward.2} parent=1 // loop_exit
      _
    %881 = vsyncpa [#allocation4], 1
    %s882 = scalar_lea.sflag [#allocation4], 1
    %883 = vsyncpa %s882, 1
    %884 = vsyncpa [#allocation6], 1
    %s885 = scalar_lea.sflag [#allocation6], 1
    %886 = vsyncpa %s885, 1

// kernel: attention_forward.3
$region0: #{attention_forward.3}
  #allocation0 [shape = 'u32[]', space=smem, size = 0x4, offset = 0x4, fixed_abs, tag = 'smem constant byte address 0x4 - core index']
  #allocation1 [shape = 'u32[144,128]{1,0:T(1,128)}', space=vmem, size = 0x12000, scoped, tag = 'internal scratch']
  #allocation2 [shape = 'f32[2,256,1]{2,1,0:T(8,128)}', space=vmem, size = 0x40000, scoped, tag = 'scratch operand']
  #allocation3 [shape = 'f32[2,256,1]{2,1,0:T(8,128)}', space=vmem, size = 0x40000, scoped, tag = 'scratch operand']
  #allocation4 [shape = 'f32[256,128]{1,0:T(8,128)}', space=vmem, size = 0x20000, scoped, tag = 'scratch operand']
  %s0 = inlined_call_operand.vmem [shape: f32[2,256,384], index: 0, kind: input, shape index: {}, may-alias: {0,1,2}]
  %s1 = inlined_call_operand.vmem [shape: f32[2,256,384], index: 1, kind: input, shape index: {}, may-alias: {0,1,2}]
  %s2 = inlined_call_operand.vmem [shape: f32[2,256,384], index: 2, kind: input, shape index: {}, may-alias: {0,1,2}]
  %s3 = inlined_call_operand.vmem [shape: f32[128,128], index: 3, kind: input, shape index: {}]
  %s4 = inlined_call_operand.vmem [shape: f32[1,128], index: 4, kind: input, shape index: {}]
  %s5 = inlined_call_operand.hbm [shape: f32[2,256,128], index: 5, kind: output, shape index: {}]
  %s6 = sld [smem:[#allocation0]]
  $region175: #{attention_forward.3} parent=0
    _
  %s8 = ssub.s32 1, %s6
  %s9 = scalar_select 0, %s8, %s6
  $region1: #{attention_forward.3} parent=0
    #allocation5 [shape = 'u8[262144]{0}', space=vmem, size = 0x40000, scoped, tag = 'input window, operand 0']
    #allocation6 [shape = 'u8[262144]{0}', space=vmem, size = 0x40000, scoped, tag = 'input window, operand 1']
    #allocation7 [shape = 'u8[262144]{0}', space=vmem, size = 0x40000, scoped, tag = 'input window, operand 2']
    #allocation8 [shape = 'u8[262144]{0}', space=vmem, size = 0x40000, scoped, tag = 'output window, operand 0']
    #allocation9 [shape = 's32[2]{0}', space=sflag, size = 0x8, scoped, tag = 'scoped memory for attention_forward.3']
    %10 = vsyncpa [#allocation9], 0
    %s11 = scalar_lea.sflag [#allocation9], 1
    %12 = vsyncpa %s11, 0
    loop: start=0, step=1, limit=4
    $region2: #{attention_forward.3} parent=1 // loop_pre_header
      _
    $region3: #{attention_forward.3} parent=1 // loop_header
      %s14 = sphi 0, %s18
      %p15 = scmp.ge.s32.totalorder %s14, 4
      %s21 = sphi 0, %s40
      %s22 = sphi 0, %s36
      %s23 = sphi 0, %s32
      %s24 = sphi 0, %s21
      %s25 = sphi 0, %s22
      %s26 = sphi 0, %s23
      %s27 = sphi 0, %s24
      %s28 = sphi 0, %s25
      %s29 = sphi 0, %s26
      %s45 = sphi 0, %s47
      %s48 = sphi 0, %s45
      %s49 = sphi 0, %s48
      %s65 = sphi 0, %s49
      %s73 = sphi 0, %s75
      %s76 = sphi 0, %s73
      %s77 = sphi 0, %s76
      %s93 = sphi 0, %s77
      %s101 = sphi 0, %s103
      %s104 = sphi 0, %s101
      %s105 = sphi 0, %s104
      %s121 = sphi 0, %s105
      %s125 = sphi 0, %s125
      %s127 = sphi 0, %s125
      %s128 = sphi 0, %s127
      %s142 = sphi 0, %s128
      %s146 = sphi 0, %s146
      %s148 = sphi 0, %s146
      %s149 = sphi 0, %s148
      %s163 = sphi 0, %s149
      %s171 = sphi 0, %s173
      %s174 = sphi 0, %s171
      %s175 = sphi 0, %s174
      %s191 = sphi 0, %s175
    $region4: #{attention_forward.3} parent=1 // loop_header_branch
      %17 = sbr.rel (%p15) target = $region8
    $region5: #{attention_forward.3} parent=1 // loop_body
      %s19 = ssub.s32 %s14, 1
      %s20 = ssub.s32 %s14, 2
      %s30 = sadd.s32 1, %s23
      %p31 = scmp.ge.s32.totalorder %s30, 1
      %s32 = scalar_select %p31, 0, %s30
      %s33 = sadd.s32 1, %s22
      %s34 = scalar_select %p31, %s33, %s22
      %p35 = scmp.ge.s32.totalorder %s34, 1
      %s36 = scalar_select %p35, 0, %s34
      %s37 = sadd.s32 1, %s21
      %s38 = scalar_select %p35, %s37, %s21
      %p39 = scmp.ge.s32.totalorder %s38, 2
      %s40 = scalar_select %p39, 0, %s38
      %s41 = ssub.s32 %s21, %s40
      %s42 = ssub.s32 %s22, %s36
      %s43 = sor.u32 %s41, %s42
      %p44 = scmp.eq.s32.totalorder %s43, 0
      %s46 = sadd.s32 %s45, 1
      %s47 = scalar_select %p44, %s45, %s46
      %p50 = pneg %p44
      %p51 = scmp.eq.s32.totalorder %s14, 1
      %p52 = por %p50, %p51
      %p53 = scmp.ne.s32.totalorder %s45, %s48
      %p54 = scmp.eq.s32.totalorder %s14, 0
      %p55 = por %p53, %p54
      %p56 = scmp.ne.s32.totalorder %s45, %s48
      %p57 = scmp.eq.s32.totalorder %s19, 1
      %p58 = por %p56, %p57
      %p59 = scmp.ne.s32.totalorder %s48, %s49
      %p60 = scmp.eq.s32.totalorder %s19, 0
      %p61 = por %p59, %p60
      %p62 = scmp.ne.s32.totalorder %s48, %s49
      %p63 = scmp.eq.s32.totalorder %s20, 1
      %p64 = por %p62, %p63
      %p66 = scmp.ne.s32.totalorder %s49, %s65
      %p67 = scmp.eq.s32.totalorder %s20, 0
      %p68 = por %p66, %p67
      %s69 = ssub.s32 %s21, %s40
      %s70 = ssub.s32 %s23, %s32
      %s71 = sor.u32 %s69, %s70
      %p72 = scmp.eq.s32.totalorder %s71, 0
      %s74 = sadd.s32 %s73, 1
      %s75 = scalar_select %p72, %s73, %s74
      %p78 = pneg %p72
      %p79 = scmp.eq.s32.totalorder %s14, 1
      %p80 = por %p78, %p79
      %p81 = scmp.ne.s32.totalorder %s73, %s76
      %p82 = scmp.eq.s32.totalorder %s14, 0
      %p83 = por %p81, %p82
      %p84 = scmp.ne.s32.totalorder %s73, %s76
      %p85 = scmp.eq.s32.totalorder %s19, 1
      %p86 = por %p84, %p85
      %p87 = scmp.ne.s32.totalorder %s76, %s77
      %p88 = scmp.eq.s32.totalorder %s19, 0
      %p89 = por %p87, %p88
      %p90 = scmp.ne.s32.totalorder %s76, %s77
      %p91 = scmp.eq.s32.totalorder %s20, 1
      %p92 = por %p90, %p91
      %p94 = scmp.ne.s32.totalorder %s77, %s93
      %p95 = scmp.eq.s32.totalorder %s20, 0
      %p96 = por %p94, %p95
      %s97 = ssub.s32 %s21, %s40
      %s98 = ssub.s32 %s23, %s32
      %s99 = sor.u32 %s97, %s98
      %p100 = scmp.eq.s32.totalorder %s99, 0
      %s102 = sadd.s32 %s101, 1
      %s103 = scalar_select %p100, %s101, %s102
      %p106 = pneg %p100
      %p107 = scmp.eq.s32.totalorder %s14, 1
      %p108 = por %p106, %p107
      %p109 = scmp.ne.s32.totalorder %s101, %s104
      %p110 = scmp.eq.s32.totalorder %s14, 0
      %p111 = por %p109, %p110
      %p112 = scmp.ne.s32.totalorder %s101, %s104
      %p113 = scmp.eq.s32.totalorder %s19, 1
      %p114 = por %p112, %p113
      %p115 = scmp.ne.s32.totalorder %s104, %s105
      %p116 = scmp.eq.s32.totalorder %s19, 0
      %p117 = por %p115, %p116
      %p118 = scmp.ne.s32.totalorder %s104, %s105
      %p119 = scmp.eq.s32.totalorder %s20, 1
      %p120 = por %p118, %p119
      %p122 = scmp.ne.s32.totalorder %s105, %s121
      %p123 = scmp.eq.s32.totalorder %s20, 0
      %p124 = por %p122, %p123
      %s126 = sadd.s32 %s125, 1
      %p129 = scmp.eq.s32.totalorder %s14, 1
      %p130 = scmp.ne.s32.totalorder %s125, %s127
      %p131 = scmp.eq.s32.totalorder %s14, 0
      %p132 = por %p130, %p131
      %p133 = scmp.ne.s32.totalorder %s125, %s127
      %p134 = scmp.eq.s32.totalorder %s19, 1
      %p135 = por %p133, %p134
      %p136 = scmp.ne.s32.totalorder %s127, %s128
      %p137 = scmp.eq.s32.totalorder %s19, 0
      %p138 = por %p136, %p137
      %p139 = scmp.ne.s32.totalorder %s127, %s128
      %p140 = scmp.eq.s32.totalorder %s20, 1
      %p141 = por %p139, %p140
      %p143 = scmp.ne.s32.totalorder %s128, %s142
      %p144 = scmp.eq.s32.totalorder %s20, 0
      %p145 = por %p143, %p144
      %s147 = sadd.s32 %s146, 1
      %p150 = scmp.eq.s32.totalorder %s14, 1
      %p151 = scmp.ne.s32.totalorder %s146, %s148
      %p152 = scmp.eq.s32.totalorder %s14, 0
      %p153 = por %p151, %p152
      %p154 = scmp.ne.s32.totalorder %s146, %s148
      %p155 = scmp.eq.s32.totalorder %s19, 1
      %p156 = por %p154, %p155
      %p157 = scmp.ne.s32.totalorder %s148, %s149
      %p158 = scmp.eq.s32.totalorder %s19, 0
      %p159 = por %p157, %p158
      %p160 = scmp.ne.s32.totalorder %s148, %s149
      %p161 = scmp.eq.s32.totalorder %s20, 1
      %p162 = por %p160, %p161
      %p164 = scmp.ne.s32.totalorder %s149, %s163
      %p165 = scmp.eq.s32.totalorder %s20, 0
      %p166 = por %p164, %p165
      %s167 = ssub.s32 %s21, %s40
      %s168 = ssub.s32 %s22, %s36
      %s169 = sor.u32 %s167, %s168
      %p170 = scmp.eq.s32.totalorder %s169, 0
      %s172 = sadd.s32 %s171, 1
      %s173 = scalar_select %p170, %s171, %s172
      %p176 = pneg %p170
      %p177 = scmp.eq.s32.totalorder %s14, 1
      %p178 = por %p176, %p177
      %p179 = scmp.ne.s32.totalorder %s171, %s174
      %p180 = scmp.eq.s32.totalorder %s14, 0
      %p181 = por %p179, %p180
      %p182 = scmp.ne.s32.totalorder %s171, %s174
      %p183 = scmp.eq.s32.totalorder %s19, 1
      %p184 = por %p182, %p183
      %p185 = scmp.ne.s32.totalorder %s174, %s175
      %p186 = scmp.eq.s32.totalorder %s19, 0
      %p187 = por %p185, %p186
      %p188 = scmp.ne.s32.totalorder %s174, %s175
      %p189 = scmp.eq.s32.totalorder %s20, 1
      %p190 = por %p188, %p189
      %p192 = scmp.ne.s32.totalorder %s175, %s191
      %p193 = scmp.eq.s32.totalorder %s20, 0
      %p194 = por %p192, %p193
      %p195 = scmp.le.s32.totalorder 1, %s14
      %p196 = scmp.lt.s32.totalorder %s14, 3
      %p197 = pnand %p195, %p196
      %p198 = pneg %p197
      // Predicated region
      $region9: #{attention_forward.3} parent=5 // pred_check
        _
      $region10: #{attention_forward.3} parent=5 // pred_check_branch
        %200 = sbr.rel (%p197) target = $region12
      $region11: #{attention_forward.3} parent=5 // pred_region
        %s201 = ssub.s32 %s14, 1
        // Predicated region
        $region13: #{attention_forward.3} parent=11 // pred_check
          %p202 = pneg %p138
        $region14: #{attention_forward.3} parent=11 // pred_check_branch
          %204 = sbr.rel (%p202) target = $region16
        $region15: #{attention_forward.3} parent=11 // pred_region
          _
        $region16: #{attention_forward.3} parent=11 // pred_fallthru
          _
        // Predicated region
        $region17: #{attention_forward.3} parent=11 // pred_check
          %p205 = pneg %p159
        $region18: #{attention_forward.3} parent=11 // pred_check_branch
          %207 = sbr.rel (%p205) target = $region20
        $region19: #{attention_forward.3} parent=11 // pred_region
          _
        $region20: #{attention_forward.3} parent=11 // pred_fallthru
          _
      $region12: #{attention_forward.3} parent=5 // pred_fallthru
        _
      %p208 = scmp.lt.s32.totalorder %s14, 2
      // Predicated region
      $region21: #{attention_forward.3} parent=5 // pred_check
        %p209 = pneg %p208
      $region22: #{attention_forward.3} parent=5 // pred_check_branch
        %211 = sbr.rel (%p209) target = $region24
      $region23: #{attention_forward.3} parent=5 // pred_region
        // Predicated region
        $region25: #{attention_forward.3} parent=23 // pred_check
          %p212 = pneg %p55
        $region26: #{attention_forward.3} parent=23 // pred_check_branch
          %214 = sbr.rel (%p212) target = $region28
        $region27: #{attention_forward.3} parent=23 // pred_region
          %s215 = sand.u32 %s45, 1
          %s216 = sand.u32 %s45, 1
          %s217 = smul.addr %s216, 256
          %s218 = scalar_lea.vmem [#allocation5], %s217
          %s219 = smul.u32 32, %s22
          %s220 = smul.addr %s219, 3
          %s221 = smul.addr %s21, 96
          %s222 = sadd.s32 %s220, %s221
          %s223 = smul.addr %s222, 8
          %s224 = scalar_lea.vmem %s0, %s223
          // Predicated region
          $region29: #{attention_forward.3} parent=27 // pred_check
            _
          $region30: #{attention_forward.3} parent=27 // pred_check_branch
            %226 = sbr.rel (0) target = $region32
          $region31: #{attention_forward.3} parent=27 // pred_region
            // Predicated region
            $region33: #{attention_forward.3} parent=31 // pred_check
              _
            $region34: #{attention_forward.3} parent=31 // pred_check_branch
              %228 = sbr.rel (0) target = $region36
            $region35: #{attention_forward.3} parent=31 // pred_region
              // Predicated region
              $region48: #{attention_forward.3} parent=35 // pred_check
                _
              $region49: #{attention_forward.3} parent=35 // pred_check_branch
                %305 = sbr.rel (0) target = $region51
              $region50: #{attention_forward.3} parent=35 // pred_region
                loop: start=0, step=1, limit=1
                $region52: #{attention_forward.3} parent=50 // loop_pre_header
                  _
                $region53: #{attention_forward.3} parent=50 // loop_header
                  %s307 = sphi 0, %s311
                  %p308 = scmp.ge.s32.totalorder %s307, 1
                  %s312 = sphi %s224, %s224
                  %s313 = sphi %s218, %s218
                $region54: #{attention_forward.3} parent=50 // loop_header_branch
                  %310 = sbr.rel (%p308) target = $region58
                $region55: #{attention_forward.3} parent=50 // loop_body
                  %v314 = vld [vmem:[%s312] sm:$0xff]
                  %315 = vst [vmem:[%s313] sm:$0xff] %v314
                  %v316 = vld [vmem:[%s312 + $0x18] sm:$0xff]
                  %317 = vst [vmem:[%s313 + $0x8] sm:$0xff] %v316
                  %v318 = vld [vmem:[%s312 + $0x30] sm:$0xff]
                  %319 = vst [vmem:[%s313 + $0x10] sm:$0xff] %v318
                  %v320 = vld [vmem:[%s312 + $0x48] sm:$0xff]
                  %321 = vst [vmem:[%s313 + $0x18] sm:$0xff] %v320
                  %v322 = vld [vmem:[%s312 + $0x60] sm:$0xff]
                  %323 = vst [vmem:[%s313 + $0x20] sm:$0xff] %v322
                  %v324 = vld [vmem:[%s312 + $0x78] sm:$0xff]
                  %325 = vst [vmem:[%s313 + $0x28] sm:$0xff] %v324
                  %v326 = vld [vmem:[%s312 + $0x90] sm:$0xff]
                  %327 = vst [vmem:[%s313 + $0x30] sm:$0xff] %v326
                  %v328 = vld [vmem:[%s312 + $0xa8] sm:$0xff]
                  %329 = vst [vmem:[%s313 + $0x38] sm:$0xff] %v328
                  %v330 = vld [vmem:[%s312 + $0xc0] sm:$0xff]
                  %331 = vst [vmem:[%s313 + $0x40] sm:$0xff] %v330
                  %v332 = vld [vmem:[%s312 + $0xd8] sm:$0xff]
                  %333 = vst [vmem:[%s313 + $0x48] sm:$0xff] %v332
                  %v334 = vld [vmem:[%s312 + $0xf0] sm:$0xff]
                  %335 = vst [vmem:[%s313 + $0x50] sm:$0xff] %v334
                  %v336 = vld [vmem:[%s312 + $0x108] sm:$0xff]
                  %337 = vst [vmem:[%s313 + $0x58] sm:$0xff] %v336
                  %v338 = vld [vmem:[%s312 + $0x120] sm:$0xff]
                  %339 = vst [vmem:[%s313 + $0x60] sm:$0xff] %v338
                  %v340 = vld [vmem:[%s312 + $0x138] sm:$0xff]
                  %341 = vst [vmem:[%s313 + $0x68] sm:$0xff] %v340
                  %v342 = vld [vmem:[%s312 + $0x150] sm:$0xff]
                  %343 = vst [vmem:[%s313 + $0x70] sm:$0xff] %v342
                  %v344 = vld [vmem:[%s312 + $0x168] sm:$0xff]
                  %345 = vst [vmem:[%s313 + $0x78] sm:$0xff] %v344
                  %v346 = vld [vmem:[%s312 + $0x180] sm:$0xff]
                  %347 = vst [vmem:[%s313 + $0x80] sm:$0xff] %v346
                  %v348 = vld [vmem:[%s312 + $0x198] sm:$0xff]
                  %349 = vst [vmem:[%s313 + $0x88] sm:$0xff] %v348
                  %v350 = vld [vmem:[%s312 + $0x1b0] sm:$0xff]
                  %351 = vst [vmem:[%s313 + $0x90] sm:$0xff] %v350
                  %v352 = vld [vmem:[%s312 + $0x1c8] sm:$0xff]
                  %353 = vst [vmem:[%s313 + $0x98] sm:$0xff] %v352
                  %v354 = vld [vmem:[%s312 + $0x1e0] sm:$0xff]
                  %355 = vst [vmem:[%s313 + $0xa0] sm:$0xff] %v354
                  %v356 = vld [vmem:[%s312 + $0x1f8] sm:$0xff]
                  %357 = vst [vmem:[%s313 + $0xa8] sm:$0xff] %v356
                  %v358 = vld [vmem:[%s312 + $0x210] sm:$0xff]
                  %359 = vst [vmem:[%s313 + $0xb0] sm:$0xff] %v358
                  %v360 = vld [vmem:[%s312 + $0x228] sm:$0xff]
                  %361 = vst [vmem:[%s313 + $0xb8] sm:$0xff] %v360
                  %v362 = vld [vmem:[%s312 + $0x240] sm:$0xff]
                  %363 = vst [vmem:[%s313 + $0xc0] sm:$0xff] %v362
                  %v364 = vld [vmem:[%s312 + $0x258] sm:$0xff]
                  %365 = vst [vmem:[%s313 + $0xc8] sm:$0xff] %v364
                  %v366 = vld [vmem:[%s312 + $0x270] sm:$0xff]
                  %367 = vst [vmem:[%s313 + $0xd0] sm:$0xff] %v366
                  %v368 = vld [vmem:[%s312 + $0x288] sm:$0xff]
                  %369 = vst [vmem:[%s313 + $0xd8] sm:$0xff] %v368
                  %v370 = vld [vmem:[%s312 + $0x2a0] sm:$0xff]
                  %371 = vst [vmem:[%s313 + $0xe0] sm:$0xff] %v370
                  %v372 = vld [vmem:[%s312 + $0x2b8] sm:$0xff]
                  %373 = vst [vmem:[%s313 + $0xe8] sm:$0xff] %v372
                  %v374 = vld [vmem:[%s312 + $0x2d0] sm:$0xff]
                  %375 = vst [vmem:[%s313 + $0xf0] sm:$0xff] %v374
                  %v376 = vld [vmem:[%s312 + $0x2e8] sm:$0xff]
                  %377 = vst [vmem:[%s313 + $0xf8] sm:$0xff] %v376
                $region56: #{attention_forward.3} parent=50 // loop_footer
                  %s311 = sadd.s32 1, %s307
                $region57: #{attention_forward.3} parent=50 // loop_footer_branch
                  %306 = sbr.rel target = $region53
                $region58: #{attention_forward.3} parent=50 // loop_exit
                  _
              $region51: #{attention_forward.3} parent=35 // pred_fallthru
                _
              // Predicated region
              $region59: #{attention_forward.3} parent=35 // pred_check
                _
              $region60: #{attention_forward.3} parent=35 // pred_check_branch
                %379 = sbr.rel target = $region62
              $region61: #{attention_forward.3} parent=35 // pred_region
                _
              $region62: #{attention_forward.3} parent=35 // pred_fallthru
                _
            $region36: #{attention_forward.3} parent=31 // pred_fallthru
              _
            // Predicated region
            $region37: #{attention_forward.3} parent=31 // pred_check
              _
            $region38: #{attention_forward.3} parent=31 // pred_check_branch
              %230 = sbr.rel target = $region40
            $region39: #{attention_forward.3} parent=31 // pred_region
              loop: start=0, step=1, limit=1
              $region41: #{attention_forward.3} parent=39 // loop_pre_header
                _
              $region42: #{attention_forward.3} parent=39 // loop_header
                %s233 = sphi 0, %s237
                %p234 = scmp.ge.s32.totalorder %s233, 1
                %s238 = sphi %s224, %s224
                %s239 = sphi %s218, %s218
              $region43: #{attention_forward.3} parent=39 // loop_header_branch
                %236 = sbr.rel (%p234) target = $region47
              $region44: #{attention_forward.3} parent=39 // loop_body
                %v240 = vld [vmem:[%s238] sm:$0xff]
                %241 = vst [vmem:[%s239] sm:$0xff] %v240
                %v242 = vld [vmem:[%s238 + $0x18] sm:$0xff]
                %243 = vst [vmem:[%s239 + $0x8] sm:$0xff] %v242
                %v244 = vld [vmem:[%s238 + $0x30] sm:$0xff]
                %245 = vst [vmem:[%s239 + $0x10] sm:$0xff] %v244
                %v246 = vld [vmem:[%s238 + $0x48] sm:$0xff]
                %247 = vst [vmem:[%s239 + $0x18] sm:$0xff] %v246
                %v248 = vld [vmem:[%s238 + $0x60] sm:$0xff]
                %249 = vst [vmem:[%s239 + $0x20] sm:$0xff] %v248
                %v250 = vld [vmem:[%s238 + $0x78] sm:$0xff]
                %251 = vst [vmem:[%s239 + $0x28] sm:$0xff] %v250
                %v252 = vld [vmem:[%s238 + $0x90] sm:$0xff]
                %253 = vst [vmem:[%s239 + $0x30] sm:$0xff] %v252
                %v254 = vld [vmem:[%s238 + $0xa8] sm:$0xff]
                %255 = vst [vmem:[%s239 + $0x38] sm:$0xff] %v254
                %v256 = vld [vmem:[%s238 + $0xc0] sm:$0xff]
                %257 = vst [vmem:[%s239 + $0x40] sm:$0xff] %v256
                %v258 = vld [vmem:[%s238 + $0xd8] sm:$0xff]
                %259 = vst [vmem:[%s239 + $0x48] sm:$0xff] %v258
                %v260 = vld [vmem:[%s238 + $0xf0] sm:$0xff]
                %261 = vst [vmem:[%s239 + $0x50] sm:$0xff] %v260
                %v262 = vld [vmem:[%s238 + $0x108] sm:$0xff]
                %263 = vst [vmem:[%s239 + $0x58] sm:$0xff] %v262
                %v264 = vld [vmem:[%s238 + $0x120] sm:$0xff]
                %265 = vst [vmem:[%s239 + $0x60] sm:$0xff] %v264
                %v266 = vld [vmem:[%s238 + $0x138] sm:$0xff]
                %267 = vst [vmem:[%s239 + $0x68] sm:$0xff] %v266
                %v268 = vld [vmem:[%s238 + $0x150] sm:$0xff]
                %269 = vst [vmem:[%s239 + $0x70] sm:$0xff] %v268
                %v270 = vld [vmem:[%s238 + $0x168] sm:$0xff]
                %271 = vst [vmem:[%s239 + $0x78] sm:$0xff] %v270
                %v272 = vld [vmem:[%s238 + $0x180] sm:$0xff]
                %273 = vst [vmem:[%s239 + $0x80] sm:$0xff] %v272
                %v274 = vld [vmem:[%s238 + $0x198] sm:$0xff]
                %275 = vst [vmem:[%s239 + $0x88] sm:$0xff] %v274
                %v276 = vld [vmem:[%s238 + $0x1b0] sm:$0xff]
                %277 = vst [vmem:[%s239 + $0x90] sm:$0xff] %v276
                %v278 = vld [vmem:[%s238 + $0x1c8] sm:$0xff]
                %279 = vst [vmem:[%s239 + $0x98] sm:$0xff] %v278
                %v280 = vld [vmem:[%s238 + $0x1e0] sm:$0xff]
                %281 = vst [vmem:[%s239 + $0xa0] sm:$0xff] %v280
                %v282 = vld [vmem:[%s238 + $0x1f8] sm:$0xff]
                %283 = vst [vmem:[%s239 + $0xa8] sm:$0xff] %v282
                %v284 = vld [vmem:[%s238 + $0x210] sm:$0xff]
                %285 = vst [vmem:[%s239 + $0xb0] sm:$0xff] %v284
                %v286 = vld [vmem:[%s238 + $0x228] sm:$0xff]
                %287 = vst [vmem:[%s239 + $0xb8] sm:$0xff] %v286
                %v288 = vld [vmem:[%s238 + $0x240] sm:$0xff]
                %289 = vst [vmem:[%s239 + $0xc0] sm:$0xff] %v288
                %v290 = vld [vmem:[%s238 + $0x258] sm:$0xff]
                %291 = vst [vmem:[%s239 + $0xc8] sm:$0xff] %v290
                %v292 = vld [vmem:[%s238 + $0x270] sm:$0xff]
                %293 = vst [vmem:[%s239 + $0xd0] sm:$0xff] %v292
                %v294 = vld [vmem:[%s238 + $0x288] sm:$0xff]
                %295 = vst [vmem:[%s239 + $0xd8] sm:$0xff] %v294
                %v296 = vld [vmem:[%s238 + $0x2a0] sm:$0xff]
                %297 = vst [vmem:[%s239 + $0xe0] sm:$0xff] %v296
                %v298 = vld [vmem:[%s238 + $0x2b8] sm:$0xff]
                %299 = vst [vmem:[%s239 + $0xe8] sm:$0xff] %v298
                %v300 = vld [vmem:[%s238 + $0x2d0] sm:$0xff]
                %301 = vst [vmem:[%s239 + $0xf0] sm:$0xff] %v300
                %v302 = vld [vmem:[%s238 + $0x2e8] sm:$0xff]
                %303 = vst [vmem:[%s239 + $0xf8] sm:$0xff] %v302
              $region45: #{attention_forward.3} parent=39 // loop_footer
                %s237 = sadd.s32 1, %s233
              $region46: #{attention_forward.3} parent=39 // loop_footer_branch
                %232 = sbr.rel target = $region42
              $region47: #{attention_forward.3} parent=39 // loop_exit
                _
            $region40: #{attention_forward.3} parent=31 // pred_fallthru
              _
          $region32: #{attention_forward.3} parent=27 // pred_fallthru
            _
          %380 = vnop
        $region28: #{attention_forward.3} parent=23 // pred_fallthru
          _
        // Predicated region
        $region63: #{attention_forward.3} parent=23 // pred_check
          %p381 = pneg %p83
        $region64: #{attention_forward.3} parent=23 // pred_check_branch
          %383 = sbr.rel (%p381) target = $region66
        $region65: #{attention_forward.3} parent=23 // pred_region
          %s384 = sand.u32 %s73, 1
          %s385 = sand.u32 %s73, 1
          %s386 = smul.addr %s385, 256
          %s387 = scalar_lea.vmem [#allocation6], %s386
          %s388 = smul.u32 32, %s23
          %s389 = smul.addr %s388, 3
          %s390 = sadd.s32 1, %s389
          %s391 = smul.addr %s21, 96
          %s392 = sadd.s32 %s390, %s391
          %s393 = smul.addr %s392, 8
          %s394 = scalar_lea.vmem %s1, %s393
          // Predicated region
          $region67: #{attention_forward.3} parent=65 // pred_check
            _
          $region68: #{attention_forward.3} parent=65 // pred_check_branch
            %396 = sbr.rel (0) target = $region70
          $region69: #{attention_forward.3} parent=65 // pred_region
            // Predicated region
            $region71: #{attention_forward.3} parent=69 // pred_check
              _
            $region72: #{attention_forward.3} parent=69 // pred_check_branch
              %398 = sbr.rel (0) target = $region74
            $region73: #{attention_forward.3} parent=69 // pred_region
              // Predicated region
              $region86: #{attention_forward.3} parent=73 // pred_check
                _
              $region87: #{attention_forward.3} parent=73 // pred_check_branch
                %475 = sbr.rel (0) target = $region89
              $region88: #{attention_forward.3} parent=73 // pred_region
                loop: start=0, step=1, limit=1
                $region90: #{attention_forward.3} parent=88 // loop_pre_header
                  _
                $region91: #{attention_forward.3} parent=88 // loop_header
                  %s477 = sphi 0, %s481
                  %p478 = scmp.ge.s32.totalorder %s477, 1
                  %s482 = sphi %s394, %s394
                  %s483 = sphi %s387, %s387
                $region92: #{attention_forward.3} parent=88 // loop_header_branch
                  %480 = sbr.rel (%p478) target = $region96
                $region93: #{attention_forward.3} parent=88 // loop_body
                  %v484 = vld [vmem:[%s482] sm:$0xff]
                  %485 = vst [vmem:[%s483] sm:$0xff] %v484
                  %v486 = vld [vmem:[%s482 + $0x18] sm:$0xff]
                  %487 = vst [vmem:[%s483 + $0x8] sm:$0xff] %v486
                  %v488 = vld [vmem:[%s482 + $0x30] sm:$0xff]
                  %489 = vst [vmem:[%s483 + $0x10] sm:$0xff] %v488
                  %v490 = vld [vmem:[%s482 + $0x48] sm:$0xff]
                  %491 = vst [vmem:[%s483 + $0x18] sm:$0xff] %v490
                  %v492 = vld [vmem:[%s482 + $0x60] sm:$0xff]
                  %493 = vst [vmem:[%s483 + $0x20] sm:$0xff] %v492
                  %v494 = vld [vmem:[%s482 + $0x78] sm:$0xff]
                  %495 = vst [vmem:[%s483 + $0x28] sm:$0xff] %v494
                  %v496 = vld [vmem:[%s482 + $0x90] sm:$0xff]
                  %497 = vst [vmem:[%s483 + $0x30] sm:$0xff] %v496
                  %v498 = vld [vmem:[%s482 + $0xa8] sm:$0xff]
                  %499 = vst [vmem:[%s483 + $0x38] sm:$0xff] %v498
                  %v500 = vld [vmem:[%s482 + $0xc0] sm:$0xff]
                  %501 = vst [vmem:[%s483 + $0x40] sm:$0xff] %v500
                  %v502 = vld [vmem:[%s482 + $0xd8] sm:$0xff]
                  %503 = vst [vmem:[%s483 + $0x48] sm:$0xff] %v502
                  %v504 = vld [vmem:[%s482 + $0xf0] sm:$0xff]
                  %505 = vst [vmem:[%s483 + $0x50] sm:$0xff] %v504
                  %v506 = vld [vmem:[%s482 + $0x108] sm:$0xff]
                  %507 = vst [vmem:[%s483 + $0x58] sm:$0xff] %v506
                  %v508 = vld [vmem:[%s482 + $0x120] sm:$0xff]
                  %509 = vst [vmem:[%s483 + $0x60] sm:$0xff] %v508
                  %v510 = vld [vmem:[%s482 + $0x138] sm:$0xff]
                  %511 = vst [vmem:[%s483 + $0x68] sm:$0xff] %v510
                  %v512 = vld [vmem:[%s482 + $0x150] sm:$0xff]
                  %513 = vst [vmem:[%s483 + $0x70] sm:$0xff] %v512
                  %v514 = vld [vmem:[%s482 + $0x168] sm:$0xff]
                  %515 = vst [vmem:[%s483 + $0x78] sm:$0xff] %v514
                  %v516 = vld [vmem:[%s482 + $0x180] sm:$0xff]
                  %517 = vst [vmem:[%s483 + $0x80] sm:$0xff] %v516
                  %v518 = vld [vmem:[%s482 + $0x198] sm:$0xff]
                  %519 = vst [vmem:[%s483 + $0x88] sm:$0xff] %v518
                  %v520 = vld [vmem:[%s482 + $0x1b0] sm:$0xff]
                  %521 = vst [vmem:[%s483 + $0x90] sm:$0xff] %v520
                  %v522 = vld [vmem:[%s482 + $0x1c8] sm:$0xff]
                  %523 = vst [vmem:[%s483 + $0x98] sm:$0xff] %v522
                  %v524 = vld [vmem:[%s482 + $0x1e0] sm:$0xff]
                  %525 = vst [vmem:[%s483 + $0xa0] sm:$0xff] %v524
                  %v526 = vld [vmem:[%s482 + $0x1f8] sm:$0xff]
                  %527 = vst [vmem:[%s483 + $0xa8] sm:$0xff] %v526
                  %v528 = vld [vmem:[%s482 + $0x210] sm:$0xff]
                  %529 = vst [vmem:[%s483 + $0xb0] sm:$0xff] %v528
                  %v530 = vld [vmem:[%s482 + $0x228] sm:$0xff]
                  %531 = vst [vmem:[%s483 + $0xb8] sm:$0xff] %v530
                  %v532 = vld [vmem:[%s482 + $0x240] sm:$0xff]
                  %533 = vst [vmem:[%s483 + $0xc0] sm:$0xff] %v532
                  %v534 = vld [vmem:[%s482 + $0x258] sm:$0xff]
                  %535 = vst [vmem:[%s483 + $0xc8] sm:$0xff] %v534
                  %v536 = vld [vmem:[%s482 + $0x270] sm:$0xff]
                  %537 = vst [vmem:[%s483 + $0xd0] sm:$0xff] %v536
                  %v538 = vld [vmem:[%s482 + $0x288] sm:$0xff]
                  %539 = vst [vmem:[%s483 + $0xd8] sm:$0xff] %v538
                  %v540 = vld [vmem:[%s482 + $0x2a0] sm:$0xff]
                  %541 = vst [vmem:[%s483 + $0xe0] sm:$0xff] %v540
                  %v542 = vld [vmem:[%s482 + $0x2b8] sm:$0xff]
                  %543 = vst [vmem:[%s483 + $0xe8] sm:$0xff] %v542
                  %v544 = vld [vmem:[%s482 + $0x2d0] sm:$0xff]
                  %545 = vst [vmem:[%s483 + $0xf0] sm:$0xff] %v544
                  %v546 = vld [vmem:[%s482 + $0x2e8] sm:$0xff]
                  %547 = vst [vmem:[%s483 + $0xf8] sm:$0xff] %v546
                $region94: #{attention_forward.3} parent=88 // loop_footer
                  %s481 = sadd.s32 1, %s477
                $region95: #{attention_forward.3} parent=88 // loop_footer_branch
                  %476 = sbr.rel target = $region91
                $region96: #{attention_forward.3} parent=88 // loop_exit
                  _
              $region89: #{attention_forward.3} parent=73 // pred_fallthru
                _
              // Predicated region
              $region97: #{attention_forward.3} parent=73 // pred_check
                _
              $region98: #{attention_forward.3} parent=73 // pred_check_branch
                %549 = sbr.rel target = $region100
              $region99: #{attention_forward.3} parent=73 // pred_region
                _
              $region100: #{attention_forward.3} parent=73 // pred_fallthru
                _
            $region74: #{attention_forward.3} parent=69 // pred_fallthru
              _
            // Predicated region
            $region75: #{attention_forward.3} parent=69 // pred_check
              _
            $region76: #{attention_forward.3} parent=69 // pred_check_branch
              %400 = sbr.rel target = $region78
            $region77: #{attention_forward.3} parent=69 // pred_region
              loop: start=0, step=1, limit=1
              $region79: #{attention_forward.3} parent=77 // loop_pre_header
                _
              $region80: #{attention_forward.3} parent=77 // loop_header
                %s403 = sphi 0, %s407
                %p404 = scmp.ge.s32.totalorder %s403, 1
                %s408 = sphi %s394, %s394
                %s409 = sphi %s387, %s387
              $region81: #{attention_forward.3} parent=77 // loop_header_branch
                %406 = sbr.rel (%p404) target = $region85
              $region82: #{attention_forward.3} parent=77 // loop_body
                %v410 = vld [vmem:[%s408] sm:$0xff]
                %411 = vst [vmem:[%s409] sm:$0xff] %v410
                %v412 = vld [vmem:[%s408 + $0x18] sm:$0xff]
                %413 = vst [vmem:[%s409 + $0x8] sm:$0xff] %v412
                %v414 = vld [vmem:[%s408 + $0x30] sm:$0xff]
                %415 = vst [vmem:[%s409 + $0x10] sm:$0xff] %v414
                %v416 = vld [vmem:[%s408 + $0x48] sm:$0xff]
                %417 = vst [vmem:[%s409 + $0x18] sm:$0xff] %v416
                %v418 = vld [vmem:[%s408 + $0x60] sm:$0xff]
                %419 = vst [vmem:[%s409 + $0x20] sm:$0xff] %v418
                %v420 = vld [vmem:[%s408 + $0x78] sm:$0xff]
                %421 = vst [vmem:[%s409 + $0x28] sm:$0xff] %v420
                %v422 = vld [vmem:[%s408 + $0x90] sm:$0xff]
                %423 = vst [vmem:[%s409 + $0x30] sm:$0xff] %v422
                %v424 = vld [vmem:[%s408 + $0xa8] sm:$0xff]
                %425 = vst [vmem:[%s409 + $0x38] sm:$0xff] %v424
                %v426 = vld [vmem:[%s408 + $0xc0] sm:$0xff]
                %427 = vst [vmem:[%s409 + $0x40] sm:$0xff] %v426
                %v428 = vld [vmem:[%s408 + $0xd8] sm:$0xff]
                %429 = vst [vmem:[%s409 + $0x48] sm:$0xff] %v428
                %v430 = vld [vmem:[%s408 + $0xf0] sm:$0xff]
                %431 = vst [vmem:[%s409 + $0x50] sm:$0xff] %v430
                %v432 = vld [vmem:[%s408 + $0x108] sm:$0xff]
                %433 = vst [vmem:[%s409 + $0x58] sm:$0xff] %v432
                %v434 = vld [vmem:[%s408 + $0x120] sm:$0xff]
                %435 = vst [vmem:[%s409 + $0x60] sm:$0xff] %v434
                %v436 = vld [vmem:[%s408 + $0x138] sm:$0xff]
                %437 = vst [vmem:[%s409 + $0x68] sm:$0xff] %v436
                %v438 = vld [vmem:[%s408 + $0x150] sm:$0xff]
                %439 = vst [vmem:[%s409 + $0x70] sm:$0xff] %v438
                %v440 = vld [vmem:[%s408 + $0x168] sm:$0xff]
                %441 = vst [vmem:[%s409 + $0x78] sm:$0xff] %v440
                %v442 = vld [vmem:[%s408 + $0x180] sm:$0xff]
                %443 = vst [vmem:[%s409 + $0x80] sm:$0xff] %v442
                %v444 = vld [vmem:[%s408 + $0x198] sm:$0xff]
                %445 = vst [vmem:[%s409 + $0x88] sm:$0xff] %v444
                %v446 = vld [vmem:[%s408 + $0x1b0] sm:$0xff]
                %447 = vst [vmem:[%s409 + $0x90] sm:$0xff] %v446
                %v448 = vld [vmem:[%s408 + $0x1c8] sm:$0xff]
                %449 = vst [vmem:[%s409 + $0x98] sm:$0xff] %v448
                %v450 = vld [vmem:[%s408 + $0x1e0] sm:$0xff]
                %451 = vst [vmem:[%s409 + $0xa0] sm:$0xff] %v450
                %v452 = vld [vmem:[%s408 + $0x1f8] sm:$0xff]
                %453 = vst [vmem:[%s409 + $0xa8] sm:$0xff] %v452
                %v454 = vld [vmem:[%s408 + $0x210] sm:$0xff]
                %455 = vst [vmem:[%s409 + $0xb0] sm:$0xff] %v454
                %v456 = vld [vmem:[%s408 + $0x228] sm:$0xff]
                %457 = vst [vmem:[%s409 + $0xb8] sm:$0xff] %v456
                %v458 = vld [vmem:[%s408 + $0x240] sm:$0xff]
                %459 = vst [vmem:[%s409 + $0xc0] sm:$0xff] %v458
                %v460 = vld [vmem:[%s408 + $0x258] sm:$0xff]
                %461 = vst [vmem:[%s409 + $0xc8] sm:$0xff] %v460
                %v462 = vld [vmem:[%s408 + $0x270] sm:$0xff]
                %463 = vst [vmem:[%s409 + $0xd0] sm:$0xff] %v462
                %v464 = vld [vmem:[%s408 + $0x288] sm:$0xff]
                %465 = vst [vmem:[%s409 + $0xd8] sm:$0xff] %v464
                %v466 = vld [vmem:[%s408 + $0x2a0] sm:$0xff]
                %467 = vst [vmem:[%s409 + $0xe0] sm:$0xff] %v466
                %v468 = vld [vmem:[%s408 + $0x2b8] sm:$0xff]
                %469 = vst [vmem:[%s409 + $0xe8] sm:$0xff] %v468
                %v470 = vld [vmem:[%s408 + $0x2d0] sm:$0xff]
                %471 = vst [vmem:[%s409 + $0xf0] sm:$0xff] %v470
                %v472 = vld [vmem:[%s408 + $0x2e8] sm:$0xff]
                %473 = vst [vmem:[%s409 + $0xf8] sm:$0xff] %v472
              $region83: #{attention_forward.3} parent=77 // loop_footer
                %s407 = sadd.s32 1, %s403
              $region84: #{attention_forward.3} parent=77 // loop_footer_branch
                %402 = sbr.rel target = $region80
              $region85: #{attention_forward.3} parent=77 // loop_exit
                _
            $region78: #{attention_forward.3} parent=69 // pred_fallthru
              _
          $region70: #{attention_forward.3} parent=65 // pred_fallthru
            _
          %550 = vnop
        $region66: #{attention_forward.3} parent=23 // pred_fallthru
          _
        // Predicated region
        $region101: #{attention_forward.3} parent=23 // pred_check
          %p551 = pneg %p111
        $region102: #{attention_forward.3} parent=23 // pred_check_branch
          %553 = sbr.rel (%p551) target = $region104
        $region103: #{attention_forward.3} parent=23 // pred_region
          %s554 = sand.u32 %s101, 1
          %s555 = sand.u32 %s101, 1
          %s556 = smul.addr %s555, 256
          %s557 = scalar_lea.vmem [#allocation7], %s556
          %s558 = smul.u32 32, %s23
          %s559 = smul.addr %s558, 3
          %s560 = sadd.s32 2, %s559
          %s561 = smul.addr %s21, 96
          %s562 = sadd.s32 %s560, %s561
          %s563 = smul.addr %s562, 8
          %s564 = scalar_lea.vmem %s2, %s563
          // Predicated region
          $region105: #{attention_forward.3} parent=103 // pred_check
            _
          $region106: #{attention_forward.3} parent=103 // pred_check_branch
            %566 = sbr.rel (0) target = $region108
          $region107: #{attention_forward.3} parent=103 // pred_region
            // Predicated region
            $region109: #{attention_forward.3} parent=107 // pred_check
              _
            $region110: #{attention_forward.3} parent=107 // pred_check_branch
              %568 = sbr.rel (0) target = $region112
            $region111: #{attention_forward.3} parent=107 // pred_region
              // Predicated region
              $region124: #{attention_forward.3} parent=111 // pred_check
                _
              $region125: #{attention_forward.3} parent=111 // pred_check_branch
                %645 = sbr.rel (0) target = $region127
              $region126: #{attention_forward.3} parent=111 // pred_region
                loop: start=0, step=1, limit=1
                $region128: #{attention_forward.3} parent=126 // loop_pre_header
                  _
                $region129: #{attention_forward.3} parent=126 // loop_header
                  %s647 = sphi 0, %s651
                  %p648 = scmp.ge.s32.totalorder %s647, 1
                  %s652 = sphi %s564, %s564
                  %s653 = sphi %s557, %s557
                $region130: #{attention_forward.3} parent=126 // loop_header_branch
                  %650 = sbr.rel (%p648) target = $region134
                $region131: #{attention_forward.3} parent=126 // loop_body
                  %v654 = vld [vmem:[%s652] sm:$0xff]
                  %655 = vst [vmem:[%s653] sm:$0xff] %v654
                  %v656 = vld [vmem:[%s652 + $0x18] sm:$0xff]
                  %657 = vst [vmem:[%s653 + $0x8] sm:$0xff] %v656
                  %v658 = vld [vmem:[%s652 + $0x30] sm:$0xff]
                  %659 = vst [vmem:[%s653 + $0x10] sm:$0xff] %v658
                  %v660 = vld [vmem:[%s652 + $0x48] sm:$0xff]
                  %661 = vst [vmem:[%s653 + $0x18] sm:$0xff] %v660
                  %v662 = vld [vmem:[%s652 + $0x60] sm:$0xff]
                  %663 = vst [vmem:[%s653 + $0x20] sm:$0xff] %v662
                  %v664 = vld [vmem:[%s652 + $0x78] sm:$0xff]
                  %665 = vst [vmem:[%s653 + $0x28] sm:$0xff] %v664
                  %v666 = vld [vmem:[%s652 + $0x90] sm:$0xff]
                  %667 = vst [vmem:[%s653 + $0x30] sm:$0xff] %v666
                  %v668 = vld [vmem:[%s652 + $0xa8] sm:$0xff]
                  %669 = vst [vmem:[%s653 + $0x38] sm:$0xff] %v668
                  %v670 = vld [vmem:[%s652 + $0xc0] sm:$0xff]
                  %671 = vst [vmem:[%s653 + $0x40] sm:$0xff] %v670
                  %v672 = vld [vmem:[%s652 + $0xd8] sm:$0xff]
                  %673 = vst [vmem:[%s653 + $0x48] sm:$0xff] %v672
                  %v674 = vld [vmem:[%s652 + $0xf0] sm:$0xff]
                  %675 = vst [vmem:[%s653 + $0x50] sm:$0xff] %v674
                  %v676 = vld [vmem:[%s652 + $0x108] sm:$0xff]
                  %677 = vst [vmem:[%s653 + $0x58] sm:$0xff] %v676
                  %v678 = vld [vmem:[%s652 + $0x120] sm:$0xff]
                  %679 = vst [vmem:[%s653 + $0x60] sm:$0xff] %v678
                  %v680 = vld [vmem:[%s652 + $0x138] sm:$0xff]
                  %681 = vst [vmem:[%s653 + $0x68] sm:$0xff] %v680
                  %v682 = vld [vmem:[%s652 + $0x150] sm:$0xff]
                  %683 = vst [vmem:[%s653 + $0x70] sm:$0xff] %v682
                  %v684 = vld [vmem:[%s652 + $0x168] sm:$0xff]
                  %685 = vst [vmem:[%s653 + $0x78] sm:$0xff] %v684
                  %v686 = vld [vmem:[%s652 + $0x180] sm:$0xff]
                  %687 = vst [vmem:[%s653 + $0x80] sm:$0xff] %v686
                  %v688 = vld [vmem:[%s652 + $0x198] sm:$0xff]
                  %689 = vst [vmem:[%s653 + $0x88] sm:$0xff] %v688
                  %v690 = vld [vmem:[%s652 + $0x1b0] sm:$0xff]
                  %691 = vst [vmem:[%s653 + $0x90] sm:$0xff] %v690
                  %v692 = vld [vmem:[%s652 + $0x1c8] sm:$0xff]
                  %693 = vst [vmem:[%s653 + $0x98] sm:$0xff] %v692
                  %v694 = vld [vmem:[%s652 + $0x1e0] sm:$0xff]
                  %695 = vst [vmem:[%s653 + $0xa0] sm:$0xff] %v694
                  %v696 = vld [vmem:[%s652 + $0x1f8] sm:$0xff]
                  %697 = vst [vmem:[%s653 + $0xa8] sm:$0xff] %v696
                  %v698 = vld [vmem:[%s652 + $0x210] sm:$0xff]
                  %699 = vst [vmem:[%s653 + $0xb0] sm:$0xff] %v698
                  %v700 = vld [vmem:[%s652 + $0x228] sm:$0xff]
                  %701 = vst [vmem:[%s653 + $0xb8] sm:$0xff] %v700
                  %v702 = vld [vmem:[%s652 + $0x240] sm:$0xff]
                  %703 = vst [vmem:[%s653 + $0xc0] sm:$0xff] %v702
                  %v704 = vld [vmem:[%s652 + $0x258] sm:$0xff]
                  %705 = vst [vmem:[%s653 + $0xc8] sm:$0xff] %v704
                  %v706 = vld [vmem:[%s652 + $0x270] sm:$0xff]
                  %707 = vst [vmem:[%s653 + $0xd0] sm:$0xff] %v706
                  %v708 = vld [vmem:[%s652 + $0x288] sm:$0xff]
                  %709 = vst [vmem:[%s653 + $0xd8] sm:$0xff] %v708
                  %v710 = vld [vmem:[%s652 + $0x2a0] sm:$0xff]
                  %711 = vst [vmem:[%s653 + $0xe0] sm:$0xff] %v710
                  %v712 = vld [vmem:[%s652 + $0x2b8] sm:$0xff]
                  %713 = vst [vmem:[%s653 + $0xe8] sm:$0xff] %v712
                  %v714 = vld [vmem:[%s652 + $0x2d0] sm:$0xff]
                  %715 = vst [vmem:[%s653 + $0xf0] sm:$0xff] %v714
                  %v716 = vld [vmem:[%s652 + $0x2e8] sm:$0xff]
                  %717 = vst [vmem:[%s653 + $0xf8] sm:$0xff] %v716
                $region132: #{attention_forward.3} parent=126 // loop_footer
                  %s651 = sadd.s32 1, %s647
                $region133: #{attention_forward.3} parent=126 // loop_footer_branch
                  %646 = sbr.rel target = $region129
                $region134: #{attention_forward.3} parent=126 // loop_exit
                  _
              $region127: #{attention_forward.3} parent=111 // pred_fallthru
                _
              // Predicated region
              $region135: #{attention_forward.3} parent=111 // pred_check
                _
              $region136: #{attention_forward.3} parent=111 // pred_check_branch
                %719 = sbr.rel target = $region138
              $region137: #{attention_forward.3} parent=111 // pred_region
                _
              $region138: #{attention_forward.3} parent=111 // pred_fallthru
                _
            $region112: #{attention_forward.3} parent=107 // pred_fallthru
              _
            // Predicated region
            $region113: #{attention_forward.3} parent=107 // pred_check
              _
            $region114: #{attention_forward.3} parent=107 // pred_check_branch
              %570 = sbr.rel target = $region116
            $region115: #{attention_forward.3} parent=107 // pred_region
              loop: start=0, step=1, limit=1
              $region117: #{attention_forward.3} parent=115 // loop_pre_header
                _
              $region118: #{attention_forward.3} parent=115 // loop_header
                %s573 = sphi 0, %s577
                %p574 = scmp.ge.s32.totalorder %s573, 1
                %s578 = sphi %s564, %s564
                %s579 = sphi %s557, %s557
              $region119: #{attention_forward.3} parent=115 // loop_header_branch
                %576 = sbr.rel (%p574) target = $region123
              $region120: #{attention_forward.3} parent=115 // loop_body
                %v580 = vld [vmem:[%s578] sm:$0xff]
                %581 = vst [vmem:[%s579] sm:$0xff] %v580
                %v582 = vld [vmem:[%s578 + $0x18] sm:$0xff]
                %583 = vst [vmem:[%s579 + $0x8] sm:$0xff] %v582
                %v584 = vld [vmem:[%s578 + $0x30] sm:$0xff]
                %585 = vst [vmem:[%s579 + $0x10] sm:$0xff] %v584
                %v586 = vld [vmem:[%s578 + $0x48] sm:$0xff]
                %587 = vst [vmem:[%s579 + $0x18] sm:$0xff] %v586
                %v588 = vld [vmem:[%s578 + $0x60] sm:$0xff]
                %589 = vst [vmem:[%s579 + $0x20] sm:$0xff] %v588
                %v590 = vld [vmem:[%s578 + $0x78] sm:$0xff]
                %591 = vst [vmem:[%s579 + $0x28] sm:$0xff] %v590
                %v592 = vld [vmem:[%s578 + $0x90] sm:$0xff]
                %593 = vst [vmem:[%s579 + $0x30] sm:$0xff] %v592
                %v594 = vld [vmem:[%s578 + $0xa8] sm:$0xff]
                %595 = vst [vmem:[%s579 + $0x38] sm:$0xff] %v594
                %v596 = vld [vmem:[%s578 + $0xc0] sm:$0xff]
                %597 = vst [vmem:[%s579 + $0x40] sm:$0xff] %v596
                %v598 = vld [vmem:[%s578 + $0xd8] sm:$0xff]
                %599 = vst [vmem:[%s579 + $0x48] sm:$0xff] %v598
                %v600 = vld [vmem:[%s578 + $0xf0] sm:$0xff]
                %601 = vst [vmem:[%s579 + $0x50] sm:$0xff] %v600
                %v602 = vld [vmem:[%s578 + $0x108] sm:$0xff]
                %603 = vst [vmem:[%s579 + $0x58] sm:$0xff] %v602
                %v604 = vld [vmem:[%s578 + $0x120] sm:$0xff]
                %605 = vst [vmem:[%s579 + $0x60] sm:$0xff] %v604
                %v606 = vld [vmem:[%s578 + $0x138] sm:$0xff]
                %607 = vst [vmem:[%s579 + $0x68] sm:$0xff] %v606
                %v608 = vld [vmem:[%s578 + $0x150] sm:$0xff]
                %609 = vst [vmem:[%s579 + $0x70] sm:$0xff] %v608
                %v610 = vld [vmem:[%s578 + $0x168] sm:$0xff]
                %611 = vst [vmem:[%s579 + $0x78] sm:$0xff] %v610
                %v612 = vld [vmem:[%s578 + $0x180] sm:$0xff]
                %613 = vst [vmem:[%s579 + $0x80] sm:$0xff] %v612
                %v614 = vld [vmem:[%s578 + $0x198] sm:$0xff]
                %615 = vst [vmem:[%s579 + $0x88] sm:$0xff] %v614
                %v616 = vld [vmem:[%s578 + $0x1b0] sm:$0xff]
                %617 = vst [vmem:[%s579 + $0x90] sm:$0xff] %v616
                %v618 = vld [vmem:[%s578 + $0x1c8] sm:$0xff]
                %619 = vst [vmem:[%s579 + $0x98] sm:$0xff] %v618
                %v620 = vld [vmem:[%s578 + $0x1e0] sm:$0xff]
                %621 = vst [vmem:[%s579 + $0xa0] sm:$0xff] %v620
                %v622 = vld [vmem:[%s578 + $0x1f8] sm:$0xff]
                %623 = vst [vmem:[%s579 + $0xa8] sm:$0xff] %v622
                %v624 = vld [vmem:[%s578 + $0x210] sm:$0xff]
                %625 = vst [vmem:[%s579 + $0xb0] sm:$0xff] %v624
                %v626 = vld [vmem:[%s578 + $0x228] sm:$0xff]
                %627 = vst [vmem:[%s579 + $0xb8] sm:$0xff] %v626
                %v628 = vld [vmem:[%s578 + $0x240] sm:$0xff]
                %629 = vst [vmem:[%s579 + $0xc0] sm:$0xff] %v628
                %v630 = vld [vmem:[%s578 + $0x258] sm:$0xff]
                %631 = vst [vmem:[%s579 + $0xc8] sm:$0xff] %v630
                %v632 = vld [vmem:[%s578 + $0x270] sm:$0xff]
                %633 = vst [vmem:[%s579 + $0xd0] sm:$0xff] %v632
                %v634 = vld [vmem:[%s578 + $0x288] sm:$0xff]
                %635 = vst [vmem:[%s579 + $0xd8] sm:$0xff] %v634
                %v636 = vld [vmem:[%s578 + $0x2a0] sm:$0xff]
                %637 = vst [vmem:[%s579 + $0xe0] sm:$0xff] %v636
                %v638 = vld [vmem:[%s578 + $0x2b8] sm:$0xff]
                %639 = vst [vmem:[%s579 + $0xe8] sm:$0xff] %v638
                %v640 = vld [vmem:[%s578 + $0x2d0] sm:$0xff]
                %641 = vst [vmem:[%s579 + $0xf0] sm:$0xff] %v640
                %v642 = vld [vmem:[%s578 + $0x2e8] sm:$0xff]
                %643 = vst [vmem:[%s579 + $0xf8] sm:$0xff] %v642
              $region121: #{attention_forward.3} parent=115 // loop_footer
                %s577 = sadd.s32 1, %s573
              $region122: #{attention_forward.3} parent=115 // loop_footer_branch
                %572 = sbr.rel target = $region118
              $region123: #{attention_forward.3} parent=115 // loop_exit
                _
            $region116: #{attention_forward.3} parent=107 // pred_fallthru
              _
          $region108: #{attention_forward.3} parent=103 // pred_fallthru
            _
          %720 = vnop
        $region104: #{attention_forward.3} parent=23 // pred_fallthru
          _
      $region24: #{attention_forward.3} parent=5 // pred_fallthru
        _
      %p721 = scmp.le.s32.totalorder 1, %s14
      %p722 = scmp.lt.s32.totalorder %s14, 3
      %p723 = pnand %p721, %p722
      %p724 = pneg %p723
      // Predicated region
      $region139: #{attention_forward.3} parent=5 // pred_check
        _
      $region140: #{attention_forward.3} parent=5 // pred_check_branch
        %726 = sbr.rel (%p723) target = $region142
      $region141: #{attention_forward.3} parent=5 // pred_region
        %s727 = ssub.s32 %s14, 1
        %s728 = sand.u32 %s48, 1
        %s729 = sand.u32 %s48, 1
        %s730 = smul.addr %s729, 256
        %s731 = scalar_lea.vmem [#allocation5], %s730
        // Predicated region
        $region143: #{attention_forward.3} parent=141 // pred_check
          %p732 = pneg %p61
        $region144: #{attention_forward.3} parent=141 // pred_check_branch
          %734 = sbr.rel (%p732) target = $region146
        $region145: #{attention_forward.3} parent=141 // pred_region
          _
        $region146: #{attention_forward.3} parent=141 // pred_fallthru
          _
        %s735 = sand.u32 %s76, 1
        %s736 = sand.u32 %s76, 1
        %s737 = smul.addr %s736, 256
        %s738 = scalar_lea.vmem [#allocation6], %s737
        // Predicated region
        $region147: #{attention_forward.3} parent=141 // pred_check
          %p739 = pneg %p89
        $region148: #{attention_forward.3} parent=141 // pred_check_branch
          %741 = sbr.rel (%p739) target = $region150
        $region149: #{attention_forward.3} parent=141 // pred_region
          _
        $region150: #{attention_forward.3} parent=141 // pred_fallthru
          _
        %s742 = sand.u32 %s104, 1
        %s743 = sand.u32 %s104, 1
        %s744 = smul.addr %s743, 256
        %s745 = scalar_lea.vmem [#allocation7], %s744
        // Predicated region
        $region151: #{attention_forward.3} parent=141 // pred_check
          %p746 = pneg %p117
        $region152: #{attention_forward.3} parent=141 // pred_check_branch
          %748 = sbr.rel (%p746) target = $region154
        $region153: #{attention_forward.3} parent=141 // pred_region
          _
        $region154: #{attention_forward.3} parent=141 // pred_fallthru
          _
        %s749 = sand.u32 %s48, 1
        %s750 = sand.u32 %s48, 1
        %s751 = smul.addr %s750, 256
        %s752 = scalar_lea.vmem [#allocation5], %s751
        %p753 = pneg %p61
        %p754 = pneg %p58
        %s755 = sand.u32 %s76, 1
        %s756 = sand.u32 %s76, 1
        %s757 = smul.addr %s756, 256
        %s758 = scalar_lea.vmem [#allocation6], %s757
        %p759 = pneg %p89
        %p760 = pneg %p86
        %s761 = sand.u32 %s104, 1
        %s762 = sand.u32 %s104, 1
        %s763 = smul.addr %s762, 256
        %s764 = scalar_lea.vmem [#allocation7], %s763
        %p765 = pneg %p117
        %p766 = pneg %p114
        %p767 = pneg %p138
        %p768 = pneg %p135
        %p769 = pneg %p159
        %p770 = pneg %p156
        %p771 = pneg %p187
        %p772 = pneg %p184
        %s773 = sand.u32 %s174, 1
        %s774 = scalar_lea.sflag [#allocation9], %s773
        %s775 = sand.u32 %s174, 1
        %s776 = smul.addr %s775, 256
        %s777 = scalar_lea.vmem [#allocation8], %s776
        %s778 = smul.u32 32, %s25
        %s779 = smul.u32 32, %s26
        %s780 = smul.u32 32, %s26
        %s781 = smul.u32 32, %s25
        %p782 = scmp.eq.s32.totalorder %s26, 0
        // Predicated region
        $region155: #{attention_forward.3} parent=141 // pred_check
          %p783 = pneg %p782
        $region156: #{attention_forward.3} parent=141 // pred_check_branch
          %785 = sbr.rel (%p783) target = $region158
        $region157: #{attention_forward.3} parent=141 // pred_region
          %vm786 = vcmask 7168
          %787 = vst.msk [vmem:[#allocation2] sm:$0xff] %vm786, -inf
          %788 = vst.msk [vmem:[#allocation2 + $0x8] sm:$0xff] %vm786, -inf
          %789 = vst.msk [vmem:[#allocation2 + $0x10] sm:$0xff] %vm786, -inf
          %790 = vst.msk [vmem:[#allocation2 + $0x18] sm:$0xff] %vm786, -inf
          %791 = vst.msk [vmem:[#allocation2 + $0x20] sm:$0xff] %vm786, -inf
          %792 = vst.msk [vmem:[#allocation2 + $0x28] sm:$0xff] %vm786, -inf
          %793 = vst.msk [vmem:[#allocation2 + $0x30] sm:$0xff] %vm786, -inf
          %794 = vst.msk [vmem:[#allocation2 + $0x38] sm:$0xff] %vm786, -inf
          %795 = vst.msk [vmem:[#allocation2 + $0x40] sm:$0xff] %vm786, -inf
          %796 = vst.msk [vmem:[#allocation2 + $0x48] sm:$0xff] %vm786, -inf
          %797 = vst.msk [vmem:[#allocation2 + $0x50] sm:$0xff] %vm786, -inf
          %798 = vst.msk [vmem:[#allocation2 + $0x58] sm:$0xff] %vm786, -inf
          %799 = vst.msk [vmem:[#allocation2 + $0x60] sm:$0xff] %vm786, -inf
          %800 = vst.msk [vmem:[#allocation2 + $0x68] sm:$0xff] %vm786, -inf
          %801 = vst.msk [vmem:[#allocation2 + $0x70] sm:$0xff] %vm786, -inf
          %802 = vst.msk [vmem:[#allocation2 + $0x78] sm:$0xff] %vm786, -inf
          %803 = vst.msk [vmem:[#allocation2 + $0x80] sm:$0xff] %vm786, -inf
          %804 = vst.msk [vmem:[#allocation2 + $0x88] sm:$0xff] %vm786, -inf
          %805 = vst.msk [vmem:[#allocation2 + $0x90] sm:$0xff] %vm786, -inf
          %806 = vst.msk [vmem:[#allocation2 + $0x98] sm:$0xff] %vm786, -inf
          %807 = vst.msk [vmem:[#allocation2 + $0xa0] sm:$0xff] %vm786, -inf
          %808 = vst.msk [vmem:[#allocation2 + $0xa8] sm:$0xff] %vm786, -inf
          %809 = vst.msk [vmem:[#allocation2 + $0xb0] sm:$0xff] %vm786, -inf
          %810 = vst.msk [vmem:[#allocation2 + $0xb8] sm:$0xff] %vm786, -inf
          %811 = vst.msk [vmem:[#allocation2 + $0xc0] sm:$0xff] %vm786, -inf
          %812 = vst.msk [vmem:[#allocation2 + $0xc8] sm:$0xff] %vm786, -inf
          %813 = vst.msk [vmem:[#allocation2 + $0xd0] sm:$0xff] %vm786, -inf
          %814 = vst.msk [vmem:[#allocation2 + $0xd8] sm:$0xff] %vm786, -inf
          %815 = vst.msk [vmem:[#allocation2 + $0xe0] sm:$0xff] %vm786, -inf
          %816 = vst.msk [vmem:[#allocation2 + $0xe8] sm:$0xff] %vm786, -inf
          %817 = vst.msk [vmem:[#allocation2 + $0xf0] sm:$0xff] %vm786, -inf
          %818 = vst.msk [vmem:[#allocation2 + $0xf8] sm:$0xff] %vm786, -inf
          %819 = vst.msk [vmem:[#allocation2 + $0x100] sm:$0xff] %vm786, -inf
          %820 = vst.msk [vmem:[#allocation2 + $0x108] sm:$0xff] %vm786, -inf
          %821 = vst.msk [vmem:[#allocation2 + $0x110] sm:$0xff] %vm786, -inf
          %822 = vst.msk [vmem:[#allocation2 + $0x118] sm:$0xff] %vm786, -inf
          %823 = vst.msk [vmem:[#allocation2 + $0x120] sm:$0xff] %vm786, -inf
          %824 = vst.msk [vmem:[#allocation2 + $0x128] sm:$0xff] %vm786, -inf
          %825 = vst.msk [vmem:[#allocation2 + $0x130] sm:$0xff] %vm786, -inf
          %826 = vst.msk [vmem:[#allocation2 + $0x138] sm:$0xff] %vm786, -inf
          %827 = vst.msk [vmem:[#allocation2 + $0x140] sm:$0xff] %vm786, -inf
          %828 = vst.msk [vmem:[#allocation2 + $0x148] sm:$0xff] %vm786, -inf
          %829 = vst.msk [vmem:[#allocation2 + $0x150] sm:$0xff] %vm786, -inf
          %830 = vst.msk [vmem:[#allocation2 + $0x158] sm:$0xff] %vm786, -inf
          %831 = vst.msk [vmem:[#allocation2 + $0x160] sm:$0xff] %vm786, -inf
          %832 = vst.msk [vmem:[#allocation2 + $0x168] sm:$0xff] %vm786, -inf
          %833 = vst.msk [vmem:[#allocation2 + $0x170] sm:$0xff] %vm786, -inf
          %834 = vst.msk [vmem:[#allocation2 + $0x178] sm:$0xff] %vm786, -inf
          %835 = vst.msk [vmem:[#allocation2 + $0x180] sm:$0xff] %vm786, -inf
          %836 = vst.msk [vmem:[#allocation2 + $0x188] sm:$0xff] %vm786, -inf
          %837 = vst.msk [vmem:[#allocation2 + $0x190] sm:$0xff] %vm786, -inf
          %838 = vst.msk [vmem:[#allocation2 + $0x198] sm:$0xff] %vm786, -inf
          %839 = vst.msk [vmem:[#allocation2 + $0x1a0] sm:$0xff] %vm786, -inf
          %840 = vst.msk [vmem:[#allocation2 + $0x1a8] sm:$0xff] %vm786, -inf
          %841 = vst.msk [vmem:[#allocation2 + $0x1b0] sm:$0xff] %vm786, -inf
          %842 = vst.msk [vmem:[#allocation2 + $0x1b8] sm:$0xff] %vm786, -inf
          %843 = vst.msk [vmem:[#allocation2 + $0x1c0] sm:$0xff] %vm786, -inf
          %844 = vst.msk [vmem:[#allocation2 + $0x1c8] sm:$0xff] %vm786, -inf
          %845 = vst.msk [vmem:[#allocation2 + $0x1d0] sm:$0xff] %vm786, -inf
          %846 = vst.msk [vmem:[#allocation2 + $0x1d8] sm:$0xff] %vm786, -inf
          %847 = vst.msk [vmem:[#allocation2 + $0x1e0] sm:$0xff] %vm786, -inf
          %848 = vst.msk [vmem:[#allocation2 + $0x1e8] sm:$0xff] %vm786, -inf
          %849 = vst.msk [vmem:[#allocation2 + $0x1f0] sm:$0xff] %vm786, -inf
          %850 = vst.msk [vmem:[#allocation2 + $0x1f8] sm:$0xff] %vm786, -inf
          %851 = vst.msk [vmem:[#allocation3] sm:$0xff] %vm786, 0.0
          %852 = vst.msk [vmem:[#allocation3 + $0x8] sm:$0xff] %vm786, 0.0
          %853 = vst.msk [vmem:[#allocation3 + $0x10] sm:$0xff] %vm786, 0.0
          %854 = vst.msk [vmem:[#allocation3 + $0x18] sm:$0xff] %vm786, 0.0
          %855 = vst.msk [vmem:[#allocation3 + $0x20] sm:$0xff] %vm786, 0.0
          %856 = vst.msk [vmem:[#allocation3 + $0x28] sm:$0xff] %vm786, 0.0
          %857 = vst.msk [vmem:[#allocation3 + $0x30] sm:$0xff] %vm786, 0.0
          %858 = vst.msk [vmem:[#allocation3 + $0x38] sm:$0xff] %vm786, 0.0
          %859 = vst.msk [vmem:[#allocation3 + $0x40] sm:$0xff] %vm786, 0.0
          %860 = vst.msk [vmem:[#allocation3 + $0x48] sm:$0xff] %vm786, 0.0
          %861 = vst.msk [vmem:[#allocation3 + $0x50] sm:$0xff] %vm786, 0.0
          %862 = vst.msk [vmem:[#allocation3 + $0x58] sm:$0xff] %vm786, 0.0
          %863 = vst.msk [vmem:[#allocation3 + $0x60] sm:$0xff] %vm786, 0.0
          %864 = vst.msk [vmem:[#allocation3 + $0x68] sm:$0xff] %vm786, 0.0
          %865 = vst.msk [vmem:[#allocation3 + $0x70] sm:$0xff] %vm786, 0.0
          %866 = vst.msk [vmem:[#allocation3 + $0x78] sm:$0xff] %vm786, 0.0
          %867 = vst.msk [vmem:[#allocation3 + $0x80] sm:$0xff] %vm786, 0.0
          %868 = vst.msk [vmem:[#allocation3 + $0x88] sm:$0xff] %vm786, 0.0
          %869 = vst.msk [vmem:[#allocation3 + $0x90] sm:$0xff] %vm786, 0.0
          %870 = vst.msk [vmem:[#allocation3 + $0x98] sm:$0xff] %vm786, 0.0
          %871 = vst.msk [vmem:[#allocation3 + $0xa0] sm:$0xff] %vm786, 0.0
          %872 = vst.msk [vmem:[#allocation3 + $0xa8] sm:$0xff] %vm786, 0.0
          %873 = vst.msk [vmem:[#allocation3 + $0xb0] sm:$0xff] %vm786, 0.0
          %874 = vst.msk [vmem:[#allocation3 + $0xb8] sm:$0xff] %vm786, 0.0
          %875 = vst.msk [vmem:[#allocation3 + $0xc0] sm:$0xff] %vm786, 0.0
          %876 = vst.msk [vmem:[#allocation3 + $0xc8] sm:$0xff] %vm786, 0.0
          %877 = vst.msk [vmem:[#allocation3 + $0xd0] sm:$0xff] %vm786, 0.0
          %878 = vst.msk [vmem:[#allocation3 + $0xd8] sm:$0xff] %vm786, 0.0
          %879 = vst.msk [vmem:[#allocation3 + $0xe0] sm:$0xff] %vm786, 0.0
          %880 = vst.msk [vmem:[#allocation3 + $0xe8] sm:$0xff] %vm786, 0.0
          %881 = vst.msk [vmem:[#allocation3 + $0xf0] sm:$0xff] %vm786, 0.0
          %882 = vst.msk [vmem:[#allocation3 + $0xf8] sm:$0xff] %vm786, 0.0
          %883 = vst.msk [vmem:[#allocation3 + $0x100] sm:$0xff] %vm786, 0.0
          %884 = vst.msk [vmem:[#allocation3 + $0x108] sm:$0xff] %vm786, 0.0
          %885 = vst.msk [vmem:[#allocation3 + $0x110] sm:$0xff] %vm786, 0.0
          %886 = vst.msk [vmem:[#allocation3 + $0x118] sm:$0xff] %vm786, 0.0
          %887 = vst.msk [vmem:[#allocation3 + $0x120] sm:$0xff] %vm786, 0.0
          %888 = vst.msk [vmem:[#allocation3 + $0x128] sm:$0xff] %vm786, 0.0
          %889 = vst.msk [vmem:[#allocation3 + $0x130] sm:$0xff] %vm786, 0.0
          %890 = vst.msk [vmem:[#allocation3 + $0x138] sm:$0xff] %vm786, 0.0
          %891 = vst.msk [vmem:[#allocation3 + $0x140] sm:$0xff] %vm786, 0.0
          %892 = vst.msk [vmem:[#allocation3 + $0x148] sm:$0xff] %vm786, 0.0
          %893 = vst.msk [vmem:[#allocation3 + $0x150] sm:$0xff] %vm786, 0.0
          %894 = vst.msk [vmem:[#allocation3 + $0x158] sm:$0xff] %vm786, 0.0
          %895 = vst.msk [vmem:[#allocation3 + $0x160] sm:$0xff] %vm786, 0.0
          %896 = vst.msk [vmem:[#allocation3 + $0x168] sm:$0xff] %vm786, 0.0
          %897 = vst.msk [vmem:[#allocation3 + $0x170] sm:$0xff] %vm786, 0.0
          %898 = vst.msk [vmem:[#allocation3 + $0x178] sm:$0xff] %vm786, 0.0
          %899 = vst.msk [vmem:[#allocation3 + $0x180] sm:$0xff] %vm786, 0.0
          %900 = vst.msk [vmem:[#allocation3 + $0x188] sm:$0xff] %vm786, 0.0
          %901 = vst.msk [vmem:[#allocation3 + $0x190] sm:$0xff] %vm786, 0.0
          %902 = vst.msk [vmem:[#allocation3 + $0x198] sm:$0xff] %vm786, 0.0
          %903 = vst.msk [vmem:[#allocation3 + $0x1a0] sm:$0xff] %vm786, 0.0
          %904 = vst.msk [vmem:[#allocation3 + $0x1a8] sm:$0xff] %vm786, 0.0
          %905 = vst.msk [vmem:[#allocation3 + $0x1b0] sm:$0xff] %vm786, 0.0
          %906 = vst.msk [vmem:[#allocation3 + $0x1b8] sm:$0xff] %vm786, 0.0
          %907 = vst.msk [vmem:[#allocation3 + $0x1c0] sm:$0xff] %vm786, 0.0
          %908 = vst.msk [vmem:[#allocation3 + $0x1c8] sm:$0xff] %vm786, 0.0
          %909 = vst.msk [vmem:[#allocation3 + $0x1d0] sm:$0xff] %vm786, 0.0
          %910 = vst.msk [vmem:[#allocation3 + $0x1d8] sm:$0xff] %vm786, 0.0
          %911 = vst.msk [vmem:[#allocation3 + $0x1e0] sm:$0xff] %vm786, 0.0
          %912 = vst.msk [vmem:[#allocation3 + $0x1e8] sm:$0xff] %vm786, 0.0
          %913 = vst.msk [vmem:[#allocation3 + $0x1f0] sm:$0xff] %vm786, 0.0
          %914 = vst.msk [vmem:[#allocation3 + $0x1f8] sm:$0xff] %vm786, 0.0
          %915 = vst [vmem:[#allocation4] sm:$0xff] 0.0
          %916 = vst [vmem:[#allocation4 + $0x8] sm:$0xff] 0.0
          %917 = vst [vmem:[#allocation4 + $0x10] sm:$0xff] 0.0
          %918 = vst [vmem:[#allocation4 + $0x18] sm:$0xff] 0.0
          %919 = vst [vmem:[#allocation4 + $0x20] sm:$0xff] 0.0
          %920 = vst [vmem:[#allocation4 + $0x28] sm:$0xff] 0.0
          %921 = vst [vmem:[#allocation4 + $0x30] sm:$0xff] 0.0
          %922 = vst [vmem:[#allocation4 + $0x38] sm:$0xff] 0.0
          %923 = vst [vmem:[#allocation4 + $0x40] sm:$0xff] 0.0
          %924 = vst [vmem:[#allocation4 + $0x48] sm:$0xff] 0.0
          %925 = vst [vmem:[#allocation4 + $0x50] sm:$0xff] 0.0
          %926 = vst [vmem:[#allocation4 + $0x58] sm:$0xff] 0.0
          %927 = vst [vmem:[#allocation4 + $0x60] sm:$0xff] 0.0
          %928 = vst [vmem:[#allocation4 + $0x68] sm:$0xff] 0.0
          %929 = vst [vmem:[#allocation4 + $0x70] sm:$0xff] 0.0
          %930 = vst [vmem:[#allocation4 + $0x78] sm:$0xff] 0.0
          %931 = vst [vmem:[#allocation4 + $0x80] sm:$0xff] 0.0
          %932 = vst [vmem:[#allocation4 + $0x88] sm:$0xff] 0.0
          %933 = vst [vmem:[#allocation4 + $0x90] sm:$0xff] 0.0
          %934 = vst [vmem:[#allocation4 + $0x98] sm:$0xff] 0.0
          %935 = vst [vmem:[#allocation4 + $0xa0] sm:$0xff] 0.0
          %936 = vst [vmem:[#allocation4 + $0xa8] sm:$0xff] 0.0
          %937 = vst [vmem:[#allocation4 + $0xb0] sm:$0xff] 0.0
          %938 = vst [vmem:[#allocation4 + $0xb8] sm:$0xff] 0.0
          %939 = vst [vmem:[#allocation4 + $0xc0] sm:$0xff] 0.0
          %940 = vst [vmem:[#allocation4 + $0xc8] sm:$0xff] 0.0
          %941 = vst [vmem:[#allocation4 + $0xd0] sm:$0xff] 0.0
          %942 = vst [vmem:[#allocation4 + $0xd8] sm:$0xff] 0.0
          %943 = vst [vmem:[#allocation4 + $0xe0] sm:$0xff] 0.0
          %944 = vst [vmem:[#allocation4 + $0xe8] sm:$0xff] 0.0
          %945 = vst [vmem:[#allocation4 + $0xf0] sm:$0xff] 0.0
          %946 = vst [vmem:[#allocation4 + $0xf8] sm:$0xff] 0.0
        $region158: #{attention_forward.3} parent=141 // pred_fallthru
          _
        %v947 = vld [vmem:[%s731] sm:$0xff]
        %v948 = vld [vmem:[%s731 + $0x8] sm:$0xff]
        %v949 = vld [vmem:[%s731 + $0x10] sm:$0xff]
        %v950 = vld [vmem:[%s731 + $0x18] sm:$0xff]
        %v951 = vld [vmem:[%s731 + $0x20] sm:$0xff]
        %v952 = vld [vmem:[%s731 + $0x28] sm:$0xff]
        %v953 = vld [vmem:[%s731 + $0x30] sm:$0xff]
        %v954 = vld [vmem:[%s731 + $0x38] sm:$0xff]
        %v955 = vld [vmem:[%s731 + $0x40] sm:$0xff]
        %v956 = vld [vmem:[%s731 + $0x48] sm:$0xff]
        %v957 = vld [vmem:[%s731 + $0x50] sm:$0xff]
        %v958 = vld [vmem:[%s731 + $0x58] sm:$0xff]
        %v959 = vld [vmem:[%s731 + $0x60] sm:$0xff]
        %v960 = vld [vmem:[%s731 + $0x68] sm:$0xff]
        %v961 = vld [vmem:[%s731 + $0x70] sm:$0xff]
        %v962 = vld [vmem:[%s731 + $0x78] sm:$0xff]
        %v963 = vld [vmem:[%s731 + $0x80] sm:$0xff]
        %v964 = vld [vmem:[%s731 + $0x88] sm:$0xff]
        %v965 = vld [vmem:[%s731 + $0x90] sm:$0xff]
        %v966 = vld [vmem:[%s731 + $0x98] sm:$0xff]
        %v967 = vld [vmem:[%s731 + $0xa0] sm:$0xff]
        %v968 = vld [vmem:[%s731 + $0xa8] sm:$0xff]
        %v969 = vld [vmem:[%s731 + $0xb0] sm:$0xff]
        %v970 = vld [vmem:[%s731 + $0xb8] sm:$0xff]
        %v971 = vld [vmem:[%s731 + $0xc0] sm:$0xff]
        %v972 = vld [vmem:[%s731 + $0xc8] sm:$0xff]
        %v973 = vld [vmem:[%s731 + $0xd0] sm:$0xff]
        %v974 = vld [vmem:[%s731 + $0xd8] sm:$0xff]
        %v975 = vld [vmem:[%s731 + $0xe0] sm:$0xff]
        %v976 = vld [vmem:[%s731 + $0xe8] sm:$0xff]
        %v977 = vld [vmem:[%s731 + $0xf0] sm:$0xff]
        %v978 = vld [vmem:[%s731 + $0xf8] sm:$0xff]
        %v979 = vld [vmem:[%s738] sm:$0xff]
        %v980 = vld [vmem:[%s738 + $0x8] sm:$0xff]
        %v981 = vld [vmem:[%s738 + $0x10] sm:$0xff]
        %v982 = vld [vmem:[%s738 + $0x18] sm:$0xff]
        %v983 = vld [vmem:[%s738 + $0x20] sm:$0xff]
        %v984 = vld [vmem:[%s738 + $0x28] sm:$0xff]
        %v985 = vld [vmem:[%s738 + $0x30] sm:$0xff]
        %v986 = vld [vmem:[%s738 + $0x38] sm:$0xff]
        %v987 = vld [vmem:[%s738 + $0x40] sm:$0xff]
        %v988 = vld [vmem:[%s738 + $0x48] sm:$0xff]
        %v989 = vld [vmem:[%s738 + $0x50] sm:$0xff]
        %v990 = vld [vmem:[%s738 + $0x58] sm:$0xff]
        %v991 = vld [vmem:[%s738 + $0x60] sm:$0xff]
        %v992 = vld [vmem:[%s738 + $0x68] sm:$0xff]
        %v993 = vld [vmem:[%s738 + $0x70] sm:$0xff]
        %v994 = vld [vmem:[%s738 + $0x78] sm:$0xff]
        %v995 = vld [vmem:[%s738 + $0x80] sm:$0xff]
        %v996 = vld [vmem:[%s738 + $0x88] sm:$0xff]
        %v997 = vld [vmem:[%s738 + $0x90] sm:$0xff]
        %v998 = vld [vmem:[%s738 + $0x98] sm:$0xff]
        %v999 = vld [vmem:[%s738 + $0xa0] sm:$0xff]
        %v1000 = vld [vmem:[%s738 + $0xa8] sm:$0xff]
        %v1001 = vld [vmem:[%s738 + $0xb0] sm:$0xff]
        %v1002 = vld [vmem:[%s738 + $0xb8] sm:$0xff]
        %v1003 = vld [vmem:[%s738 + $0xc0] sm:$0xff]
        %v1004 = vld [vmem:[%s738 + $0xc8] sm:$0xff]
        %v1005 = vld [vmem:[%s738 + $0xd0] sm:$0xff]
        %v1006 = vld [vmem:[%s738 + $0xd8] sm:$0xff]
        %v1007 = vld [vmem:[%s738 + $0xe0] sm:$0xff]
        %v1008 = vld [vmem:[%s738 + $0xe8] sm:$0xff]
        %v1009 = vld [vmem:[%s738 + $0xf0] sm:$0xff]
        %v1010 = vld [vmem:[%s738 + $0xf8] sm:$0xff]
        %v1011 = vld [vmem:[%s745] sm:$0xff]
        %v1012 = vld [vmem:[%s745 + $0x8] sm:$0xff]
        %v1013 = vld [vmem:[%s745 + $0x10] sm:$0xff]
        %v1014 = vld [vmem:[%s745 + $0x18] sm:$0xff]
        %v1015 = vld [vmem:[%s745 + $0x20] sm:$0xff]
        %v1016 = vld [vmem:[%s745 + $0x28] sm:$0xff]
        %v1017 = vld [vmem:[%s745 + $0x30] sm:$0xff]
        %v1018 = vld [vmem:[%s745 + $0x38] sm:$0xff]
        %v1019 = vld [vmem:[%s745 + $0x40] sm:$0xff]
        %v1020 = vld [vmem:[%s745 + $0x48] sm:$0xff]
        %v1021 = vld [vmem:[%s745 + $0x50] sm:$0xff]
        %v1022 = vld [vmem:[%s745 + $0x58] sm:$0xff]
        %v1023 = vld [vmem:[%s745 + $0x60] sm:$0xff]
        %v1024 = vld [vmem:[%s745 + $0x68] sm:$0xff]
        %v1025 = vld [vmem:[%s745 + $0x70] sm:$0xff]
        %v1026 = vld [vmem:[%s745 + $0x78] sm:$0xff]
        %v1027 = vld [vmem:[%s745 + $0x80] sm:$0xff]
        %v1028 = vld [vmem:[%s745 + $0x88] sm:$0xff]
        %v1029 = vld [vmem:[%s745 + $0x90] sm:$0xff]
        %v1030 = vld [vmem:[%s745 + $0x98] sm:$0xff]
        %v1031 = vld [vmem:[%s745 + $0xa0] sm:$0xff]
        %v1032 = vld [vmem:[%s745 + $0xa8] sm:$0xff]
        %v1033 = vld [vmem:[%s745 + $0xb0] sm:$0xff]
        %v1034 = vld [vmem:[%s745 + $0xb8] sm:$0xff]
        %v1035 = vld [vmem:[%s745 + $0xc0] sm:$0xff]
        %v1036 = vld [vmem:[%s745 + $0xc8] sm:$0xff]
        %v1037 = vld [vmem:[%s745 + $0xd0] sm:$0xff]
        %v1038 = vld [vmem:[%s745 + $0xd8] sm:$0xff]
        %v1039 = vld [vmem:[%s745 + $0xe0] sm:$0xff]
        %v1040 = vld [vmem:[%s745 + $0xe8] sm:$0xff]
        %v1041 = vld [vmem:[%s745 + $0xf0] sm:$0xff]
        %v1042 = vld [vmem:[%s745 + $0xf8] sm:$0xff]
        %vm1043 = vcmask 523264
        %v1045 = vsel %vm1043, %v947, 0
        %v1048 = vsel %vm1043, %v948, 0
        %v1051 = vsel %vm1043, %v949, 0
        %v1054 = vsel %vm1043, %v950, 0
        %v1057 = vsel %vm1043, %v951, 0
        %v1060 = vsel %vm1043, %v952, 0
        %v1063 = vsel %vm1043, %v953, 0
        %v1066 = vsel %vm1043, %v954, 0
        %v1069 = vsel %vm1043, %v955, 0
        %v1072 = vsel %vm1043, %v956, 0
        %v1075 = vsel %vm1043, %v957, 0
        %v1078 = vsel %vm1043, %v958, 0
        %v1081 = vsel %vm1043, %v959, 0
        %v1084 = vsel %vm1043, %v960, 0
        %v1087 = vsel %vm1043, %v961, 0
        %v1090 = vsel %vm1043, %v962, 0
        %v1093 = vsel %vm1043, %v963, 0
        %v1096 = vsel %vm1043, %v964, 0
        %v1099 = vsel %vm1043, %v965, 0
        %v1102 = vsel %vm1043, %v966, 0
        %v1105 = vsel %vm1043, %v967, 0
        %v1108 = vsel %vm1043, %v968, 0
        %v1111 = vsel %vm1043, %v969, 0
        %v1114 = vsel %vm1043, %v970, 0
        %v1117 = vsel %vm1043, %v971, 0
        %v1120 = vsel %vm1043, %v972, 0
        %v1123 = vsel %vm1043, %v973, 0
        %v1126 = vsel %vm1043, %v974, 0
        %v1129 = vsel %vm1043, %v975, 0
        %v1132 = vsel %vm1043, %v976, 0
        %v1135 = vsel %vm1043, %v977, 0
        %v1138 = vsel %vm1043, %v978, 0
        %v1141 = vsel %vm1043, %v979, 0
        %v1144 = vsel %vm1043, %v980, 0
        %v1147 = vsel %vm1043, %v981, 0
        %v1150 = vsel %vm1043, %v982, 0
        %v1153 = vsel %vm1043, %v983, 0
        %v1156 = vsel %vm1043, %v984, 0
        %v1159 = vsel %vm1043, %v985, 0
        %v1162 = vsel %vm1043, %v986, 0
        %v1165 = vsel %vm1043, %v987, 0
        %v1168 = vsel %vm1043, %v988, 0
        %v1171 = vsel %vm1043, %v989, 0
        %v1174 = vsel %vm1043, %v990, 0
        %v1177 = vsel %vm1043, %v991, 0
        %v1180 = vsel %vm1043, %v992, 0
        %v1183 = vsel %vm1043, %v993, 0
        %v1186 = vsel %vm1043, %v994, 0
        %v1189 = vsel %vm1043, %v995, 0
        %v1192 = vsel %vm1043, %v996, 0
        %v1195 = vsel %vm1043, %v997, 0
        %v1198 = vsel %vm1043, %v998, 0
        %v1201 = vsel %vm1043, %v999, 0
        %v1204 = vsel %vm1043, %v1000, 0
        %v1207 = vsel %vm1043, %v1001, 0
        %v1210 = vsel %vm1043, %v1002, 0
        %v1213 = vsel %vm1043, %v1003, 0
        %v1216 = vsel %vm1043, %v1004, 0
        %v1219 = vsel %vm1043, %v1005, 0
        %v1222 = vsel %vm1043, %v1006, 0
        %v1225 = vsel %vm1043, %v1007, 0
        %v1228 = vsel %vm1043, %v1008, 0
        %v1231 = vsel %vm1043, %v1009, 0
        %v1234 = vsel %vm1043, %v1010, 0
        %1236 = vmatprep.subr.mxu0 0.0
        %1237 = vmatpush1.xpose.msra.mxu0 %v1141
        %1238 = vmatprep.subr.mxu0 0.0
        %1239 = vmatpush1.xpose.msra.mxu0 %v1144
        %1240 = vmatprep.subr.mxu0 0.0
        %1241 = vmatpush1.xpose.msra.mxu0 %v1147
        %1242 = vmatprep.subr.mxu0 0.0
        %1243 = vmatpush1.xpose.msra.mxu0 %v1150
        %1244 = vmatprep.subr.mxu0 0.0
        %1245 = vmatpush1.xpose.msra.mxu0 %v1153
        %1246 = vmatprep.subr.mxu0 0.0
        %1247 = vmatpush1.xpose.msra.mxu0 %v1156
        %1248 = vmatprep.subr.mxu0 0.0
        %1249 = vmatpush1.xpose.msra.mxu0 %v1159
        %1250 = vmatprep.subr.mxu0 0.0
        %1251 = vmatpush1.xpose.msra.mxu0 %v1162
        %1252 = vmatprep.subr.mxu0 0.0
        %1253 = vmatpush1.xpose.msra.mxu0 %v1165
        %1254 = vmatprep.subr.mxu0 0.0
        %1255 = vmatpush1.xpose.msra.mxu0 %v1168
        %1256 = vmatprep.subr.mxu0 0.0
        %1257 = vmatpush1.xpose.msra.mxu0 %v1171
        %1258 = vmatprep.subr.mxu0 0.0
        %1259 = vmatpush1.xpose.msra.mxu0 %v1174
        %1260 = vmatprep.subr.mxu0 0.0
        %1261 = vmatpush1.xpose.msra.mxu0 %v1177
        %1262 = vmatprep.subr.mxu0 0.0
        %1263 = vmatpush1.xpose.msra.mxu0 %v1180
        %1264 = vmatprep.subr.mxu0 0.0
        %1265 = vmatpush1.xpose.msra.mxu0 %v1183
        %1266 = vmatprep.subr.mxu0 0.0
        %1267 = vmatpush1.xpose.msra.mxu0 %v1186
        %1268 = vmatprep.subr.mxu0 0.0
        %1269 = vmatpush1.xpose.msra.mxu0 %v1189
        %1270 = vmatprep.subr.mxu0 0.0
        %1271 = vmatpush1.xpose.msra.mxu0 %v1192
        %1272 = vmatprep.subr.mxu0 0.0
        %1273 = vmatpush1.xpose.msra.mxu0 %v1195
        %1274 = vmatprep.subr.mxu0 0.0
        %1275 = vmatpush1.xpose.msra.mxu0 %v1198
        %1276 = vmatprep.subr.mxu0 0.0
        %1277 = vmatpush1.xpose.msra.mxu0 %v1201
        %1278 = vmatprep.subr.mxu0 0.0
        %1279 = vmatpush1.xpose.msra.mxu0 %v1204
        %1280 = vmatprep.subr.mxu0 0.0
        %1281 = vmatpush1.xpose.msra.mxu0 %v1207
        %1282 = vmatprep.subr.mxu0 0.0
        %1283 = vmatpush1.xpose.msra.mxu0 %v1210
        %1284 = vmatprep.subr.mxu0 0.0
        %1285 = vmatpush1.xpose.msra.mxu0 %v1213
        %1286 = vmatprep.subr.mxu0 0.0
        %1287 = vmatpush1.xpose.msra.mxu0 %v1216
        %1288 = vmatprep.subr.mxu0 0.0
        %1289 = vmatpush1.xpose.msra.mxu0 %v1219
        %1290 = vmatprep.subr.mxu0 0.0
        %1291 = vmatpush1.xpose.msra.mxu0 %v1222
        %1292 = vmatprep.subr.mxu0 0.0
        %1293 = vmatpush1.xpose.msra.mxu0 %v1225
        %1294 = vmatprep.subr.mxu0 0.0
        %1295 = vmatpush1.xpose.msra.mxu0 %v1228
        %1296 = vmatprep.subr.mxu0 0.0
        %1297 = vmatpush1.xpose.msra.mxu0 %v1231
        %1298 = vmatprep.subr.mxu0 0.0
        %1299 = vmatpush1.xpose.msra.mxu0 %v1234
        %1300 = vmatprep.mubr.f32.mxu0 0.0
        %1301 = vmatmul.mubr.f32.gmra.mrb[0].mxu0 %v1045
        %v1302 = vpop.f32.mrb[0].mxu0
        %v1303 = vadd.f32 0.0, %v1302
        %v1304 = vpop.f32.mrb[0].mxu0
        %v1305 = vadd.f32 0.0, %v1304
        %1306 = vmatprep.mubr.f32.mxu0 0.0
        %1307 = vmatmul.mubr.f32.gmra.mrb[0].mxu0 %v1048
        %v1308 = vpop.f32.mrb[0].mxu0
        %v1309 = vadd.f32 0.0, %v1308
        %v1310 = vpop.f32.mrb[0].mxu0
        %v1311 = vadd.f32 0.0, %v1310
        %1312 = vmatprep.mubr.f32.mxu0 0.0
        %1313 = vmatmul.mubr.f32.gmra.mrb[0].mxu0 %v1051
        %v1314 = vpop.f32.mrb[0].mxu0
        %v1315 = vadd.f32 0.0, %v1314
        %v1316 = vpop.f32.mrb[0].mxu0
        %v1317 = vadd.f32 0.0, %v1316
        %1318 = vmatprep.mubr.f32.mxu0 0.0
        %1319 = vmatmul.mubr.f32.gmra.mrb[0].mxu0 %v1054
        %v1320 = vpop.f32.mrb[0].mxu0
        %v1321 = vadd.f32 0.0, %v1320
        %v1322 = vpop.f32.mrb[0].mxu0
        %v1323 = vadd.f32 0.0, %v1322
        %1324 = vmatprep.mubr.f32.mxu0 0.0
        %1325 = vmatmul.mubr.f32.gmra.mrb[0].mxu0 %v1057
        %v1326 = vpop.f32.mrb[0].mxu0
        %v1327 = vadd.f32 0.0, %v1326
        %v1328 = vpop.f32.mrb[0].mxu0
        %v1329 = vadd.f32 0.0, %v1328
        %1330 = vmatprep.mubr.f32.mxu0 0.0
        %1331 = vmatmul.mubr.f32.gmra.mrb[0].mxu0 %v1060
        %v1332 = vpop.f32.mrb[0].mxu0
        %v1333 = vadd.f32 0.0, %v1332
        %v1334 = vpop.f32.mrb[0].mxu0
        %v1335 = vadd.f32 0.0, %v1334
        %1336 = vmatprep.mubr.f32.mxu0 0.0
        %1337 = vmatmul.mubr.f32.gmra.mrb[0].mxu0 %v1063
        %v1338 = vpop.f32.mrb[0].mxu0
        %v1339 = vadd.f32 0.0, %v1338
        %v1340 = vpop.f32.mrb[0].mxu0
        %v1341 = vadd.f32 0.0, %v1340
        %1342 = vmatprep.mubr.f32.mxu0 0.0
        %1343 = vmatmul.mubr.f32.gmra.mrb[0].mxu0 %v1066
        %v1344 = vpop.f32.mrb[0].mxu0
        %v1345 = vadd.f32 0.0, %v1344
        %v1346 = vpop.f32.mrb[0].mxu0
        %v1347 = vadd.f32 0.0, %v1346
        %1348 = vmatprep.mubr.f32.mxu0 0.0
        %1349 = vmatmul.mubr.f32.gmra.mrb[0].mxu0 %v1069
        %v1350 = vpop.f32.mrb[0].mxu0
        %v1351 = vadd.f32 0.0, %v1350
        %v1352 = vpop.f32.mrb[0].mxu0
        %v1353 = vadd.f32 0.0, %v1352
        %1354 = vmatprep.mubr.f32.mxu0 0.0
        %1355 = vmatmul.mubr.f32.gmra.mrb[0].mxu0 %v1072
        %v1356 = vpop.f32.mrb[0].mxu0
        %v1357 = vadd.f32 0.0, %v1356
        %v1358 = vpop.f32.mrb[0].mxu0
        %v1359 = vadd.f32 0.0, %v1358
        %1360 = vmatprep.mubr.f32.mxu0 0.0
        %1361 = vmatmul.mubr.f32.gmra.mrb[0].mxu0 %v1075
        %v1362 = vpop.f32.mrb[0].mxu0
        %v1363 = vadd.f32 0.0, %v1362
        %v1364 = vpop.f32.mrb[0].mxu0
        %v1365 = vadd.f32 0.0, %v1364
        %1366 = vmatprep.mubr.f32.mxu0 0.0
        %1367 = vmatmul.mubr.f32.gmra.mrb[0].mxu0 %v1078
        %v1368 = vpop.f32.mrb[0].mxu0
        %v1369 = vadd.f32 0.0, %v1368
        %v1370 = vpop.f32.mrb[0].mxu0
        %v1371 = vadd.f32 0.0, %v1370
        %1372 = vmatprep.mubr.f32.mxu0 0.0
        %1373 = vmatmul.mubr.f32.gmra.mrb[0].mxu0 %v1081
        %v1374 = vpop.f32.mrb[0].mxu0
        %v1375 = vadd.f32 0.0, %v1374
        %v1376 = vpop.f32.mrb[0].mxu0
        %v1377 = vadd.f32 0.0, %v1376
        %1378 = vmatprep.mubr.f32.mxu0 0.0
        %1379 = vmatmul.mubr.f32.gmra.mrb[0].mxu0 %v1084
        %v1380 = vpop.f32.mrb[0].mxu0
        %v1381 = vadd.f32 0.0, %v1380
        %v1382 = vpop.f32.mrb[0].mxu0
        %v1383 = vadd.f32 0.0, %v1382
        %1384 = vmatprep.mubr.f32.mxu0 0.0
        %1385 = vmatmul.mubr.f32.gmra.mrb[0].mxu0 %v1087
        %v1386 = vpop.f32.mrb[0].mxu0
        %v1387 = vadd.f32 0.0, %v1386
        %v1388 = vpop.f32.mrb[0].mxu0
        %v1389 = vadd.f32 0.0, %v1388
        %1390 = vmatprep.mubr.f32.mxu0 0.0
        %1391 = vmatmul.mubr.f32.gmra.mrb[0].mxu0 %v1090
        %v1392 = vpop.f32.mrb[0].mxu0
        %v1393 = vadd.f32 0.0, %v1392
        %v1394 = vpop.f32.mrb[0].mxu0
        %v1395 = vadd.f32 0.0, %v1394
        %1396 = vmatprep.mubr.f32.mxu0 0.0
        %1397 = vmatmul.mubr.f32.gmra.mrb[0].mxu0 %v1093
        %v1398 = vpop.f32.mrb[0].mxu0
        %v1399 = vadd.f32 0.0, %v1398
        %v1400 = vpop.f32.mrb[0].mxu0
        %v1401 = vadd.f32 0.0, %v1400
        %1402 = vmatprep.mubr.f32.mxu0 0.0
        %1403 = vmatmul.mubr.f32.gmra.mrb[0].mxu0 %v1096
        %v1404 = vpop.f32.mrb[0].mxu0
        %v1405 = vadd.f32 0.0, %v1404
        %v1406 = vpop.f32.mrb[0].mxu0
        %v1407 = vadd.f32 0.0, %v1406
        %1408 = vmatprep.mubr.f32.mxu0 0.0
        %1409 = vmatmul.mubr.f32.gmra.mrb[0].mxu0 %v1099
        %v1410 = vpop.f32.mrb[0].mxu0
        %v1411 = vadd.f32 0.0, %v1410
        %v1412 = vpop.f32.mrb[0].mxu0
        %v1413 = vadd.f32 0.0, %v1412
        %1414 = vmatprep.mubr.f32.mxu0 0.0
        %1415 = vmatmul.mubr.f32.gmra.mrb[0].mxu0 %v1102
        %v1416 = vpop.f32.mrb[0].mxu0
        %v1417 = vadd.f32 0.0, %v1416
        %v1418 = vpop.f32.mrb[0].mxu0
        %v1419 = vadd.f32 0.0, %v1418
        %1420 = vmatprep.mubr.f32.mxu0 0.0
        %1421 = vmatmul.mubr.f32.gmra.mrb[0].mxu0 %v1105
        %v1422 = vpop.f32.mrb[0].mxu0
        %v1423 = vadd.f32 0.0, %v1422
        %v1424 = vpop.f32.mrb[0].mxu0
        %v1425 = vadd.f32 0.0, %v1424
        %1426 = vmatprep.mubr.f32.mxu0 0.0
        %1427 = vmatmul.mubr.f32.gmra.mrb[0].mxu0 %v1108
        %v1428 = vpop.f32.mrb[0].mxu0
        %v1429 = vadd.f32 0.0, %v1428
        %v1430 = vpop.f32.mrb[0].mxu0
        %v1431 = vadd.f32 0.0, %v1430
        %1432 = vmatprep.mubr.f32.mxu0 0.0
        %1433 = vmatmul.mubr.f32.gmra.mrb[0].mxu0 %v1111
        %v1434 = vpop.f32.mrb[0].mxu0
        %v1435 = vadd.f32 0.0, %v1434
        %v1436 = vpop.f32.mrb[0].mxu0
        %v1437 = vadd.f32 0.0, %v1436
        %1438 = vmatprep.mubr.f32.mxu0 0.0
        %1439 = vmatmul.mubr.f32.gmra.mrb[0].mxu0 %v1114
        %v1440 = vpop.f32.mrb[0].mxu0
        %v1441 = vadd.f32 0.0, %v1440
        %v1442 = vpop.f32.mrb[0].mxu0
        %v1443 = vadd.f32 0.0, %v1442
        %1444 = vmatprep.mubr.f32.mxu0 0.0
        %1445 = vmatmul.mubr.f32.gmra.mrb[0].mxu0 %v1117
        %v1446 = vpop.f32.mrb[0].mxu0
        %v1447 = vadd.f32 0.0, %v1446
        %v1448 = vpop.f32.mrb[0].mxu0
        %v1449 = vadd.f32 0.0, %v1448
        %1450 = vmatprep.mubr.f32.mxu0 0.0
        %1451 = vmatmul.mubr.f32.gmra.mrb[0].mxu0 %v1120
        %v1452 = vpop.f32.mrb[0].mxu0
        %v1453 = vadd.f32 0.0, %v1452
        %v1454 = vpop.f32.mrb[0].mxu0
        %v1455 = vadd.f32 0.0, %v1454
        %1456 = vmatprep.mubr.f32.mxu0 0.0
        %1457 = vmatmul.mubr.f32.gmra.mrb[0].mxu0 %v1123
        %v1458 = vpop.f32.mrb[0].mxu0
        %v1459 = vadd.f32 0.0, %v1458
        %v1460 = vpop.f32.mrb[0].mxu0
        %v1461 = vadd.f32 0.0, %v1460
        %1462 = vmatprep.mubr.f32.mxu0 0.0
        %1463 = vmatmul.mubr.f32.gmra.mrb[0].mxu0 %v1126
        %v1464 = vpop.f32.mrb[0].mxu0
        %v1465 = vadd.f32 0.0, %v1464
        %v1466 = vpop.f32.mrb[0].mxu0
        %v1467 = vadd.f32 0.0, %v1466
        %1468 = vmatprep.mubr.f32.mxu0 0.0
        %1469 = vmatmul.mubr.f32.gmra.mrb[0].mxu0 %v1129
        %v1470 = vpop.f32.mrb[0].mxu0
        %v1471 = vadd.f32 0.0, %v1470
        %v1472 = vpop.f32.mrb[0].mxu0
        %v1473 = vadd.f32 0.0, %v1472
        %1474 = vmatprep.mubr.f32.mxu0 0.0
        %1475 = vmatmul.mubr.f32.gmra.mrb[0].mxu0 %v1132
        %v1476 = vpop.f32.mrb[0].mxu0
        %v1477 = vadd.f32 0.0, %v1476
        %v1478 = vpop.f32.mrb[0].mxu0
        %v1479 = vadd.f32 0.0, %v1478
        %1480 = vmatprep.mubr.f32.mxu0 0.0
        %1481 = vmatmul.mubr.f32.gmra.mrb[0].mxu0 %v1135
        %v1482 = vpop.f32.mrb[0].mxu0
        %v1483 = vadd.f32 0.0, %v1482
        %v1484 = vpop.f32.mrb[0].mxu0
        %v1485 = vadd.f32 0.0, %v1484
        %1486 = vmatprep.mubr.f32.mxu0 0.0
        %1487 = vmatmul.mubr.f32.gmra.mrb[0].mxu0 %v1138
        %v1488 = vpop.f32.mrb[0].mxu0
        %v1489 = vadd.f32 0.0, %v1488
        %v1490 = vpop.f32.mrb[0].mxu0
        %v1491 = vadd.f32 0.0, %v1490
        %1492 = vdwg.mxu0
        %v1493 = vld [vmem:[#allocation2] sm:$0xff]
        %v1494 = vld [vmem:[#allocation2 + $0x8] sm:$0xff]
        %v1495 = vld [vmem:[#allocation2 + $0x10] sm:$0xff]
        %v1496 = vld [vmem:[#allocation2 + $0x18] sm:$0xff]
        %v1497 = vld [vmem:[#allocation2 + $0x20] sm:$0xff]
        %v1498 = vld [vmem:[#allocation2 + $0x28] sm:$0xff]
        %v1499 = vld [vmem:[#allocation2 + $0x30] sm:$0xff]
        %v1500 = vld [vmem:[#allocation2 + $0x38] sm:$0xff]
        %v1501 = vld [vmem:[#allocation2 + $0x40] sm:$0xff]
        %v1502 = vld [vmem:[#allocation2 + $0x48] sm:$0xff]
        %v1503 = vld [vmem:[#allocation2 + $0x50] sm:$0xff]
        %v1504 = vld [vmem:[#allocation2 + $0x58] sm:$0xff]
        %v1505 = vld [vmem:[#allocation2 + $0x60] sm:$0xff]
        %v1506 = vld [vmem:[#allocation2 + $0x68] sm:$0xff]
        %v1507 = vld [vmem:[#allocation2 + $0x70] sm:$0xff]
        %v1508 = vld [vmem:[#allocation2 + $0x78] sm:$0xff]
        %v1509 = vld [vmem:[#allocation2 + $0x80] sm:$0xff]
        %v1510 = vld [vmem:[#allocation2 + $0x88] sm:$0xff]
        %v1511 = vld [vmem:[#allocation2 + $0x90] sm:$0xff]
        %v1512 = vld [vmem:[#allocation2 + $0x98] sm:$0xff]
        %v1513 = vld [vmem:[#allocation2 + $0xa0] sm:$0xff]
        %v1514 = vld [vmem:[#allocation2 + $0xa8] sm:$0xff]
        %v1515 = vld [vmem:[#allocation2 + $0xb0] sm:$0xff]
        %v1516 = vld [vmem:[#allocation2 + $0xb8] sm:$0xff]
        %v1517 = vld [vmem:[#allocation2 + $0xc0] sm:$0xff]
        %v1518 = vld [vmem:[#allocation2 + $0xc8] sm:$0xff]
        %v1519 = vld [vmem:[#allocation2 + $0xd0] sm:$0xff]
        %v1520 = vld [vmem:[#allocation2 + $0xd8] sm:$0xff]
        %v1521 = vld [vmem:[#allocation2 + $0xe0] sm:$0xff]
        %v1522 = vld [vmem:[#allocation2 + $0xe8] sm:$0xff]
        %v1523 = vld [vmem:[#allocation2 + $0xf0] sm:$0xff]
        %v1524 = vld [vmem:[#allocation2 + $0xf8] sm:$0xff]
        %v1525 = vmax.f32 %v1303, %v1305
        %1526 = vmax.xlane.f32.xlu0 %v1525
        %v1527 = vpop.xlane.xlu0 %1526
        %v1528 = vmax.f32 %v1309, %v1311
        %1529 = vmax.xlane.f32.xlu0 %v1528
        %v1530 = vpop.xlane.xlu0 %1529
        %v1531 = vmax.f32 %v1315, %v1317
        %1532 = vmax.xlane.f32.xlu0 %v1531
        %v1533 = vpop.xlane.xlu0 %1532
        %v1534 = vmax.f32 %v1321, %v1323
        %1535 = vmax.xlane.f32.xlu0 %v1534
        %v1536 = vpop.xlane.xlu0 %1535
        %v1537 = vmax.f32 %v1327, %v1329
        %1538 = vmax.xlane.f32.xlu0 %v1537
        %v1539 = vpop.xlane.xlu0 %1538
        %v1540 = vmax.f32 %v1333, %v1335
        %1541 = vmax.xlane.f32.xlu0 %v1540
        %v1542 = vpop.xlane.xlu0 %1541
        %v1543 = vmax.f32 %v1339, %v1341
        %1544 = vmax.xlane.f32.xlu0 %v1543
        %v1545 = vpop.xlane.xlu0 %1544
        %v1546 = vmax.f32 %v1345, %v1347
        %1547 = vmax.xlane.f32.xlu0 %v1546
        %v1548 = vpop.xlane.xlu0 %1547
        %v1549 = vmax.f32 %v1351, %v1353
        %1550 = vmax.xlane.f32.xlu0 %v1549
        %v1551 = vpop.xlane.xlu0 %1550
        %v1552 = vmax.f32 %v1357, %v1359
        %1553 = vmax.xlane.f32.xlu0 %v1552
        %v1554 = vpop.xlane.xlu0 %1553
        %v1555 = vmax.f32 %v1363, %v1365
        %1556 = vmax.xlane.f32.xlu0 %v1555
        %v1557 = vpop.xlane.xlu0 %1556
        %v1558 = vmax.f32 %v1369, %v1371
        %1559 = vmax.xlane.f32.xlu0 %v1558
        %v1560 = vpop.xlane.xlu0 %1559
        %v1561 = vmax.f32 %v1375, %v1377
        %1562 = vmax.xlane.f32.xlu0 %v1561
        %v1563 = vpop.xlane.xlu0 %1562
        %v1564 = vmax.f32 %v1381, %v1383
        %1565 = vmax.xlane.f32.xlu0 %v1564
        %v1566 = vpop.xlane.xlu0 %1565
        %v1567 = vmax.f32 %v1387, %v1389
        %1568 = vmax.xlane.f32.xlu0 %v1567
        %v1569 = vpop.xlane.xlu0 %1568
        %v1570 = vmax.f32 %v1393, %v1395
        %1571 = vmax.xlane.f32.xlu0 %v1570
        %v1572 = vpop.xlane.xlu0 %1571
        %v1573 = vmax.f32 %v1399, %v1401
        %1574 = vmax.xlane.f32.xlu0 %v1573
        %v1575 = vpop.xlane.xlu0 %1574
        %v1576 = vmax.f32 %v1405, %v1407
        %1577 = vmax.xlane.f32.xlu0 %v1576
        %v1578 = vpop.xlane.xlu0 %1577
        %v1579 = vmax.f32 %v1411, %v1413
        %1580 = vmax.xlane.f32.xlu0 %v1579
        %v1581 = vpop.xlane.xlu0 %1580
        %v1582 = vmax.f32 %v1417, %v1419
        %1583 = vmax.xlane.f32.xlu0 %v1582
        %v1584 = vpop.xlane.xlu0 %1583
        %v1585 = vmax.f32 %v1423, %v1425
        %1586 = vmax.xlane.f32.xlu0 %v1585
        %v1587 = vpop.xlane.xlu0 %1586
        %v1588 = vmax.f32 %v1429, %v1431
        %1589 = vmax.xlane.f32.xlu0 %v1588
        %v1590 = vpop.xlane.xlu0 %1589
        %v1591 = vmax.f32 %v1435, %v1437
        %1592 = vmax.xlane.f32.xlu0 %v1591
        %v1593 = vpop.xlane.xlu0 %1592
        %v1594 = vmax.f32 %v1441, %v1443
        %1595 = vmax.xlane.f32.xlu0 %v1594
        %v1596 = vpop.xlane.xlu0 %1595
        %v1597 = vmax.f32 %v1447, %v1449
        %1598 = vmax.xlane.f32.xlu0 %v1597
        %v1599 = vpop.xlane.xlu0 %1598
        %v1600 = vmax.f32 %v1453, %v1455
        %1601 = vmax.xlane.f32.xlu0 %v1600
        %v1602 = vpop.xlane.xlu0 %1601
        %v1603 = vmax.f32 %v1459, %v1461
        %1604 = vmax.xlane.f32.xlu0 %v1603
        %v1605 = vpop.xlane.xlu0 %1604
        %v1606 = vmax.f32 %v1465, %v1467
        %1607 = vmax.xlane.f32.xlu0 %v1606
        %v1608 = vpop.xlane.xlu0 %1607
        %v1609 = vmax.f32 %v1471, %v1473
        %1610 = vmax.xlane.f32.xlu0 %v1609
        %v1611 = vpop.xlane.xlu0 %1610
        %v1612 = vmax.f32 %v1477, %v1479
        %1613 = vmax.xlane.f32.xlu0 %v1612
        %v1614 = vpop.xlane.xlu0 %1613
        %v1615 = vmax.f32 %v1483, %v1485
        %1616 = vmax.xlane.f32.xlu0 %v1615
        %v1617 = vpop.xlane.xlu0 %1616
        %v1618 = vmax.f32 %v1489, %v1491
        %1619 = vmax.xlane.f32.xlu0 %v1618
        %v1620 = vpop.xlane.xlu0 %1619
        %v1621 = vmax.f32 %v1493, %v1527
        %v1622 = vmax.f32 %v1494, %v1530
        %v1623 = vmax.f32 %v1495, %v1533
        %v1624 = vmax.f32 %v1496, %v1536
        %v1625 = vmax.f32 %v1497, %v1539
        %v1626 = vmax.f32 %v1498, %v1542
        %v1627 = vmax.f32 %v1499, %v1545
        %v1628 = vmax.f32 %v1500, %v1548
        %v1629 = vmax.f32 %v1501, %v1551
        %v1630 = vmax.f32 %v1502, %v1554
        %v1631 = vmax.f32 %v1503, %v1557
        %v1632 = vmax.f32 %v1504, %v1560
        %v1633 = vmax.f32 %v1505, %v1563
        %v1634 = vmax.f32 %v1506, %v1566
        %v1635 = vmax.f32 %v1507, %v1569
        %v1636 = vmax.f32 %v1508, %v1572
        %v1637 = vmax.f32 %v1509, %v1575
        %v1638 = vmax.f32 %v1510, %v1578
        %v1639 = vmax.f32 %v1511, %v1581
        %v1640 = vmax.f32 %v1512, %v1584
        %v1641 = vmax.f32 %v1513, %v1587
        %v1642 = vmax.f32 %v1514, %v1590
        %v1643 = vmax.f32 %v1515, %v1593
        %v1644 = vmax.f32 %v1516, %v1596
        %v1645 = vmax.f32 %v1517, %v1599
        %v1646 = vmax.f32 %v1518, %v1602
        %v1647 = vmax.f32 %v1519, %v1605
        %v1648 = vmax.f32 %v1520, %v1608
        %v1649 = vmax.f32 %v1521, %v1611
        %v1650 = vmax.f32 %v1522, %v1614
        %v1651 = vmax.f32 %v1523, %v1617
        %v1652 = vmax.f32 %v1524, %v1620
        %v1653 = vsub.f32 %v1493, %v1621
        %v1654 = vsub.f32 %v1494, %v1622
        %v1655 = vsub.f32 %v1495, %v1623
        %v1656 = vsub.f32 %v1496, %v1624
        %v1657 = vsub.f32 %v1497, %v1625
        %v1658 = vsub.f32 %v1498, %v1626
        %v1659 = vsub.f32 %v1499, %v1627
        %v1660 = vsub.f32 %v1500, %v1628
        %v1661 = vsub.f32 %v1501, %v1629
        %v1662 = vsub.f32 %v1502, %v1630
        %v1663 = vsub.f32 %v1503, %v1631
        %v1664 = vsub.f32 %v1504, %v1632
        %v1665 = vsub.f32 %v1505, %v1633
        %v1666 = vsub.f32 %v1506, %v1634
        %v1667 = vsub.f32 %v1507, %v1635
        %v1668 = vsub.f32 %v1508, %v1636
        %v1669 = vsub.f32 %v1509, %v1637
        %v1670 = vsub.f32 %v1510, %v1638
        %v1671 = vsub.f32 %v1511, %v1639
        %v1672 = vsub.f32 %v1512, %v1640
        %v1673 = vsub.f32 %v1513, %v1641
        %v1674 = vsub.f32 %v1514, %v1642
        %v1675 = vsub.f32 %v1515, %v1643
        %v1676 = vsub.f32 %v1516, %v1644
        %v1677 = vsub.f32 %v1517, %v1645
        %v1678 = vsub.f32 %v1518, %v1646
        %v1679 = vsub.f32 %v1519, %v1647
        %v1680 = vsub.f32 %v1520, %v1648
        %v1681 = vsub.f32 %v1521, %v1649
        %v1682 = vsub.f32 %v1522, %v1650
        %v1683 = vsub.f32 %v1523, %v1651
        %v1684 = vsub.f32 %v1524, %v1652
        %v1685 = vmul.f32 %v1653, 1.442695
        %v1686 = vpow.pop %v1685
        %v1687 = vmul.f32 %v1654, 1.442695
        %v1688 = vpow.pop %v1687
        %v1689 = vmul.f32 %v1655, 1.442695
        %v1690 = vpow.pop %v1689
        %v1691 = vmul.f32 %v1656, 1.442695
        %v1692 = vpow.pop %v1691
        %v1693 = vmul.f32 %v1657, 1.442695
        %v1694 = vpow.pop %v1693
        %v1695 = vmul.f32 %v1658, 1.442695
        %v1696 = vpow.pop %v1695
        %v1697 = vmul.f32 %v1659, 1.442695
        %v1698 = vpow.pop %v1697
        %v1699 = vmul.f32 %v1660, 1.442695
        %v1700 = vpow.pop %v1699
        %v1701 = vmul.f32 %v1661, 1.442695
        %v1702 = vpow.pop %v1701
        %v1703 = vmul.f32 %v1662, 1.442695
        %v1704 = vpow.pop %v1703
        %v1705 = vmul.f32 %v1663, 1.442695
        %v1706 = vpow.pop %v1705
        %v1707 = vmul.f32 %v1664, 1.442695
        %v1708 = vpow.pop %v1707
        %v1709 = vmul.f32 %v1665, 1.442695
        %v1710 = vpow.pop %v1709
        %v1711 = vmul.f32 %v1666, 1.442695
        %v1712 = vpow.pop %v1711
        %v1713 = vmul.f32 %v1667, 1.442695
        %v1714 = vpow.pop %v1713
        %v1715 = vmul.f32 %v1668, 1.442695
        %v1716 = vpow.pop %v1715
        %v1717 = vmul.f32 %v1669, 1.442695
        %v1718 = vpow.pop %v1717
        %v1719 = vmul.f32 %v1670, 1.442695
        %v1720 = vpow.pop %v1719
        %v1721 = vmul.f32 %v1671, 1.442695
        %v1722 = vpow.pop %v1721
        %v1723 = vmul.f32 %v1672, 1.442695
        %v1724 = vpow.pop %v1723
        %v1725 = vmul.f32 %v1673, 1.442695
        %v1726 = vpow.pop %v1725
        %v1727 = vmul.f32 %v1674, 1.442695
        %v1728 = vpow.pop %v1727
        %v1729 = vmul.f32 %v1675, 1.442695
        %v1730 = vpow.pop %v1729
        %v1731 = vmul.f32 %v1676, 1.442695
        %v1732 = vpow.pop %v1731
        %v1733 = vmul.f32 %v1677, 1.442695
        %v1734 = vpow.pop %v1733
        %v1735 = vmul.f32 %v1678, 1.442695
        %v1736 = vpow.pop %v1735
        %v1737 = vmul.f32 %v1679, 1.442695
        %v1738 = vpow.pop %v1737
        %v1739 = vmul.f32 %v1680, 1.442695
        %v1740 = vpow.pop %v1739
        %v1741 = vmul.f32 %v1681, 1.442695
        %v1742 = vpow.pop %v1741
        %v1743 = vmul.f32 %v1682, 1.442695
        %v1744 = vpow.pop %v1743
        %v1745 = vmul.f32 %v1683, 1.442695
        %v1746 = vpow.pop %v1745
        %v1747 = vmul.f32 %v1684, 1.442695
        %v1748 = vpow.pop %v1747
        %1750 = vset.pattern.permute.xlu0 0
        %1751 = vperm.xlu0 %1750, %v1621
        %v1752 = vpop.permute.xlu0 %1751
        %1755 = vset.pattern.permute.xlu0 0
        %1756 = vperm.xlu0 %1755, %v1622
        %v1757 = vpop.permute.xlu0 %1756
        %1760 = vset.pattern.permute.xlu0 0
        %1761 = vperm.xlu0 %1760, %v1623
        %v1762 = vpop.permute.xlu0 %1761
        %1765 = vset.pattern.permute.xlu0 0
        %1766 = vperm.xlu0 %1765, %v1624
        %v1767 = vpop.permute.xlu0 %1766
        %1770 = vset.pattern.permute.xlu0 0
        %1771 = vperm.xlu0 %1770, %v1625
        %v1772 = vpop.permute.xlu0 %1771
        %1775 = vset.pattern.permute.xlu0 0
        %1776 = vperm.xlu0 %1775, %v1626
        %v1777 = vpop.permute.xlu0 %1776
        %1780 = vset.pattern.permute.xlu0 0
        %1781 = vperm.xlu0 %1780, %v1627
        %v1782 = vpop.permute.xlu0 %1781
        %1785 = vset.pattern.permute.xlu0 0
        %1786 = vperm.xlu0 %1785, %v1628
        %v1787 = vpop.permute.xlu0 %1786
        %1790 = vset.pattern.permute.xlu0 0
        %1791 = vperm.xlu0 %1790, %v1629
        %v1792 = vpop.permute.xlu0 %1791
        %1795 = vset.pattern.permute.xlu0 0
        %1796 = vperm.xlu0 %1795, %v1630
        %v1797 = vpop.permute.xlu0 %1796
        %1800 = vset.pattern.permute.xlu0 0
        %1801 = vperm.xlu0 %1800, %v1631
        %v1802 = vpop.permute.xlu0 %1801
        %1805 = vset.pattern.permute.xlu0 0
        %1806 = vperm.xlu0 %1805, %v1632
        %v1807 = vpop.permute.xlu0 %1806
        %1810 = vset.pattern.permute.xlu0 0
        %1811 = vperm.xlu0 %1810, %v1633
        %v1812 = vpop.permute.xlu0 %1811
        %1815 = vset.pattern.permute.xlu0 0
        %1816 = vperm.xlu0 %1815, %v1634
        %v1817 = vpop.permute.xlu0 %1816
        %1820 = vset.pattern.permute.xlu0 0
        %1821 = vperm.xlu0 %1820, %v1635
        %v1822 = vpop.permute.xlu0 %1821
        %1825 = vset.pattern.permute.xlu0 0
        %1826 = vperm.xlu0 %1825, %v1636
        %v1827 = vpop.permute.xlu0 %1826
        %1830 = vset.pattern.permute.xlu0 0
        %1831 = vperm.xlu0 %1830, %v1637
        %v1832 = vpop.permute.xlu0 %1831
        %1835 = vset.pattern.permute.xlu0 0
        %1836 = vperm.xlu0 %1835, %v1638
        %v1837 = vpop.permute.xlu0 %1836
        %1840 = vset.pattern.permute.xlu0 0
        %1841 = vperm.xlu0 %1840, %v1639
        %v1842 = vpop.permute.xlu0 %1841
        %1845 = vset.pattern.permute.xlu0 0
        %1846 = vperm.xlu0 %1845, %v1640
        %v1847 = vpop.permute.xlu0 %1846
        %1850 = vset.pattern.permute.xlu0 0
        %1851 = vperm.xlu0 %1850, %v1641
        %v1852 = vpop.permute.xlu0 %1851
        %1855 = vset.pattern.permute.xlu0 0
        %1856 = vperm.xlu0 %1855, %v1642
        %v1857 = vpop.permute.xlu0 %1856
        %1860 = vset.pattern.permute.xlu0 0
        %1861 = vperm.xlu0 %1860, %v1643
        %v1862 = vpop.permute.xlu0 %1861
        %1865 = vset.pattern.permute.xlu0 0
        %1866 = vperm.xlu0 %1865, %v1644
        %v1867 = vpop.permute.xlu0 %1866
        %1870 = vset.pattern.permute.xlu0 0
        %1871 = vperm.xlu0 %1870, %v1645
        %v1872 = vpop.permute.xlu0 %1871
        %1875 = vset.pattern.permute.xlu0 0
        %1876 = vperm.xlu0 %1875, %v1646
        %v1877 = vpop.permute.xlu0 %1876
        %1880 = vset.pattern.permute.xlu0 0
        %1881 = vperm.xlu0 %1880, %v1647
        %v1882 = vpop.permute.xlu0 %1881
        %1885 = vset.pattern.permute.xlu0 0
        %1886 = vperm.xlu0 %1885, %v1648
        %v1887 = vpop.permute.xlu0 %1886
        %1890 = vset.pattern.permute.xlu0 0
        %1891 = vperm.xlu0 %1890, %v1649
        %v1892 = vpop.permute.xlu0 %1891
        %1895 = vset.pattern.permute.xlu0 0
        %1896 = vperm.xlu0 %1895, %v1650
        %v1897 = vpop.permute.xlu0 %1896
        %1900 = vset.pattern.permute.xlu0 0
        %1901 = vperm.xlu0 %1900, %v1651
        %v1902 = vpop.permute.xlu0 %1901
        %1905 = vset.pattern.permute.xlu0 0
        %1906 = vperm.xlu0 %1905, %v1652
        %v1907 = vpop.permute.xlu0 %1906
        %v1909 = vsub.f32 %v1303, %v1752
        %v1910 = vsub.f32 %v1305, %v1752
        %v1911 = vsub.f32 %v1309, %v1757
        %v1912 = vsub.f32 %v1311, %v1757
        %v1913 = vsub.f32 %v1315, %v1762
        %v1914 = vsub.f32 %v1317, %v1762
        %v1915 = vsub.f32 %v1321, %v1767
        %v1916 = vsub.f32 %v1323, %v1767
        %v1917 = vsub.f32 %v1327, %v1772
        %v1918 = vsub.f32 %v1329, %v1772
        %v1919 = vsub.f32 %v1333, %v1777
        %v1920 = vsub.f32 %v1335, %v1777
        %v1921 = vsub.f32 %v1339, %v1782
        %v1922 = vsub.f32 %v1341, %v1782
        %v1923 = vsub.f32 %v1345, %v1787
        %v1924 = vsub.f32 %v1347, %v1787
        %v1925 = vsub.f32 %v1351, %v1792
        %v1926 = vsub.f32 %v1353, %v1792
        %v1927 = vsub.f32 %v1357, %v1797
        %v1928 = vsub.f32 %v1359, %v1797
        %v1929 = vsub.f32 %v1363, %v1802
        %v1930 = vsub.f32 %v1365, %v1802
        %v1931 = vsub.f32 %v1369, %v1807
        %v1932 = vsub.f32 %v1371, %v1807
        %v1933 = vsub.f32 %v1375, %v1812
        %v1934 = vsub.f32 %v1377, %v1812
        %v1935 = vsub.f32 %v1381, %v1817
        %v1936 = vsub.f32 %v1383, %v1817
        %v1937 = vsub.f32 %v1387, %v1822
        %v1938 = vsub.f32 %v1389, %v1822
        %v1939 = vsub.f32 %v1393, %v1827
        %v1940 = vsub.f32 %v1395, %v1827
        %v1941 = vsub.f32 %v1399, %v1832
        %v1942 = vsub.f32 %v1401, %v1832
        %v1943 = vsub.f32 %v1405, %v1837
        %v1944 = vsub.f32 %v1407, %v1837
        %v1945 = vsub.f32 %v1411, %v1842
        %v1946 = vsub.f32 %v1413, %v1842
        %v1947 = vsub.f32 %v1417, %v1847
        %v1948 = vsub.f32 %v1419, %v1847
        %v1949 = vsub.f32 %v1423, %v1852
        %v1950 = vsub.f32 %v1425, %v1852
        %v1951 = vsub.f32 %v1429, %v1857
        %v1952 = vsub.f32 %v1431, %v1857
        %v1953 = vsub.f32 %v1435, %v1862
        %v1954 = vsub.f32 %v1437, %v1862
        %v1955 = vsub.f32 %v1441, %v1867
        %v1956 = vsub.f32 %v1443, %v1867
        %v1957 = vsub.f32 %v1447, %v1872
        %v1958 = vsub.f32 %v1449, %v1872
        %v1959 = vsub.f32 %v1453, %v1877
        %v1960 = vsub.f32 %v1455, %v1877
        %v1961 = vsub.f32 %v1459, %v1882
        %v1962 = vsub.f32 %v1461, %v1882
        %v1963 = vsub.f32 %v1465, %v1887
        %v1964 = vsub.f32 %v1467, %v1887
        %v1965 = vsub.f32 %v1471, %v1892
        %v1966 = vsub.f32 %v1473, %v1892
        %v1967 = vsub.f32 %v1477, %v1897
        %v1968 = vsub.f32 %v1479, %v1897
        %v1969 = vsub.f32 %v1483, %v1902
        %v1970 = vsub.f32 %v1485, %v1902
        %v1971 = vsub.f32 %v1489, %v1907
        %v1972 = vsub.f32 %v1491, %v1907
        %v1973 = vmul.f32 %v1909, 1.442695
        %v1974 = vpow.pop %v1973
        %v1975 = vmul.f32 %v1910, 1.442695
        %v1976 = vpow.pop %v1975
        %v1977 = vmul.f32 %v1911, 1.442695
        %v1978 = vpow.pop %v1977
        %v1979 = vmul.f32 %v1912, 1.442695
        %v1980 = vpow.pop %v1979
        %v1981 = vmul.f32 %v1913, 1.442695
        %v1982 = vpow.pop %v1981
        %v1983 = vmul.f32 %v1914, 1.442695
        %v1984 = vpow.pop %v1983
        %v1985 = vmul.f32 %v1915, 1.442695
        %v1986 = vpow.pop %v1985
        %v1987 = vmul.f32 %v1916, 1.442695
        %v1988 = vpow.pop %v1987
        %v1989 = vmul.f32 %v1917, 1.442695
        %v1990 = vpow.pop %v1989
        %v1991 = vmul.f32 %v1918, 1.442695
        %v1992 = vpow.pop %v1991
        %v1993 = vmul.f32 %v1919, 1.442695
        %v1994 = vpow.pop %v1993
        %v1995 = vmul.f32 %v1920, 1.442695
        %v1996 = vpow.pop %v1995
        %v1997 = vmul.f32 %v1921, 1.442695
        %v1998 = vpow.pop %v1997
        %v1999 = vmul.f32 %v1922, 1.442695
        %v2000 = vpow.pop %v1999
        %v2001 = vmul.f32 %v1923, 1.442695
        %v2002 = vpow.pop %v2001
        %v2003 = vmul.f32 %v1924, 1.442695
        %v2004 = vpow.pop %v2003
        %v2005 = vmul.f32 %v1925, 1.442695
        %v2006 = vpow.pop %v2005
        %v2007 = vmul.f32 %v1926, 1.442695
        %v2008 = vpow.pop %v2007
        %v2009 = vmul.f32 %v1927, 1.442695
        %v2010 = vpow.pop %v2009
        %v2011 = vmul.f32 %v1928, 1.442695
        %v2012 = vpow.pop %v2011
        %v2013 = vmul.f32 %v1929, 1.442695
        %v2014 = vpow.pop %v2013
        %v2015 = vmul.f32 %v1930, 1.442695
        %v2016 = vpow.pop %v2015
        %v2017 = vmul.f32 %v1931, 1.442695
        %v2018 = vpow.pop %v2017
        %v2019 = vmul.f32 %v1932, 1.442695
        %v2020 = vpow.pop %v2019
        %v2021 = vmul.f32 %v1933, 1.442695
        %v2022 = vpow.pop %v2021
        %v2023 = vmul.f32 %v1934, 1.442695
        %v2024 = vpow.pop %v2023
        %v2025 = vmul.f32 %v1935, 1.442695
        %v2026 = vpow.pop %v2025
        %v2027 = vmul.f32 %v1936, 1.442695
        %v2028 = vpow.pop %v2027
        %v2029 = vmul.f32 %v1937, 1.442695
        %v2030 = vpow.pop %v2029
        %v2031 = vmul.f32 %v1938, 1.442695
        %v2032 = vpow.pop %v2031
        %v2033 = vmul.f32 %v1939, 1.442695
        %v2034 = vpow.pop %v2033
        %v2035 = vmul.f32 %v1940, 1.442695
        %v2036 = vpow.pop %v2035
        %v2037 = vmul.f32 %v1941, 1.442695
        %v2038 = vpow.pop %v2037
        %v2039 = vmul.f32 %v1942, 1.442695
        %v2040 = vpow.pop %v2039
        %v2041 = vmul.f32 %v1943, 1.442695
        %v2042 = vpow.pop %v2041
        %v2043 = vmul.f32 %v1944, 1.442695
        %v2044 = vpow.pop %v2043
        %v2045 = vmul.f32 %v1945, 1.442695
        %v2046 = vpow.pop %v2045
        %v2047 = vmul.f32 %v1946, 1.442695
        %v2048 = vpow.pop %v2047
        %v2049 = vmul.f32 %v1947, 1.442695
        %v2050 = vpow.pop %v2049
        %v2051 = vmul.f32 %v1948, 1.442695
        %v2052 = vpow.pop %v2051
        %v2053 = vmul.f32 %v1949, 1.442695
        %v2054 = vpow.pop %v2053
        %v2055 = vmul.f32 %v1950, 1.442695
        %v2056 = vpow.pop %v2055
        %v2057 = vmul.f32 %v1951, 1.442695
        %v2058 = vpow.pop %v2057
        %v2059 = vmul.f32 %v1952, 1.442695
        %v2060 = vpow.pop %v2059
        %v2061 = vmul.f32 %v1953, 1.442695
        %v2062 = vpow.pop %v2061
        %v2063 = vmul.f32 %v1954, 1.442695
        %v2064 = vpow.pop %v2063
        %v2065 = vmul.f32 %v1955, 1.442695
        %v2066 = vpow.pop %v2065
        %v2067 = vmul.f32 %v1956, 1.442695
        %v2068 = vpow.pop %v2067
        %v2069 = vmul.f32 %v1957, 1.442695
        %v2070 = vpow.pop %v2069
        %v2071 = vmul.f32 %v1958, 1.442695
        %v2072 = vpow.pop %v2071
        %v2073 = vmul.f32 %v1959, 1.442695
        %v2074 = vpow.pop %v2073
        %v2075 = vmul.f32 %v1960, 1.442695
        %v2076 = vpow.pop %v2075
        %v2077 = vmul.f32 %v1961, 1.442695
        %v2078 = vpow.pop %v2077
        %v2079 = vmul.f32 %v1962, 1.442695
        %v2080 = vpow.pop %v2079
        %v2081 = vmul.f32 %v1963, 1.442695
        %v2082 = vpow.pop %v2081
        %v2083 = vmul.f32 %v1964, 1.442695
        %v2084 = vpow.pop %v2083
        %v2085 = vmul.f32 %v1965, 1.442695
        %v2086 = vpow.pop %v2085
        %v2087 = vmul.f32 %v1966, 1.442695
        %v2088 = vpow.pop %v2087
        %v2089 = vmul.f32 %v1967, 1.442695
        %v2090 = vpow.pop %v2089
        %v2091 = vmul.f32 %v1968, 1.442695
        %v2092 = vpow.pop %v2091
        %v2093 = vmul.f32 %v1969, 1.442695
        %v2094 = vpow.pop %v2093
        %v2095 = vmul.f32 %v1970, 1.442695
        %v2096 = vpow.pop %v2095
        %v2097 = vmul.f32 %v1971, 1.442695
        %v2098 = vpow.pop %v2097
        %v2099 = vmul.f32 %v1972, 1.442695
        %v2100 = vpow.pop %v2099
        %v2101 = vld [vmem:[#allocation3] sm:$0xff]
        %v2102 = vld [vmem:[#allocation3 + $0x8] sm:$0xff]
        %v2103 = vld [vmem:[#allocation3 + $0x10] sm:$0xff]
        %v2104 = vld [vmem:[#allocation3 + $0x18] sm:$0xff]
        %v2105 = vld [vmem:[#allocation3 + $0x20] sm:$0xff]
        %v2106 = vld [vmem:[#allocation3 + $0x28] sm:$0xff]
        %v2107 = vld [vmem:[#allocation3 + $0x30] sm:$0xff]
        %v2108 = vld [vmem:[#allocation3 + $0x38] sm:$0xff]
        %v2109 = vld [vmem:[#allocation3 + $0x40] sm:$0xff]
        %v2110 = vld [vmem:[#allocation3 + $0x48] sm:$0xff]
        %v2111 = vld [vmem:[#allocation3 + $0x50] sm:$0xff]
        %v2112 = vld [vmem:[#allocation3 + $0x58] sm:$0xff]
        %v2113 = vld [vmem:[#allocation3 + $0x60] sm:$0xff]
        %v2114 = vld [vmem:[#allocation3 + $0x68] sm:$0xff]
        %v2115 = vld [vmem:[#allocation3 + $0x70] sm:$0xff]
        %v2116 = vld [vmem:[#allocation3 + $0x78] sm:$0xff]
        %v2117 = vld [vmem:[#allocation3 + $0x80] sm:$0xff]
        %v2118 = vld [vmem:[#allocation3 + $0x88] sm:$0xff]
        %v2119 = vld [vmem:[#allocation3 + $0x90] sm:$0xff]
        %v2120 = vld [vmem:[#allocation3 + $0x98] sm:$0xff]
        %v2121 = vld [vmem:[#allocation3 + $0xa0] sm:$0xff]
        %v2122 = vld [vmem:[#allocation3 + $0xa8] sm:$0xff]
        %v2123 = vld [vmem:[#allocation3 + $0xb0] sm:$0xff]
        %v2124 = vld [vmem:[#allocation3 + $0xb8] sm:$0xff]
        %v2125 = vld [vmem:[#allocation3 + $0xc0] sm:$0xff]
        %v2126 = vld [vmem:[#allocation3 + $0xc8] sm:$0xff]
        %v2127 = vld [vmem:[#allocation3 + $0xd0] sm:$0xff]
        %v2128 = vld [vmem:[#allocation3 + $0xd8] sm:$0xff]
        %v2129 = vld [vmem:[#allocation3 + $0xe0] sm:$0xff]
        %v2130 = vld [vmem:[#allocation3 + $0xe8] sm:$0xff]
        %v2131 = vld [vmem:[#allocation3 + $0xf0] sm:$0xff]
        %v2132 = vld [vmem:[#allocation3 + $0xf8] sm:$0xff]
        %v2133 = vmul.f32 %v1686, %v2101
        %v2134 = vmul.f32 %v1688, %v2102
        %v2135 = vmul.f32 %v1690, %v2103
        %v2136 = vmul.f32 %v1692, %v2104
        %v2137 = vmul.f32 %v1694, %v2105
        %v2138 = vmul.f32 %v1696, %v2106
        %v2139 = vmul.f32 %v1698, %v2107
        %v2140 = vmul.f32 %v1700, %v2108
        %v2141 = vmul.f32 %v1702, %v2109
        %v2142 = vmul.f32 %v1704, %v2110
        %v2143 = vmul.f32 %v1706, %v2111
        %v2144 = vmul.f32 %v1708, %v2112
        %v2145 = vmul.f32 %v1710, %v2113
        %v2146 = vmul.f32 %v1712, %v2114
        %v2147 = vmul.f32 %v1714, %v2115
        %v2148 = vmul.f32 %v1716, %v2116
        %v2149 = vmul.f32 %v1718, %v2117
        %v2150 = vmul.f32 %v1720, %v2118
        %v2151 = vmul.f32 %v1722, %v2119
        %v2152 = vmul.f32 %v1724, %v2120
        %v2153 = vmul.f32 %v1726, %v2121
        %v2154 = vmul.f32 %v1728, %v2122
        %v2155 = vmul.f32 %v1730, %v2123
        %v2156 = vmul.f32 %v1732, %v2124
        %v2157 = vmul.f32 %v1734, %v2125
        %v2158 = vmul.f32 %v1736, %v2126
        %v2159 = vmul.f32 %v1738, %v2127
        %v2160 = vmul.f32 %v1740, %v2128
        %v2161 = vmul.f32 %v1742, %v2129
        %v2162 = vmul.f32 %v1744, %v2130
        %v2163 = vmul.f32 %v1746, %v2131
        %v2164 = vmul.f32 %v1748, %v2132
        %v2165 = vadd.f32 %v1974, %v1976
        %2166 = vadd.xlane.f32.xlu0 %v2165
        %v2167 = vpop.xlane.xlu0 %2166
        %v2168 = vadd.f32 %v1978, %v1980
        %2169 = vadd.xlane.f32.xlu0 %v2168
        %v2170 = vpop.xlane.xlu0 %2169
        %v2171 = vadd.f32 %v1982, %v1984
        %2172 = vadd.xlane.f32.xlu0 %v2171
        %v2173 = vpop.xlane.xlu0 %2172
        %v2174 = vadd.f32 %v1986, %v1988
        %2175 = vadd.xlane.f32.xlu0 %v2174
        %v2176 = vpop.xlane.xlu0 %2175
        %v2177 = vadd.f32 %v1990, %v1992
        %2178 = vadd.xlane.f32.xlu0 %v2177
        %v2179 = vpop.xlane.xlu0 %2178
        %v2180 = vadd.f32 %v1994, %v1996
        %2181 = vadd.xlane.f32.xlu0 %v2180
        %v2182 = vpop.xlane.xlu0 %2181
        %v2183 = vadd.f32 %v1998, %v2000
        %2184 = vadd.xlane.f32.xlu0 %v2183
        %v2185 = vpop.xlane.xlu0 %2184
        %v2186 = vadd.f32 %v2002, %v2004
        %2187 = vadd.xlane.f32.xlu0 %v2186
        %v2188 = vpop.xlane.xlu0 %2187
        %v2189 = vadd.f32 %v2006, %v2008
        %2190 = vadd.xlane.f32.xlu0 %v2189
        %v2191 = vpop.xlane.xlu0 %2190
        %v2192 = vadd.f32 %v2010, %v2012
        %2193 = vadd.xlane.f32.xlu0 %v2192
        %v2194 = vpop.xlane.xlu0 %2193
        %v2195 = vadd.f32 %v2014, %v2016
        %2196 = vadd.xlane.f32.xlu0 %v2195
        %v2197 = vpop.xlane.xlu0 %2196
        %v2198 = vadd.f32 %v2018, %v2020
        %2199 = vadd.xlane.f32.xlu0 %v2198
        %v2200 = vpop.xlane.xlu0 %2199
        %v2201 = vadd.f32 %v2022, %v2024
        %2202 = vadd.xlane.f32.xlu0 %v2201
        %v2203 = vpop.xlane.xlu0 %2202
        %v2204 = vadd.f32 %v2026, %v2028
        %2205 = vadd.xlane.f32.xlu0 %v2204
        %v2206 = vpop.xlane.xlu0 %2205
        %v2207 = vadd.f32 %v2030, %v2032
        %2208 = vadd.xlane.f32.xlu0 %v2207
        %v2209 = vpop.xlane.xlu0 %2208
        %v2210 = vadd.f32 %v2034, %v2036
        %2211 = vadd.xlane.f32.xlu0 %v2210
        %v2212 = vpop.xlane.xlu0 %2211
        %v2213 = vadd.f32 %v2038, %v2040
        %2214 = vadd.xlane.f32.xlu0 %v2213
        %v2215 = vpop.xlane.xlu0 %2214
        %v2216 = vadd.f32 %v2042, %v2044
        %2217 = vadd.xlane.f32.xlu0 %v2216
        %v2218 = vpop.xlane.xlu0 %2217
        %v2219 = vadd.f32 %v2046, %v2048
        %2220 = vadd.xlane.f32.xlu0 %v2219
        %v2221 = vpop.xlane.xlu0 %2220
        %v2222 = vadd.f32 %v2050, %v2052
        %2223 = vadd.xlane.f32.xlu0 %v2222
        %v2224 = vpop.xlane.xlu0 %2223
        %v2225 = vadd.f32 %v2054, %v2056
        %2226 = vadd.xlane.f32.xlu0 %v2225
        %v2227 = vpop.xlane.xlu0 %2226
        %v2228 = vadd.f32 %v2058, %v2060
        %2229 = vadd.xlane.f32.xlu0 %v2228
        %v2230 = vpop.xlane.xlu0 %2229
        %v2231 = vadd.f32 %v2062, %v2064
        %2232 = vadd.xlane.f32.xlu0 %v2231
        %v2233 = vpop.xlane.xlu0 %2232
        %v2234 = vadd.f32 %v2066, %v2068
        %2235 = vadd.xlane.f32.xlu0 %v2234
        %v2236 = vpop.xlane.xlu0 %2235
        %v2237 = vadd.f32 %v2070, %v2072
        %2238 = vadd.xlane.f32.xlu0 %v2237
        %v2239 = vpop.xlane.xlu0 %2238
        %v2240 = vadd.f32 %v2074, %v2076
        %2241 = vadd.xlane.f32.xlu0 %v2240
        %v2242 = vpop.xlane.xlu0 %2241
        %v2243 = vadd.f32 %v2078, %v2080
        %2244 = vadd.xlane.f32.xlu0 %v2243
        %v2245 = vpop.xlane.xlu0 %2244
        %v2246 = vadd.f32 %v2082, %v2084
        %2247 = vadd.xlane.f32.xlu0 %v2246
        %v2248 = vpop.xlane.xlu0 %2247
        %v2249 = vadd.f32 %v2086, %v2088
        %2250 = vadd.xlane.f32.xlu0 %v2249
        %v2251 = vpop.xlane.xlu0 %2250
        %v2252 = vadd.f32 %v2090, %v2092
        %2253 = vadd.xlane.f32.xlu0 %v2252
        %v2254 = vpop.xlane.xlu0 %2253
        %v2255 = vadd.f32 %v2094, %v2096
        %2256 = vadd.xlane.f32.xlu0 %v2255
        %v2257 = vpop.xlane.xlu0 %2256
        %v2258 = vadd.f32 %v2098, %v2100
        %2259 = vadd.xlane.f32.xlu0 %v2258
        %v2260 = vpop.xlane.xlu0 %2259
        %v2261 = vadd.f32 %v2133, %v2167
        %v2262 = vadd.f32 %v2134, %v2170
        %v2263 = vadd.f32 %v2135, %v2173
        %v2264 = vadd.f32 %v2136, %v2176
        %v2265 = vadd.f32 %v2137, %v2179
        %v2266 = vadd.f32 %v2138, %v2182
        %v2267 = vadd.f32 %v2139, %v2185
        %v2268 = vadd.f32 %v2140, %v2188
        %v2269 = vadd.f32 %v2141, %v2191
        %v2270 = vadd.f32 %v2142, %v2194
        %v2271 = vadd.f32 %v2143, %v2197
        %v2272 = vadd.f32 %v2144, %v2200
        %v2273 = vadd.f32 %v2145, %v2203
        %v2274 = vadd.f32 %v2146, %v2206
        %v2275 = vadd.f32 %v2147, %v2209
        %v2276 = vadd.f32 %v2148, %v2212
        %v2277 = vadd.f32 %v2149, %v2215
        %v2278 = vadd.f32 %v2150, %v2218
        %v2279 = vadd.f32 %v2151, %v2221
        %v2280 = vadd.f32 %v2152, %v2224
        %v2281 = vadd.f32 %v2153, %v2227
        %v2282 = vadd.f32 %v2154, %v2230
        %v2283 = vadd.f32 %v2155, %v2233
        %v2284 = vadd.f32 %v2156, %v2236
        %v2285 = vadd.f32 %v2157, %v2239
        %v2286 = vadd.f32 %v2158, %v2242
        %v2287 = vadd.f32 %v2159, %v2245
        %v2288 = vadd.f32 %v2160, %v2248
        %v2289 = vadd.f32 %v2161, %v2251
        %v2290 = vadd.f32 %v2162, %v2254
        %v2291 = vadd.f32 %v2163, %v2257
        %v2292 = vadd.f32 %v2164, %v2260
        %vm2293 = vcmask 7168
        %2294 = vst.msk [vmem:[#allocation3] sm:$0xff] %vm2293, %v2261
        %2295 = vst.msk [vmem:[#allocation3 + $0x8] sm:$0xff] %vm2293, %v2262
        %2296 = vst.msk [vmem:[#allocation3 + $0x10] sm:$0xff] %vm2293, %v2263
        %2297 = vst.msk [vmem:[#allocation3 + $0x18] sm:$0xff] %vm2293, %v2264
        %2298 = vst.msk [vmem:[#allocation3 + $0x20] sm:$0xff] %vm2293, %v2265
        %2299 = vst.msk [vmem:[#allocation3 + $0x28] sm:$0xff] %vm2293, %v2266
        %2300 = vst.msk [vmem:[#allocation3 + $0x30] sm:$0xff] %vm2293, %v2267
        %2301 = vst.msk [vmem:[#allocation3 + $0x38] sm:$0xff] %vm2293, %v2268
        %2302 = vst.msk [vmem:[#allocation3 + $0x40] sm:$0xff] %vm2293, %v2269
        %2303 = vst.msk [vmem:[#allocation3 + $0x48] sm:$0xff] %vm2293, %v2270
        %2304 = vst.msk [vmem:[#allocation3 + $0x50] sm:$0xff] %vm2293, %v2271
        %2305 = vst.msk [vmem:[#allocation3 + $0x58] sm:$0xff] %vm2293, %v2272
        %2306 = vst.msk [vmem:[#allocation3 + $0x60] sm:$0xff] %vm2293, %v2273
        %2307 = vst.msk [vmem:[#allocation3 + $0x68] sm:$0xff] %vm2293, %v2274
        %2308 = vst.msk [vmem:[#allocation3 + $0x70] sm:$0xff] %vm2293, %v2275
        %2309 = vst.msk [vmem:[#allocation3 + $0x78] sm:$0xff] %vm2293, %v2276
        %2310 = vst.msk [vmem:[#allocation3 + $0x80] sm:$0xff] %vm2293, %v2277
        %2311 = vst.msk [vmem:[#allocation3 + $0x88] sm:$0xff] %vm2293, %v2278
        %2312 = vst.msk [vmem:[#allocation3 + $0x90] sm:$0xff] %vm2293, %v2279
        %2313 = vst.msk [vmem:[#allocation3 + $0x98] sm:$0xff] %vm2293, %v2280
        %2314 = vst.msk [vmem:[#allocation3 + $0xa0] sm:$0xff] %vm2293, %v2281
        %2315 = vst.msk [vmem:[#allocation3 + $0xa8] sm:$0xff] %vm2293, %v2282
        %2316 = vst.msk [vmem:[#allocation3 + $0xb0] sm:$0xff] %vm2293, %v2283
        %2317 = vst.msk [vmem:[#allocation3 + $0xb8] sm:$0xff] %vm2293, %v2284
        %2318 = vst.msk [vmem:[#allocation3 + $0xc0] sm:$0xff] %vm2293, %v2285
        %2319 = vst.msk [vmem:[#allocation3 + $0xc8] sm:$0xff] %vm2293, %v2286
        %2320 = vst.msk [vmem:[#allocation3 + $0xd0] sm:$0xff] %vm2293, %v2287
        %2321 = vst.msk [vmem:[#allocation3 + $0xd8] sm:$0xff] %vm2293, %v2288
        %2322 = vst.msk [vmem:[#allocation3 + $0xe0] sm:$0xff] %vm2293, %v2289
        %2323 = vst.msk [vmem:[#allocation3 + $0xe8] sm:$0xff] %vm2293, %v2290
        %2324 = vst.msk [vmem:[#allocation3 + $0xf0] sm:$0xff] %vm2293, %v2291
        %2325 = vst.msk [vmem:[#allocation3 + $0xf8] sm:$0xff] %vm2293, %v2292
        %2326 = vst.msk [vmem:[#allocation2] sm:$0xff] %vm2293, %v1621
        %2327 = vst.msk [vmem:[#allocation2 + $0x8] sm:$0xff] %vm2293, %v1622
        %2328 = vst.msk [vmem:[#allocation2 + $0x10] sm:$0xff] %vm2293, %v1623
        %2329 = vst.msk [vmem:[#allocation2 + $0x18] sm:$0xff] %vm2293, %v1624
        %2330 = vst.msk [vmem:[#allocation2 + $0x20] sm:$0xff] %vm2293, %v1625
        %2331 = vst.msk [vmem:[#allocation2 + $0x28] sm:$0xff] %vm2293, %v1626
        %2332 = vst.msk [vmem:[#allocation2 + $0x30] sm:$0xff] %vm2293, %v1627
        %2333 = vst.msk [vmem:[#allocation2 + $0x38] sm:$0xff] %vm2293, %v1628
        %2334 = vst.msk [vmem:[#allocation2 + $0x40] sm:$0xff] %vm2293, %v1629
        %2335 = vst.msk [vmem:[#allocation2 + $0x48] sm:$0xff] %vm2293, %v1630
        %2336 = vst.msk [vmem:[#allocation2 + $0x50] sm:$0xff] %vm2293, %v1631
        %2337 = vst.msk [vmem:[#allocation2 + $0x58] sm:$0xff] %vm2293, %v1632
        %2338 = vst.msk [vmem:[#allocation2 + $0x60] sm:$0xff] %vm2293, %v1633
        %2339 = vst.msk [vmem:[#allocation2 + $0x68] sm:$0xff] %vm2293, %v1634
        %2340 = vst.msk [vmem:[#allocation2 + $0x70] sm:$0xff] %vm2293, %v1635
        %2341 = vst.msk [vmem:[#allocation2 + $0x78] sm:$0xff] %vm2293, %v1636
        %2342 = vst.msk [vmem:[#allocation2 + $0x80] sm:$0xff] %vm2293, %v1637
        %2343 = vst.msk [vmem:[#allocation2 + $0x88] sm:$0xff] %vm2293, %v1638
        %2344 = vst.msk [vmem:[#allocation2 + $0x90] sm:$0xff] %vm2293, %v1639
        %2345 = vst.msk [vmem:[#allocation2 + $0x98] sm:$0xff] %vm2293, %v1640
        %2346 = vst.msk [vmem:[#allocation2 + $0xa0] sm:$0xff] %vm2293, %v1641
        %2347 = vst.msk [vmem:[#allocation2 + $0xa8] sm:$0xff] %vm2293, %v1642
        %2348 = vst.msk [vmem:[#allocation2 + $0xb0] sm:$0xff] %vm2293, %v1643
        %2349 = vst.msk [vmem:[#allocation2 + $0xb8] sm:$0xff] %vm2293, %v1644
        %2350 = vst.msk [vmem:[#allocation2 + $0xc0] sm:$0xff] %vm2293, %v1645
        %2351 = vst.msk [vmem:[#allocation2 + $0xc8] sm:$0xff] %vm2293, %v1646
        %2352 = vst.msk [vmem:[#allocation2 + $0xd0] sm:$0xff] %vm2293, %v1647
        %2353 = vst.msk [vmem:[#allocation2 + $0xd8] sm:$0xff] %vm2293, %v1648
        %2354 = vst.msk [vmem:[#allocation2 + $0xe0] sm:$0xff] %vm2293, %v1649
        %2355 = vst.msk [vmem:[#allocation2 + $0xe8] sm:$0xff] %vm2293, %v1650
        %2356 = vst.msk [vmem:[#allocation2 + $0xf0] sm:$0xff] %vm2293, %v1651
        %2357 = vst.msk [vmem:[#allocation2 + $0xf8] sm:$0xff] %vm2293, %v1652
        %2358 = vmatprep.subr.mxu0 0.0
        %2359 = vmatpush1.msra.mxu0 %v1011
        %2360 = vmatprep.subr.mxu0 0.0
        %2361 = vmatpush1.msra.mxu0 %v1012
        %2362 = vmatprep.subr.mxu0 0.0
        %2363 = vmatpush1.msra.mxu0 %v1013
        %2364 = vmatprep.subr.mxu0 0.0
        %2365 = vmatpush1.msra.mxu0 %v1014
        %2366 = vmatprep.subr.mxu0 0.0
        %2367 = vmatpush1.msra.mxu0 %v1015
        %2368 = vmatprep.subr.mxu0 0.0
        %2369 = vmatpush1.msra.mxu0 %v1016
        %2370 = vmatprep.subr.mxu0 0.0
        %2371 = vmatpush1.msra.mxu0 %v1017
        %2372 = vmatprep.subr.mxu0 0.0
        %2373 = vmatpush1.msra.mxu0 %v1018
        %2374 = vmatprep.subr.mxu0 0.0
        %2375 = vmatpush1.msra.mxu0 %v1019
        %2376 = vmatprep.subr.mxu0 0.0
        %2377 = vmatpush1.msra.mxu0 %v1020
        %2378 = vmatprep.subr.mxu0 0.0
        %2379 = vmatpush1.msra.mxu0 %v1021
        %2380 = vmatprep.subr.mxu0 0.0
        %2381 = vmatpush1.msra.mxu0 %v1022
        %2382 = vmatprep.subr.mxu0 0.0
        %2383 = vmatpush1.msra.mxu0 %v1023
        %2384 = vmatprep.subr.mxu0 0.0
        %2385 = vmatpush1.msra.mxu0 %v1024
        %2386 = vmatprep.subr.mxu0 0.0
        %2387 = vmatpush1.msra.mxu0 %v1025
        %2388 = vmatprep.subr.mxu0 0.0
        %2389 = vmatpush1.msra.mxu0 %v1026
        %2390 = vmatprep.subr.mxu0 0.0
        %2391 = vmatpush1.msra.mxu0 %v1027
        %2392 = vmatprep.subr.mxu0 0.0
        %2393 = vmatpush1.msra.mxu0 %v1028
        %2394 = vmatprep.subr.mxu0 0.0
        %2395 = vmatpush1.msra.mxu0 %v1029
        %2396 = vmatprep.subr.mxu0 0.0
        %2397 = vmatpush1.msra.mxu0 %v1030
        %2398 = vmatprep.subr.mxu0 0.0
        %2399 = vmatpush1.msra.mxu0 %v1031
        %2400 = vmatprep.subr.mxu0 0.0
        %2401 = vmatpush1.msra.mxu0 %v1032
        %2402 = vmatprep.subr.mxu0 0.0
        %2403 = vmatpush1.msra.mxu0 %v1033
        %2404 = vmatprep.subr.mxu0 0.0
        %2405 = vmatpush1.msra.mxu0 %v1034
        %2406 = vmatprep.subr.mxu0 0.0
        %2407 = vmatpush1.msra.mxu0 %v1035
        %2408 = vmatprep.subr.mxu0 0.0
        %2409 = vmatpush1.msra.mxu0 %v1036
        %2410 = vmatprep.subr.mxu0 0.0
        %2411 = vmatpush1.msra.mxu0 %v1037
        %2412 = vmatprep.subr.mxu0 0.0
        %2413 = vmatpush1.msra.mxu0 %v1038
        %2414 = vmatprep.subr.mxu0 0.0
        %2415 = vmatpush1.msra.mxu0 %v1039
        %2416 = vmatprep.subr.mxu0 0.0
        %2417 = vmatpush1.msra.mxu0 %v1040
        %2418 = vmatprep.subr.mxu0 0.0
        %2419 = vmatpush1.msra.mxu0 %v1041
        %2420 = vmatprep.subr.mxu0 0.0
        %2421 = vmatpush1.msra.mxu0 %v1042
        %2422 = vmatprep.mubr.f32.mxu0 %v1976
        %2423 = vmatmul.mubr.f32.gmra.mrb[0].mxu0 %v1974
        %v2424 = vpop.f32.mrb[0].mxu0
        %v2425 = vadd.f32 0.0, %v2424
        %v2426 = vpop.f32.mrb[0].mxu0
        %2427 = vmatprep.mubr.f32.mxu0 %v1980
        %2428 = vmatmul.mubr.f32.gmra.mrb[0].mxu0 %v1978
        %v2429 = vpop.f32.mrb[0].mxu0
        %v2430 = vadd.f32 0.0, %v2429
        %v2431 = vpop.f32.mrb[0].mxu0
        %2432 = vmatprep.mubr.f32.mxu0 %v1984
        %2433 = vmatmul.mubr.f32.gmra.mrb[0].mxu0 %v1982
        %v2434 = vpop.f32.mrb[0].mxu0
        %v2435 = vadd.f32 0.0, %v2434
        %v2436 = vpop.f32.mrb[0].mxu0
        %2437 = vmatprep.mubr.f32.mxu0 %v1988
        %2438 = vmatmul.mubr.f32.gmra.mrb[0].mxu0 %v1986
        %v2439 = vpop.f32.mrb[0].mxu0
        %v2440 = vadd.f32 0.0, %v2439
        %v2441 = vpop.f32.mrb[0].mxu0
        %2442 = vmatprep.mubr.f32.mxu0 %v1992
        %2443 = vmatmul.mubr.f32.gmra.mrb[0].mxu0 %v1990
        %v2444 = vpop.f32.mrb[0].mxu0
        %v2445 = vadd.f32 0.0, %v2444
        %v2446 = vpop.f32.mrb[0].mxu0
        %2447 = vmatprep.mubr.f32.mxu0 %v1996
        %2448 = vmatmul.mubr.f32.gmra.mrb[0].mxu0 %v1994
        %v2449 = vpop.f32.mrb[0].mxu0
        %v2450 = vadd.f32 0.0, %v2449
        %v2451 = vpop.f32.mrb[0].mxu0
        %2452 = vmatprep.mubr.f32.mxu0 %v2000
        %2453 = vmatmul.mubr.f32.gmra.mrb[0].mxu0 %v1998
        %v2454 = vpop.f32.mrb[0].mxu0
        %v2455 = vadd.f32 0.0, %v2454
        %v2456 = vpop.f32.mrb[0].mxu0
        %2457 = vmatprep.mubr.f32.mxu0 %v2004
        %2458 = vmatmul.mubr.f32.gmra.mrb[0].mxu0 %v2002
        %v2459 = vpop.f32.mrb[0].mxu0
        %v2460 = vadd.f32 0.0, %v2459
        %v2461 = vpop.f32.mrb[0].mxu0
        %2462 = vmatprep.mubr.f32.mxu0 %v2008
        %2463 = vmatmul.mubr.f32.gmra.mrb[0].mxu0 %v2006
        %v2464 = vpop.f32.mrb[0].mxu0
        %v2465 = vadd.f32 0.0, %v2464
        %v2466 = vpop.f32.mrb[0].mxu0
        %2467 = vmatprep.mubr.f32.mxu0 %v2012
        %2468 = vmatmul.mubr.f32.gmra.mrb[0].mxu0 %v2010
        %v2469 = vpop.f32.mrb[0].mxu0
        %v2470 = vadd.f32 0.0, %v2469
        %v2471 = vpop.f32.mrb[0].mxu0
        %2472 = vmatprep.mubr.f32.mxu0 %v2016
        %2473 = vmatmul.mubr.f32.gmra.mrb[0].mxu0 %v2014
        %v2474 = vpop.f32.mrb[0].mxu0
        %v2475 = vadd.f32 0.0, %v2474
        %v2476 = vpop.f32.mrb[0].mxu0
        %2477 = vmatprep.mubr.f32.mxu0 %v2020
        %2478 = vmatmul.mubr.f32.gmra.mrb[0].mxu0 %v2018
        %v2479 = vpop.f32.mrb[0].mxu0
        %v2480 = vadd.f32 0.0, %v2479
        %v2481 = vpop.f32.mrb[0].mxu0
        %2482 = vmatprep.mubr.f32.mxu0 %v2024
        %2483 = vmatmul.mubr.f32.gmra.mrb[0].mxu0 %v2022
        %v2484 = vpop.f32.mrb[0].mxu0
        %v2485 = vadd.f32 0.0, %v2484
        %v2486 = vpop.f32.mrb[0].mxu0
        %2487 = vmatprep.mubr.f32.mxu0 %v2028
        %2488 = vmatmul.mubr.f32.gmra.mrb[0].mxu0 %v2026
        %v2489 = vpop.f32.mrb[0].mxu0
        %v2490 = vadd.f32 0.0, %v2489
        %v2491 = vpop.f32.mrb[0].mxu0
        %2492 = vmatprep.mubr.f32.mxu0 %v2032
        %2493 = vmatmul.mubr.f32.gmra.mrb[0].mxu0 %v2030
        %v2494 = vpop.f32.mrb[0].mxu0
        %v2495 = vadd.f32 0.0, %v2494
        %v2496 = vpop.f32.mrb[0].mxu0
        %2497 = vmatprep.mubr.f32.mxu0 %v2036
        %2498 = vmatmul.mubr.f32.gmra.mrb[0].mxu0 %v2034
        %v2499 = vpop.f32.mrb[0].mxu0
        %v2500 = vadd.f32 0.0, %v2499
        %v2501 = vpop.f32.mrb[0].mxu0
        %2502 = vmatprep.mubr.f32.mxu0 %v2040
        %2503 = vmatmul.mubr.f32.gmra.mrb[0].mxu0 %v2038
        %v2504 = vpop.f32.mrb[0].mxu0
        %v2505 = vadd.f32 0.0, %v2504
        %v2506 = vpop.f32.mrb[0].mxu0
        %2507 = vmatprep.mubr.f32.mxu0 %v2044
        %2508 = vmatmul.mubr.f32.gmra.mrb[0].mxu0 %v2042
        %v2509 = vpop.f32.mrb[0].mxu0
        %v2510 = vadd.f32 0.0, %v2509
        %v2511 = vpop.f32.mrb[0].mxu0
        %2512 = vmatprep.mubr.f32.mxu0 %v2048
        %2513 = vmatmul.mubr.f32.gmra.mrb[0].mxu0 %v2046
        %v2514 = vpop.f32.mrb[0].mxu0
        %v2515 = vadd.f32 0.0, %v2514
        %v2516 = vpop.f32.mrb[0].mxu0
        %2517 = vmatprep.mubr.f32.mxu0 %v2052
        %2518 = vmatmul.mubr.f32.gmra.mrb[0].mxu0 %v2050
        %v2519 = vpop.f32.mrb[0].mxu0
        %v2520 = vadd.f32 0.0, %v2519
        %v2521 = vpop.f32.mrb[0].mxu0
        %2522 = vmatprep.mubr.f32.mxu0 %v2056
        %2523 = vmatmul.mubr.f32.gmra.mrb[0].mxu0 %v2054
        %v2524 = vpop.f32.mrb[0].mxu0
        %v2525 = vadd.f32 0.0, %v2524
        %v2526 = vpop.f32.mrb[0].mxu0
        %2527 = vmatprep.mubr.f32.mxu0 %v2060
        %2528 = vmatmul.mubr.f32.gmra.mrb[0].mxu0 %v2058
        %v2529 = vpop.f32.mrb[0].mxu0
        %v2530 = vadd.f32 0.0, %v2529
        %v2531 = vpop.f32.mrb[0].mxu0
        %2532 = vmatprep.mubr.f32.mxu0 %v2064
        %2533 = vmatmul.mubr.f32.gmra.mrb[0].mxu0 %v2062
        %v2534 = vpop.f32.mrb[0].mxu0
        %v2535 = vadd.f32 0.0, %v2534
        %v2536 = vpop.f32.mrb[0].mxu0
        %2537 = vmatprep.mubr.f32.mxu0 %v2068
        %2538 = vmatmul.mubr.f32.gmra.mrb[0].mxu0 %v2066
        %v2539 = vpop.f32.mrb[0].mxu0
        %v2540 = vadd.f32 0.0, %v2539
        %v2541 = vpop.f32.mrb[0].mxu0
        %2542 = vmatprep.mubr.f32.mxu0 %v2072
        %2543 = vmatmul.mubr.f32.gmra.mrb[0].mxu0 %v2070
        %v2544 = vpop.f32.mrb[0].mxu0
        %v2545 = vadd.f32 0.0, %v2544
        %v2546 = vpop.f32.mrb[0].mxu0
        %2547 = vmatprep.mubr.f32.mxu0 %v2076
        %2548 = vmatmul.mubr.f32.gmra.mrb[0].mxu0 %v2074
        %v2549 = vpop.f32.mrb[0].mxu0
        %v2550 = vadd.f32 0.0, %v2549
        %v2551 = vpop.f32.mrb[0].mxu0
        %2552 = vmatprep.mubr.f32.mxu0 %v2080
        %2553 = vmatmul.mubr.f32.gmra.mrb[0].mxu0 %v2078
        %v2554 = vpop.f32.mrb[0].mxu0
        %v2555 = vadd.f32 0.0, %v2554
        %v2556 = vpop.f32.mrb[0].mxu0
        %2557 = vmatprep.mubr.f32.mxu0 %v2084
        %2558 = vmatmul.mubr.f32.gmra.mrb[0].mxu0 %v2082
        %v2559 = vpop.f32.mrb[0].mxu0
        %v2560 = vadd.f32 0.0, %v2559
        %v2561 = vpop.f32.mrb[0].mxu0
        %2562 = vmatprep.mubr.f32.mxu0 %v2088
        %2563 = vmatmul.mubr.f32.gmra.mrb[0].mxu0 %v2086
        %v2564 = vpop.f32.mrb[0].mxu0
        %v2565 = vadd.f32 0.0, %v2564
        %v2566 = vpop.f32.mrb[0].mxu0
        %2567 = vmatprep.mubr.f32.mxu0 %v2092
        %2568 = vmatmul.mubr.f32.gmra.mrb[0].mxu0 %v2090
        %v2569 = vpop.f32.mrb[0].mxu0
        %v2570 = vadd.f32 0.0, %v2569
        %v2571 = vpop.f32.mrb[0].mxu0
        %2572 = vmatprep.mubr.f32.mxu0 %v2096
        %2573 = vmatmul.mubr.f32.gmra.mrb[0].mxu0 %v2094
        %v2574 = vpop.f32.mrb[0].mxu0
        %v2575 = vadd.f32 0.0, %v2574
        %v2576 = vpop.f32.mrb[0].mxu0
        %2577 = vmatprep.mubr.f32.mxu0 %v2100
        %2578 = vmatmul.mubr.f32.gmra.mrb[0].mxu0 %v2098
        %v2579 = vpop.f32.mrb[0].mxu0
        %v2580 = vadd.f32 0.0, %v2579
        %v2581 = vpop.f32.mrb[0].mxu0
        %2582 = vdwg.mxu0
        %v2583 = vld [vmem:[#allocation4] sm:$0xff]
        %v2584 = vld [vmem:[#allocation4 + $0x8] sm:$0xff]
        %v2585 = vld [vmem:[#allocation4 + $0x10] sm:$0xff]
        %v2586 = vld [vmem:[#allocation4 + $0x18] sm:$0xff]
        %v2587 = vld [vmem:[#allocation4 + $0x20] sm:$0xff]
        %v2588 = vld [vmem:[#allocation4 + $0x28] sm:$0xff]
        %v2589 = vld [vmem:[#allocation4 + $0x30] sm:$0xff]
        %v2590 = vld [vmem:[#allocation4 + $0x38] sm:$0xff]
        %v2591 = vld [vmem:[#allocation4 + $0x40] sm:$0xff]
        %v2592 = vld [vmem:[#allocation4 + $0x48] sm:$0xff]
        %v2593 = vld [vmem:[#allocation4 + $0x50] sm:$0xff]
        %v2594 = vld [vmem:[#allocation4 + $0x58] sm:$0xff]
        %v2595 = vld [vmem:[#allocation4 + $0x60] sm:$0xff]
        %v2596 = vld [vmem:[#allocation4 + $0x68] sm:$0xff]
        %v2597 = vld [vmem:[#allocation4 + $0x70] sm:$0xff]
        %v2598 = vld [vmem:[#allocation4 + $0x78] sm:$0xff]
        %v2599 = vld [vmem:[#allocation4 + $0x80] sm:$0xff]
        %v2600 = vld [vmem:[#allocation4 + $0x88] sm:$0xff]
        %v2601 = vld [vmem:[#allocation4 + $0x90] sm:$0xff]
        %v2602 = vld [vmem:[#allocation4 + $0x98] sm:$0xff]
        %v2603 = vld [vmem:[#allocation4 + $0xa0] sm:$0xff]
        %v2604 = vld [vmem:[#allocation4 + $0xa8] sm:$0xff]
        %v2605 = vld [vmem:[#allocation4 + $0xb0] sm:$0xff]
        %v2606 = vld [vmem:[#allocation4 + $0xb8] sm:$0xff]
        %v2607 = vld [vmem:[#allocation4 + $0xc0] sm:$0xff]
        %v2608 = vld [vmem:[#allocation4 + $0xc8] sm:$0xff]
        %v2609 = vld [vmem:[#allocation4 + $0xd0] sm:$0xff]
        %v2610 = vld [vmem:[#allocation4 + $0xd8] sm:$0xff]
        %v2611 = vld [vmem:[#allocation4 + $0xe0] sm:$0xff]
        %v2612 = vld [vmem:[#allocation4 + $0xe8] sm:$0xff]
        %v2613 = vld [vmem:[#allocation4 + $0xf0] sm:$0xff]
        %v2614 = vld [vmem:[#allocation4 + $0xf8] sm:$0xff]
        %2616 = vset.pattern.permute.xlu0 0
        %2617 = vperm.xlu0 %2616, %v1686
        %v2618 = vpop.permute.xlu0 %2617
        %2621 = vset.pattern.permute.xlu0 0
        %2622 = vperm.xlu0 %2621, %v1688
        %v2623 = vpop.permute.xlu0 %2622
        %2626 = vset.pattern.permute.xlu0 0
        %2627 = vperm.xlu0 %2626, %v1690
        %v2628 = vpop.permute.xlu0 %2627
        %2631 = vset.pattern.permute.xlu0 0
        %2632 = vperm.xlu0 %2631, %v1692
        %v2633 = vpop.permute.xlu0 %2632
        %2636 = vset.pattern.permute.xlu0 0
        %2637 = vperm.xlu0 %2636, %v1694
        %v2638 = vpop.permute.xlu0 %2637
        %2641 = vset.pattern.permute.xlu0 0
        %2642 = vperm.xlu0 %2641, %v1696
        %v2643 = vpop.permute.xlu0 %2642
        %2646 = vset.pattern.permute.xlu0 0
        %2647 = vperm.xlu0 %2646, %v1698
        %v2648 = vpop.permute.xlu0 %2647
        %2651 = vset.pattern.permute.xlu0 0
        %2652 = vperm.xlu0 %2651, %v1700
        %v2653 = vpop.permute.xlu0 %2652
        %2656 = vset.pattern.permute.xlu0 0
        %2657 = vperm.xlu0 %2656, %v1702
        %v2658 = vpop.permute.xlu0 %2657
        %2661 = vset.pattern.permute.xlu0 0
        %2662 = vperm.xlu0 %2661, %v1704
        %v2663 = vpop.permute.xlu0 %2662
        %2666 = vset.pattern.permute.xlu0 0
        %2667 = vperm.xlu0 %2666, %v1706
        %v2668 = vpop.permute.xlu0 %2667
        %2671 = vset.pattern.permute.xlu0 0
        %2672 = vperm.xlu0 %2671, %v1708
        %v2673 = vpop.permute.xlu0 %2672
        %2676 = vset.pattern.permute.xlu0 0
        %2677 = vperm.xlu0 %2676, %v1710
        %v2678 = vpop.permute.xlu0 %2677
        %2681 = vset.pattern.permute.xlu0 0
        %2682 = vperm.xlu0 %2681, %v1712
        %v2683 = vpop.permute.xlu0 %2682
        %2686 = vset.pattern.permute.xlu0 0
        %2687 = vperm.xlu0 %2686, %v1714
        %v2688 = vpop.permute.xlu0 %2687
        %2691 = vset.pattern.permute.xlu0 0
        %2692 = vperm.xlu0 %2691, %v1716
        %v2693 = vpop.permute.xlu0 %2692
        %2696 = vset.pattern.permute.xlu0 0
        %2697 = vperm.xlu0 %2696, %v1718
        %v2698 = vpop.permute.xlu0 %2697
        %2701 = vset.pattern.permute.xlu0 0
        %2702 = vperm.xlu0 %2701, %v1720
        %v2703 = vpop.permute.xlu0 %2702
        %2706 = vset.pattern.permute.xlu0 0
        %2707 = vperm.xlu0 %2706, %v1722
        %v2708 = vpop.permute.xlu0 %2707
        %2711 = vset.pattern.permute.xlu0 0
        %2712 = vperm.xlu0 %2711, %v1724
        %v2713 = vpop.permute.xlu0 %2712
        %2716 = vset.pattern.permute.xlu0 0
        %2717 = vperm.xlu0 %2716, %v1726
        %v2718 = vpop.permute.xlu0 %2717
        %2721 = vset.pattern.permute.xlu0 0
        %2722 = vperm.xlu0 %2721, %v1728
        %v2723 = vpop.permute.xlu0 %2722
        %2726 = vset.pattern.permute.xlu0 0
        %2727 = vperm.xlu0 %2726, %v1730
        %v2728 = vpop.permute.xlu0 %2727
        %2731 = vset.pattern.permute.xlu0 0
        %2732 = vperm.xlu0 %2731, %v1732
        %v2733 = vpop.permute.xlu0 %2732
        %2736 = vset.pattern.permute.xlu0 0
        %2737 = vperm.xlu0 %2736, %v1734
        %v2738 = vpop.permute.xlu0 %2737
        %2741 = vset.pattern.permute.xlu0 0
        %2742 = vperm.xlu0 %2741, %v1736
        %v2743 = vpop.permute.xlu0 %2742
        %2746 = vset.pattern.permute.xlu0 0
        %2747 = vperm.xlu0 %2746, %v1738
        %v2748 = vpop.permute.xlu0 %2747
        %2751 = vset.pattern.permute.xlu0 0
        %2752 = vperm.xlu0 %2751, %v1740
        %v2753 = vpop.permute.xlu0 %2752
        %2756 = vset.pattern.permute.xlu0 0
        %2757 = vperm.xlu0 %2756, %v1742
        %v2758 = vpop.permute.xlu0 %2757
        %2761 = vset.pattern.permute.xlu0 0
        %2762 = vperm.xlu0 %2761, %v1744
        %v2763 = vpop.permute.xlu0 %2762
        %2766 = vset.pattern.permute.xlu0 0
        %2767 = vperm.xlu0 %2766, %v1746
        %v2768 = vpop.permute.xlu0 %2767
        %2771 = vset.pattern.permute.xlu0 0
        %2772 = vperm.xlu0 %2771, %v1748
        %v2773 = vpop.permute.xlu0 %2772
        %v2775 = vmul.f32 %v2618, %v2583
        %v2776 = vmul.f32 %v2623, %v2584
        %v2777 = vmul.f32 %v2628, %v2585
        %v2778 = vmul.f32 %v2633, %v2586
        %v2779 = vmul.f32 %v2638, %v2587
        %v2780 = vmul.f32 %v2643, %v2588
        %v2781 = vmul.f32 %v2648, %v2589
        %v2782 = vmul.f32 %v2653, %v2590
        %v2783 = vmul.f32 %v2658, %v2591
        %v2784 = vmul.f32 %v2663, %v2592
        %v2785 = vmul.f32 %v2668, %v2593
        %v2786 = vmul.f32 %v2673, %v2594
        %v2787 = vmul.f32 %v2678, %v2595
        %v2788 = vmul.f32 %v2683, %v2596
        %v2789 = vmul.f32 %v2688, %v2597
        %v2790 = vmul.f32 %v2693, %v2598
        %v2791 = vmul.f32 %v2698, %v2599
        %v2792 = vmul.f32 %v2703, %v2600
        %v2793 = vmul.f32 %v2708, %v2601
        %v2794 = vmul.f32 %v2713, %v2602
        %v2795 = vmul.f32 %v2718, %v2603
        %v2796 = vmul.f32 %v2723, %v2604
        %v2797 = vmul.f32 %v2728, %v2605
        %v2798 = vmul.f32 %v2733, %v2606
        %v2799 = vmul.f32 %v2738, %v2607
        %v2800 = vmul.f32 %v2743, %v2608
        %v2801 = vmul.f32 %v2748, %v2609
        %v2802 = vmul.f32 %v2753, %v2610
        %v2803 = vmul.f32 %v2758, %v2611
        %v2804 = vmul.f32 %v2763, %v2612
        %v2805 = vmul.f32 %v2768, %v2613
        %v2806 = vmul.f32 %v2773, %v2614
        %v2807 = vadd.f32 %v2775, %v2425
        %v2808 = vadd.f32 %v2776, %v2430
        %v2809 = vadd.f32 %v2777, %v2435
        %v2810 = vadd.f32 %v2778, %v2440
        %v2811 = vadd.f32 %v2779, %v2445
        %v2812 = vadd.f32 %v2780, %v2450
        %v2813 = vadd.f32 %v2781, %v2455
        %v2814 = vadd.f32 %v2782, %v2460
        %v2815 = vadd.f32 %v2783, %v2465
        %v2816 = vadd.f32 %v2784, %v2470
        %v2817 = vadd.f32 %v2785, %v2475
        %v2818 = vadd.f32 %v2786, %v2480
        %v2819 = vadd.f32 %v2787, %v2485
        %v2820 = vadd.f32 %v2788, %v2490
        %v2821 = vadd.f32 %v2789, %v2495
        %v2822 = vadd.f32 %v2790, %v2500
        %v2823 = vadd.f32 %v2791, %v2505
        %v2824 = vadd.f32 %v2792, %v2510
        %v2825 = vadd.f32 %v2793, %v2515
        %v2826 = vadd.f32 %v2794, %v2520
        %v2827 = vadd.f32 %v2795, %v2525
        %v2828 = vadd.f32 %v2796, %v2530
        %v2829 = vadd.f32 %v2797, %v2535
        %v2830 = vadd.f32 %v2798, %v2540
        %v2831 = vadd.f32 %v2799, %v2545
        %v2832 = vadd.f32 %v2800, %v2550
        %v2833 = vadd.f32 %v2801, %v2555
        %v2834 = vadd.f32 %v2802, %v2560
        %v2835 = vadd.f32 %v2803, %v2565
        %v2836 = vadd.f32 %v2804, %v2570
        %v2837 = vadd.f32 %v2805, %v2575
        %v2838 = vadd.f32 %v2806, %v2580
        %2839 = vst.msk [vmem:[#allocation4] sm:$0xff] %vm1043, %v2807
        %2840 = vst.msk [vmem:[#allocation4 + $0x8] sm:$0xff] %vm1043, %v2808
        %2841 = vst.msk [vmem:[#allocation4 + $0x10] sm:$0xff] %vm1043, %v2809
        %2842 = vst.msk [vmem:[#allocation4 + $0x18] sm:$0xff] %vm1043, %v2810
        %2843 = vst.msk [vmem:[#allocation4 + $0x20] sm:$0xff] %vm1043, %v2811
        %2844 = vst.msk [vmem:[#allocation4 + $0x28] sm:$0xff] %vm1043, %v2812
        %2845 = vst.msk [vmem:[#allocation4 + $0x30] sm:$0xff] %vm1043, %v2813
        %2846 = vst.msk [vmem:[#allocation4 + $0x38] sm:$0xff] %vm1043, %v2814
        %2847 = vst.msk [vmem:[#allocation4 + $0x40] sm:$0xff] %vm1043, %v2815
        %2848 = vst.msk [vmem:[#allocation4 + $0x48] sm:$0xff] %vm1043, %v2816
        %2849 = vst.msk [vmem:[#allocation4 + $0x50] sm:$0xff] %vm1043, %v2817
        %2850 = vst.msk [vmem:[#allocation4 + $0x58] sm:$0xff] %vm1043, %v2818
        %2851 = vst.msk [vmem:[#allocation4 + $0x60] sm:$0xff] %vm1043, %v2819
        %2852 = vst.msk [vmem:[#allocation4 + $0x68] sm:$0xff] %vm1043, %v2820
        %2853 = vst.msk [vmem:[#allocation4 + $0x70] sm:$0xff] %vm1043, %v2821
        %2854 = vst.msk [vmem:[#allocation4 + $0x78] sm:$0xff] %vm1043, %v2822
        %2855 = vst.msk [vmem:[#allocation4 + $0x80] sm:$0xff] %vm1043, %v2823
        %2856 = vst.msk [vmem:[#allocation4 + $0x88] sm:$0xff] %vm1043, %v2824
        %2857 = vst.msk [vmem:[#allocation4 + $0x90] sm:$0xff] %vm1043, %v2825
        %2858 = vst.msk [vmem:[#allocation4 + $0x98] sm:$0xff] %vm1043, %v2826
        %2859 = vst.msk [vmem:[#allocation4 + $0xa0] sm:$0xff] %vm1043, %v2827
        %2860 = vst.msk [vmem:[#allocation4 + $0xa8] sm:$0xff] %vm1043, %v2828
        %2861 = vst.msk [vmem:[#allocation4 + $0xb0] sm:$0xff] %vm1043, %v2829
        %2862 = vst.msk [vmem:[#allocation4 + $0xb8] sm:$0xff] %vm1043, %v2830
        %2863 = vst.msk [vmem:[#allocation4 + $0xc0] sm:$0xff] %vm1043, %v2831
        %2864 = vst.msk [vmem:[#allocation4 + $0xc8] sm:$0xff] %vm1043, %v2832
        %2865 = vst.msk [vmem:[#allocation4 + $0xd0] sm:$0xff] %vm1043, %v2833
        %2866 = vst.msk [vmem:[#allocation4 + $0xd8] sm:$0xff] %vm1043, %v2834
        %2867 = vst.msk [vmem:[#allocation4 + $0xe0] sm:$0xff] %vm1043, %v2835
        %2868 = vst.msk [vmem:[#allocation4 + $0xe8] sm:$0xff] %vm1043, %v2836
        %2869 = vst.msk [vmem:[#allocation4 + $0xf0] sm:$0xff] %vm1043, %v2837
        %2870 = vst.msk [vmem:[#allocation4 + $0xf8] sm:$0xff] %vm1043, %v2838
        %v2871 = vld [vmem:[%s731] sm:$0xff]
        %v2872 = vld [vmem:[%s731 + $0x8] sm:$0xff]
        %v2873 = vld [vmem:[%s731 + $0x10] sm:$0xff]
        %v2874 = vld [vmem:[%s731 + $0x18] sm:$0xff]
        %v2875 = vld [vmem:[%s731 + $0x20] sm:$0xff]
        %v2876 = vld [vmem:[%s731 + $0x28] sm:$0xff]
        %v2877 = vld [vmem:[%s731 + $0x30] sm:$0xff]
        %v2878 = vld [vmem:[%s731 + $0x38] sm:$0xff]
        %v2879 = vld [vmem:[%s731 + $0x40] sm:$0xff]
        %v2880 = vld [vmem:[%s731 + $0x48] sm:$0xff]
        %v2881 = vld [vmem:[%s731 + $0x50] sm:$0xff]
        %v2882 = vld [vmem:[%s731 + $0x58] sm:$0xff]
        %v2883 = vld [vmem:[%s731 + $0x60] sm:$0xff]
        %v2884 = vld [vmem:[%s731 + $0x68] sm:$0xff]
        %v2885 = vld [vmem:[%s731 + $0x70] sm:$0xff]
        %v2886 = vld [vmem:[%s731 + $0x78] sm:$0xff]
        %v2887 = vld [vmem:[%s731 + $0x80] sm:$0xff]
        %v2888 = vld [vmem:[%s731 + $0x88] sm:$0xff]
        %v2889 = vld [vmem:[%s731 + $0x90] sm:$0xff]
        %v2890 = vld [vmem:[%s731 + $0x98] sm:$0xff]
        %v2891 = vld [vmem:[%s731 + $0xa0] sm:$0xff]
        %v2892 = vld [vmem:[%s731 + $0xa8] sm:$0xff]
        %v2893 = vld [vmem:[%s731 + $0xb0] sm:$0xff]
        %v2894 = vld [vmem:[%s731 + $0xb8] sm:$0xff]
        %v2895 = vld [vmem:[%s731 + $0xc0] sm:$0xff]
        %v2896 = vld [vmem:[%s731 + $0xc8] sm:$0xff]
        %v2897 = vld [vmem:[%s731 + $0xd0] sm:$0xff]
        %v2898 = vld [vmem:[%s731 + $0xd8] sm:$0xff]
        %v2899 = vld [vmem:[%s731 + $0xe0] sm:$0xff]
        %v2900 = vld [vmem:[%s731 + $0xe8] sm:$0xff]
        %v2901 = vld [vmem:[%s731 + $0xf0] sm:$0xff]
        %v2902 = vld [vmem:[%s731 + $0xf8] sm:$0xff]
        %v2903 = vld [vmem:[%s738] sm:$0xff]
        %v2904 = vld [vmem:[%s738 + $0x8] sm:$0xff]
        %v2905 = vld [vmem:[%s738 + $0x10] sm:$0xff]
        %v2906 = vld [vmem:[%s738 + $0x18] sm:$0xff]
        %v2907 = vld [vmem:[%s738 + $0x20] sm:$0xff]
        %v2908 = vld [vmem:[%s738 + $0x28] sm:$0xff]
        %v2909 = vld [vmem:[%s738 + $0x30] sm:$0xff]
        %v2910 = vld [vmem:[%s738 + $0x38] sm:$0xff]
        %v2911 = vld [vmem:[%s738 + $0x40] sm:$0xff]
        %v2912 = vld [vmem:[%s738 + $0x48] sm:$0xff]
        %v2913 = vld [vmem:[%s738 + $0x50] sm:$0xff]
        %v2914 = vld [vmem:[%s738 + $0x58] sm:$0xff]
        %v2915 = vld [vmem:[%s738 + $0x60] sm:$0xff]
        %v2916 = vld [vmem:[%s738 + $0x68] sm:$0xff]
        %v2917 = vld [vmem:[%s738 + $0x70] sm:$0xff]
        %v2918 = vld [vmem:[%s738 + $0x78] sm:$0xff]
        %v2919 = vld [vmem:[%s738 + $0x80] sm:$0xff]
        %v2920 = vld [vmem:[%s738 + $0x88] sm:$0xff]
        %v2921 = vld [vmem:[%s738 + $0x90] sm:$0xff]
        %v2922 = vld [vmem:[%s738 + $0x98] sm:$0xff]
        %v2923 = vld [vmem:[%s738 + $0xa0] sm:$0xff]
        %v2924 = vld [vmem:[%s738 + $0xa8] sm:$0xff]
        %v2925 = vld [vmem:[%s738 + $0xb0] sm:$0xff]
        %v2926 = vld [vmem:[%s738 + $0xb8] sm:$0xff]
        %v2927 = vld [vmem:[%s738 + $0xc0] sm:$0xff]
        %v2928 = vld [vmem:[%s738 + $0xc8] sm:$0xff]
        %v2929 = vld [vmem:[%s738 + $0xd0] sm:$0xff]
        %v2930 = vld [vmem:[%s738 + $0xd8] sm:$0xff]
        %v2931 = vld [vmem:[%s738 + $0xe0] sm:$0xff]
        %v2932 = vld [vmem:[%s738 + $0xe8] sm:$0xff]
        %v2933 = vld [vmem:[%s738 + $0xf0] sm:$0xff]
        %v2934 = vld [vmem:[%s738 + $0xf8] sm:$0xff]
        %v2935 = vld [vmem:[%s745] sm:$0xff]
        %v2936 = vld [vmem:[%s745 + $0x8] sm:$0xff]
        %v2937 = vld [vmem:[%s745 + $0x10] sm:$0xff]
        %v2938 = vld [vmem:[%s745 + $0x18] sm:$0xff]
        %v2939 = vld [vmem:[%s745 + $0x20] sm:$0xff]
        %v2940 = vld [vmem:[%s745 + $0x28] sm:$0xff]
        %v2941 = vld [vmem:[%s745 + $0x30] sm:$0xff]
        %v2942 = vld [vmem:[%s745 + $0x38] sm:$0xff]
        %v2943 = vld [vmem:[%s745 + $0x40] sm:$0xff]
        %v2944 = vld [vmem:[%s745 + $0x48] sm:$0xff]
        %v2945 = vld [vmem:[%s745 + $0x50] sm:$0xff]
        %v2946 = vld [vmem:[%s745 + $0x58] sm:$0xff]
        %v2947 = vld [vmem:[%s745 + $0x60] sm:$0xff]
        %v2948 = vld [vmem:[%s745 + $0x68] sm:$0xff]
        %v2949 = vld [vmem:[%s745 + $0x70] sm:$0xff]
        %v2950 = vld [vmem:[%s745 + $0x78] sm:$0xff]
        %v2951 = vld [vmem:[%s745 + $0x80] sm:$0xff]
        %v2952 = vld [vmem:[%s745 + $0x88] sm:$0xff]
        %v2953 = vld [vmem:[%s745 + $0x90] sm:$0xff]
        %v2954 = vld [vmem:[%s745 + $0x98] sm:$0xff]
        %v2955 = vld [vmem:[%s745 + $0xa0] sm:$0xff]
        %v2956 = vld [vmem:[%s745 + $0xa8] sm:$0xff]
        %v2957 = vld [vmem:[%s745 + $0xb0] sm:$0xff]
        %v2958 = vld [vmem:[%s745 + $0xb8] sm:$0xff]
        %v2959 = vld [vmem:[%s745 + $0xc0] sm:$0xff]
        %v2960 = vld [vmem:[%s745 + $0xc8] sm:$0xff]
        %v2961 = vld [vmem:[%s745 + $0xd0] sm:$0xff]
        %v2962 = vld [vmem:[%s745 + $0xd8] sm:$0xff]
        %v2963 = vld [vmem:[%s745 + $0xe0] sm:$0xff]
        %v2964 = vld [vmem:[%s745 + $0xe8] sm:$0xff]
        %v2965 = vld [vmem:[%s745 + $0xf0] sm:$0xff]
        %v2966 = vld [vmem:[%s745 + $0xf8] sm:$0xff]
        %2999 = vrot.lane.b32.xlu0 %v2871, 64
        %v3000 = vpop.permute.xlu0 %2999
        %3001 = vrot.lane.b32.xlu0 %v2872, 64
        %v3002 = vpop.permute.xlu0 %3001
        %3003 = vrot.lane.b32.xlu0 %v2873, 64
        %v3004 = vpop.permute.xlu0 %3003
        %3005 = vrot.lane.b32.xlu0 %v2874, 64
        %v3006 = vpop.permute.xlu0 %3005
        %3007 = vrot.lane.b32.xlu0 %v2875, 64
        %v3008 = vpop.permute.xlu0 %3007
        %3009 = vrot.lane.b32.xlu0 %v2876, 64
        %v3010 = vpop.permute.xlu0 %3009
        %3011 = vrot.lane.b32.xlu0 %v2877, 64
        %v3012 = vpop.permute.xlu0 %3011
        %3013 = vrot.lane.b32.xlu0 %v2878, 64
        %v3014 = vpop.permute.xlu0 %3013
        %3015 = vrot.lane.b32.xlu0 %v2879, 64
        %v3016 = vpop.permute.xlu0 %3015
        %3017 = vrot.lane.b32.xlu0 %v2880, 64
        %v3018 = vpop.permute.xlu0 %3017
        %3019 = vrot.lane.b32.xlu0 %v2881, 64
        %v3020 = vpop.permute.xlu0 %3019
        %3021 = vrot.lane.b32.xlu0 %v2882, 64
        %v3022 = vpop.permute.xlu0 %3021
        %3023 = vrot.lane.b32.xlu0 %v2883, 64
        %v3024 = vpop.permute.xlu0 %3023
        %3025 = vrot.lane.b32.xlu0 %v2884, 64
        %v3026 = vpop.permute.xlu0 %3025
        %3027 = vrot.lane.b32.xlu0 %v2885, 64
        %v3028 = vpop.permute.xlu0 %3027
        %3029 = vrot.lane.b32.xlu0 %v2886, 64
        %v3030 = vpop.permute.xlu0 %3029
        %3031 = vrot.lane.b32.xlu0 %v2887, 64
        %v3032 = vpop.permute.xlu0 %3031
        %3033 = vrot.lane.b32.xlu0 %v2888, 64
        %v3034 = vpop.permute.xlu0 %3033
        %3035 = vrot.lane.b32.xlu0 %v2889, 64
        %v3036 = vpop.permute.xlu0 %3035
        %3037 = vrot.lane.b32.xlu0 %v2890, 64
        %v3038 = vpop.permute.xlu0 %3037
        %3039 = vrot.lane.b32.xlu0 %v2891, 64
        %v3040 = vpop.permute.xlu0 %3039
        %3041 = vrot.lane.b32.xlu0 %v2892, 64
        %v3042 = vpop.permute.xlu0 %3041
        %3043 = vrot.lane.b32.xlu0 %v2893, 64
        %v3044 = vpop.permute.xlu0 %3043
        %3045 = vrot.lane.b32.xlu0 %v2894, 64
        %v3046 = vpop.permute.xlu0 %3045
        %3047 = vrot.lane.b32.xlu0 %v2895, 64
        %v3048 = vpop.permute.xlu0 %3047
        %3049 = vrot.lane.b32.xlu0 %v2896, 64
        %v3050 = vpop.permute.xlu0 %3049
        %3051 = vrot.lane.b32.xlu0 %v2897, 64
        %v3052 = vpop.permute.xlu0 %3051
        %3053 = vrot.lane.b32.xlu0 %v2898, 64
        %v3054 = vpop.permute.xlu0 %3053
        %3055 = vrot.lane.b32.xlu0 %v2899, 64
        %v3056 = vpop.permute.xlu0 %3055
        %3057 = vrot.lane.b32.xlu0 %v2900, 64
        %v3058 = vpop.permute.xlu0 %3057
        %3059 = vrot.lane.b32.xlu0 %v2901, 64
        %v3060 = vpop.permute.xlu0 %3059
        %3061 = vrot.lane.b32.xlu0 %v2902, 64
        %v3062 = vpop.permute.xlu0 %3061
        %3095 = vrot.lane.b32.xlu0 %v2903, 64
        %v3096 = vpop.permute.xlu0 %3095
        %3097 = vrot.lane.b32.xlu0 %v2904, 64
        %v3098 = vpop.permute.xlu0 %3097
        %3099 = vrot.lane.b32.xlu0 %v2905, 64
        %v3100 = vpop.permute.xlu0 %3099
        %3101 = vrot.lane.b32.xlu0 %v2906, 64
        %v3102 = vpop.permute.xlu0 %3101
        %3103 = vrot.lane.b32.xlu0 %v2907, 64
        %v3104 = vpop.permute.xlu0 %3103
        %3105 = vrot.lane.b32.xlu0 %v2908, 64
        %v3106 = vpop.permute.xlu0 %3105
        %3107 = vrot.lane.b32.xlu0 %v2909, 64
        %v3108 = vpop.permute.xlu0 %3107
        %3109 = vrot.lane.b32.xlu0 %v2910, 64
        %v3110 = vpop.permute.xlu0 %3109
        %3111 = vrot.lane.b32.xlu0 %v2911, 64
        %v3112 = vpop.permute.xlu0 %3111
        %3113 = vrot.lane.b32.xlu0 %v2912, 64
        %v3114 = vpop.permute.xlu0 %3113
        %3115 = vrot.lane.b32.xlu0 %v2913, 64
        %v3116 = vpop.permute.xlu0 %3115
        %3117 = vrot.lane.b32.xlu0 %v2914, 64
        %v3118 = vpop.permute.xlu0 %3117
        %3119 = vrot.lane.b32.xlu0 %v2915, 64
        %v3120 = vpop.permute.xlu0 %3119
        %3121 = vrot.lane.b32.xlu0 %v2916, 64
        %v3122 = vpop.permute.xlu0 %3121
        %3123 = vrot.lane.b32.xlu0 %v2917, 64
        %v3124 = vpop.permute.xlu0 %3123
        %3125 = vrot.lane.b32.xlu0 %v2918, 64
        %v3126 = vpop.permute.xlu0 %3125
        %3127 = vrot.lane.b32.xlu0 %v2919, 64
        %v3128 = vpop.permute.xlu0 %3127
        %3129 = vrot.lane.b32.xlu0 %v2920, 64
        %v3130 = vpop.permute.xlu0 %3129
        %3131 = vrot.lane.b32.xlu0 %v2921, 64
        %v3132 = vpop.permute.xlu0 %3131
        %3133 = vrot.lane.b32.xlu0 %v2922, 64
        %v3134 = vpop.permute.xlu0 %3133
        %3135 = vrot.lane.b32.xlu0 %v2923, 64
        %v3136 = vpop.permute.xlu0 %3135
        %3137 = vrot.lane.b32.xlu0 %v2924, 64
        %v3138 = vpop.permute.xlu0 %3137
        %3139 = vrot.lane.b32.xlu0 %v2925, 64
        %v3140 = vpop.permute.xlu0 %3139
        %3141 = vrot.lane.b32.xlu0 %v2926, 64
        %v3142 = vpop.permute.xlu0 %3141
        %3143 = vrot.lane.b32.xlu0 %v2927, 64
        %v3144 = vpop.permute.xlu0 %3143
        %3145 = vrot.lane.b32.xlu0 %v2928, 64
        %v3146 = vpop.permute.xlu0 %3145
        %3147 = vrot.lane.b32.xlu0 %v2929, 64
        %v3148 = vpop.permute.xlu0 %3147
        %3149 = vrot.lane.b32.xlu0 %v2930, 64
        %v3150 = vpop.permute.xlu0 %3149
        %3151 = vrot.lane.b32.xlu0 %v2931, 64
        %v3152 = vpop.permute.xlu0 %3151
        %3153 = vrot.lane.b32.xlu0 %v2932, 64
        %v3154 = vpop.permute.xlu0 %3153
        %3155 = vrot.lane.b32.xlu0 %v2933, 64
        %v3156 = vpop.permute.xlu0 %3155
        %3157 = vrot.lane.b32.xlu0 %v2934, 64
        %v3158 = vpop.permute.xlu0 %3157
        %v3159 = vsel %vm1043, %v3000, 0
        %v3161 = vsel %vm1043, %v3002, 0
        %v3163 = vsel %vm1043, %v3004, 0
        %v3165 = vsel %vm1043, %v3006, 0
        %v3167 = vsel %vm1043, %v3008, 0
        %v3169 = vsel %vm1043, %v3010, 0
        %v3171 = vsel %vm1043, %v3012, 0
        %v3173 = vsel %vm1043, %v3014, 0
        %v3175 = vsel %vm1043, %v3016, 0
        %v3177 = vsel %vm1043, %v3018, 0
        %v3179 = vsel %vm1043, %v3020, 0
        %v3181 = vsel %vm1043, %v3022, 0
        %v3183 = vsel %vm1043, %v3024, 0
        %v3185 = vsel %vm1043, %v3026, 0
        %v3187 = vsel %vm1043, %v3028, 0
        %v3189 = vsel %vm1043, %v3030, 0
        %v3191 = vsel %vm1043, %v3032, 0
        %v3193 = vsel %vm1043, %v3034, 0
        %v3195 = vsel %vm1043, %v3036, 0
        %v3197 = vsel %vm1043, %v3038, 0
        %v3199 = vsel %vm1043, %v3040, 0
        %v3201 = vsel %vm1043, %v3042, 0
        %v3203 = vsel %vm1043, %v3044, 0
        %v3205 = vsel %vm1043, %v3046, 0
        %v3207 = vsel %vm1043, %v3048, 0
        %v3209 = vsel %vm1043, %v3050, 0
        %v3211 = vsel %vm1043, %v3052, 0
        %v3213 = vsel %vm1043, %v3054, 0
        %v3215 = vsel %vm1043, %v3056, 0
        %v3217 = vsel %vm1043, %v3058, 0
        %v3219 = vsel %vm1043, %v3060, 0
        %v3221 = vsel %vm1043, %v3062, 0
        %v3223 = vsel %vm1043, %v3096, 0
        %v3225 = vsel %vm1043, %v3098, 0
        %v3227 = vsel %vm1043, %v3100, 0
        %v3229 = vsel %vm1043, %v3102, 0
        %v3231 = vsel %vm1043, %v3104, 0
        %v3233 = vsel %vm1043, %v3106, 0
        %v3235 = vsel %vm1043, %v3108, 0
        %v3237 = vsel %vm1043, %v3110, 0
        %v3239 = vsel %vm1043, %v3112, 0
        %v3241 = vsel %vm1043, %v3114, 0
        %v3243 = vsel %vm1043, %v3116, 0
        %v3245 = vsel %vm1043, %v3118, 0
        %v3247 = vsel %vm1043, %v3120, 0
        %v3249 = vsel %vm1043, %v3122, 0
        %v3251 = vsel %vm1043, %v3124, 0
        %v3253 = vsel %vm1043, %v3126, 0
        %v3255 = vsel %vm1043, %v3128, 0
        %v3257 = vsel %vm1043, %v3130, 0
        %v3259 = vsel %vm1043, %v3132, 0
        %v3261 = vsel %vm1043, %v3134, 0
        %v3263 = vsel %vm1043, %v3136, 0
        %v3265 = vsel %vm1043, %v3138, 0
        %v3267 = vsel %vm1043, %v3140, 0
        %v3269 = vsel %vm1043, %v3142, 0
        %v3271 = vsel %vm1043, %v3144, 0
        %v3273 = vsel %vm1043, %v3146, 0
        %v3275 = vsel %vm1043, %v3148, 0
        %v3277 = vsel %vm1043, %v3150, 0
        %v3279 = vsel %vm1043, %v3152, 0
        %v3281 = vsel %vm1043, %v3154, 0
        %v3283 = vsel %vm1043, %v3156, 0
        %v3285 = vsel %vm1043, %v3158, 0
        %3287 = vmatprep.subr.mxu0 0.0
        %3288 = vmatpush1.xpose.msra.mxu0 %v3223
        %3289 = vmatprep.subr.mxu0 0.0
        %3290 = vmatpush1.xpose.msra.mxu0 %v3225
        %3291 = vmatprep.subr.mxu0 0.0
        %3292 = vmatpush1.xpose.msra.mxu0 %v3227
        %3293 = vmatprep.subr.mxu0 0.0
        %3294 = vmatpush1.xpose.msra.mxu0 %v3229
        %3295 = vmatprep.subr.mxu0 0.0
        %3296 = vmatpush1.xpose.msra.mxu0 %v3231
        %3297 = vmatprep.subr.mxu0 0.0
        %3298 = vmatpush1.xpose.msra.mxu0 %v3233
        %3299 = vmatprep.subr.mxu0 0.0
        %3300 = vmatpush1.xpose.msra.mxu0 %v3235
        %3301 = vmatprep.subr.mxu0 0.0
        %3302 = vmatpush1.xpose.msra.mxu0 %v3237
        %3303 = vmatprep.subr.mxu0 0.0
        %3304 = vmatpush1.xpose.msra.mxu0 %v3239
        %3305 = vmatprep.subr.mxu0 0.0
        %3306 = vmatpush1.xpose.msra.mxu0 %v3241
        %3307 = vmatprep.subr.mxu0 0.0
        %3308 = vmatpush1.xpose.msra.mxu0 %v3243
        %3309 = vmatprep.subr.mxu0 0.0
        %3310 = vmatpush1.xpose.msra.mxu0 %v3245
        %3311 = vmatprep.subr.mxu0 0.0
        %3312 = vmatpush1.xpose.msra.mxu0 %v3247
        %3313 = vmatprep.subr.mxu0 0.0
        %3314 = vmatpush1.xpose.msra.mxu0 %v3249
        %3315 = vmatprep.subr.mxu0 0.0
        %3316 = vmatpush1.xpose.msra.mxu0 %v3251
        %3317 = vmatprep.subr.mxu0 0.0
        %3318 = vmatpush1.xpose.msra.mxu0 %v3253
        %3319 = vmatprep.subr.mxu0 0.0
        %3320 = vmatpush1.xpose.msra.mxu0 %v3255
        %3321 = vmatprep.subr.mxu0 0.0
        %3322 = vmatpush1.xpose.msra.mxu0 %v3257
        %3323 = vmatprep.subr.mxu0 0.0
        %3324 = vmatpush1.xpose.msra.mxu0 %v3259
        %3325 = vmatprep.subr.mxu0 0.0
        %3326 = vmatpush1.xpose.msra.mxu0 %v3261
        %3327 = vmatprep.subr.mxu0 0.0
        %3328 = vmatpush1.xpose.msra.mxu0 %v3263
        %3329 = vmatprep.subr.mxu0 0.0
        %3330 = vmatpush1.xpose.msra.mxu0 %v3265
        %3331 = vmatprep.subr.mxu0 0.0
        %3332 = vmatpush1.xpose.msra.mxu0 %v3267
        %3333 = vmatprep.subr.mxu0 0.0
        %3334 = vmatpush1.xpose.msra.mxu0 %v3269
        %3335 = vmatprep.subr.mxu0 0.0
        %3336 = vmatpush1.xpose.msra.mxu0 %v3271
        %3337 = vmatprep.subr.mxu0 0.0
        %3338 = vmatpush1.xpose.msra.mxu0 %v3273
        %3339 = vmatprep.subr.mxu0 0.0
        %3340 = vmatpush1.xpose.msra.mxu0 %v3275
        %3341 = vmatprep.subr.mxu0 0.0
        %3342 = vmatpush1.xpose.msra.mxu0 %v3277
        %3343 = vmatprep.subr.mxu0 0.0
        %3344 = vmatpush1.xpose.msra.mxu0 %v3279
        %3345 = vmatprep.subr.mxu0 0.0
        %3346 = vmatpush1.xpose.msra.mxu0 %v3281
        %3347 = vmatprep.subr.mxu0 0.0
        %3348 = vmatpush1.xpose.msra.mxu0 %v3283
        %3349 = vmatprep.subr.mxu0 0.0
        %3350 = vmatpush1.xpose.msra.mxu0 %v3285
        %3351 = vmatprep.mubr.f32.mxu0 0.0
        %3352 = vmatmul.mubr.f32.gmra.mrb[0].mxu0 %v3159
        %v3353 = vpop.f32.mrb[0].mxu0
        %v3354 = vadd.f32 0.0, %v3353
        %v3355 = vpop.f32.mrb[0].mxu0
        %v3356 = vadd.f32 0.0, %v3355
        %3357 = vmatprep.mubr.f32.mxu0 0.0
        %3358 = vmatmul.mubr.f32.gmra.mrb[0].mxu0 %v3161
        %v3359 = vpop.f32.mrb[0].mxu0
        %v3360 = vadd.f32 0.0, %v3359
        %v3361 = vpop.f32.mrb[0].mxu0
        %v3362 = vadd.f32 0.0, %v3361
        %3363 = vmatprep.mubr.f32.mxu0 0.0
        %3364 = vmatmul.mubr.f32.gmra.mrb[0].mxu0 %v3163
        %v3365 = vpop.f32.mrb[0].mxu0
        %v3366 = vadd.f32 0.0, %v3365
        %v3367 = vpop.f32.mrb[0].mxu0
        %v3368 = vadd.f32 0.0, %v3367
        %3369 = vmatprep.mubr.f32.mxu0 0.0
        %3370 = vmatmul.mubr.f32.gmra.mrb[0].mxu0 %v3165
        %v3371 = vpop.f32.mrb[0].mxu0
        %v3372 = vadd.f32 0.0, %v3371
        %v3373 = vpop.f32.mrb[0].mxu0
        %v3374 = vadd.f32 0.0, %v3373
        %3375 = vmatprep.mubr.f32.mxu0 0.0
        %3376 = vmatmul.mubr.f32.gmra.mrb[0].mxu0 %v3167
        %v3377 = vpop.f32.mrb[0].mxu0
        %v3378 = vadd.f32 0.0, %v3377
        %v3379 = vpop.f32.mrb[0].mxu0
        %v3380 = vadd.f32 0.0, %v3379
        %3381 = vmatprep.mubr.f32.mxu0 0.0
        %3382 = vmatmul.mubr.f32.gmra.mrb[0].mxu0 %v3169
        %v3383 = vpop.f32.mrb[0].mxu0
        %v3384 = vadd.f32 0.0, %v3383
        %v3385 = vpop.f32.mrb[0].mxu0
        %v3386 = vadd.f32 0.0, %v3385
        %3387 = vmatprep.mubr.f32.mxu0 0.0
        %3388 = vmatmul.mubr.f32.gmra.mrb[0].mxu0 %v3171
        %v3389 = vpop.f32.mrb[0].mxu0
        %v3390 = vadd.f32 0.0, %v3389
        %v3391 = vpop.f32.mrb[0].mxu0
        %v3392 = vadd.f32 0.0, %v3391
        %3393 = vmatprep.mubr.f32.mxu0 0.0
        %3394 = vmatmul.mubr.f32.gmra.mrb[0].mxu0 %v3173
        %v3395 = vpop.f32.mrb[0].mxu0
        %v3396 = vadd.f32 0.0, %v3395
        %v3397 = vpop.f32.mrb[0].mxu0
        %v3398 = vadd.f32 0.0, %v3397
        %3399 = vmatprep.mubr.f32.mxu0 0.0
        %3400 = vmatmul.mubr.f32.gmra.mrb[0].mxu0 %v3175
        %v3401 = vpop.f32.mrb[0].mxu0
        %v3402 = vadd.f32 0.0, %v3401
        %v3403 = vpop.f32.mrb[0].mxu0
        %v3404 = vadd.f32 0.0, %v3403
        %3405 = vmatprep.mubr.f32.mxu0 0.0
        %3406 = vmatmul.mubr.f32.gmra.mrb[0].mxu0 %v3177
        %v3407 = vpop.f32.mrb[0].mxu0
        %v3408 = vadd.f32 0.0, %v3407
        %v3409 = vpop.f32.mrb[0].mxu0
        %v3410 = vadd.f32 0.0, %v3409
        %3411 = vmatprep.mubr.f32.mxu0 0.0
        %3412 = vmatmul.mubr.f32.gmra.mrb[0].mxu0 %v3179
        %v3413 = vpop.f32.mrb[0].mxu0
        %v3414 = vadd.f32 0.0, %v3413
        %v3415 = vpop.f32.mrb[0].mxu0
        %v3416 = vadd.f32 0.0, %v3415
        %3417 = vmatprep.mubr.f32.mxu0 0.0
        %3418 = vmatmul.mubr.f32.gmra.mrb[0].mxu0 %v3181
        %v3419 = vpop.f32.mrb[0].mxu0
        %v3420 = vadd.f32 0.0, %v3419
        %v3421 = vpop.f32.mrb[0].mxu0
        %v3422 = vadd.f32 0.0, %v3421
        %3423 = vmatprep.mubr.f32.mxu0 0.0
        %3424 = vmatmul.mubr.f32.gmra.mrb[0].mxu0 %v3183
        %v3425 = vpop.f32.mrb[0].mxu0
        %v3426 = vadd.f32 0.0, %v3425
        %v3427 = vpop.f32.mrb[0].mxu0
        %v3428 = vadd.f32 0.0, %v3427
        %3429 = vmatprep.mubr.f32.mxu0 0.0
        %3430 = vmatmul.mubr.f32.gmra.mrb[0].mxu0 %v3185
        %v3431 = vpop.f32.mrb[0].mxu0
        %v3432 = vadd.f32 0.0, %v3431
        %v3433 = vpop.f32.mrb[0].mxu0
        %v3434 = vadd.f32 0.0, %v3433
        %3435 = vmatprep.mubr.f32.mxu0 0.0
        %3436 = vmatmul.mubr.f32.gmra.mrb[0].mxu0 %v3187
        %v3437 = vpop.f32.mrb[0].mxu0
        %v3438 = vadd.f32 0.0, %v3437
        %v3439 = vpop.f32.mrb[0].mxu0
        %v3440 = vadd.f32 0.0, %v3439
        %3441 = vmatprep.mubr.f32.mxu0 0.0
        %3442 = vmatmul.mubr.f32.gmra.mrb[0].mxu0 %v3189
        %v3443 = vpop.f32.mrb[0].mxu0
        %v3444 = vadd.f32 0.0, %v3443
        %v3445 = vpop.f32.mrb[0].mxu0
        %v3446 = vadd.f32 0.0, %v3445
        %3447 = vmatprep.mubr.f32.mxu0 0.0
        %3448 = vmatmul.mubr.f32.gmra.mrb[0].mxu0 %v3191
        %v3449 = vpop.f32.mrb[0].mxu0
        %v3450 = vadd.f32 0.0, %v3449
        %v3451 = vpop.f32.mrb[0].mxu0
        %v3452 = vadd.f32 0.0, %v3451
        %3453 = vmatprep.mubr.f32.mxu0 0.0
        %3454 = vmatmul.mubr.f32.gmra.mrb[0].mxu0 %v3193
        %v3455 = vpop.f32.mrb[0].mxu0
        %v3456 = vadd.f32 0.0, %v3455
        %v3457 = vpop.f32.mrb[0].mxu0
        %v3458 = vadd.f32 0.0, %v3457
        %3459 = vmatprep.mubr.f32.mxu0 0.0
        %3460 = vmatmul.mubr.f32.gmra.mrb[0].mxu0 %v3195
        %v3461 = vpop.f32.mrb[0].mxu0
        %v3462 = vadd.f32 0.0, %v3461
        %v3463 = vpop.f32.mrb[0].mxu0
        %v3464 = vadd.f32 0.0, %v3463
        %3465 = vmatprep.mubr.f32.mxu0 0.0
        %3466 = vmatmul.mubr.f32.gmra.mrb[0].mxu0 %v3197
        %v3467 = vpop.f32.mrb[0].mxu0
        %v3468 = vadd.f32 0.0, %v3467
        %v3469 = vpop.f32.mrb[0].mxu0
        %v3470 = vadd.f32 0.0, %v3469
        %3471 = vmatprep.mubr.f32.mxu0 0.0
        %3472 = vmatmul.mubr.f32.gmra.mrb[0].mxu0 %v3199
        %v3473 = vpop.f32.mrb[0].mxu0
        %v3474 = vadd.f32 0.0, %v3473
        %v3475 = vpop.f32.mrb[0].mxu0
        %v3476 = vadd.f32 0.0, %v3475
        %3477 = vmatprep.mubr.f32.mxu0 0.0
        %3478 = vmatmul.mubr.f32.gmra.mrb[0].mxu0 %v3201
        %v3479 = vpop.f32.mrb[0].mxu0
        %v3480 = vadd.f32 0.0, %v3479
        %v3481 = vpop.f32.mrb[0].mxu0
        %v3482 = vadd.f32 0.0, %v3481
        %3483 = vmatprep.mubr.f32.mxu0 0.0
        %3484 = vmatmul.mubr.f32.gmra.mrb[0].mxu0 %v3203
        %v3485 = vpop.f32.mrb[0].mxu0
        %v3486 = vadd.f32 0.0, %v3485
        %v3487 = vpop.f32.mrb[0].mxu0
        %v3488 = vadd.f32 0.0, %v3487
        %3489 = vmatprep.mubr.f32.mxu0 0.0
        %3490 = vmatmul.mubr.f32.gmra.mrb[0].mxu0 %v3205
        %v3491 = vpop.f32.mrb[0].mxu0
        %v3492 = vadd.f32 0.0, %v3491
        %v3493 = vpop.f32.mrb[0].mxu0
        %v3494 = vadd.f32 0.0, %v3493
        %3495 = vmatprep.mubr.f32.mxu0 0.0
        %3496 = vmatmul.mubr.f32.gmra.mrb[0].mxu0 %v3207
        %v3497 = vpop.f32.mrb[0].mxu0
        %v3498 = vadd.f32 0.0, %v3497
        %v3499 = vpop.f32.mrb[0].mxu0
        %v3500 = vadd.f32 0.0, %v3499
        %3501 = vmatprep.mubr.f32.mxu0 0.0
        %3502 = vmatmul.mubr.f32.gmra.mrb[0].mxu0 %v3209
        %v3503 = vpop.f32.mrb[0].mxu0
        %v3504 = vadd.f32 0.0, %v3503
        %v3505 = vpop.f32.mrb[0].mxu0
        %v3506 = vadd.f32 0.0, %v3505
        %3507 = vmatprep.mubr.f32.mxu0 0.0
        %3508 = vmatmul.mubr.f32.gmra.mrb[0].mxu0 %v3211
        %v3509 = vpop.f32.mrb[0].mxu0
        %v3510 = vadd.f32 0.0, %v3509
        %v3511 = vpop.f32.mrb[0].mxu0
        %v3512 = vadd.f32 0.0, %v3511
        %3513 = vmatprep.mubr.f32.mxu0 0.0
        %3514 = vmatmul.mubr.f32.gmra.mrb[0].mxu0 %v3213
        %v3515 = vpop.f32.mrb[0].mxu0
        %v3516 = vadd.f32 0.0, %v3515
        %v3517 = vpop.f32.mrb[0].mxu0
        %v3518 = vadd.f32 0.0, %v3517
        %3519 = vmatprep.mubr.f32.mxu0 0.0
        %3520 = vmatmul.mubr.f32.gmra.mrb[0].mxu0 %v3215
        %v3521 = vpop.f32.mrb[0].mxu0
        %v3522 = vadd.f32 0.0, %v3521
        %v3523 = vpop.f32.mrb[0].mxu0
        %v3524 = vadd.f32 0.0, %v3523
        %3525 = vmatprep.mubr.f32.mxu0 0.0
        %3526 = vmatmul.mubr.f32.gmra.mrb[0].mxu0 %v3217
        %v3527 = vpop.f32.mrb[0].mxu0
        %v3528 = vadd.f32 0.0, %v3527
        %v3529 = vpop.f32.mrb[0].mxu0
        %v3530 = vadd.f32 0.0, %v3529
        %3531 = vmatprep.mubr.f32.mxu0 0.0
        %3532 = vmatmul.mubr.f32.gmra.mrb[0].mxu0 %v3219
        %v3533 = vpop.f32.mrb[0].mxu0
        %v3534 = vadd.f32 0.0, %v3533
        %v3535 = vpop.f32.mrb[0].mxu0
        %v3536 = vadd.f32 0.0, %v3535
        %3537 = vmatprep.mubr.f32.mxu0 0.0
        %3538 = vmatmul.mubr.f32.gmra.mrb[0].mxu0 %v3221
        %v3539 = vpop.f32.mrb[0].mxu0
        %v3540 = vadd.f32 0.0, %v3539
        %v3541 = vpop.f32.mrb[0].mxu0
        %v3542 = vadd.f32 0.0, %v3541
        %3543 = vdwg.mxu0
        %s3544 = scalar_lea.vmem [#allocation2], 256
        %v3545 = vld [vmem:[%s3544] sm:$0xff]
        %v3546 = vld [vmem:[%s3544 + $0x8] sm:$0xff]
        %v3547 = vld [vmem:[%s3544 + $0x10] sm:$0xff]
        %v3548 = vld [vmem:[%s3544 + $0x18] sm:$0xff]
        %v3549 = vld [vmem:[%s3544 + $0x20] sm:$0xff]
        %v3550 = vld [vmem:[%s3544 + $0x28] sm:$0xff]
        %v3551 = vld [vmem:[%s3544 + $0x30] sm:$0xff]
        %v3552 = vld [vmem:[%s3544 + $0x38] sm:$0xff]
        %v3553 = vld [vmem:[%s3544 + $0x40] sm:$0xff]
        %v3554 = vld [vmem:[%s3544 + $0x48] sm:$0xff]
        %v3555 = vld [vmem:[%s3544 + $0x50] sm:$0xff]
        %v3556 = vld [vmem:[%s3544 + $0x58] sm:$0xff]
        %v3557 = vld [vmem:[%s3544 + $0x60] sm:$0xff]
        %v3558 = vld [vmem:[%s3544 + $0x68] sm:$0xff]
        %v3559 = vld [vmem:[%s3544 + $0x70] sm:$0xff]
        %v3560 = vld [vmem:[%s3544 + $0x78] sm:$0xff]
        %v3561 = vld [vmem:[%s3544 + $0x80] sm:$0xff]
        %v3562 = vld [vmem:[%s3544 + $0x88] sm:$0xff]
        %v3563 = vld [vmem:[%s3544 + $0x90] sm:$0xff]
        %v3564 = vld [vmem:[%s3544 + $0x98] sm:$0xff]
        %v3565 = vld [vmem:[%s3544 + $0xa0] sm:$0xff]
        %v3566 = vld [vmem:[%s3544 + $0xa8] sm:$0xff]
        %v3567 = vld [vmem:[%s3544 + $0xb0] sm:$0xff]
        %v3568 = vld [vmem:[%s3544 + $0xb8] sm:$0xff]
        %v3569 = vld [vmem:[%s3544 + $0xc0] sm:$0xff]
        %v3570 = vld [vmem:[%s3544 + $0xc8] sm:$0xff]
        %v3571 = vld [vmem:[%s3544 + $0xd0] sm:$0xff]
        %v3572 = vld [vmem:[%s3544 + $0xd8] sm:$0xff]
        %v3573 = vld [vmem:[%s3544 + $0xe0] sm:$0xff]
        %v3574 = vld [vmem:[%s3544 + $0xe8] sm:$0xff]
        %v3575 = vld [vmem:[%s3544 + $0xf0] sm:$0xff]
        %v3576 = vld [vmem:[%s3544 + $0xf8] sm:$0xff]
        %v3577 = vmax.f32 %v3354, %v3356
        %3578 = vmax.xlane.f32.xlu0 %v3577
        %v3579 = vpop.xlane.xlu0 %3578
        %v3580 = vmax.f32 %v3360, %v3362
        %3581 = vmax.xlane.f32.xlu0 %v3580
        %v3582 = vpop.xlane.xlu0 %3581
        %v3583 = vmax.f32 %v3366, %v3368
        %3584 = vmax.xlane.f32.xlu0 %v3583
        %v3585 = vpop.xlane.xlu0 %3584
        %v3586 = vmax.f32 %v3372, %v3374
        %3587 = vmax.xlane.f32.xlu0 %v3586
        %v3588 = vpop.xlane.xlu0 %3587
        %v3589 = vmax.f32 %v3378, %v3380
        %3590 = vmax.xlane.f32.xlu0 %v3589
        %v3591 = vpop.xlane.xlu0 %3590
        %v3592 = vmax.f32 %v3384, %v3386
        %3593 = vmax.xlane.f32.xlu0 %v3592
        %v3594 = vpop.xlane.xlu0 %3593
        %v3595 = vmax.f32 %v3390, %v3392
        %3596 = vmax.xlane.f32.xlu0 %v3595
        %v3597 = vpop.xlane.xlu0 %3596
        %v3598 = vmax.f32 %v3396, %v3398
        %3599 = vmax.xlane.f32.xlu0 %v3598
        %v3600 = vpop.xlane.xlu0 %3599
        %v3601 = vmax.f32 %v3402, %v3404
        %3602 = vmax.xlane.f32.xlu0 %v3601
        %v3603 = vpop.xlane.xlu0 %3602
        %v3604 = vmax.f32 %v3408, %v3410
        %3605 = vmax.xlane.f32.xlu0 %v3604
        %v3606 = vpop.xlane.xlu0 %3605
        %v3607 = vmax.f32 %v3414, %v3416
        %3608 = vmax.xlane.f32.xlu0 %v3607
        %v3609 = vpop.xlane.xlu0 %3608
        %v3610 = vmax.f32 %v3420, %v3422
        %3611 = vmax.xlane.f32.xlu0 %v3610
        %v3612 = vpop.xlane.xlu0 %3611
        %v3613 = vmax.f32 %v3426, %v3428
        %3614 = vmax.xlane.f32.xlu0 %v3613
        %v3615 = vpop.xlane.xlu0 %3614
        %v3616 = vmax.f32 %v3432, %v3434
        %3617 = vmax.xlane.f32.xlu0 %v3616
        %v3618 = vpop.xlane.xlu0 %3617
        %v3619 = vmax.f32 %v3438, %v3440
        %3620 = vmax.xlane.f32.xlu0 %v3619
        %v3621 = vpop.xlane.xlu0 %3620
        %v3622 = vmax.f32 %v3444, %v3446
        %3623 = vmax.xlane.f32.xlu0 %v3622
        %v3624 = vpop.xlane.xlu0 %3623
        %v3625 = vmax.f32 %v3450, %v3452
        %3626 = vmax.xlane.f32.xlu0 %v3625
        %v3627 = vpop.xlane.xlu0 %3626
        %v3628 = vmax.f32 %v3456, %v3458
        %3629 = vmax.xlane.f32.xlu0 %v3628
        %v3630 = vpop.xlane.xlu0 %3629
        %v3631 = vmax.f32 %v3462, %v3464
        %3632 = vmax.xlane.f32.xlu0 %v3631
        %v3633 = vpop.xlane.xlu0 %3632
        %v3634 = vmax.f32 %v3468, %v3470
        %3635 = vmax.xlane.f32.xlu0 %v3634
        %v3636 = vpop.xlane.xlu0 %3635
        %v3637 = vmax.f32 %v3474, %v3476
        %3638 = vmax.xlane.f32.xlu0 %v3637
        %v3639 = vpop.xlane.xlu0 %3638
        %v3640 = vmax.f32 %v3480, %v3482
        %3641 = vmax.xlane.f32.xlu0 %v3640
        %v3642 = vpop.xlane.xlu0 %3641
        %v3643 = vmax.f32 %v3486, %v3488
        %3644 = vmax.xlane.f32.xlu0 %v3643
        %v3645 = vpop.xlane.xlu0 %3644
        %v3646 = vmax.f32 %v3492, %v3494
        %3647 = vmax.xlane.f32.xlu0 %v3646
        %v3648 = vpop.xlane.xlu0 %3647
        %v3649 = vmax.f32 %v3498, %v3500
        %3650 = vmax.xlane.f32.xlu0 %v3649
        %v3651 = vpop.xlane.xlu0 %3650
        %v3652 = vmax.f32 %v3504, %v3506
        %3653 = vmax.xlane.f32.xlu0 %v3652
        %v3654 = vpop.xlane.xlu0 %3653
        %v3655 = vmax.f32 %v3510, %v3512
        %3656 = vmax.xlane.f32.xlu0 %v3655
        %v3657 = vpop.xlane.xlu0 %3656
        %v3658 = vmax.f32 %v3516, %v3518
        %3659 = vmax.xlane.f32.xlu0 %v3658
        %v3660 = vpop.xlane.xlu0 %3659
        %v3661 = vmax.f32 %v3522, %v3524
        %3662 = vmax.xlane.f32.xlu0 %v3661
        %v3663 = vpop.xlane.xlu0 %3662
        %v3664 = vmax.f32 %v3528, %v3530
        %3665 = vmax.xlane.f32.xlu0 %v3664
        %v3666 = vpop.xlane.xlu0 %3665
        %v3667 = vmax.f32 %v3534, %v3536
        %3668 = vmax.xlane.f32.xlu0 %v3667
        %v3669 = vpop.xlane.xlu0 %3668
        %v3670 = vmax.f32 %v3540, %v3542
        %3671 = vmax.xlane.f32.xlu0 %v3670
        %v3672 = vpop.xlane.xlu0 %3671
        %v3673 = vmax.f32 %v3545, %v3579
        %v3674 = vmax.f32 %v3546, %v3582
        %v3675 = vmax.f32 %v3547, %v3585
        %v3676 = vmax.f32 %v3548, %v3588
        %v3677 = vmax.f32 %v3549, %v3591
        %v3678 = vmax.f32 %v3550, %v3594
        %v3679 = vmax.f32 %v3551, %v3597
        %v3680 = vmax.f32 %v3552, %v3600
        %v3681 = vmax.f32 %v3553, %v3603
        %v3682 = vmax.f32 %v3554, %v3606
        %v3683 = vmax.f32 %v3555, %v3609
        %v3684 = vmax.f32 %v3556, %v3612
        %v3685 = vmax.f32 %v3557, %v3615
        %v3686 = vmax.f32 %v3558, %v3618
        %v3687 = vmax.f32 %v3559, %v3621
        %v3688 = vmax.f32 %v3560, %v3624
        %v3689 = vmax.f32 %v3561, %v3627
        %v3690 = vmax.f32 %v3562, %v3630
        %v3691 = vmax.f32 %v3563, %v3633
        %v3692 = vmax.f32 %v3564, %v3636
        %v3693 = vmax.f32 %v3565, %v3639
        %v3694 = vmax.f32 %v3566, %v3642
        %v3695 = vmax.f32 %v3567, %v3645
        %v3696 = vmax.f32 %v3568, %v3648
        %v3697 = vmax.f32 %v3569, %v3651
        %v3698 = vmax.f32 %v3570, %v3654
        %v3699 = vmax.f32 %v3571, %v3657
        %v3700 = vmax.f32 %v3572, %v3660
        %v3701 = vmax.f32 %v3573, %v3663
        %v3702 = vmax.f32 %v3574, %v3666
        %v3703 = vmax.f32 %v3575, %v3669
        %v3704 = vmax.f32 %v3576, %v3672
        %v3705 = vsub.f32 %v3545, %v3673
        %v3706 = vsub.f32 %v3546, %v3674
        %v3707 = vsub.f32 %v3547, %v3675
        %v3708 = vsub.f32 %v3548, %v3676
        %v3709 = vsub.f32 %v3549, %v3677
        %v3710 = vsub.f32 %v3550, %v3678
        %v3711 = vsub.f32 %v3551, %v3679
        %v3712 = vsub.f32 %v3552, %v3680
        %v3713 = vsub.f32 %v3553, %v3681
        %v3714 = vsub.f32 %v3554, %v3682
        %v3715 = vsub.f32 %v3555, %v3683
        %v3716 = vsub.f32 %v3556, %v3684
        %v3717 = vsub.f32 %v3557, %v3685
        %v3718 = vsub.f32 %v3558, %v3686
        %v3719 = vsub.f32 %v3559, %v3687
        %v3720 = vsub.f32 %v3560, %v3688
        %v3721 = vsub.f32 %v3561, %v3689
        %v3722 = vsub.f32 %v3562, %v3690
        %v3723 = vsub.f32 %v3563, %v3691
        %v3724 = vsub.f32 %v3564, %v3692
        %v3725 = vsub.f32 %v3565, %v3693
        %v3726 = vsub.f32 %v3566, %v3694
        %v3727 = vsub.f32 %v3567, %v3695
        %v3728 = vsub.f32 %v3568, %v3696
        %v3729 = vsub.f32 %v3569, %v3697
        %v3730 = vsub.f32 %v3570, %v3698
        %v3731 = vsub.f32 %v3571, %v3699
        %v3732 = vsub.f32 %v3572, %v3700
        %v3733 = vsub.f32 %v3573, %v3701
        %v3734 = vsub.f32 %v3574, %v3702
        %v3735 = vsub.f32 %v3575, %v3703
        %v3736 = vsub.f32 %v3576, %v3704
        %v3737 = vmul.f32 %v3705, 1.442695
        %v3738 = vpow.pop %v3737
        %v3739 = vmul.f32 %v3706, 1.442695
        %v3740 = vpow.pop %v3739
        %v3741 = vmul.f32 %v3707, 1.442695
        %v3742 = vpow.pop %v3741
        %v3743 = vmul.f32 %v3708, 1.442695
        %v3744 = vpow.pop %v3743
        %v3745 = vmul.f32 %v3709, 1.442695
        %v3746 = vpow.pop %v3745
        %v3747 = vmul.f32 %v3710, 1.442695
        %v3748 = vpow.pop %v3747
        %v3749 = vmul.f32 %v3711, 1.442695
        %v3750 = vpow.pop %v3749
        %v3751 = vmul.f32 %v3712, 1.442695
        %v3752 = vpow.pop %v3751
        %v3753 = vmul.f32 %v3713, 1.442695
        %v3754 = vpow.pop %v3753
        %v3755 = vmul.f32 %v3714, 1.442695
        %v3756 = vpow.pop %v3755
        %v3757 = vmul.f32 %v3715, 1.442695
        %v3758 = vpow.pop %v3757
        %v3759 = vmul.f32 %v3716, 1.442695
        %v3760 = vpow.pop %v3759
        %v3761 = vmul.f32 %v3717, 1.442695
        %v3762 = vpow.pop %v3761
        %v3763 = vmul.f32 %v3718, 1.442695
        %v3764 = vpow.pop %v3763
        %v3765 = vmul.f32 %v3719, 1.442695
        %v3766 = vpow.pop %v3765
        %v3767 = vmul.f32 %v3720, 1.442695
        %v3768 = vpow.pop %v3767
        %v3769 = vmul.f32 %v3721, 1.442695
        %v3770 = vpow.pop %v3769
        %v3771 = vmul.f32 %v3722, 1.442695
        %v3772 = vpow.pop %v3771
        %v3773 = vmul.f32 %v3723, 1.442695
        %v3774 = vpow.pop %v3773
        %v3775 = vmul.f32 %v3724, 1.442695
        %v3776 = vpow.pop %v3775
        %v3777 = vmul.f32 %v3725, 1.442695
        %v3778 = vpow.pop %v3777
        %v3779 = vmul.f32 %v3726, 1.442695
        %v3780 = vpow.pop %v3779
        %v3781 = vmul.f32 %v3727, 1.442695
        %v3782 = vpow.pop %v3781
        %v3783 = vmul.f32 %v3728, 1.442695
        %v3784 = vpow.pop %v3783
        %v3785 = vmul.f32 %v3729, 1.442695
        %v3786 = vpow.pop %v3785
        %v3787 = vmul.f32 %v3730, 1.442695
        %v3788 = vpow.pop %v3787
        %v3789 = vmul.f32 %v3731, 1.442695
        %v3790 = vpow.pop %v3789
        %v3791 = vmul.f32 %v3732, 1.442695
        %v3792 = vpow.pop %v3791
        %v3793 = vmul.f32 %v3733, 1.442695
        %v3794 = vpow.pop %v3793
        %v3795 = vmul.f32 %v3734, 1.442695
        %v3796 = vpow.pop %v3795
        %v3797 = vmul.f32 %v3735, 1.442695
        %v3798 = vpow.pop %v3797
        %v3799 = vmul.f32 %v3736, 1.442695
        %v3800 = vpow.pop %v3799
        %3802 = vset.pattern.permute.xlu0 0
        %3803 = vperm.xlu0 %3802, %v3673
        %v3804 = vpop.permute.xlu0 %3803
        %3807 = vset.pattern.permute.xlu0 0
        %3808 = vperm.xlu0 %3807, %v3674
        %v3809 = vpop.permute.xlu0 %3808
        %3812 = vset.pattern.permute.xlu0 0
        %3813 = vperm.xlu0 %3812, %v3675
        %v3814 = vpop.permute.xlu0 %3813
        %3817 = vset.pattern.permute.xlu0 0
        %3818 = vperm.xlu0 %3817, %v3676
        %v3819 = vpop.permute.xlu0 %3818
        %3822 = vset.pattern.permute.xlu0 0
        %3823 = vperm.xlu0 %3822, %v3677
        %v3824 = vpop.permute.xlu0 %3823
        %3827 = vset.pattern.permute.xlu0 0
        %3828 = vperm.xlu0 %3827, %v3678
        %v3829 = vpop.permute.xlu0 %3828
        %3832 = vset.pattern.permute.xlu0 0
        %3833 = vperm.xlu0 %3832, %v3679
        %v3834 = vpop.permute.xlu0 %3833
        %3837 = vset.pattern.permute.xlu0 0
        %3838 = vperm.xlu0 %3837, %v3680
        %v3839 = vpop.permute.xlu0 %3838
        %3842 = vset.pattern.permute.xlu0 0
        %3843 = vperm.xlu0 %3842, %v3681
        %v3844 = vpop.permute.xlu0 %3843
        %3847 = vset.pattern.permute.xlu0 0
        %3848 = vperm.xlu0 %3847, %v3682
        %v3849 = vpop.permute.xlu0 %3848
        %3852 = vset.pattern.permute.xlu0 0
        %3853 = vperm.xlu0 %3852, %v3683
        %v3854 = vpop.permute.xlu0 %3853
        %3857 = vset.pattern.permute.xlu0 0
        %3858 = vperm.xlu0 %3857, %v3684
        %v3859 = vpop.permute.xlu0 %3858
        %3862 = vset.pattern.permute.xlu0 0
        %3863 = vperm.xlu0 %3862, %v3685
        %v3864 = vpop.permute.xlu0 %3863
        %3867 = vset.pattern.permute.xlu0 0
        %3868 = vperm.xlu0 %3867, %v3686
        %v3869 = vpop.permute.xlu0 %3868
        %3872 = vset.pattern.permute.xlu0 0
        %3873 = vperm.xlu0 %3872, %v3687
        %v3874 = vpop.permute.xlu0 %3873
        %3877 = vset.pattern.permute.xlu0 0
        %3878 = vperm.xlu0 %3877, %v3688
        %v3879 = vpop.permute.xlu0 %3878
        %3882 = vset.pattern.permute.xlu0 0
        %3883 = vperm.xlu0 %3882, %v3689
        %v3884 = vpop.permute.xlu0 %3883
        %3887 = vset.pattern.permute.xlu0 0
        %3888 = vperm.xlu0 %3887, %v3690
        %v3889 = vpop.permute.xlu0 %3888
        %3892 = vset.pattern.permute.xlu0 0
        %3893 = vperm.xlu0 %3892, %v3691
        %v3894 = vpop.permute.xlu0 %3893
        %3897 = vset.pattern.permute.xlu0 0
        %3898 = vperm.xlu0 %3897, %v3692
        %v3899 = vpop.permute.xlu0 %3898
        %3902 = vset.pattern.permute.xlu0 0
        %3903 = vperm.xlu0 %3902, %v3693
        %v3904 = vpop.permute.xlu0 %3903
        %3907 = vset.pattern.permute.xlu0 0
        %3908 = vperm.xlu0 %3907, %v3694
        %v3909 = vpop.permute.xlu0 %3908
        %3912 = vset.pattern.permute.xlu0 0
        %3913 = vperm.xlu0 %3912, %v3695
        %v3914 = vpop.permute.xlu0 %3913
        %3917 = vset.pattern.permute.xlu0 0
        %3918 = vperm.xlu0 %3917, %v3696
        %v3919 = vpop.permute.xlu0 %3918
        %3922 = vset.pattern.permute.xlu0 0
        %3923 = vperm.xlu0 %3922, %v3697
        %v3924 = vpop.permute.xlu0 %3923
        %3927 = vset.pattern.permute.xlu0 0
        %3928 = vperm.xlu0 %3927, %v3698
        %v3929 = vpop.permute.xlu0 %3928
        %3932 = vset.pattern.permute.xlu0 0
        %3933 = vperm.xlu0 %3932, %v3699
        %v3934 = vpop.permute.xlu0 %3933
        %3937 = vset.pattern.permute.xlu0 0
        %3938 = vperm.xlu0 %3937, %v3700
        %v3939 = vpop.permute.xlu0 %3938
        %3942 = vset.pattern.permute.xlu0 0
        %3943 = vperm.xlu0 %3942, %v3701
        %v3944 = vpop.permute.xlu0 %3943
        %3947 = vset.pattern.permute.xlu0 0
        %3948 = vperm.xlu0 %3947, %v3702
        %v3949 = vpop.permute.xlu0 %3948
        %3952 = vset.pattern.permute.xlu0 0
        %3953 = vperm.xlu0 %3952, %v3703
        %v3954 = vpop.permute.xlu0 %3953
        %3957 = vset.pattern.permute.xlu0 0
        %3958 = vperm.xlu0 %3957, %v3704
        %v3959 = vpop.permute.xlu0 %3958
        %v3961 = vsub.f32 %v3354, %v3804
        %v3962 = vsub.f32 %v3356, %v3804
        %v3963 = vsub.f32 %v3360, %v3809
        %v3964 = vsub.f32 %v3362, %v3809
        %v3965 = vsub.f32 %v3366, %v3814
        %v3966 = vsub.f32 %v3368, %v3814
        %v3967 = vsub.f32 %v3372, %v3819
        %v3968 = vsub.f32 %v3374, %v3819
        %v3969 = vsub.f32 %v3378, %v3824
        %v3970 = vsub.f32 %v3380, %v3824
        %v3971 = vsub.f32 %v3384, %v3829
        %v3972 = vsub.f32 %v3386, %v3829
        %v3973 = vsub.f32 %v3390, %v3834
        %v3974 = vsub.f32 %v3392, %v3834
        %v3975 = vsub.f32 %v3396, %v3839
        %v3976 = vsub.f32 %v3398, %v3839
        %v3977 = vsub.f32 %v3402, %v3844
        %v3978 = vsub.f32 %v3404, %v3844
        %v3979 = vsub.f32 %v3408, %v3849
        %v3980 = vsub.f32 %v3410, %v3849
        %v3981 = vsub.f32 %v3414, %v3854
        %v3982 = vsub.f32 %v3416, %v3854
        %v3983 = vsub.f32 %v3420, %v3859
        %v3984 = vsub.f32 %v3422, %v3859
        %v3985 = vsub.f32 %v3426, %v3864
        %v3986 = vsub.f32 %v3428, %v3864
        %v3987 = vsub.f32 %v3432, %v3869
        %v3988 = vsub.f32 %v3434, %v3869
        %v3989 = vsub.f32 %v3438, %v3874
        %v3990 = vsub.f32 %v3440, %v3874
        %v3991 = vsub.f32 %v3444, %v3879
        %v3992 = vsub.f32 %v3446, %v3879
        %v3993 = vsub.f32 %v3450, %v3884
        %v3994 = vsub.f32 %v3452, %v3884
        %v3995 = vsub.f32 %v3456, %v3889
        %v3996 = vsub.f32 %v3458, %v3889
        %v3997 = vsub.f32 %v3462, %v3894
        %v3998 = vsub.f32 %v3464, %v3894
        %v3999 = vsub.f32 %v3468, %v3899
        %v4000 = vsub.f32 %v3470, %v3899
        %v4001 = vsub.f32 %v3474, %v3904
        %v4002 = vsub.f32 %v3476, %v3904
        %v4003 = vsub.f32 %v3480, %v3909
        %v4004 = vsub.f32 %v3482, %v3909
        %v4005 = vsub.f32 %v3486, %v3914
        %v4006 = vsub.f32 %v3488, %v3914
        %v4007 = vsub.f32 %v3492, %v3919
        %v4008 = vsub.f32 %v3494, %v3919
        %v4009 = vsub.f32 %v3498, %v3924
        %v4010 = vsub.f32 %v3500, %v3924
        %v4011 = vsub.f32 %v3504, %v3929
        %v4012 = vsub.f32 %v3506, %v3929
        %v4013 = vsub.f32 %v3510, %v3934
        %v4014 = vsub.f32 %v3512, %v3934
        %v4015 = vsub.f32 %v3516, %v3939
        %v4016 = vsub.f32 %v3518, %v3939
        %v4017 = vsub.f32 %v3522, %v3944
        %v4018 = vsub.f32 %v3524, %v3944
        %v4019 = vsub.f32 %v3528, %v3949
        %v4020 = vsub.f32 %v3530, %v3949
        %v4021 = vsub.f32 %v3534, %v3954
        %v4022 = vsub.f32 %v3536, %v3954
        %v4023 = vsub.f32 %v3540, %v3959
        %v4024 = vsub.f32 %v3542, %v3959
        %v4025 = vmul.f32 %v3961, 1.442695
        %v4026 = vpow.pop %v4025
        %v4027 = vmul.f32 %v3962, 1.442695
        %v4028 = vpow.pop %v4027
        %v4029 = vmul.f32 %v3963, 1.442695
        %v4030 = vpow.pop %v4029
        %v4031 = vmul.f32 %v3964, 1.442695
        %v4032 = vpow.pop %v4031
        %v4033 = vmul.f32 %v3965, 1.442695
        %v4034 = vpow.pop %v4033
        %v4035 = vmul.f32 %v3966, 1.442695
        %v4036 = vpow.pop %v4035
        %v4037 = vmul.f32 %v3967, 1.442695
        %v4038 = vpow.pop %v4037
        %v4039 = vmul.f32 %v3968, 1.442695
        %v4040 = vpow.pop %v4039
        %v4041 = vmul.f32 %v3969, 1.442695
        %v4042 = vpow.pop %v4041
        %v4043 = vmul.f32 %v3970, 1.442695
        %v4044 = vpow.pop %v4043
        %v4045 = vmul.f32 %v3971, 1.442695
        %v4046 = vpow.pop %v4045
        %v4047 = vmul.f32 %v3972, 1.442695
        %v4048 = vpow.pop %v4047
        %v4049 = vmul.f32 %v3973, 1.442695
        %v4050 = vpow.pop %v4049
        %v4051 = vmul.f32 %v3974, 1.442695
        %v4052 = vpow.pop %v4051
        %v4053 = vmul.f32 %v3975, 1.442695
        %v4054 = vpow.pop %v4053
        %v4055 = vmul.f32 %v3976, 1.442695
        %v4056 = vpow.pop %v4055
        %v4057 = vmul.f32 %v3977, 1.442695
        %v4058 = vpow.pop %v4057
        %v4059 = vmul.f32 %v3978, 1.442695
        %v4060 = vpow.pop %v4059
        %v4061 = vmul.f32 %v3979, 1.442695
        %v4062 = vpow.pop %v4061
        %v4063 = vmul.f32 %v3980, 1.442695
        %v4064 = vpow.pop %v4063
        %v4065 = vmul.f32 %v3981, 1.442695
        %v4066 = vpow.pop %v4065
        %v4067 = vmul.f32 %v3982, 1.442695
        %v4068 = vpow.pop %v4067
        %v4069 = vmul.f32 %v3983, 1.442695
        %v4070 = vpow.pop %v4069
        %v4071 = vmul.f32 %v3984, 1.442695
        %v4072 = vpow.pop %v4071
        %v4073 = vmul.f32 %v3985, 1.442695
        %v4074 = vpow.pop %v4073
        %v4075 = vmul.f32 %v3986, 1.442695
        %v4076 = vpow.pop %v4075
        %v4077 = vmul.f32 %v3987, 1.442695
        %v4078 = vpow.pop %v4077
        %v4079 = vmul.f32 %v3988, 1.442695
        %v4080 = vpow.pop %v4079
        %v4081 = vmul.f32 %v3989, 1.442695
        %v4082 = vpow.pop %v4081
        %v4083 = vmul.f32 %v3990, 1.442695
        %v4084 = vpow.pop %v4083
        %v4085 = vmul.f32 %v3991, 1.442695
        %v4086 = vpow.pop %v4085
        %v4087 = vmul.f32 %v3992, 1.442695
        %v4088 = vpow.pop %v4087
        %v4089 = vmul.f32 %v3993, 1.442695
        %v4090 = vpow.pop %v4089
        %v4091 = vmul.f32 %v3994, 1.442695
        %v4092 = vpow.pop %v4091
        %v4093 = vmul.f32 %v3995, 1.442695
        %v4094 = vpow.pop %v4093
        %v4095 = vmul.f32 %v3996, 1.442695
        %v4096 = vpow.pop %v4095
        %v4097 = vmul.f32 %v3997, 1.442695
        %v4098 = vpow.pop %v4097
        %v4099 = vmul.f32 %v3998, 1.442695
        %v4100 = vpow.pop %v4099
        %v4101 = vmul.f32 %v3999, 1.442695
        %v4102 = vpow.pop %v4101
        %v4103 = vmul.f32 %v4000, 1.442695
        %v4104 = vpow.pop %v4103
        %v4105 = vmul.f32 %v4001, 1.442695
        %v4106 = vpow.pop %v4105
        %v4107 = vmul.f32 %v4002, 1.442695
        %v4108 = vpow.pop %v4107
        %v4109 = vmul.f32 %v4003, 1.442695
        %v4110 = vpow.pop %v4109
        %v4111 = vmul.f32 %v4004, 1.442695
        %v4112 = vpow.pop %v4111
        %v4113 = vmul.f32 %v4005, 1.442695
        %v4114 = vpow.pop %v4113
        %v4115 = vmul.f32 %v4006, 1.442695
        %v4116 = vpow.pop %v4115
        %v4117 = vmul.f32 %v4007, 1.442695
        %v4118 = vpow.pop %v4117
        %v4119 = vmul.f32 %v4008, 1.442695
        %v4120 = vpow.pop %v4119
        %v4121 = vmul.f32 %v4009, 1.442695
        %v4122 = vpow.pop %v4121
        %v4123 = vmul.f32 %v4010, 1.442695
        %v4124 = vpow.pop %v4123
        %v4125 = vmul.f32 %v4011, 1.442695
        %v4126 = vpow.pop %v4125
        %v4127 = vmul.f32 %v4012, 1.442695
        %v4128 = vpow.pop %v4127
        %v4129 = vmul.f32 %v4013, 1.442695
        %v4130 = vpow.pop %v4129
        %v4131 = vmul.f32 %v4014, 1.442695
        %v4132 = vpow.pop %v4131
        %v4133 = vmul.f32 %v4015, 1.442695
        %v4134 = vpow.pop %v4133
        %v4135 = vmul.f32 %v4016, 1.442695
        %v4136 = vpow.pop %v4135
        %v4137 = vmul.f32 %v4017, 1.442695
        %v4138 = vpow.pop %v4137
        %v4139 = vmul.f32 %v4018, 1.442695
        %v4140 = vpow.pop %v4139
        %v4141 = vmul.f32 %v4019, 1.442695
        %v4142 = vpow.pop %v4141
        %v4143 = vmul.f32 %v4020, 1.442695
        %v4144 = vpow.pop %v4143
        %v4145 = vmul.f32 %v4021, 1.442695
        %v4146 = vpow.pop %v4145
        %v4147 = vmul.f32 %v4022, 1.442695
        %v4148 = vpow.pop %v4147
        %v4149 = vmul.f32 %v4023, 1.442695
        %v4150 = vpow.pop %v4149
        %v4151 = vmul.f32 %v4024, 1.442695
        %v4152 = vpow.pop %v4151
        %s4153 = scalar_lea.vmem [#allocation3], 256
        %v4154 = vld [vmem:[%s4153] sm:$0xff]
        %v4155 = vld [vmem:[%s4153 + $0x8] sm:$0xff]
        %v4156 = vld [vmem:[%s4153 + $0x10] sm:$0xff]
        %v4157 = vld [vmem:[%s4153 + $0x18] sm:$0xff]
        %v4158 = vld [vmem:[%s4153 + $0x20] sm:$0xff]
        %v4159 = vld [vmem:[%s4153 + $0x28] sm:$0xff]
        %v4160 = vld [vmem:[%s4153 + $0x30] sm:$0xff]
        %v4161 = vld [vmem:[%s4153 + $0x38] sm:$0xff]
        %v4162 = vld [vmem:[%s4153 + $0x40] sm:$0xff]
        %v4163 = vld [vmem:[%s4153 + $0x48] sm:$0xff]
        %v4164 = vld [vmem:[%s4153 + $0x50] sm:$0xff]
        %v4165 = vld [vmem:[%s4153 + $0x58] sm:$0xff]
        %v4166 = vld [vmem:[%s4153 + $0x60] sm:$0xff]
        %v4167 = vld [vmem:[%s4153 + $0x68] sm:$0xff]
        %v4168 = vld [vmem:[%s4153 + $0x70] sm:$0xff]
        %v4169 = vld [vmem:[%s4153 + $0x78] sm:$0xff]
        %v4170 = vld [vmem:[%s4153 + $0x80] sm:$0xff]
        %v4171 = vld [vmem:[%s4153 + $0x88] sm:$0xff]
        %v4172 = vld [vmem:[%s4153 + $0x90] sm:$0xff]
        %v4173 = vld [vmem:[%s4153 + $0x98] sm:$0xff]
        %v4174 = vld [vmem:[%s4153 + $0xa0] sm:$0xff]
        %v4175 = vld [vmem:[%s4153 + $0xa8] sm:$0xff]
        %v4176 = vld [vmem:[%s4153 + $0xb0] sm:$0xff]
        %v4177 = vld [vmem:[%s4153 + $0xb8] sm:$0xff]
        %v4178 = vld [vmem:[%s4153 + $0xc0] sm:$0xff]
        %v4179 = vld [vmem:[%s4153 + $0xc8] sm:$0xff]
        %v4180 = vld [vmem:[%s4153 + $0xd0] sm:$0xff]
        %v4181 = vld [vmem:[%s4153 + $0xd8] sm:$0xff]
        %v4182 = vld [vmem:[%s4153 + $0xe0] sm:$0xff]
        %v4183 = vld [vmem:[%s4153 + $0xe8] sm:$0xff]
        %v4184 = vld [vmem:[%s4153 + $0xf0] sm:$0xff]
        %v4185 = vld [vmem:[%s4153 + $0xf8] sm:$0xff]
        %v4186 = vmul.f32 %v3738, %v4154
        %v4187 = vmul.f32 %v3740, %v4155
        %v4188 = vmul.f32 %v3742, %v4156
        %v4189 = vmul.f32 %v3744, %v4157
        %v4190 = vmul.f32 %v3746, %v4158
        %v4191 = vmul.f32 %v3748, %v4159
        %v4192 = vmul.f32 %v3750, %v4160
        %v4193 = vmul.f32 %v3752, %v4161
        %v4194 = vmul.f32 %v3754, %v4162
        %v4195 = vmul.f32 %v3756, %v4163
        %v4196 = vmul.f32 %v3758, %v4164
        %v4197 = vmul.f32 %v3760, %v4165
        %v4198 = vmul.f32 %v3762, %v4166
        %v4199 = vmul.f32 %v3764, %v4167
        %v4200 = vmul.f32 %v3766, %v4168
        %v4201 = vmul.f32 %v3768, %v4169
        %v4202 = vmul.f32 %v3770, %v4170
        %v4203 = vmul.f32 %v3772, %v4171
        %v4204 = vmul.f32 %v3774, %v4172
        %v4205 = vmul.f32 %v3776, %v4173
        %v4206 = vmul.f32 %v3778, %v4174
        %v4207 = vmul.f32 %v3780, %v4175
        %v4208 = vmul.f32 %v3782, %v4176
        %v4209 = vmul.f32 %v3784, %v4177
        %v4210 = vmul.f32 %v3786, %v4178
        %v4211 = vmul.f32 %v3788, %v4179
        %v4212 = vmul.f32 %v3790, %v4180
        %v4213 = vmul.f32 %v3792, %v4181
        %v4214 = vmul.f32 %v3794, %v4182
        %v4215 = vmul.f32 %v3796, %v4183
        %v4216 = vmul.f32 %v3798, %v4184
        %v4217 = vmul.f32 %v3800, %v4185
        %v4218 = vadd.f32 %v4026, %v4028
        %4219 = vadd.xlane.f32.xlu0 %v4218
        %v4220 = vpop.xlane.xlu0 %4219
        %v4221 = vadd.f32 %v4030, %v4032
        %4222 = vadd.xlane.f32.xlu0 %v4221
        %v4223 = vpop.xlane.xlu0 %4222
        %v4224 = vadd.f32 %v4034, %v4036
        %4225 = vadd.xlane.f32.xlu0 %v4224
        %v4226 = vpop.xlane.xlu0 %4225
        %v4227 = vadd.f32 %v4038, %v4040
        %4228 = vadd.xlane.f32.xlu0 %v4227
        %v4229 = vpop.xlane.xlu0 %4228
        %v4230 = vadd.f32 %v4042, %v4044
        %4231 = vadd.xlane.f32.xlu0 %v4230
        %v4232 = vpop.xlane.xlu0 %4231
        %v4233 = vadd.f32 %v4046, %v4048
        %4234 = vadd.xlane.f32.xlu0 %v4233
        %v4235 = vpop.xlane.xlu0 %4234
        %v4236 = vadd.f32 %v4050, %v4052
        %4237 = vadd.xlane.f32.xlu0 %v4236
        %v4238 = vpop.xlane.xlu0 %4237
        %v4239 = vadd.f32 %v4054, %v4056
        %4240 = vadd.xlane.f32.xlu0 %v4239
        %v4241 = vpop.xlane.xlu0 %4240
        %v4242 = vadd.f32 %v4058, %v4060
        %4243 = vadd.xlane.f32.xlu0 %v4242
        %v4244 = vpop.xlane.xlu0 %4243
        %v4245 = vadd.f32 %v4062, %v4064
        %4246 = vadd.xlane.f32.xlu0 %v4245
        %v4247 = vpop.xlane.xlu0 %4246
        %v4248 = vadd.f32 %v4066, %v4068
        %4249 = vadd.xlane.f32.xlu0 %v4248
        %v4250 = vpop.xlane.xlu0 %4249
        %v4251 = vadd.f32 %v4070, %v4072
        %4252 = vadd.xlane.f32.xlu0 %v4251
        %v4253 = vpop.xlane.xlu0 %4252
        %v4254 = vadd.f32 %v4074, %v4076
        %4255 = vadd.xlane.f32.xlu0 %v4254
        %v4256 = vpop.xlane.xlu0 %4255
        %v4257 = vadd.f32 %v4078, %v4080
        %4258 = vadd.xlane.f32.xlu0 %v4257
        %v4259 = vpop.xlane.xlu0 %4258
        %v4260 = vadd.f32 %v4082, %v4084
        %4261 = vadd.xlane.f32.xlu0 %v4260
        %v4262 = vpop.xlane.xlu0 %4261
        %v4263 = vadd.f32 %v4086, %v4088
        %4264 = vadd.xlane.f32.xlu0 %v4263
        %v4265 = vpop.xlane.xlu0 %4264
        %v4266 = vadd.f32 %v4090, %v4092
        %4267 = vadd.xlane.f32.xlu0 %v4266
        %v4268 = vpop.xlane.xlu0 %4267
        %v4269 = vadd.f32 %v4094, %v4096
        %4270 = vadd.xlane.f32.xlu0 %v4269
        %v4271 = vpop.xlane.xlu0 %4270
        %v4272 = vadd.f32 %v4098, %v4100
        %4273 = vadd.xlane.f32.xlu0 %v4272
        %v4274 = vpop.xlane.xlu0 %4273
        %v4275 = vadd.f32 %v4102, %v4104
        %4276 = vadd.xlane.f32.xlu0 %v4275
        %v4277 = vpop.xlane.xlu0 %4276
        %v4278 = vadd.f32 %v4106, %v4108
        %4279 = vadd.xlane.f32.xlu0 %v4278
        %v4280 = vpop.xlane.xlu0 %4279
        %v4281 = vadd.f32 %v4110, %v4112
        %4282 = vadd.xlane.f32.xlu0 %v4281
        %v4283 = vpop.xlane.xlu0 %4282
        %v4284 = vadd.f32 %v4114, %v4116
        %4285 = vadd.xlane.f32.xlu0 %v4284
        %v4286 = vpop.xlane.xlu0 %4285
        %v4287 = vadd.f32 %v4118, %v4120
        %4288 = vadd.xlane.f32.xlu0 %v4287
        %v4289 = vpop.xlane.xlu0 %4288
        %v4290 = vadd.f32 %v4122, %v4124
        %4291 = vadd.xlane.f32.xlu0 %v4290
        %v4292 = vpop.xlane.xlu0 %4291
        %v4293 = vadd.f32 %v4126, %v4128
        %4294 = vadd.xlane.f32.xlu0 %v4293
        %v4295 = vpop.xlane.xlu0 %4294
        %v4296 = vadd.f32 %v4130, %v4132
        %4297 = vadd.xlane.f32.xlu0 %v4296
        %v4298 = vpop.xlane.xlu0 %4297
        %v4299 = vadd.f32 %v4134, %v4136
        %4300 = vadd.xlane.f32.xlu0 %v4299
        %v4301 = vpop.xlane.xlu0 %4300
        %v4302 = vadd.f32 %v4138, %v4140
        %4303 = vadd.xlane.f32.xlu0 %v4302
        %v4304 = vpop.xlane.xlu0 %4303
        %v4305 = vadd.f32 %v4142, %v4144
        %4306 = vadd.xlane.f32.xlu0 %v4305
        %v4307 = vpop.xlane.xlu0 %4306
        %v4308 = vadd.f32 %v4146, %v4148
        %4309 = vadd.xlane.f32.xlu0 %v4308
        %v4310 = vpop.xlane.xlu0 %4309
        %v4311 = vadd.f32 %v4150, %v4152
        %4312 = vadd.xlane.f32.xlu0 %v4311
        %v4313 = vpop.xlane.xlu0 %4312
        %v4314 = vadd.f32 %v4186, %v4220
        %v4315 = vadd.f32 %v4187, %v4223
        %v4316 = vadd.f32 %v4188, %v4226
        %v4317 = vadd.f32 %v4189, %v4229
        %v4318 = vadd.f32 %v4190, %v4232
        %v4319 = vadd.f32 %v4191, %v4235
        %v4320 = vadd.f32 %v4192, %v4238
        %v4321 = vadd.f32 %v4193, %v4241
        %v4322 = vadd.f32 %v4194, %v4244
        %v4323 = vadd.f32 %v4195, %v4247
        %v4324 = vadd.f32 %v4196, %v4250
        %v4325 = vadd.f32 %v4197, %v4253
        %v4326 = vadd.f32 %v4198, %v4256
        %v4327 = vadd.f32 %v4199, %v4259
        %v4328 = vadd.f32 %v4200, %v4262
        %v4329 = vadd.f32 %v4201, %v4265
        %v4330 = vadd.f32 %v4202, %v4268
        %v4331 = vadd.f32 %v4203, %v4271
        %v4332 = vadd.f32 %v4204, %v4274
        %v4333 = vadd.f32 %v4205, %v4277
        %v4334 = vadd.f32 %v4206, %v4280
        %v4335 = vadd.f32 %v4207, %v4283
        %v4336 = vadd.f32 %v4208, %v4286
        %v4337 = vadd.f32 %v4209, %v4289
        %v4338 = vadd.f32 %v4210, %v4292
        %v4339 = vadd.f32 %v4211, %v4295
        %v4340 = vadd.f32 %v4212, %v4298
        %v4341 = vadd.f32 %v4213, %v4301
        %v4342 = vadd.f32 %v4214, %v4304
        %v4343 = vadd.f32 %v4215, %v4307
        %v4344 = vadd.f32 %v4216, %v4310
        %v4345 = vadd.f32 %v4217, %v4313
        %4346 = vst.msk [vmem:[%s4153] sm:$0xff] %vm2293, %v4314
        %4347 = vst.msk [vmem:[%s4153 + $0x8] sm:$0xff] %vm2293, %v4315
        %4348 = vst.msk [vmem:[%s4153 + $0x10] sm:$0xff] %vm2293, %v4316
        %4349 = vst.msk [vmem:[%s4153 + $0x18] sm:$0xff] %vm2293, %v4317
        %4350 = vst.msk [vmem:[%s4153 + $0x20] sm:$0xff] %vm2293, %v4318
        %4351 = vst.msk [vmem:[%s4153 + $0x28] sm:$0xff] %vm2293, %v4319
        %4352 = vst.msk [vmem:[%s4153 + $0x30] sm:$0xff] %vm2293, %v4320
        %4353 = vst.msk [vmem:[%s4153 + $0x38] sm:$0xff] %vm2293, %v4321
        %4354 = vst.msk [vmem:[%s4153 + $0x40] sm:$0xff] %vm2293, %v4322
        %4355 = vst.msk [vmem:[%s4153 + $0x48] sm:$0xff] %vm2293, %v4323
        %4356 = vst.msk [vmem:[%s4153 + $0x50] sm:$0xff] %vm2293, %v4324
        %4357 = vst.msk [vmem:[%s4153 + $0x58] sm:$0xff] %vm2293, %v4325
        %4358 = vst.msk [vmem:[%s4153 + $0x60] sm:$0xff] %vm2293, %v4326
        %4359 = vst.msk [vmem:[%s4153 + $0x68] sm:$0xff] %vm2293, %v4327
        %4360 = vst.msk [vmem:[%s4153 + $0x70] sm:$0xff] %vm2293, %v4328
        %4361 = vst.msk [vmem:[%s4153 + $0x78] sm:$0xff] %vm2293, %v4329
        %4362 = vst.msk [vmem:[%s4153 + $0x80] sm:$0xff] %vm2293, %v4330
        %4363 = vst.msk [vmem:[%s4153 + $0x88] sm:$0xff] %vm2293, %v4331
        %4364 = vst.msk [vmem:[%s4153 + $0x90] sm:$0xff] %vm2293, %v4332
        %4365 = vst.msk [vmem:[%s4153 + $0x98] sm:$0xff] %vm2293, %v4333
        %4366 = vst.msk [vmem:[%s4153 + $0xa0] sm:$0xff] %vm2293, %v4334
        %4367 = vst.msk [vmem:[%s4153 + $0xa8] sm:$0xff] %vm2293, %v4335
        %4368 = vst.msk [vmem:[%s4153 + $0xb0] sm:$0xff] %vm2293, %v4336
        %4369 = vst.msk [vmem:[%s4153 + $0xb8] sm:$0xff] %vm2293, %v4337
        %4370 = vst.msk [vmem:[%s4153 + $0xc0] sm:$0xff] %vm2293, %v4338
        %4371 = vst.msk [vmem:[%s4153 + $0xc8] sm:$0xff] %vm2293, %v4339
        %4372 = vst.msk [vmem:[%s4153 + $0xd0] sm:$0xff] %vm2293, %v4340
        %4373 = vst.msk [vmem:[%s4153 + $0xd8] sm:$0xff] %vm2293, %v4341
        %4374 = vst.msk [vmem:[%s4153 + $0xe0] sm:$0xff] %vm2293, %v4342
        %4375 = vst.msk [vmem:[%s4153 + $0xe8] sm:$0xff] %vm2293, %v4343
        %4376 = vst.msk [vmem:[%s4153 + $0xf0] sm:$0xff] %vm2293, %v4344
        %4377 = vst.msk [vmem:[%s4153 + $0xf8] sm:$0xff] %vm2293, %v4345
        %4378 = vst.msk [vmem:[%s3544] sm:$0xff] %vm2293, %v3673
        %4379 = vst.msk [vmem:[%s3544 + $0x8] sm:$0xff] %vm2293, %v3674
        %4380 = vst.msk [vmem:[%s3544 + $0x10] sm:$0xff] %vm2293, %v3675
        %4381 = vst.msk [vmem:[%s3544 + $0x18] sm:$0xff] %vm2293, %v3676
        %4382 = vst.msk [vmem:[%s3544 + $0x20] sm:$0xff] %vm2293, %v3677
        %4383 = vst.msk [vmem:[%s3544 + $0x28] sm:$0xff] %vm2293, %v3678
        %4384 = vst.msk [vmem:[%s3544 + $0x30] sm:$0xff] %vm2293, %v3679
        %4385 = vst.msk [vmem:[%s3544 + $0x38] sm:$0xff] %vm2293, %v3680
        %4386 = vst.msk [vmem:[%s3544 + $0x40] sm:$0xff] %vm2293, %v3681
        %4387 = vst.msk [vmem:[%s3544 + $0x48] sm:$0xff] %vm2293, %v3682
        %4388 = vst.msk [vmem:[%s3544 + $0x50] sm:$0xff] %vm2293, %v3683
        %4389 = vst.msk [vmem:[%s3544 + $0x58] sm:$0xff] %vm2293, %v3684
        %4390 = vst.msk [vmem:[%s3544 + $0x60] sm:$0xff] %vm2293, %v3685
        %4391 = vst.msk [vmem:[%s3544 + $0x68] sm:$0xff] %vm2293, %v3686
        %4392 = vst.msk [vmem:[%s3544 + $0x70] sm:$0xff] %vm2293, %v3687
        %4393 = vst.msk [vmem:[%s3544 + $0x78] sm:$0xff] %vm2293, %v3688
        %4394 = vst.msk [vmem:[%s3544 + $0x80] sm:$0xff] %vm2293, %v3689
        %4395 = vst.msk [vmem:[%s3544 + $0x88] sm:$0xff] %vm2293, %v3690
        %4396 = vst.msk [vmem:[%s3544 + $0x90] sm:$0xff] %vm2293, %v3691
        %4397 = vst.msk [vmem:[%s3544 + $0x98] sm:$0xff] %vm2293, %v3692
        %4398 = vst.msk [vmem:[%s3544 + $0xa0] sm:$0xff] %vm2293, %v3693
        %4399 = vst.msk [vmem:[%s3544 + $0xa8] sm:$0xff] %vm2293, %v3694
        %4400 = vst.msk [vmem:[%s3544 + $0xb0] sm:$0xff] %vm2293, %v3695
        %4401 = vst.msk [vmem:[%s3544 + $0xb8] sm:$0xff] %vm2293, %v3696
        %4402 = vst.msk [vmem:[%s3544 + $0xc0] sm:$0xff] %vm2293, %v3697
        %4403 = vst.msk [vmem:[%s3544 + $0xc8] sm:$0xff] %vm2293, %v3698
        %4404 = vst.msk [vmem:[%s3544 + $0xd0] sm:$0xff] %vm2293, %v3699
        %4405 = vst.msk [vmem:[%s3544 + $0xd8] sm:$0xff] %vm2293, %v3700
        %4406 = vst.msk [vmem:[%s3544 + $0xe0] sm:$0xff] %vm2293, %v3701
        %4407 = vst.msk [vmem:[%s3544 + $0xe8] sm:$0xff] %vm2293, %v3702
        %4408 = vst.msk [vmem:[%s3544 + $0xf0] sm:$0xff] %vm2293, %v3703
        %4409 = vst.msk [vmem:[%s3544 + $0xf8] sm:$0xff] %vm2293, %v3704
        %4442 = vrot.lane.b32.xlu0 %v2935, 64
        %v4443 = vpop.permute.xlu0 %4442
        %4444 = vrot.lane.b32.xlu0 %v2936, 64
        %v4445 = vpop.permute.xlu0 %4444
        %4446 = vrot.lane.b32.xlu0 %v2937, 64
        %v4447 = vpop.permute.xlu0 %4446
        %4448 = vrot.lane.b32.xlu0 %v2938, 64
        %v4449 = vpop.permute.xlu0 %4448
        %4450 = vrot.lane.b32.xlu0 %v2939, 64
        %v4451 = vpop.permute.xlu0 %4450
        %4452 = vrot.lane.b32.xlu0 %v2940, 64
        %v4453 = vpop.permute.xlu0 %4452
        %4454 = vrot.lane.b32.xlu0 %v2941, 64
        %v4455 = vpop.permute.xlu0 %4454
        %4456 = vrot.lane.b32.xlu0 %v2942, 64
        %v4457 = vpop.permute.xlu0 %4456
        %4458 = vrot.lane.b32.xlu0 %v2943, 64
        %v4459 = vpop.permute.xlu0 %4458
        %4460 = vrot.lane.b32.xlu0 %v2944, 64
        %v4461 = vpop.permute.xlu0 %4460
        %4462 = vrot.lane.b32.xlu0 %v2945, 64
        %v4463 = vpop.permute.xlu0 %4462
        %4464 = vrot.lane.b32.xlu0 %v2946, 64
        %v4465 = vpop.permute.xlu0 %4464
        %4466 = vrot.lane.b32.xlu0 %v2947, 64
        %v4467 = vpop.permute.xlu0 %4466
        %4468 = vrot.lane.b32.xlu0 %v2948, 64
        %v4469 = vpop.permute.xlu0 %4468
        %4470 = vrot.lane.b32.xlu0 %v2949, 64
        %v4471 = vpop.permute.xlu0 %4470
        %4472 = vrot.lane.b32.xlu0 %v2950, 64
        %v4473 = vpop.permute.xlu0 %4472
        %4474 = vrot.lane.b32.xlu0 %v2951, 64
        %v4475 = vpop.permute.xlu0 %4474
        %4476 = vrot.lane.b32.xlu0 %v2952, 64
        %v4477 = vpop.permute.xlu0 %4476
        %4478 = vrot.lane.b32.xlu0 %v2953, 64
        %v4479 = vpop.permute.xlu0 %4478
        %4480 = vrot.lane.b32.xlu0 %v2954, 64
        %v4481 = vpop.permute.xlu0 %4480
        %4482 = vrot.lane.b32.xlu0 %v2955, 64
        %v4483 = vpop.permute.xlu0 %4482
        %4484 = vrot.lane.b32.xlu0 %v2956, 64
        %v4485 = vpop.permute.xlu0 %4484
        %4486 = vrot.lane.b32.xlu0 %v2957, 64
        %v4487 = vpop.permute.xlu0 %4486
        %4488 = vrot.lane.b32.xlu0 %v2958, 64
        %v4489 = vpop.permute.xlu0 %4488
        %4490 = vrot.lane.b32.xlu0 %v2959, 64
        %v4491 = vpop.permute.xlu0 %4490
        %4492 = vrot.lane.b32.xlu0 %v2960, 64
        %v4493 = vpop.permute.xlu0 %4492
        %4494 = vrot.lane.b32.xlu0 %v2961, 64
        %v4495 = vpop.permute.xlu0 %4494
        %4496 = vrot.lane.b32.xlu0 %v2962, 64
        %v4497 = vpop.permute.xlu0 %4496
        %4498 = vrot.lane.b32.xlu0 %v2963, 64
        %v4499 = vpop.permute.xlu0 %4498
        %4500 = vrot.lane.b32.xlu0 %v2964, 64
        %v4501 = vpop.permute.xlu0 %4500
        %4502 = vrot.lane.b32.xlu0 %v2965, 64
        %v4503 = vpop.permute.xlu0 %4502
        %4504 = vrot.lane.b32.xlu0 %v2966, 64
        %v4505 = vpop.permute.xlu0 %4504
        %4538 = vmatprep.subr.mxu0 0.0
        %4539 = vmatpush1.msra.mxu0 %v4443
        %4540 = vmatprep.subr.mxu0 0.0
        %4541 = vmatpush1.msra.mxu0 %v4445
        %4542 = vmatprep.subr.mxu0 0.0
        %4543 = vmatpush1.msra.mxu0 %v4447
        %4544 = vmatprep.subr.mxu0 0.0
        %4545 = vmatpush1.msra.mxu0 %v4449
        %4546 = vmatprep.subr.mxu0 0.0
        %4547 = vmatpush1.msra.mxu0 %v4451
        %4548 = vmatprep.subr.mxu0 0.0
        %4549 = vmatpush1.msra.mxu0 %v4453
        %4550 = vmatprep.subr.mxu0 0.0
        %4551 = vmatpush1.msra.mxu0 %v4455
        %4552 = vmatprep.subr.mxu0 0.0
        %4553 = vmatpush1.msra.mxu0 %v4457
        %4554 = vmatprep.subr.mxu0 0.0
        %4555 = vmatpush1.msra.mxu0 %v4459
        %4556 = vmatprep.subr.mxu0 0.0
        %4557 = vmatpush1.msra.mxu0 %v4461
        %4558 = vmatprep.subr.mxu0 0.0
        %4559 = vmatpush1.msra.mxu0 %v4463
        %4560 = vmatprep.subr.mxu0 0.0
        %4561 = vmatpush1.msra.mxu0 %v4465
        %4562 = vmatprep.subr.mxu0 0.0
        %4563 = vmatpush1.msra.mxu0 %v4467
        %4564 = vmatprep.subr.mxu0 0.0
        %4565 = vmatpush1.msra.mxu0 %v4469
        %4566 = vmatprep.subr.mxu0 0.0
        %4567 = vmatpush1.msra.mxu0 %v4471
        %4568 = vmatprep.subr.mxu0 0.0
        %4569 = vmatpush1.msra.mxu0 %v4473
        %4570 = vmatprep.subr.mxu0 0.0
        %4571 = vmatpush1.msra.mxu0 %v4475
        %4572 = vmatprep.subr.mxu0 0.0
        %4573 = vmatpush1.msra.mxu0 %v4477
        %4574 = vmatprep.subr.mxu0 0.0
        %4575 = vmatpush1.msra.mxu0 %v4479
        %4576 = vmatprep.subr.mxu0 0.0
        %4577 = vmatpush1.msra.mxu0 %v4481
        %4578 = vmatprep.subr.mxu0 0.0
        %4579 = vmatpush1.msra.mxu0 %v4483
        %4580 = vmatprep.subr.mxu0 0.0
        %4581 = vmatpush1.msra.mxu0 %v4485
        %4582 = vmatprep.subr.mxu0 0.0
        %4583 = vmatpush1.msra.mxu0 %v4487
        %4584 = vmatprep.subr.mxu0 0.0
        %4585 = vmatpush1.msra.mxu0 %v4489
        %4586 = vmatprep.subr.mxu0 0.0
        %4587 = vmatpush1.msra.mxu0 %v4491
        %4588 = vmatprep.subr.mxu0 0.0
        %4589 = vmatpush1.msra.mxu0 %v4493
        %4590 = vmatprep.subr.mxu0 0.0
        %4591 = vmatpush1.msra.mxu0 %v4495
        %4592 = vmatprep.subr.mxu0 0.0
        %4593 = vmatpush1.msra.mxu0 %v4497
        %4594 = vmatprep.subr.mxu0 0.0
        %4595 = vmatpush1.msra.mxu0 %v4499
        %4596 = vmatprep.subr.mxu0 0.0
        %4597 = vmatpush1.msra.mxu0 %v4501
        %4598 = vmatprep.subr.mxu0 0.0
        %4599 = vmatpush1.msra.mxu0 %v4503
        %4600 = vmatprep.subr.mxu0 0.0
        %4601 = vmatpush1.msra.mxu0 %v4505
        %4602 = vmatprep.mubr.f32.mxu0 %v4028
        %4603 = vmatmul.mubr.f32.gmra.mrb[0].mxu0 %v4026
        %v4604 = vpop.f32.mrb[0].mxu0
        %v4605 = vadd.f32 0.0, %v4604
        %v4606 = vpop.f32.mrb[0].mxu0
        %4607 = vmatprep.mubr.f32.mxu0 %v4032
        %4608 = vmatmul.mubr.f32.gmra.mrb[0].mxu0 %v4030
        %v4609 = vpop.f32.mrb[0].mxu0
        %v4610 = vadd.f32 0.0, %v4609
        %v4611 = vpop.f32.mrb[0].mxu0
        %4612 = vmatprep.mubr.f32.mxu0 %v4036
        %4613 = vmatmul.mubr.f32.gmra.mrb[0].mxu0 %v4034
        %v4614 = vpop.f32.mrb[0].mxu0
        %v4615 = vadd.f32 0.0, %v4614
        %v4616 = vpop.f32.mrb[0].mxu0
        %4617 = vmatprep.mubr.f32.mxu0 %v4040
        %4618 = vmatmul.mubr.f32.gmra.mrb[0].mxu0 %v4038
        %v4619 = vpop.f32.mrb[0].mxu0
        %v4620 = vadd.f32 0.0, %v4619
        %v4621 = vpop.f32.mrb[0].mxu0
        %4622 = vmatprep.mubr.f32.mxu0 %v4044
        %4623 = vmatmul.mubr.f32.gmra.mrb[0].mxu0 %v4042
        %v4624 = vpop.f32.mrb[0].mxu0
        %v4625 = vadd.f32 0.0, %v4624
        %v4626 = vpop.f32.mrb[0].mxu0
        %4627 = vmatprep.mubr.f32.mxu0 %v4048
        %4628 = vmatmul.mubr.f32.gmra.mrb[0].mxu0 %v4046
        %v4629 = vpop.f32.mrb[0].mxu0
        %v4630 = vadd.f32 0.0, %v4629
        %v4631 = vpop.f32.mrb[0].mxu0
        %4632 = vmatprep.mubr.f32.mxu0 %v4052
        %4633 = vmatmul.mubr.f32.gmra.mrb[0].mxu0 %v4050
        %v4634 = vpop.f32.mrb[0].mxu0
        %v4635 = vadd.f32 0.0, %v4634
        %v4636 = vpop.f32.mrb[0].mxu0
        %4637 = vmatprep.mubr.f32.mxu0 %v4056
        %4638 = vmatmul.mubr.f32.gmra.mrb[0].mxu0 %v4054
        %v4639 = vpop.f32.mrb[0].mxu0
        %v4640 = vadd.f32 0.0, %v4639
        %v4641 = vpop.f32.mrb[0].mxu0
        %4642 = vmatprep.mubr.f32.mxu0 %v4060
        %4643 = vmatmul.mubr.f32.gmra.mrb[0].mxu0 %v4058
        %v4644 = vpop.f32.mrb[0].mxu0
        %v4645 = vadd.f32 0.0, %v4644
        %v4646 = vpop.f32.mrb[0].mxu0
        %4647 = vmatprep.mubr.f32.mxu0 %v4064
        %4648 = vmatmul.mubr.f32.gmra.mrb[0].mxu0 %v4062
        %v4649 = vpop.f32.mrb[0].mxu0
        %v4650 = vadd.f32 0.0, %v4649
        %v4651 = vpop.f32.mrb[0].mxu0
        %4652 = vmatprep.mubr.f32.mxu0 %v4068
        %4653 = vmatmul.mubr.f32.gmra.mrb[0].mxu0 %v4066
        %v4654 = vpop.f32.mrb[0].mxu0
        %v4655 = vadd.f32 0.0, %v4654
        %v4656 = vpop.f32.mrb[0].mxu0
        %4657 = vmatprep.mubr.f32.mxu0 %v4072
        %4658 = vmatmul.mubr.f32.gmra.mrb[0].mxu0 %v4070
        %v4659 = vpop.f32.mrb[0].mxu0
        %v4660 = vadd.f32 0.0, %v4659
        %v4661 = vpop.f32.mrb[0].mxu0
        %4662 = vmatprep.mubr.f32.mxu0 %v4076
        %4663 = vmatmul.mubr.f32.gmra.mrb[0].mxu0 %v4074
        %v4664 = vpop.f32.mrb[0].mxu0
        %v4665 = vadd.f32 0.0, %v4664
        %v4666 = vpop.f32.mrb[0].mxu0
        %4667 = vmatprep.mubr.f32.mxu0 %v4080
        %4668 = vmatmul.mubr.f32.gmra.mrb[0].mxu0 %v4078
        %v4669 = vpop.f32.mrb[0].mxu0
        %v4670 = vadd.f32 0.0, %v4669
        %v4671 = vpop.f32.mrb[0].mxu0
        %4672 = vmatprep.mubr.f32.mxu0 %v4084
        %4673 = vmatmul.mubr.f32.gmra.mrb[0].mxu0 %v4082
        %v4674 = vpop.f32.mrb[0].mxu0
        %v4675 = vadd.f32 0.0, %v4674
        %v4676 = vpop.f32.mrb[0].mxu0
        %4677 = vmatprep.mubr.f32.mxu0 %v4088
        %4678 = vmatmul.mubr.f32.gmra.mrb[0].mxu0 %v4086
        %v4679 = vpop.f32.mrb[0].mxu0
        %v4680 = vadd.f32 0.0, %v4679
        %v4681 = vpop.f32.mrb[0].mxu0
        %4682 = vmatprep.mubr.f32.mxu0 %v4092
        %4683 = vmatmul.mubr.f32.gmra.mrb[0].mxu0 %v4090
        %v4684 = vpop.f32.mrb[0].mxu0
        %v4685 = vadd.f32 0.0, %v4684
        %v4686 = vpop.f32.mrb[0].mxu0
        %4687 = vmatprep.mubr.f32.mxu0 %v4096
        %4688 = vmatmul.mubr.f32.gmra.mrb[0].mxu0 %v4094
        %v4689 = vpop.f32.mrb[0].mxu0
        %v4690 = vadd.f32 0.0, %v4689
        %v4691 = vpop.f32.mrb[0].mxu0
        %4692 = vmatprep.mubr.f32.mxu0 %v4100
        %4693 = vmatmul.mubr.f32.gmra.mrb[0].mxu0 %v4098
        %v4694 = vpop.f32.mrb[0].mxu0
        %v4695 = vadd.f32 0.0, %v4694
        %v4696 = vpop.f32.mrb[0].mxu0
        %4697 = vmatprep.mubr.f32.mxu0 %v4104
        %4698 = vmatmul.mubr.f32.gmra.mrb[0].mxu0 %v4102
        %v4699 = vpop.f32.mrb[0].mxu0
        %v4700 = vadd.f32 0.0, %v4699
        %v4701 = vpop.f32.mrb[0].mxu0
        %4702 = vmatprep.mubr.f32.mxu0 %v4108
        %4703 = vmatmul.mubr.f32.gmra.mrb[0].mxu0 %v4106
        %v4704 = vpop.f32.mrb[0].mxu0
        %v4705 = vadd.f32 0.0, %v4704
        %v4706 = vpop.f32.mrb[0].mxu0
        %4707 = vmatprep.mubr.f32.mxu0 %v4112
        %4708 = vmatmul.mubr.f32.gmra.mrb[0].mxu0 %v4110
        %v4709 = vpop.f32.mrb[0].mxu0
        %v4710 = vadd.f32 0.0, %v4709
        %v4711 = vpop.f32.mrb[0].mxu0
        %4712 = vmatprep.mubr.f32.mxu0 %v4116
        %4713 = vmatmul.mubr.f32.gmra.mrb[0].mxu0 %v4114
        %v4714 = vpop.f32.mrb[0].mxu0
        %v4715 = vadd.f32 0.0, %v4714
        %v4716 = vpop.f32.mrb[0].mxu0
        %4717 = vmatprep.mubr.f32.mxu0 %v4120
        %4718 = vmatmul.mubr.f32.gmra.mrb[0].mxu0 %v4118
        %v4719 = vpop.f32.mrb[0].mxu0
        %v4720 = vadd.f32 0.0, %v4719
        %v4721 = vpop.f32.mrb[0].mxu0
        %4722 = vmatprep.mubr.f32.mxu0 %v4124
        %4723 = vmatmul.mubr.f32.gmra.mrb[0].mxu0 %v4122
        %v4724 = vpop.f32.mrb[0].mxu0
        %v4725 = vadd.f32 0.0, %v4724
        %v4726 = vpop.f32.mrb[0].mxu0
        %4727 = vmatprep.mubr.f32.mxu0 %v4128
        %4728 = vmatmul.mubr.f32.gmra.mrb[0].mxu0 %v4126
        %v4729 = vpop.f32.mrb[0].mxu0
        %v4730 = vadd.f32 0.0, %v4729
        %v4731 = vpop.f32.mrb[0].mxu0
        %4732 = vmatprep.mubr.f32.mxu0 %v4132
        %4733 = vmatmul.mubr.f32.gmra.mrb[0].mxu0 %v4130
        %v4734 = vpop.f32.mrb[0].mxu0
        %v4735 = vadd.f32 0.0, %v4734
        %v4736 = vpop.f32.mrb[0].mxu0
        %4737 = vmatprep.mubr.f32.mxu0 %v4136
        %4738 = vmatmul.mubr.f32.gmra.mrb[0].mxu0 %v4134
        %v4739 = vpop.f32.mrb[0].mxu0
        %v4740 = vadd.f32 0.0, %v4739
        %v4741 = vpop.f32.mrb[0].mxu0
        %4742 = vmatprep.mubr.f32.mxu0 %v4140
        %4743 = vmatmul.mubr.f32.gmra.mrb[0].mxu0 %v4138
        %v4744 = vpop.f32.mrb[0].mxu0
        %v4745 = vadd.f32 0.0, %v4744
        %v4746 = vpop.f32.mrb[0].mxu0
        %4747 = vmatprep.mubr.f32.mxu0 %v4144
        %4748 = vmatmul.mubr.f32.gmra.mrb[0].mxu0 %v4142
        %v4749 = vpop.f32.mrb[0].mxu0
        %v4750 = vadd.f32 0.0, %v4749
        %v4751 = vpop.f32.mrb[0].mxu0
        %4752 = vmatprep.mubr.f32.mxu0 %v4148
        %4753 = vmatmul.mubr.f32.gmra.mrb[0].mxu0 %v4146
        %v4754 = vpop.f32.mrb[0].mxu0
        %v4755 = vadd.f32 0.0, %v4754
        %v4756 = vpop.f32.mrb[0].mxu0
        %4757 = vmatprep.mubr.f32.mxu0 %v4152
        %4758 = vmatmul.mubr.f32.gmra.mrb[0].mxu0 %v4150
        %v4759 = vpop.f32.mrb[0].mxu0
        %v4760 = vadd.f32 0.0, %v4759
        %v4761 = vpop.f32.mrb[0].mxu0
        %4762 = vdwg.mxu0
        %v4763 = vld [vmem:[#allocation4] sm:$0xff]
        %v4764 = vld [vmem:[#allocation4 + $0x8] sm:$0xff]
        %v4765 = vld [vmem:[#allocation4 + $0x10] sm:$0xff]
        %v4766 = vld [vmem:[#allocation4 + $0x18] sm:$0xff]
        %v4767 = vld [vmem:[#allocation4 + $0x20] sm:$0xff]
        %v4768 = vld [vmem:[#allocation4 + $0x28] sm:$0xff]
        %v4769 = vld [vmem:[#allocation4 + $0x30] sm:$0xff]
        %v4770 = vld [vmem:[#allocation4 + $0x38] sm:$0xff]
        %v4771 = vld [vmem:[#allocation4 + $0x40] sm:$0xff]
        %v4772 = vld [vmem:[#allocation4 + $0x48] sm:$0xff]
        %v4773 = vld [vmem:[#allocation4 + $0x50] sm:$0xff]
        %v4774 = vld [vmem:[#allocation4 + $0x58] sm:$0xff]
        %v4775 = vld [vmem:[#allocation4 + $0x60] sm:$0xff]
        %v4776 = vld [vmem:[#allocation4 + $0x68] sm:$0xff]
        %v4777 = vld [vmem:[#allocation4 + $0x70] sm:$0xff]
        %v4778 = vld [vmem:[#allocation4 + $0x78] sm:$0xff]
        %v4779 = vld [vmem:[#allocation4 + $0x80] sm:$0xff]
        %v4780 = vld [vmem:[#allocation4 + $0x88] sm:$0xff]
        %v4781 = vld [vmem:[#allocation4 + $0x90] sm:$0xff]
        %v4782 = vld [vmem:[#allocation4 + $0x98] sm:$0xff]
        %v4783 = vld [vmem:[#allocation4 + $0xa0] sm:$0xff]
        %v4784 = vld [vmem:[#allocation4 + $0xa8] sm:$0xff]
        %v4785 = vld [vmem:[#allocation4 + $0xb0] sm:$0xff]
        %v4786 = vld [vmem:[#allocation4 + $0xb8] sm:$0xff]
        %v4787 = vld [vmem:[#allocation4 + $0xc0] sm:$0xff]
        %v4788 = vld [vmem:[#allocation4 + $0xc8] sm:$0xff]
        %v4789 = vld [vmem:[#allocation4 + $0xd0] sm:$0xff]
        %v4790 = vld [vmem:[#allocation4 + $0xd8] sm:$0xff]
        %v4791 = vld [vmem:[#allocation4 + $0xe0] sm:$0xff]
        %v4792 = vld [vmem:[#allocation4 + $0xe8] sm:$0xff]
        %v4793 = vld [vmem:[#allocation4 + $0xf0] sm:$0xff]
        %v4794 = vld [vmem:[#allocation4 + $0xf8] sm:$0xff]
        %4796 = vset.pattern.permute.xlu0 0
        %4797 = vperm.xlu0 %4796, %v3738
        %v4798 = vpop.permute.xlu0 %4797
        %4801 = vset.pattern.permute.xlu0 0
        %4802 = vperm.xlu0 %4801, %v3740
        %v4803 = vpop.permute.xlu0 %4802
        %4806 = vset.pattern.permute.xlu0 0
        %4807 = vperm.xlu0 %4806, %v3742
        %v4808 = vpop.permute.xlu0 %4807
        %4811 = vset.pattern.permute.xlu0 0
        %4812 = vperm.xlu0 %4811, %v3744
        %v4813 = vpop.permute.xlu0 %4812
        %4816 = vset.pattern.permute.xlu0 0
        %4817 = vperm.xlu0 %4816, %v3746
        %v4818 = vpop.permute.xlu0 %4817
        %4821 = vset.pattern.permute.xlu0 0
        %4822 = vperm.xlu0 %4821, %v3748
        %v4823 = vpop.permute.xlu0 %4822
        %4826 = vset.pattern.permute.xlu0 0
        %4827 = vperm.xlu0 %4826, %v3750
        %v4828 = vpop.permute.xlu0 %4827
        %4831 = vset.pattern.permute.xlu0 0
        %4832 = vperm.xlu0 %4831, %v3752
        %v4833 = vpop.permute.xlu0 %4832
        %4836 = vset.pattern.permute.xlu0 0
        %4837 = vperm.xlu0 %4836, %v3754
        %v4838 = vpop.permute.xlu0 %4837
        %4841 = vset.pattern.permute.xlu0 0
        %4842 = vperm.xlu0 %4841, %v3756
        %v4843 = vpop.permute.xlu0 %4842
        %4846 = vset.pattern.permute.xlu0 0
        %4847 = vperm.xlu0 %4846, %v3758
        %v4848 = vpop.permute.xlu0 %4847
        %4851 = vset.pattern.permute.xlu0 0
        %4852 = vperm.xlu0 %4851, %v3760
        %v4853 = vpop.permute.xlu0 %4852
        %4856 = vset.pattern.permute.xlu0 0
        %4857 = vperm.xlu0 %4856, %v3762
        %v4858 = vpop.permute.xlu0 %4857
        %4861 = vset.pattern.permute.xlu0 0
        %4862 = vperm.xlu0 %4861, %v3764
        %v4863 = vpop.permute.xlu0 %4862
        %4866 = vset.pattern.permute.xlu0 0
        %4867 = vperm.xlu0 %4866, %v3766
        %v4868 = vpop.permute.xlu0 %4867
        %4871 = vset.pattern.permute.xlu0 0
        %4872 = vperm.xlu0 %4871, %v3768
        %v4873 = vpop.permute.xlu0 %4872
        %4876 = vset.pattern.permute.xlu0 0
        %4877 = vperm.xlu0 %4876, %v3770
        %v4878 = vpop.permute.xlu0 %4877
        %4881 = vset.pattern.permute.xlu0 0
        %4882 = vperm.xlu0 %4881, %v3772
        %v4883 = vpop.permute.xlu0 %4882
        %4886 = vset.pattern.permute.xlu0 0
        %4887 = vperm.xlu0 %4886, %v3774
        %v4888 = vpop.permute.xlu0 %4887
        %4891 = vset.pattern.permute.xlu0 0
        %4892 = vperm.xlu0 %4891, %v3776
        %v4893 = vpop.permute.xlu0 %4892
        %4896 = vset.pattern.permute.xlu0 0
        %4897 = vperm.xlu0 %4896, %v3778
        %v4898 = vpop.permute.xlu0 %4897
        %4901 = vset.pattern.permute.xlu0 0
        %4902 = vperm.xlu0 %4901, %v3780
        %v4903 = vpop.permute.xlu0 %4902
        %4906 = vset.pattern.permute.xlu0 0
        %4907 = vperm.xlu0 %4906, %v3782
        %v4908 = vpop.permute.xlu0 %4907
        %4911 = vset.pattern.permute.xlu0 0
        %4912 = vperm.xlu0 %4911, %v3784
        %v4913 = vpop.permute.xlu0 %4912
        %4916 = vset.pattern.permute.xlu0 0
        %4917 = vperm.xlu0 %4916, %v3786
        %v4918 = vpop.permute.xlu0 %4917
        %4921 = vset.pattern.permute.xlu0 0
        %4922 = vperm.xlu0 %4921, %v3788
        %v4923 = vpop.permute.xlu0 %4922
        %4926 = vset.pattern.permute.xlu0 0
        %4927 = vperm.xlu0 %4926, %v3790
        %v4928 = vpop.permute.xlu0 %4927
        %4931 = vset.pattern.permute.xlu0 0
        %4932 = vperm.xlu0 %4931, %v3792
        %v4933 = vpop.permute.xlu0 %4932
        %4936 = vset.pattern.permute.xlu0 0
        %4937 = vperm.xlu0 %4936, %v3794
        %v4938 = vpop.permute.xlu0 %4937
        %4941 = vset.pattern.permute.xlu0 0
        %4942 = vperm.xlu0 %4941, %v3796
        %v4943 = vpop.permute.xlu0 %4942
        %4946 = vset.pattern.permute.xlu0 0
        %4947 = vperm.xlu0 %4946, %v3798
        %v4948 = vpop.permute.xlu0 %4947
        %4951 = vset.pattern.permute.xlu0 0
        %4952 = vperm.xlu0 %4951, %v3800
        %v4953 = vpop.permute.xlu0 %4952
        %v4955 = vmul.f32 %v4798, %v4763
        %v4956 = vmul.f32 %v4803, %v4764
        %v4957 = vmul.f32 %v4808, %v4765
        %v4958 = vmul.f32 %v4813, %v4766
        %v4959 = vmul.f32 %v4818, %v4767
        %v4960 = vmul.f32 %v4823, %v4768
        %v4961 = vmul.f32 %v4828, %v4769
        %v4962 = vmul.f32 %v4833, %v4770
        %v4963 = vmul.f32 %v4838, %v4771
        %v4964 = vmul.f32 %v4843, %v4772
        %v4965 = vmul.f32 %v4848, %v4773
        %v4966 = vmul.f32 %v4853, %v4774
        %v4967 = vmul.f32 %v4858, %v4775
        %v4968 = vmul.f32 %v4863, %v4776
        %v4969 = vmul.f32 %v4868, %v4777
        %v4970 = vmul.f32 %v4873, %v4778
        %v4971 = vmul.f32 %v4878, %v4779
        %v4972 = vmul.f32 %v4883, %v4780
        %v4973 = vmul.f32 %v4888, %v4781
        %v4974 = vmul.f32 %v4893, %v4782
        %v4975 = vmul.f32 %v4898, %v4783
        %v4976 = vmul.f32 %v4903, %v4784
        %v4977 = vmul.f32 %v4908, %v4785
        %v4978 = vmul.f32 %v4913, %v4786
        %v4979 = vmul.f32 %v4918, %v4787
        %v4980 = vmul.f32 %v4923, %v4788
        %v4981 = vmul.f32 %v4928, %v4789
        %v4982 = vmul.f32 %v4933, %v4790
        %v4983 = vmul.f32 %v4938, %v4791
        %v4984 = vmul.f32 %v4943, %v4792
        %v4985 = vmul.f32 %v4948, %v4793
        %v4986 = vmul.f32 %v4953, %v4794
        %5019 = vrot.lane.b32.xlu0 %v4605, 64
        %v5020 = vpop.permute.xlu0 %5019
        %5021 = vrot.lane.b32.xlu0 %v4610, 64
        %v5022 = vpop.permute.xlu0 %5021
        %5023 = vrot.lane.b32.xlu0 %v4615, 64
        %v5024 = vpop.permute.xlu0 %5023
        %5025 = vrot.lane.b32.xlu0 %v4620, 64
        %v5026 = vpop.permute.xlu0 %5025
        %5027 = vrot.lane.b32.xlu0 %v4625, 64
        %v5028 = vpop.permute.xlu0 %5027
        %5029 = vrot.lane.b32.xlu0 %v4630, 64
        %v5030 = vpop.permute.xlu0 %5029
        %5031 = vrot.lane.b32.xlu0 %v4635, 64
        %v5032 = vpop.permute.xlu0 %5031
        %5033 = vrot.lane.b32.xlu0 %v4640, 64
        %v5034 = vpop.permute.xlu0 %5033
        %5035 = vrot.lane.b32.xlu0 %v4645, 64
        %v5036 = vpop.permute.xlu0 %5035
        %5037 = vrot.lane.b32.xlu0 %v4650, 64
        %v5038 = vpop.permute.xlu0 %5037
        %5039 = vrot.lane.b32.xlu0 %v4655, 64
        %v5040 = vpop.permute.xlu0 %5039
        %5041 = vrot.lane.b32.xlu0 %v4660, 64
        %v5042 = vpop.permute.xlu0 %5041
        %5043 = vrot.lane.b32.xlu0 %v4665, 64
        %v5044 = vpop.permute.xlu0 %5043
        %5045 = vrot.lane.b32.xlu0 %v4670, 64
        %v5046 = vpop.permute.xlu0 %5045
        %5047 = vrot.lane.b32.xlu0 %v4675, 64
        %v5048 = vpop.permute.xlu0 %5047
        %5049 = vrot.lane.b32.xlu0 %v4680, 64
        %v5050 = vpop.permute.xlu0 %5049
        %5051 = vrot.lane.b32.xlu0 %v4685, 64
        %v5052 = vpop.permute.xlu0 %5051
        %5053 = vrot.lane.b32.xlu0 %v4690, 64
        %v5054 = vpop.permute.xlu0 %5053
        %5055 = vrot.lane.b32.xlu0 %v4695, 64
        %v5056 = vpop.permute.xlu0 %5055
        %5057 = vrot.lane.b32.xlu0 %v4700, 64
        %v5058 = vpop.permute.xlu0 %5057
        %5059 = vrot.lane.b32.xlu0 %v4705, 64
        %v5060 = vpop.permute.xlu0 %5059
        %5061 = vrot.lane.b32.xlu0 %v4710, 64
        %v5062 = vpop.permute.xlu0 %5061
        %5063 = vrot.lane.b32.xlu0 %v4715, 64
        %v5064 = vpop.permute.xlu0 %5063
        %5065 = vrot.lane.b32.xlu0 %v4720, 64
        %v5066 = vpop.permute.xlu0 %5065
        %5067 = vrot.lane.b32.xlu0 %v4725, 64
        %v5068 = vpop.permute.xlu0 %5067
        %5069 = vrot.lane.b32.xlu0 %v4730, 64
        %v5070 = vpop.permute.xlu0 %5069
        %5071 = vrot.lane.b32.xlu0 %v4735, 64
        %v5072 = vpop.permute.xlu0 %5071
        %5073 = vrot.lane.b32.xlu0 %v4740, 64
        %v5074 = vpop.permute.xlu0 %5073
        %5075 = vrot.lane.b32.xlu0 %v4745, 64
        %v5076 = vpop.permute.xlu0 %5075
        %5077 = vrot.lane.b32.xlu0 %v4750, 64
        %v5078 = vpop.permute.xlu0 %5077
        %5079 = vrot.lane.b32.xlu0 %v4755, 64
        %v5080 = vpop.permute.xlu0 %5079
        %5081 = vrot.lane.b32.xlu0 %v4760, 64
        %v5082 = vpop.permute.xlu0 %5081
        %v5115 = vadd.f32 %v4955, %v5020
        %v5116 = vadd.f32 %v4956, %v5022
        %v5117 = vadd.f32 %v4957, %v5024
        %v5118 = vadd.f32 %v4958, %v5026
        %v5119 = vadd.f32 %v4959, %v5028
        %v5120 = vadd.f32 %v4960, %v5030
        %v5121 = vadd.f32 %v4961, %v5032
        %v5122 = vadd.f32 %v4962, %v5034
        %v5123 = vadd.f32 %v4963, %v5036
        %v5124 = vadd.f32 %v4964, %v5038
        %v5125 = vadd.f32 %v4965, %v5040
        %v5126 = vadd.f32 %v4966, %v5042
        %v5127 = vadd.f32 %v4967, %v5044
        %v5128 = vadd.f32 %v4968, %v5046
        %v5129 = vadd.f32 %v4969, %v5048
        %v5130 = vadd.f32 %v4970, %v5050
        %v5131 = vadd.f32 %v4971, %v5052
        %v5132 = vadd.f32 %v4972, %v5054
        %v5133 = vadd.f32 %v4973, %v5056
        %v5134 = vadd.f32 %v4974, %v5058
        %v5135 = vadd.f32 %v4975, %v5060
        %v5136 = vadd.f32 %v4976, %v5062
        %v5137 = vadd.f32 %v4977, %v5064
        %v5138 = vadd.f32 %v4978, %v5066
        %v5139 = vadd.f32 %v4979, %v5068
        %v5140 = vadd.f32 %v4980, %v5070
        %v5141 = vadd.f32 %v4981, %v5072
        %v5142 = vadd.f32 %v4982, %v5074
        %v5143 = vadd.f32 %v4983, %v5076
        %v5144 = vadd.f32 %v4984, %v5078
        %v5145 = vadd.f32 %v4985, %v5080
        %v5146 = vadd.f32 %v4986, %v5082
        %vm5147 = vcmask 1048064
        %5148 = vst.msk [vmem:[#allocation4] sm:$0xff] %vm5147, %v5115
        %5149 = vst.msk [vmem:[#allocation4 + $0x8] sm:$0xff] %vm5147, %v5116
        %5150 = vst.msk [vmem:[#allocation4 + $0x10] sm:$0xff] %vm5147, %v5117
        %5151 = vst.msk [vmem:[#allocation4 + $0x18] sm:$0xff] %vm5147, %v5118
        %5152 = vst.msk [vmem:[#allocation4 + $0x20] sm:$0xff] %vm5147, %v5119
        %5153 = vst.msk [vmem:[#allocation4 + $0x28] sm:$0xff] %vm5147, %v5120
        %5154 = vst.msk [vmem:[#allocation4 + $0x30] sm:$0xff] %vm5147, %v5121
        %5155 = vst.msk [vmem:[#allocation4 + $0x38] sm:$0xff] %vm5147, %v5122
        %5156 = vst.msk [vmem:[#allocation4 + $0x40] sm:$0xff] %vm5147, %v5123
        %5157 = vst.msk [vmem:[#allocation4 + $0x48] sm:$0xff] %vm5147, %v5124
        %5158 = vst.msk [vmem:[#allocation4 + $0x50] sm:$0xff] %vm5147, %v5125
        %5159 = vst.msk [vmem:[#allocation4 + $0x58] sm:$0xff] %vm5147, %v5126
        %5160 = vst.msk [vmem:[#allocation4 + $0x60] sm:$0xff] %vm5147, %v5127
        %5161 = vst.msk [vmem:[#allocation4 + $0x68] sm:$0xff] %vm5147, %v5128
        %5162 = vst.msk [vmem:[#allocation4 + $0x70] sm:$0xff] %vm5147, %v5129
        %5163 = vst.msk [vmem:[#allocation4 + $0x78] sm:$0xff] %vm5147, %v5130
        %5164 = vst.msk [vmem:[#allocation4 + $0x80] sm:$0xff] %vm5147, %v5131
        %5165 = vst.msk [vmem:[#allocation4 + $0x88] sm:$0xff] %vm5147, %v5132
        %5166 = vst.msk [vmem:[#allocation4 + $0x90] sm:$0xff] %vm5147, %v5133
        %5167 = vst.msk [vmem:[#allocation4 + $0x98] sm:$0xff] %vm5147, %v5134
        %5168 = vst.msk [vmem:[#allocation4 + $0xa0] sm:$0xff] %vm5147, %v5135
        %5169 = vst.msk [vmem:[#allocation4 + $0xa8] sm:$0xff] %vm5147, %v5136
        %5170 = vst.msk [vmem:[#allocation4 + $0xb0] sm:$0xff] %vm5147, %v5137
        %5171 = vst.msk [vmem:[#allocation4 + $0xb8] sm:$0xff] %vm5147, %v5138
        %5172 = vst.msk [vmem:[#allocation4 + $0xc0] sm:$0xff] %vm5147, %v5139
        %5173 = vst.msk [vmem:[#allocation4 + $0xc8] sm:$0xff] %vm5147, %v5140
        %5174 = vst.msk [vmem:[#allocation4 + $0xd0] sm:$0xff] %vm5147, %v5141
        %5175 = vst.msk [vmem:[#allocation4 + $0xd8] sm:$0xff] %vm5147, %v5142
        %5176 = vst.msk [vmem:[#allocation4 + $0xe0] sm:$0xff] %vm5147, %v5143
        %5177 = vst.msk [vmem:[#allocation4 + $0xe8] sm:$0xff] %vm5147, %v5144
        %5178 = vst.msk [vmem:[#allocation4 + $0xf0] sm:$0xff] %vm5147, %v5145
        %5179 = vst.msk [vmem:[#allocation4 + $0xf8] sm:$0xff] %vm5147, %v5146
        // Predicated region
        $region159: #{attention_forward.3} parent=141 // pred_check
          %p5180 = pneg %p782
        $region160: #{attention_forward.3} parent=141 // pred_check_branch
          %5182 = sbr.rel (%p5180) target = $region162
        $region161: #{attention_forward.3} parent=141 // pred_region
          %v5183 = vld [vmem:[#allocation3] sm:$0xff]
          %v5184 = vld [vmem:[#allocation3 + $0x8] sm:$0xff]
          %v5185 = vld [vmem:[#allocation3 + $0x10] sm:$0xff]
          %v5186 = vld [vmem:[#allocation3 + $0x18] sm:$0xff]
          %v5187 = vld [vmem:[#allocation3 + $0x20] sm:$0xff]
          %v5188 = vld [vmem:[#allocation3 + $0x28] sm:$0xff]
          %v5189 = vld [vmem:[#allocation3 + $0x30] sm:$0xff]
          %v5190 = vld [vmem:[#allocation3 + $0x38] sm:$0xff]
          %v5191 = vld [vmem:[#allocation3 + $0x40] sm:$0xff]
          %v5192 = vld [vmem:[#allocation3 + $0x48] sm:$0xff]
          %v5193 = vld [vmem:[#allocation3 + $0x50] sm:$0xff]
          %v5194 = vld [vmem:[#allocation3 + $0x58] sm:$0xff]
          %v5195 = vld [vmem:[#allocation3 + $0x60] sm:$0xff]
          %v5196 = vld [vmem:[#allocation3 + $0x68] sm:$0xff]
          %v5197 = vld [vmem:[#allocation3 + $0x70] sm:$0xff]
          %v5198 = vld [vmem:[#allocation3 + $0x78] sm:$0xff]
          %v5199 = vld [vmem:[#allocation3 + $0x80] sm:$0xff]
          %v5200 = vld [vmem:[#allocation3 + $0x88] sm:$0xff]
          %v5201 = vld [vmem:[#allocation3 + $0x90] sm:$0xff]
          %v5202 = vld [vmem:[#allocation3 + $0x98] sm:$0xff]
          %v5203 = vld [vmem:[#allocation3 + $0xa0] sm:$0xff]
          %v5204 = vld [vmem:[#allocation3 + $0xa8] sm:$0xff]
          %v5205 = vld [vmem:[#allocation3 + $0xb0] sm:$0xff]
          %v5206 = vld [vmem:[#allocation3 + $0xb8] sm:$0xff]
          %v5207 = vld [vmem:[#allocation3 + $0xc0] sm:$0xff]
          %v5208 = vld [vmem:[#allocation3 + $0xc8] sm:$0xff]
          %v5209 = vld [vmem:[#allocation3 + $0xd0] sm:$0xff]
          %v5210 = vld [vmem:[#allocation3 + $0xd8] sm:$0xff]
          %v5211 = vld [vmem:[#allocation3 + $0xe0] sm:$0xff]
          %v5212 = vld [vmem:[#allocation3 + $0xe8] sm:$0xff]
          %v5213 = vld [vmem:[#allocation3 + $0xf0] sm:$0xff]
          %v5214 = vld [vmem:[#allocation3 + $0xf8] sm:$0xff]
          %v5215 = vrcp.pop %v5183
          %v5216 = vrcp.pop %v5184
          %v5217 = vrcp.pop %v5185
          %v5218 = vrcp.pop %v5186
          %v5219 = vrcp.pop %v5187
          %v5220 = vrcp.pop %v5188
          %v5221 = vrcp.pop %v5189
          %v5222 = vrcp.pop %v5190
          %v5223 = vrcp.pop %v5191
          %v5224 = vrcp.pop %v5192
          %v5225 = vrcp.pop %v5193
          %v5226 = vrcp.pop %v5194
          %v5227 = vrcp.pop %v5195
          %v5228 = vrcp.pop %v5196
          %v5229 = vrcp.pop %v5197
          %v5230 = vrcp.pop %v5198
          %v5231 = vrcp.pop %v5199
          %v5232 = vrcp.pop %v5200
          %v5233 = vrcp.pop %v5201
          %v5234 = vrcp.pop %v5202
          %v5235 = vrcp.pop %v5203
          %v5236 = vrcp.pop %v5204
          %v5237 = vrcp.pop %v5205
          %v5238 = vrcp.pop %v5206
          %v5239 = vrcp.pop %v5207
          %v5240 = vrcp.pop %v5208
          %v5241 = vrcp.pop %v5209
          %v5242 = vrcp.pop %v5210
          %v5243 = vrcp.pop %v5211
          %v5244 = vrcp.pop %v5212
          %v5245 = vrcp.pop %v5213
          %v5246 = vrcp.pop %v5214
          %v5247 = vmul.f32 %v5183, %v5215
          %v5248 = vmul.f32 %v5184, %v5216
          %v5249 = vmul.f32 %v5185, %v5217
          %v5250 = vmul.f32 %v5186, %v5218
          %v5251 = vmul.f32 %v5187, %v5219
          %v5252 = vmul.f32 %v5188, %v5220
          %v5253 = vmul.f32 %v5189, %v5221
          %v5254 = vmul.f32 %v5190, %v5222
          %v5255 = vmul.f32 %v5191, %v5223
          %v5256 = vmul.f32 %v5192, %v5224
          %v5257 = vmul.f32 %v5193, %v5225
          %v5258 = vmul.f32 %v5194, %v5226
          %v5259 = vmul.f32 %v5195, %v5227
          %v5260 = vmul.f32 %v5196, %v5228
          %v5261 = vmul.f32 %v5197, %v5229
          %v5262 = vmul.f32 %v5198, %v5230
          %v5263 = vmul.f32 %v5199, %v5231
          %v5264 = vmul.f32 %v5200, %v5232
          %v5265 = vmul.f32 %v5201, %v5233
          %v5266 = vmul.f32 %v5202, %v5234
          %v5267 = vmul.f32 %v5203, %v5235
          %v5268 = vmul.f32 %v5204, %v5236
          %v5269 = vmul.f32 %v5205, %v5237
          %v5270 = vmul.f32 %v5206, %v5238
          %v5271 = vmul.f32 %v5207, %v5239
          %v5272 = vmul.f32 %v5208, %v5240
          %v5273 = vmul.f32 %v5209, %v5241
          %v5274 = vmul.f32 %v5210, %v5242
          %v5275 = vmul.f32 %v5211, %v5243
          %v5276 = vmul.f32 %v5212, %v5244
          %v5277 = vmul.f32 %v5213, %v5245
          %v5278 = vmul.f32 %v5214, %v5246
          %v5279 = vsub.f32 2.0, %v5247
          %v5280 = vsub.f32 2.0, %v5248
          %v5281 = vsub.f32 2.0, %v5249
          %v5282 = vsub.f32 2.0, %v5250
          %v5283 = vsub.f32 2.0, %v5251
          %v5284 = vsub.f32 2.0, %v5252
          %v5285 = vsub.f32 2.0, %v5253
          %v5286 = vsub.f32 2.0, %v5254
          %v5287 = vsub.f32 2.0, %v5255
          %v5288 = vsub.f32 2.0, %v5256
          %v5289 = vsub.f32 2.0, %v5257
          %v5290 = vsub.f32 2.0, %v5258
          %v5291 = vsub.f32 2.0, %v5259
          %v5292 = vsub.f32 2.0, %v5260
          %v5293 = vsub.f32 2.0, %v5261
          %v5294 = vsub.f32 2.0, %v5262
          %v5295 = vsub.f32 2.0, %v5263
          %v5296 = vsub.f32 2.0, %v5264
          %v5297 = vsub.f32 2.0, %v5265
          %v5298 = vsub.f32 2.0, %v5266
          %v5299 = vsub.f32 2.0, %v5267
          %v5300 = vsub.f32 2.0, %v5268
          %v5301 = vsub.f32 2.0, %v5269
          %v5302 = vsub.f32 2.0, %v5270
          %v5303 = vsub.f32 2.0, %v5271
          %v5304 = vsub.f32 2.0, %v5272
          %v5305 = vsub.f32 2.0, %v5273
          %v5306 = vsub.f32 2.0, %v5274
          %v5307 = vsub.f32 2.0, %v5275
          %v5308 = vsub.f32 2.0, %v5276
          %v5309 = vsub.f32 2.0, %v5277
          %v5310 = vsub.f32 2.0, %v5278
          %v5311 = vmul.f32 %v5215, %v5279
          %v5312 = vmul.f32 %v5216, %v5280
          %v5313 = vmul.f32 %v5217, %v5281
          %v5314 = vmul.f32 %v5218, %v5282
          %v5315 = vmul.f32 %v5219, %v5283
          %v5316 = vmul.f32 %v5220, %v5284
          %v5317 = vmul.f32 %v5221, %v5285
          %v5318 = vmul.f32 %v5222, %v5286
          %v5319 = vmul.f32 %v5223, %v5287
          %v5320 = vmul.f32 %v5224, %v5288
          %v5321 = vmul.f32 %v5225, %v5289
          %v5322 = vmul.f32 %v5226, %v5290
          %v5323 = vmul.f32 %v5227, %v5291
          %v5324 = vmul.f32 %v5228, %v5292
          %v5325 = vmul.f32 %v5229, %v5293
          %v5326 = vmul.f32 %v5230, %v5294
          %v5327 = vmul.f32 %v5231, %v5295
          %v5328 = vmul.f32 %v5232, %v5296
          %v5329 = vmul.f32 %v5233, %v5297
          %v5330 = vmul.f32 %v5234, %v5298
          %v5331 = vmul.f32 %v5235, %v5299
          %v5332 = vmul.f32 %v5236, %v5300
          %v5333 = vmul.f32 %v5237, %v5301
          %v5334 = vmul.f32 %v5238, %v5302
          %v5335 = vmul.f32 %v5239, %v5303
          %v5336 = vmul.f32 %v5240, %v5304
          %v5337 = vmul.f32 %v5241, %v5305
          %v5338 = vmul.f32 %v5242, %v5306
          %v5339 = vmul.f32 %v5243, %v5307
          %v5340 = vmul.f32 %v5244, %v5308
          %v5341 = vmul.f32 %v5245, %v5309
          %v5342 = vmul.f32 %v5246, %v5310
          %v5343 = vld [vmem:[#allocation4] sm:$0xff]
          %v5344 = vld [vmem:[#allocation4 + $0x8] sm:$0xff]
          %v5345 = vld [vmem:[#allocation4 + $0x10] sm:$0xff]
          %v5346 = vld [vmem:[#allocation4 + $0x18] sm:$0xff]
          %v5347 = vld [vmem:[#allocation4 + $0x20] sm:$0xff]
          %v5348 = vld [vmem:[#allocation4 + $0x28] sm:$0xff]
          %v5349 = vld [vmem:[#allocation4 + $0x30] sm:$0xff]
          %v5350 = vld [vmem:[#allocation4 + $0x38] sm:$0xff]
          %v5351 = vld [vmem:[#allocation4 + $0x40] sm:$0xff]
          %v5352 = vld [vmem:[#allocation4 + $0x48] sm:$0xff]
          %v5353 = vld [vmem:[#allocation4 + $0x50] sm:$0xff]
          %v5354 = vld [vmem:[#allocation4 + $0x58] sm:$0xff]
          %v5355 = vld [vmem:[#allocation4 + $0x60] sm:$0xff]
          %v5356 = vld [vmem:[#allocation4 + $0x68] sm:$0xff]
          %v5357 = vld [vmem:[#allocation4 + $0x70] sm:$0xff]
          %v5358 = vld [vmem:[#allocation4 + $0x78] sm:$0xff]
          %v5359 = vld [vmem:[#allocation4 + $0x80] sm:$0xff]
          %v5360 = vld [vmem:[#allocation4 + $0x88] sm:$0xff]
          %v5361 = vld [vmem:[#allocation4 + $0x90] sm:$0xff]
          %v5362 = vld [vmem:[#allocation4 + $0x98] sm:$0xff]
          %v5363 = vld [vmem:[#allocation4 + $0xa0] sm:$0xff]
          %v5364 = vld [vmem:[#allocation4 + $0xa8] sm:$0xff]
          %v5365 = vld [vmem:[#allocation4 + $0xb0] sm:$0xff]
          %v5366 = vld [vmem:[#allocation4 + $0xb8] sm:$0xff]
          %v5367 = vld [vmem:[#allocation4 + $0xc0] sm:$0xff]
          %v5368 = vld [vmem:[#allocation4 + $0xc8] sm:$0xff]
          %v5369 = vld [vmem:[#allocation4 + $0xd0] sm:$0xff]
          %v5370 = vld [vmem:[#allocation4 + $0xd8] sm:$0xff]
          %v5371 = vld [vmem:[#allocation4 + $0xe0] sm:$0xff]
          %v5372 = vld [vmem:[#allocation4 + $0xe8] sm:$0xff]
          %v5373 = vld [vmem:[#allocation4 + $0xf0] sm:$0xff]
          %v5374 = vld [vmem:[#allocation4 + $0xf8] sm:$0xff]
          %5376 = vset.pattern.permute.xlu0 0
          %5377 = vperm.xlu0 %5376, %v5311
          %v5378 = vpop.permute.xlu0 %5377
          %5381 = vset.pattern.permute.xlu0 0
          %5382 = vperm.xlu0 %5381, %v5312
          %v5383 = vpop.permute.xlu0 %5382
          %5386 = vset.pattern.permute.xlu0 0
          %5387 = vperm.xlu0 %5386, %v5313
          %v5388 = vpop.permute.xlu0 %5387
          %5391 = vset.pattern.permute.xlu0 0
          %5392 = vperm.xlu0 %5391, %v5314
          %v5393 = vpop.permute.xlu0 %5392
          %5396 = vset.pattern.permute.xlu0 0
          %5397 = vperm.xlu0 %5396, %v5315
          %v5398 = vpop.permute.xlu0 %5397
          %5401 = vset.pattern.permute.xlu0 0
          %5402 = vperm.xlu0 %5401, %v5316
          %v5403 = vpop.permute.xlu0 %5402
          %5406 = vset.pattern.permute.xlu0 0
          %5407 = vperm.xlu0 %5406, %v5317
          %v5408 = vpop.permute.xlu0 %5407
          %5411 = vset.pattern.permute.xlu0 0
          %5412 = vperm.xlu0 %5411, %v5318
          %v5413 = vpop.permute.xlu0 %5412
          %5416 = vset.pattern.permute.xlu0 0
          %5417 = vperm.xlu0 %5416, %v5319
          %v5418 = vpop.permute.xlu0 %5417
          %5421 = vset.pattern.permute.xlu0 0
          %5422 = vperm.xlu0 %5421, %v5320
          %v5423 = vpop.permute.xlu0 %5422
          %5426 = vset.pattern.permute.xlu0 0
          %5427 = vperm.xlu0 %5426, %v5321
          %v5428 = vpop.permute.xlu0 %5427
          %5431 = vset.pattern.permute.xlu0 0
          %5432 = vperm.xlu0 %5431, %v5322
          %v5433 = vpop.permute.xlu0 %5432
          %5436 = vset.pattern.permute.xlu0 0
          %5437 = vperm.xlu0 %5436, %v5323
          %v5438 = vpop.permute.xlu0 %5437
          %5441 = vset.pattern.permute.xlu0 0
          %5442 = vperm.xlu0 %5441, %v5324
          %v5443 = vpop.permute.xlu0 %5442
          %5446 = vset.pattern.permute.xlu0 0
          %5447 = vperm.xlu0 %5446, %v5325
          %v5448 = vpop.permute.xlu0 %5447
          %5451 = vset.pattern.permute.xlu0 0
          %5452 = vperm.xlu0 %5451, %v5326
          %v5453 = vpop.permute.xlu0 %5452
          %5456 = vset.pattern.permute.xlu0 0
          %5457 = vperm.xlu0 %5456, %v5327
          %v5458 = vpop.permute.xlu0 %5457
          %5461 = vset.pattern.permute.xlu0 0
          %5462 = vperm.xlu0 %5461, %v5328
          %v5463 = vpop.permute.xlu0 %5462
          %5466 = vset.pattern.permute.xlu0 0
          %5467 = vperm.xlu0 %5466, %v5329
          %v5468 = vpop.permute.xlu0 %5467
          %5471 = vset.pattern.permute.xlu0 0
          %5472 = vperm.xlu0 %5471, %v5330
          %v5473 = vpop.permute.xlu0 %5472
          %5476 = vset.pattern.permute.xlu0 0
          %5477 = vperm.xlu0 %5476, %v5331
          %v5478 = vpop.permute.xlu0 %5477
          %5481 = vset.pattern.permute.xlu0 0
          %5482 = vperm.xlu0 %5481, %v5332
          %v5483 = vpop.permute.xlu0 %5482
          %5486 = vset.pattern.permute.xlu0 0
          %5487 = vperm.xlu0 %5486, %v5333
          %v5488 = vpop.permute.xlu0 %5487
          %5491 = vset.pattern.permute.xlu0 0
          %5492 = vperm.xlu0 %5491, %v5334
          %v5493 = vpop.permute.xlu0 %5492
          %5496 = vset.pattern.permute.xlu0 0
          %5497 = vperm.xlu0 %5496, %v5335
          %v5498 = vpop.permute.xlu0 %5497
          %5501 = vset.pattern.permute.xlu0 0
          %5502 = vperm.xlu0 %5501, %v5336
          %v5503 = vpop.permute.xlu0 %5502
          %5506 = vset.pattern.permute.xlu0 0
          %5507 = vperm.xlu0 %5506, %v5337
          %v5508 = vpop.permute.xlu0 %5507
          %5511 = vset.pattern.permute.xlu0 0
          %5512 = vperm.xlu0 %5511, %v5338
          %v5513 = vpop.permute.xlu0 %5512
          %5516 = vset.pattern.permute.xlu0 0
          %5517 = vperm.xlu0 %5516, %v5339
          %v5518 = vpop.permute.xlu0 %5517
          %5521 = vset.pattern.permute.xlu0 0
          %5522 = vperm.xlu0 %5521, %v5340
          %v5523 = vpop.permute.xlu0 %5522
          %5526 = vset.pattern.permute.xlu0 0
          %5527 = vperm.xlu0 %5526, %v5341
          %v5528 = vpop.permute.xlu0 %5527
          %5531 = vset.pattern.permute.xlu0 0
          %5532 = vperm.xlu0 %5531, %v5342
          %v5533 = vpop.permute.xlu0 %5532
          %v5535 = vmul.f32 %v5343, %v5378
          %v5536 = vmul.f32 %v5344, %v5383
          %v5537 = vmul.f32 %v5345, %v5388
          %v5538 = vmul.f32 %v5346, %v5393
          %v5539 = vmul.f32 %v5347, %v5398
          %v5540 = vmul.f32 %v5348, %v5403
          %v5541 = vmul.f32 %v5349, %v5408
          %v5542 = vmul.f32 %v5350, %v5413
          %v5543 = vmul.f32 %v5351, %v5418
          %v5544 = vmul.f32 %v5352, %v5423
          %v5545 = vmul.f32 %v5353, %v5428
          %v5546 = vmul.f32 %v5354, %v5433
          %v5547 = vmul.f32 %v5355, %v5438
          %v5548 = vmul.f32 %v5356, %v5443
          %v5549 = vmul.f32 %v5357, %v5448
          %v5550 = vmul.f32 %v5358, %v5453
          %v5551 = vmul.f32 %v5359, %v5458
          %v5552 = vmul.f32 %v5360, %v5463
          %v5553 = vmul.f32 %v5361, %v5468
          %v5554 = vmul.f32 %v5362, %v5473
          %v5555 = vmul.f32 %v5363, %v5478
          %v5556 = vmul.f32 %v5364, %v5483
          %v5557 = vmul.f32 %v5365, %v5488
          %v5558 = vmul.f32 %v5366, %v5493
          %v5559 = vmul.f32 %v5367, %v5498
          %v5560 = vmul.f32 %v5368, %v5503
          %v5561 = vmul.f32 %v5369, %v5508
          %v5562 = vmul.f32 %v5370, %v5513
          %v5563 = vmul.f32 %v5371, %v5518
          %v5564 = vmul.f32 %v5372, %v5523
          %v5565 = vmul.f32 %v5373, %v5528
          %v5566 = vmul.f32 %v5374, %v5533
          %5567 = vst.msk [vmem:[#allocation4] sm:$0xff] %vm1043, %v5535
          %5568 = vst.msk [vmem:[#allocation4 + $0x8] sm:$0xff] %vm1043, %v5536
          %5569 = vst.msk [vmem:[#allocation4 + $0x10] sm:$0xff] %vm1043, %v5537
          %5570 = vst.msk [vmem:[#allocation4 + $0x18] sm:$0xff] %vm1043, %v5538
          %5571 = vst.msk [vmem:[#allocation4 + $0x20] sm:$0xff] %vm1043, %v5539
          %5572 = vst.msk [vmem:[#allocation4 + $0x28] sm:$0xff] %vm1043, %v5540
          %5573 = vst.msk [vmem:[#allocation4 + $0x30] sm:$0xff] %vm1043, %v5541
          %5574 = vst.msk [vmem:[#allocation4 + $0x38] sm:$0xff] %vm1043, %v5542
          %5575 = vst.msk [vmem:[#allocation4 + $0x40] sm:$0xff] %vm1043, %v5543
          %5576 = vst.msk [vmem:[#allocation4 + $0x48] sm:$0xff] %vm1043, %v5544
          %5577 = vst.msk [vmem:[#allocation4 + $0x50] sm:$0xff] %vm1043, %v5545
          %5578 = vst.msk [vmem:[#allocation4 + $0x58] sm:$0xff] %vm1043, %v5546
          %5579 = vst.msk [vmem:[#allocation4 + $0x60] sm:$0xff] %vm1043, %v5547
          %5580 = vst.msk [vmem:[#allocation4 + $0x68] sm:$0xff] %vm1043, %v5548
          %5581 = vst.msk [vmem:[#allocation4 + $0x70] sm:$0xff] %vm1043, %v5549
          %5582 = vst.msk [vmem:[#allocation4 + $0x78] sm:$0xff] %vm1043, %v5550
          %5583 = vst.msk [vmem:[#allocation4 + $0x80] sm:$0xff] %vm1043, %v5551
          %5584 = vst.msk [vmem:[#allocation4 + $0x88] sm:$0xff] %vm1043, %v5552
          %5585 = vst.msk [vmem:[#allocation4 + $0x90] sm:$0xff] %vm1043, %v5553
          %5586 = vst.msk [vmem:[#allocation4 + $0x98] sm:$0xff] %vm1043, %v5554
          %5587 = vst.msk [vmem:[#allocation4 + $0xa0] sm:$0xff] %vm1043, %v5555
          %5588 = vst.msk [vmem:[#allocation4 + $0xa8] sm:$0xff] %vm1043, %v5556
          %5589 = vst.msk [vmem:[#allocation4 + $0xb0] sm:$0xff] %vm1043, %v5557
          %5590 = vst.msk [vmem:[#allocation4 + $0xb8] sm:$0xff] %vm1043, %v5558
          %5591 = vst.msk [vmem:[#allocation4 + $0xc0] sm:$0xff] %vm1043, %v5559
          %5592 = vst.msk [vmem:[#allocation4 + $0xc8] sm:$0xff] %vm1043, %v5560
          %5593 = vst.msk [vmem:[#allocation4 + $0xd0] sm:$0xff] %vm1043, %v5561
          %5594 = vst.msk [vmem:[#allocation4 + $0xd8] sm:$0xff] %vm1043, %v5562
          %5595 = vst.msk [vmem:[#allocation4 + $0xe0] sm:$0xff] %vm1043, %v5563
          %5596 = vst.msk [vmem:[#allocation4 + $0xe8] sm:$0xff] %vm1043, %v5564
          %5597 = vst.msk [vmem:[#allocation4 + $0xf0] sm:$0xff] %vm1043, %v5565
          %5598 = vst.msk [vmem:[#allocation4 + $0xf8] sm:$0xff] %vm1043, %v5566
          %v5599 = vld [vmem:[%s4153] sm:$0xff]
          %v5600 = vld [vmem:[%s4153 + $0x8] sm:$0xff]
          %v5601 = vld [vmem:[%s4153 + $0x10] sm:$0xff]
          %v5602 = vld [vmem:[%s4153 + $0x18] sm:$0xff]
          %v5603 = vld [vmem:[%s4153 + $0x20] sm:$0xff]
          %v5604 = vld [vmem:[%s4153 + $0x28] sm:$0xff]
          %v5605 = vld [vmem:[%s4153 + $0x30] sm:$0xff]
          %v5606 = vld [vmem:[%s4153 + $0x38] sm:$0xff]
          %v5607 = vld [vmem:[%s4153 + $0x40] sm:$0xff]
          %v5608 = vld [vmem:[%s4153 + $0x48] sm:$0xff]
          %v5609 = vld [vmem:[%s4153 + $0x50] sm:$0xff]
          %v5610 = vld [vmem:[%s4153 + $0x58] sm:$0xff]
          %v5611 = vld [vmem:[%s4153 + $0x60] sm:$0xff]
          %v5612 = vld [vmem:[%s4153 + $0x68] sm:$0xff]
          %v5613 = vld [vmem:[%s4153 + $0x70] sm:$0xff]
          %v5614 = vld [vmem:[%s4153 + $0x78] sm:$0xff]
          %v5615 = vld [vmem:[%s4153 + $0x80] sm:$0xff]
          %v5616 = vld [vmem:[%s4153 + $0x88] sm:$0xff]
          %v5617 = vld [vmem:[%s4153 + $0x90] sm:$0xff]
          %v5618 = vld [vmem:[%s4153 + $0x98] sm:$0xff]
          %v5619 = vld [vmem:[%s4153 + $0xa0] sm:$0xff]
          %v5620 = vld [vmem:[%s4153 + $0xa8] sm:$0xff]
          %v5621 = vld [vmem:[%s4153 + $0xb0] sm:$0xff]
          %v5622 = vld [vmem:[%s4153 + $0xb8] sm:$0xff]
          %v5623 = vld [vmem:[%s4153 + $0xc0] sm:$0xff]
          %v5624 = vld [vmem:[%s4153 + $0xc8] sm:$0xff]
          %v5625 = vld [vmem:[%s4153 + $0xd0] sm:$0xff]
          %v5626 = vld [vmem:[%s4153 + $0xd8] sm:$0xff]
          %v5627 = vld [vmem:[%s4153 + $0xe0] sm:$0xff]
          %v5628 = vld [vmem:[%s4153 + $0xe8] sm:$0xff]
          %v5629 = vld [vmem:[%s4153 + $0xf0] sm:$0xff]
          %v5630 = vld [vmem:[%s4153 + $0xf8] sm:$0xff]
          %v5631 = vrcp.pop %v5599
          %v5632 = vrcp.pop %v5600
          %v5633 = vrcp.pop %v5601
          %v5634 = vrcp.pop %v5602
          %v5635 = vrcp.pop %v5603
          %v5636 = vrcp.pop %v5604
          %v5637 = vrcp.pop %v5605
          %v5638 = vrcp.pop %v5606
          %v5639 = vrcp.pop %v5607
          %v5640 = vrcp.pop %v5608
          %v5641 = vrcp.pop %v5609
          %v5642 = vrcp.pop %v5610
          %v5643 = vrcp.pop %v5611
          %v5644 = vrcp.pop %v5612
          %v5645 = vrcp.pop %v5613
          %v5646 = vrcp.pop %v5614
          %v5647 = vrcp.pop %v5615
          %v5648 = vrcp.pop %v5616
          %v5649 = vrcp.pop %v5617
          %v5650 = vrcp.pop %v5618
          %v5651 = vrcp.pop %v5619
          %v5652 = vrcp.pop %v5620
          %v5653 = vrcp.pop %v5621
          %v5654 = vrcp.pop %v5622
          %v5655 = vrcp.pop %v5623
          %v5656 = vrcp.pop %v5624
          %v5657 = vrcp.pop %v5625
          %v5658 = vrcp.pop %v5626
          %v5659 = vrcp.pop %v5627
          %v5660 = vrcp.pop %v5628
          %v5661 = vrcp.pop %v5629
          %v5662 = vrcp.pop %v5630
          %v5663 = vmul.f32 %v5599, %v5631
          %v5664 = vmul.f32 %v5600, %v5632
          %v5665 = vmul.f32 %v5601, %v5633
          %v5666 = vmul.f32 %v5602, %v5634
          %v5667 = vmul.f32 %v5603, %v5635
          %v5668 = vmul.f32 %v5604, %v5636
          %v5669 = vmul.f32 %v5605, %v5637
          %v5670 = vmul.f32 %v5606, %v5638
          %v5671 = vmul.f32 %v5607, %v5639
          %v5672 = vmul.f32 %v5608, %v5640
          %v5673 = vmul.f32 %v5609, %v5641
          %v5674 = vmul.f32 %v5610, %v5642
          %v5675 = vmul.f32 %v5611, %v5643
          %v5676 = vmul.f32 %v5612, %v5644
          %v5677 = vmul.f32 %v5613, %v5645
          %v5678 = vmul.f32 %v5614, %v5646
          %v5679 = vmul.f32 %v5615, %v5647
          %v5680 = vmul.f32 %v5616, %v5648
          %v5681 = vmul.f32 %v5617, %v5649
          %v5682 = vmul.f32 %v5618, %v5650
          %v5683 = vmul.f32 %v5619, %v5651
          %v5684 = vmul.f32 %v5620, %v5652
          %v5685 = vmul.f32 %v5621, %v5653
          %v5686 = vmul.f32 %v5622, %v5654
          %v5687 = vmul.f32 %v5623, %v5655
          %v5688 = vmul.f32 %v5624, %v5656
          %v5689 = vmul.f32 %v5625, %v5657
          %v5690 = vmul.f32 %v5626, %v5658
          %v5691 = vmul.f32 %v5627, %v5659
          %v5692 = vmul.f32 %v5628, %v5660
          %v5693 = vmul.f32 %v5629, %v5661
          %v5694 = vmul.f32 %v5630, %v5662
          %v5695 = vsub.f32 2.0, %v5663
          %v5696 = vsub.f32 2.0, %v5664
          %v5697 = vsub.f32 2.0, %v5665
          %v5698 = vsub.f32 2.0, %v5666
          %v5699 = vsub.f32 2.0, %v5667
          %v5700 = vsub.f32 2.0, %v5668
          %v5701 = vsub.f32 2.0, %v5669
          %v5702 = vsub.f32 2.0, %v5670
          %v5703 = vsub.f32 2.0, %v5671
          %v5704 = vsub.f32 2.0, %v5672
          %v5705 = vsub.f32 2.0, %v5673
          %v5706 = vsub.f32 2.0, %v5674
          %v5707 = vsub.f32 2.0, %v5675
          %v5708 = vsub.f32 2.0, %v5676
          %v5709 = vsub.f32 2.0, %v5677
          %v5710 = vsub.f32 2.0, %v5678
          %v5711 = vsub.f32 2.0, %v5679
          %v5712 = vsub.f32 2.0, %v5680
          %v5713 = vsub.f32 2.0, %v5681
          %v5714 = vsub.f32 2.0, %v5682
          %v5715 = vsub.f32 2.0, %v5683
          %v5716 = vsub.f32 2.0, %v5684
          %v5717 = vsub.f32 2.0, %v5685
          %v5718 = vsub.f32 2.0, %v5686
          %v5719 = vsub.f32 2.0, %v5687
          %v5720 = vsub.f32 2.0, %v5688
          %v5721 = vsub.f32 2.0, %v5689
          %v5722 = vsub.f32 2.0, %v5690
          %v5723 = vsub.f32 2.0, %v5691
          %v5724 = vsub.f32 2.0, %v5692
          %v5725 = vsub.f32 2.0, %v5693
          %v5726 = vsub.f32 2.0, %v5694
          %v5727 = vmul.f32 %v5631, %v5695
          %v5728 = vmul.f32 %v5632, %v5696
          %v5729 = vmul.f32 %v5633, %v5697
          %v5730 = vmul.f32 %v5634, %v5698
          %v5731 = vmul.f32 %v5635, %v5699
          %v5732 = vmul.f32 %v5636, %v5700
          %v5733 = vmul.f32 %v5637, %v5701
          %v5734 = vmul.f32 %v5638, %v5702
          %v5735 = vmul.f32 %v5639, %v5703
          %v5736 = vmul.f32 %v5640, %v5704
          %v5737 = vmul.f32 %v5641, %v5705
          %v5738 = vmul.f32 %v5642, %v5706
          %v5739 = vmul.f32 %v5643, %v5707
          %v5740 = vmul.f32 %v5644, %v5708
          %v5741 = vmul.f32 %v5645, %v5709
          %v5742 = vmul.f32 %v5646, %v5710
          %v5743 = vmul.f32 %v5647, %v5711
          %v5744 = vmul.f32 %v5648, %v5712
          %v5745 = vmul.f32 %v5649, %v5713
          %v5746 = vmul.f32 %v5650, %v5714
          %v5747 = vmul.f32 %v5651, %v5715
          %v5748 = vmul.f32 %v5652, %v5716
          %v5749 = vmul.f32 %v5653, %v5717
          %v5750 = vmul.f32 %v5654, %v5718
          %v5751 = vmul.f32 %v5655, %v5719
          %v5752 = vmul.f32 %v5656, %v5720
          %v5753 = vmul.f32 %v5657, %v5721
          %v5754 = vmul.f32 %v5658, %v5722
          %v5755 = vmul.f32 %v5659, %v5723
          %v5756 = vmul.f32 %v5660, %v5724
          %v5757 = vmul.f32 %v5661, %v5725
          %v5758 = vmul.f32 %v5662, %v5726
          %v5759 = vld [vmem:[#allocation4] sm:$0xff]
          %v5760 = vld [vmem:[#allocation4 + $0x8] sm:$0xff]
          %v5761 = vld [vmem:[#allocation4 + $0x10] sm:$0xff]
          %v5762 = vld [vmem:[#allocation4 + $0x18] sm:$0xff]
          %v5763 = vld [vmem:[#allocation4 + $0x20] sm:$0xff]
          %v5764 = vld [vmem:[#allocation4 + $0x28] sm:$0xff]
          %v5765 = vld [vmem:[#allocation4 + $0x30] sm:$0xff]
          %v5766 = vld [vmem:[#allocation4 + $0x38] sm:$0xff]
          %v5767 = vld [vmem:[#allocation4 + $0x40] sm:$0xff]
          %v5768 = vld [vmem:[#allocation4 + $0x48] sm:$0xff]
          %v5769 = vld [vmem:[#allocation4 + $0x50] sm:$0xff]
          %v5770 = vld [vmem:[#allocation4 + $0x58] sm:$0xff]
          %v5771 = vld [vmem:[#allocation4 + $0x60] sm:$0xff]
          %v5772 = vld [vmem:[#allocation4 + $0x68] sm:$0xff]
          %v5773 = vld [vmem:[#allocation4 + $0x70] sm:$0xff]
          %v5774 = vld [vmem:[#allocation4 + $0x78] sm:$0xff]
          %v5775 = vld [vmem:[#allocation4 + $0x80] sm:$0xff]
          %v5776 = vld [vmem:[#allocation4 + $0x88] sm:$0xff]
          %v5777 = vld [vmem:[#allocation4 + $0x90] sm:$0xff]
          %v5778 = vld [vmem:[#allocation4 + $0x98] sm:$0xff]
          %v5779 = vld [vmem:[#allocation4 + $0xa0] sm:$0xff]
          %v5780 = vld [vmem:[#allocation4 + $0xa8] sm:$0xff]
          %v5781 = vld [vmem:[#allocation4 + $0xb0] sm:$0xff]
          %v5782 = vld [vmem:[#allocation4 + $0xb8] sm:$0xff]
          %v5783 = vld [vmem:[#allocation4 + $0xc0] sm:$0xff]
          %v5784 = vld [vmem:[#allocation4 + $0xc8] sm:$0xff]
          %v5785 = vld [vmem:[#allocation4 + $0xd0] sm:$0xff]
          %v5786 = vld [vmem:[#allocation4 + $0xd8] sm:$0xff]
          %v5787 = vld [vmem:[#allocation4 + $0xe0] sm:$0xff]
          %v5788 = vld [vmem:[#allocation4 + $0xe8] sm:$0xff]
          %v5789 = vld [vmem:[#allocation4 + $0xf0] sm:$0xff]
          %v5790 = vld [vmem:[#allocation4 + $0xf8] sm:$0xff]
          %5792 = vset.pattern.permute.xlu0 0
          %5793 = vperm.xlu0 %5792, %v5727
          %v5794 = vpop.permute.xlu0 %5793
          %5797 = vset.pattern.permute.xlu0 0
          %5798 = vperm.xlu0 %5797, %v5728
          %v5799 = vpop.permute.xlu0 %5798
          %5802 = vset.pattern.permute.xlu0 0
          %5803 = vperm.xlu0 %5802, %v5729
          %v5804 = vpop.permute.xlu0 %5803
          %5807 = vset.pattern.permute.xlu0 0
          %5808 = vperm.xlu0 %5807, %v5730
          %v5809 = vpop.permute.xlu0 %5808
          %5812 = vset.pattern.permute.xlu0 0
          %5813 = vperm.xlu0 %5812, %v5731
          %v5814 = vpop.permute.xlu0 %5813
          %5817 = vset.pattern.permute.xlu0 0
          %5818 = vperm.xlu0 %5817, %v5732
          %v5819 = vpop.permute.xlu0 %5818
          %5822 = vset.pattern.permute.xlu0 0
          %5823 = vperm.xlu0 %5822, %v5733
          %v5824 = vpop.permute.xlu0 %5823
          %5827 = vset.pattern.permute.xlu0 0
          %5828 = vperm.xlu0 %5827, %v5734
          %v5829 = vpop.permute.xlu0 %5828
          %5832 = vset.pattern.permute.xlu0 0
          %5833 = vperm.xlu0 %5832, %v5735
          %v5834 = vpop.permute.xlu0 %5833
          %5837 = vset.pattern.permute.xlu0 0
          %5838 = vperm.xlu0 %5837, %v5736
          %v5839 = vpop.permute.xlu0 %5838
          %5842 = vset.pattern.permute.xlu0 0
          %5843 = vperm.xlu0 %5842, %v5737
          %v5844 = vpop.permute.xlu0 %5843
          %5847 = vset.pattern.permute.xlu0 0
          %5848 = vperm.xlu0 %5847, %v5738
          %v5849 = vpop.permute.xlu0 %5848
          %5852 = vset.pattern.permute.xlu0 0
          %5853 = vperm.xlu0 %5852, %v5739
          %v5854 = vpop.permute.xlu0 %5853
          %5857 = vset.pattern.permute.xlu0 0
          %5858 = vperm.xlu0 %5857, %v5740
          %v5859 = vpop.permute.xlu0 %5858
          %5862 = vset.pattern.permute.xlu0 0
          %5863 = vperm.xlu0 %5862, %v5741
          %v5864 = vpop.permute.xlu0 %5863
          %5867 = vset.pattern.permute.xlu0 0
          %5868 = vperm.xlu0 %5867, %v5742
          %v5869 = vpop.permute.xlu0 %5868
          %5872 = vset.pattern.permute.xlu0 0
          %5873 = vperm.xlu0 %5872, %v5743
          %v5874 = vpop.permute.xlu0 %5873
          %5877 = vset.pattern.permute.xlu0 0
          %5878 = vperm.xlu0 %5877, %v5744
          %v5879 = vpop.permute.xlu0 %5878
          %5882 = vset.pattern.permute.xlu0 0
          %5883 = vperm.xlu0 %5882, %v5745
          %v5884 = vpop.permute.xlu0 %5883
          %5887 = vset.pattern.permute.xlu0 0
          %5888 = vperm.xlu0 %5887, %v5746
          %v5889 = vpop.permute.xlu0 %5888
          %5892 = vset.pattern.permute.xlu0 0
          %5893 = vperm.xlu0 %5892, %v5747
          %v5894 = vpop.permute.xlu0 %5893
          %5897 = vset.pattern.permute.xlu0 0
          %5898 = vperm.xlu0 %5897, %v5748
          %v5899 = vpop.permute.xlu0 %5898
          %5902 = vset.pattern.permute.xlu0 0
          %5903 = vperm.xlu0 %5902, %v5749
          %v5904 = vpop.permute.xlu0 %5903
          %5907 = vset.pattern.permute.xlu0 0
          %5908 = vperm.xlu0 %5907, %v5750
          %v5909 = vpop.permute.xlu0 %5908
          %5912 = vset.pattern.permute.xlu0 0
          %5913 = vperm.xlu0 %5912, %v5751
          %v5914 = vpop.permute.xlu0 %5913
          %5917 = vset.pattern.permute.xlu0 0
          %5918 = vperm.xlu0 %5917, %v5752
          %v5919 = vpop.permute.xlu0 %5918
          %5922 = vset.pattern.permute.xlu0 0
          %5923 = vperm.xlu0 %5922, %v5753
          %v5924 = vpop.permute.xlu0 %5923
          %5927 = vset.pattern.permute.xlu0 0
          %5928 = vperm.xlu0 %5927, %v5754
          %v5929 = vpop.permute.xlu0 %5928
          %5932 = vset.pattern.permute.xlu0 0
          %5933 = vperm.xlu0 %5932, %v5755
          %v5934 = vpop.permute.xlu0 %5933
          %5937 = vset.pattern.permute.xlu0 0
          %5938 = vperm.xlu0 %5937, %v5756
          %v5939 = vpop.permute.xlu0 %5938
          %5942 = vset.pattern.permute.xlu0 0
          %5943 = vperm.xlu0 %5942, %v5757
          %v5944 = vpop.permute.xlu0 %5943
          %5947 = vset.pattern.permute.xlu0 0
          %5948 = vperm.xlu0 %5947, %v5758
          %v5949 = vpop.permute.xlu0 %5948
          %v5951 = vmul.f32 %v5759, %v5794
          %v5952 = vmul.f32 %v5760, %v5799
          %v5953 = vmul.f32 %v5761, %v5804
          %v5954 = vmul.f32 %v5762, %v5809
          %v5955 = vmul.f32 %v5763, %v5814
          %v5956 = vmul.f32 %v5764, %v5819
          %v5957 = vmul.f32 %v5765, %v5824
          %v5958 = vmul.f32 %v5766, %v5829
          %v5959 = vmul.f32 %v5767, %v5834
          %v5960 = vmul.f32 %v5768, %v5839
          %v5961 = vmul.f32 %v5769, %v5844
          %v5962 = vmul.f32 %v5770, %v5849
          %v5963 = vmul.f32 %v5771, %v5854
          %v5964 = vmul.f32 %v5772, %v5859
          %v5965 = vmul.f32 %v5773, %v5864
          %v5966 = vmul.f32 %v5774, %v5869
          %v5967 = vmul.f32 %v5775, %v5874
          %v5968 = vmul.f32 %v5776, %v5879
          %v5969 = vmul.f32 %v5777, %v5884
          %v5970 = vmul.f32 %v5778, %v5889
          %v5971 = vmul.f32 %v5779, %v5894
          %v5972 = vmul.f32 %v5780, %v5899
          %v5973 = vmul.f32 %v5781, %v5904
          %v5974 = vmul.f32 %v5782, %v5909
          %v5975 = vmul.f32 %v5783, %v5914
          %v5976 = vmul.f32 %v5784, %v5919
          %v5977 = vmul.f32 %v5785, %v5924
          %v5978 = vmul.f32 %v5786, %v5929
          %v5979 = vmul.f32 %v5787, %v5934
          %v5980 = vmul.f32 %v5788, %v5939
          %v5981 = vmul.f32 %v5789, %v5944
          %v5982 = vmul.f32 %v5790, %v5949
          %5983 = vst.msk [vmem:[#allocation4] sm:$0xff] %vm5147, %v5951
          %5984 = vst.msk [vmem:[#allocation4 + $0x8] sm:$0xff] %vm5147, %v5952
          %5985 = vst.msk [vmem:[#allocation4 + $0x10] sm:$0xff] %vm5147, %v5953
          %5986 = vst.msk [vmem:[#allocation4 + $0x18] sm:$0xff] %vm5147, %v5954
          %5987 = vst.msk [vmem:[#allocation4 + $0x20] sm:$0xff] %vm5147, %v5955
          %5988 = vst.msk [vmem:[#allocation4 + $0x28] sm:$0xff] %vm5147, %v5956
          %5989 = vst.msk [vmem:[#allocation4 + $0x30] sm:$0xff] %vm5147, %v5957
          %5990 = vst.msk [vmem:[#allocation4 + $0x38] sm:$0xff] %vm5147, %v5958
          %5991 = vst.msk [vmem:[#allocation4 + $0x40] sm:$0xff] %vm5147, %v5959
          %5992 = vst.msk [vmem:[#allocation4 + $0x48] sm:$0xff] %vm5147, %v5960
          %5993 = vst.msk [vmem:[#allocation4 + $0x50] sm:$0xff] %vm5147, %v5961
          %5994 = vst.msk [vmem:[#allocation4 + $0x58] sm:$0xff] %vm5147, %v5962
          %5995 = vst.msk [vmem:[#allocation4 + $0x60] sm:$0xff] %vm5147, %v5963
          %5996 = vst.msk [vmem:[#allocation4 + $0x68] sm:$0xff] %vm5147, %v5964
          %5997 = vst.msk [vmem:[#allocation4 + $0x70] sm:$0xff] %vm5147, %v5965
          %5998 = vst.msk [vmem:[#allocation4 + $0x78] sm:$0xff] %vm5147, %v5966
          %5999 = vst.msk [vmem:[#allocation4 + $0x80] sm:$0xff] %vm5147, %v5967
          %6000 = vst.msk [vmem:[#allocation4 + $0x88] sm:$0xff] %vm5147, %v5968
          %6001 = vst.msk [vmem:[#allocation4 + $0x90] sm:$0xff] %vm5147, %v5969
          %6002 = vst.msk [vmem:[#allocation4 + $0x98] sm:$0xff] %vm5147, %v5970
          %6003 = vst.msk [vmem:[#allocation4 + $0xa0] sm:$0xff] %vm5147, %v5971
          %6004 = vst.msk [vmem:[#allocation4 + $0xa8] sm:$0xff] %vm5147, %v5972
          %6005 = vst.msk [vmem:[#allocation4 + $0xb0] sm:$0xff] %vm5147, %v5973
          %6006 = vst.msk [vmem:[#allocation4 + $0xb8] sm:$0xff] %vm5147, %v5974
          %6007 = vst.msk [vmem:[#allocation4 + $0xc0] sm:$0xff] %vm5147, %v5975
          %6008 = vst.msk [vmem:[#allocation4 + $0xc8] sm:$0xff] %vm5147, %v5976
          %6009 = vst.msk [vmem:[#allocation4 + $0xd0] sm:$0xff] %vm5147, %v5977
          %6010 = vst.msk [vmem:[#allocation4 + $0xd8] sm:$0xff] %vm5147, %v5978
          %6011 = vst.msk [vmem:[#allocation4 + $0xe0] sm:$0xff] %vm5147, %v5979
          %6012 = vst.msk [vmem:[#allocation4 + $0xe8] sm:$0xff] %vm5147, %v5980
          %6013 = vst.msk [vmem:[#allocation4 + $0xf0] sm:$0xff] %vm5147, %v5981
          %6014 = vst.msk [vmem:[#allocation4 + $0xf8] sm:$0xff] %vm5147, %v5982
          %v6015 = vld [vmem:[#allocation4] sm:$0xff]
          %v6016 = vld [vmem:[#allocation4 + $0x8] sm:$0xff]
          %v6017 = vld [vmem:[#allocation4 + $0x10] sm:$0xff]
          %v6018 = vld [vmem:[#allocation4 + $0x18] sm:$0xff]
          %v6019 = vld [vmem:[#allocation4 + $0x20] sm:$0xff]
          %v6020 = vld [vmem:[#allocation4 + $0x28] sm:$0xff]
          %v6021 = vld [vmem:[#allocation4 + $0x30] sm:$0xff]
          %v6022 = vld [vmem:[#allocation4 + $0x38] sm:$0xff]
          %v6023 = vld [vmem:[#allocation4 + $0x40] sm:$0xff]
          %v6024 = vld [vmem:[#allocation4 + $0x48] sm:$0xff]
          %v6025 = vld [vmem:[#allocation4 + $0x50] sm:$0xff]
          %v6026 = vld [vmem:[#allocation4 + $0x58] sm:$0xff]
          %v6027 = vld [vmem:[#allocation4 + $0x60] sm:$0xff]
          %v6028 = vld [vmem:[#allocation4 + $0x68] sm:$0xff]
          %v6029 = vld [vmem:[#allocation4 + $0x70] sm:$0xff]
          %v6030 = vld [vmem:[#allocation4 + $0x78] sm:$0xff]
          %v6031 = vld [vmem:[#allocation4 + $0x80] sm:$0xff]
          %v6032 = vld [vmem:[#allocation4 + $0x88] sm:$0xff]
          %v6033 = vld [vmem:[#allocation4 + $0x90] sm:$0xff]
          %v6034 = vld [vmem:[#allocation4 + $0x98] sm:$0xff]
          %v6035 = vld [vmem:[#allocation4 + $0xa0] sm:$0xff]
          %v6036 = vld [vmem:[#allocation4 + $0xa8] sm:$0xff]
          %v6037 = vld [vmem:[#allocation4 + $0xb0] sm:$0xff]
          %v6038 = vld [vmem:[#allocation4 + $0xb8] sm:$0xff]
          %v6039 = vld [vmem:[#allocation4 + $0xc0] sm:$0xff]
          %v6040 = vld [vmem:[#allocation4 + $0xc8] sm:$0xff]
          %v6041 = vld [vmem:[#allocation4 + $0xd0] sm:$0xff]
          %v6042 = vld [vmem:[#allocation4 + $0xd8] sm:$0xff]
          %v6043 = vld [vmem:[#allocation4 + $0xe0] sm:$0xff]
          %v6044 = vld [vmem:[#allocation4 + $0xe8] sm:$0xff]
          %v6045 = vld [vmem:[#allocation4 + $0xf0] sm:$0xff]
          %v6046 = vld [vmem:[#allocation4 + $0xf8] sm:$0xff]
          %v6047 = vld [vmem:[%s3] sm:$0xff]
          %v6048 = vld [vmem:[%s3 + $0x8] sm:$0xff]
          %v6049 = vld [vmem:[%s3 + $0x10] sm:$0xff]
          %v6050 = vld [vmem:[%s3 + $0x18] sm:$0xff]
          %v6051 = vld [vmem:[%s3 + $0x20] sm:$0xff]
          %v6052 = vld [vmem:[%s3 + $0x28] sm:$0xff]
          %v6053 = vld [vmem:[%s3 + $0x30] sm:$0xff]
          %v6054 = vld [vmem:[%s3 + $0x38] sm:$0xff]
          %v6055 = vld [vmem:[%s3 + $0x40] sm:$0xff]
          %v6056 = vld [vmem:[%s3 + $0x48] sm:$0xff]
          %v6057 = vld [vmem:[%s3 + $0x50] sm:$0xff]
          %v6058 = vld [vmem:[%s3 + $0x58] sm:$0xff]
          %v6059 = vld [vmem:[%s3 + $0x60] sm:$0xff]
          %v6060 = vld [vmem:[%s3 + $0x68] sm:$0xff]
          %v6061 = vld [vmem:[%s3 + $0x70] sm:$0xff]
          %v6062 = vld [vmem:[%s3 + $0x78] sm:$0xff]
          %v6063 = vld [vmem:[%s4] sm:$0x1]
          %v6065 = vlaneseq
          %v6066 = vshrl.u32 %v6065, 7
          %v6067 = vsub.s32 0, %v6066
          %v6068 = vrot.slane %v6063, %v6067
          %6070 = vmatprep.subr.mxu0 0.0
          %6071 = vmatpush1.msra.mxu0 %v6047
          %6072 = vmatprep.subr.mxu0 0.0
          %6073 = vmatpush1.msra.mxu0 %v6048
          %6074 = vmatprep.subr.mxu0 0.0
          %6075 = vmatpush1.msra.mxu0 %v6049
          %6076 = vmatprep.subr.mxu0 0.0
          %6077 = vmatpush1.msra.mxu0 %v6050
          %6078 = vmatprep.subr.mxu0 0.0
          %6079 = vmatpush1.msra.mxu0 %v6051
          %6080 = vmatprep.subr.mxu0 0.0
          %6081 = vmatpush1.msra.mxu0 %v6052
          %6082 = vmatprep.subr.mxu0 0.0
          %6083 = vmatpush1.msra.mxu0 %v6053
          %6084 = vmatprep.subr.mxu0 0.0
          %6085 = vmatpush1.msra.mxu0 %v6054
          %6086 = vmatprep.subr.mxu0 0.0
          %6087 = vmatpush1.msra.mxu0 %v6055
          %6088 = vmatprep.subr.mxu0 0.0
          %6089 = vmatpush1.msra.mxu0 %v6056
          %6090 = vmatprep.subr.mxu0 0.0
          %6091 = vmatpush1.msra.mxu0 %v6057
          %6092 = vmatprep.subr.mxu0 0.0
          %6093 = vmatpush1.msra.mxu0 %v6058
          %6094 = vmatprep.subr.mxu0 0.0
          %6095 = vmatpush1.msra.mxu0 %v6059
          %6096 = vmatprep.subr.mxu0 0.0
          %6097 = vmatpush1.msra.mxu0 %v6060
          %6098 = vmatprep.subr.mxu0 0.0
          %6099 = vmatpush1.msra.mxu0 %v6061
          %6100 = vmatprep.subr.mxu0 0.0
          %6101 = vmatpush1.msra.mxu0 %v6062
          %6102 = vmatprep.subr.mxu0 0.0
          %6103 = vmatpush1.msra.mxu0 0.0
          %6104 = vmatprep.subr.mxu0 0.0
          %6105 = vmatpush1.msra.mxu0 0.0
          %6106 = vmatprep.subr.mxu0 0.0
          %6107 = vmatpush1.msra.mxu0 0.0
          %6108 = vmatprep.subr.mxu0 0.0
          %6109 = vmatpush1.msra.mxu0 0.0
          %6110 = vmatprep.subr.mxu0 0.0
          %6111 = vmatpush1.msra.mxu0 0.0
          %6112 = vmatprep.subr.mxu0 0.0
          %6113 = vmatpush1.msra.mxu0 0.0
          %6114 = vmatprep.subr.mxu0 0.0
          %6115 = vmatpush1.msra.mxu0 0.0
          %6116 = vmatprep.subr.mxu0 0.0
          %6117 = vmatpush1.msra.mxu0 0.0
          %6118 = vmatprep.subr.mxu0 0.0
          %6119 = vmatpush1.msra.mxu0 0.0
          %6120 = vmatprep.subr.mxu0 0.0
          %6121 = vmatpush1.msra.mxu0 0.0
          %6122 = vmatprep.subr.mxu0 0.0
          %6123 = vmatpush1.msra.mxu0 0.0
          %6124 = vmatprep.subr.mxu0 0.0
          %6125 = vmatpush1.msra.mxu0 0.0
          %6126 = vmatprep.subr.mxu0 0.0
          %6127 = vmatpush1.msra.mxu0 0.0
          %6128 = vmatprep.subr.mxu0 0.0
          %6129 = vmatpush1.msra.mxu0 0.0
          %6130 = vmatprep.subr.mxu0 0.0
          %6131 = vmatpush1.msra.mxu0 0.0
          %6132 = vmatprep.subr.mxu0 0.0
          %6133 = vmatpush1.msra.mxu0 0.0
          %6134 = vmatprep.mubr.f32.mxu0 0.0
          %6135 = vmatmul.mubr.f32.gmra.mrb[0].mxu0 %v6015
          %v6136 = vpop.f32.mrb[0].mxu0
          %v6137 = vadd.f32 %v6068, %v6136
          %v6138 = vpop.f32.mrb[0].mxu0
          %6139 = vmatprep.mubr.f32.mxu0 0.0
          %6140 = vmatmul.mubr.f32.gmra.mrb[0].mxu0 %v6016
          %v6141 = vpop.f32.mrb[0].mxu0
          %v6142 = vadd.f32 %v6068, %v6141
          %v6143 = vpop.f32.mrb[0].mxu0
          %6144 = vmatprep.mubr.f32.mxu0 0.0
          %6145 = vmatmul.mubr.f32.gmra.mrb[0].mxu0 %v6017
          %v6146 = vpop.f32.mrb[0].mxu0
          %v6147 = vadd.f32 %v6068, %v6146
          %v6148 = vpop.f32.mrb[0].mxu0
          %6149 = vmatprep.mubr.f32.mxu0 0.0
          %6150 = vmatmul.mubr.f32.gmra.mrb[0].mxu0 %v6018
          %v6151 = vpop.f32.mrb[0].mxu0
          %v6152 = vadd.f32 %v6068, %v6151
          %v6153 = vpop.f32.mrb[0].mxu0
          %6154 = vmatprep.mubr.f32.mxu0 0.0
          %6155 = vmatmul.mubr.f32.gmra.mrb[0].mxu0 %v6019
          %v6156 = vpop.f32.mrb[0].mxu0
          %v6157 = vadd.f32 %v6068, %v6156
          %v6158 = vpop.f32.mrb[0].mxu0
          %6159 = vmatprep.mubr.f32.mxu0 0.0
          %6160 = vmatmul.mubr.f32.gmra.mrb[0].mxu0 %v6020
          %v6161 = vpop.f32.mrb[0].mxu0
          %v6162 = vadd.f32 %v6068, %v6161
          %v6163 = vpop.f32.mrb[0].mxu0
          %6164 = vmatprep.mubr.f32.mxu0 0.0
          %6165 = vmatmul.mubr.f32.gmra.mrb[0].mxu0 %v6021
          %v6166 = vpop.f32.mrb[0].mxu0
          %v6167 = vadd.f32 %v6068, %v6166
          %v6168 = vpop.f32.mrb[0].mxu0
          %6169 = vmatprep.mubr.f32.mxu0 0.0
          %6170 = vmatmul.mubr.f32.gmra.mrb[0].mxu0 %v6022
          %v6171 = vpop.f32.mrb[0].mxu0
          %v6172 = vadd.f32 %v6068, %v6171
          %v6173 = vpop.f32.mrb[0].mxu0
          %6174 = vmatprep.mubr.f32.mxu0 0.0
          %6175 = vmatmul.mubr.f32.gmra.mrb[0].mxu0 %v6023
          %v6176 = vpop.f32.mrb[0].mxu0
          %v6177 = vadd.f32 %v6068, %v6176
          %v6178 = vpop.f32.mrb[0].mxu0
          %6179 = vmatprep.mubr.f32.mxu0 0.0
          %6180 = vmatmul.mubr.f32.gmra.mrb[0].mxu0 %v6024
          %v6181 = vpop.f32.mrb[0].mxu0
          %v6182 = vadd.f32 %v6068, %v6181
          %v6183 = vpop.f32.mrb[0].mxu0
          %6184 = vmatprep.mubr.f32.mxu0 0.0
          %6185 = vmatmul.mubr.f32.gmra.mrb[0].mxu0 %v6025
          %v6186 = vpop.f32.mrb[0].mxu0
          %v6187 = vadd.f32 %v6068, %v6186
          %v6188 = vpop.f32.mrb[0].mxu0
          %6189 = vmatprep.mubr.f32.mxu0 0.0
          %6190 = vmatmul.mubr.f32.gmra.mrb[0].mxu0 %v6026
          %v6191 = vpop.f32.mrb[0].mxu0
          %v6192 = vadd.f32 %v6068, %v6191
          %v6193 = vpop.f32.mrb[0].mxu0
          %6194 = vmatprep.mubr.f32.mxu0 0.0
          %6195 = vmatmul.mubr.f32.gmra.mrb[0].mxu0 %v6027
          %v6196 = vpop.f32.mrb[0].mxu0
          %v6197 = vadd.f32 %v6068, %v6196
          %v6198 = vpop.f32.mrb[0].mxu0
          %6199 = vmatprep.mubr.f32.mxu0 0.0
          %6200 = vmatmul.mubr.f32.gmra.mrb[0].mxu0 %v6028
          %v6201 = vpop.f32.mrb[0].mxu0
          %v6202 = vadd.f32 %v6068, %v6201
          %v6203 = vpop.f32.mrb[0].mxu0
          %6204 = vmatprep.mubr.f32.mxu0 0.0
          %6205 = vmatmul.mubr.f32.gmra.mrb[0].mxu0 %v6029
          %v6206 = vpop.f32.mrb[0].mxu0
          %v6207 = vadd.f32 %v6068, %v6206
          %v6208 = vpop.f32.mrb[0].mxu0
          %6209 = vmatprep.mubr.f32.mxu0 0.0
          %6210 = vmatmul.mubr.f32.gmra.mrb[0].mxu0 %v6030
          %v6211 = vpop.f32.mrb[0].mxu0
          %v6212 = vadd.f32 %v6068, %v6211
          %v6213 = vpop.f32.mrb[0].mxu0
          %6214 = vmatprep.mubr.f32.mxu0 0.0
          %6215 = vmatmul.mubr.f32.gmra.mrb[0].mxu0 %v6031
          %v6216 = vpop.f32.mrb[0].mxu0
          %v6217 = vadd.f32 %v6068, %v6216
          %v6218 = vpop.f32.mrb[0].mxu0
          %6219 = vmatprep.mubr.f32.mxu0 0.0
          %6220 = vmatmul.mubr.f32.gmra.mrb[0].mxu0 %v6032
          %v6221 = vpop.f32.mrb[0].mxu0
          %v6222 = vadd.f32 %v6068, %v6221
          %v6223 = vpop.f32.mrb[0].mxu0
          %6224 = vmatprep.mubr.f32.mxu0 0.0
          %6225 = vmatmul.mubr.f32.gmra.mrb[0].mxu0 %v6033
          %v6226 = vpop.f32.mrb[0].mxu0
          %v6227 = vadd.f32 %v6068, %v6226
          %v6228 = vpop.f32.mrb[0].mxu0
          %6229 = vmatprep.mubr.f32.mxu0 0.0
          %6230 = vmatmul.mubr.f32.gmra.mrb[0].mxu0 %v6034
          %v6231 = vpop.f32.mrb[0].mxu0
          %v6232 = vadd.f32 %v6068, %v6231
          %v6233 = vpop.f32.mrb[0].mxu0
          %6234 = vmatprep.mubr.f32.mxu0 0.0
          %6235 = vmatmul.mubr.f32.gmra.mrb[0].mxu0 %v6035
          %v6236 = vpop.f32.mrb[0].mxu0
          %v6237 = vadd.f32 %v6068, %v6236
          %v6238 = vpop.f32.mrb[0].mxu0
          %6239 = vmatprep.mubr.f32.mxu0 0.0
          %6240 = vmatmul.mubr.f32.gmra.mrb[0].mxu0 %v6036
          %v6241 = vpop.f32.mrb[0].mxu0
          %v6242 = vadd.f32 %v6068, %v6241
          %v6243 = vpop.f32.mrb[0].mxu0
          %6244 = vmatprep.mubr.f32.mxu0 0.0
          %6245 = vmatmul.mubr.f32.gmra.mrb[0].mxu0 %v6037
          %v6246 = vpop.f32.mrb[0].mxu0
          %v6247 = vadd.f32 %v6068, %v6246
          %v6248 = vpop.f32.mrb[0].mxu0
          %6249 = vmatprep.mubr.f32.mxu0 0.0
          %6250 = vmatmul.mubr.f32.gmra.mrb[0].mxu0 %v6038
          %v6251 = vpop.f32.mrb[0].mxu0
          %v6252 = vadd.f32 %v6068, %v6251
          %v6253 = vpop.f32.mrb[0].mxu0
          %6254 = vmatprep.mubr.f32.mxu0 0.0
          %6255 = vmatmul.mubr.f32.gmra.mrb[0].mxu0 %v6039
          %v6256 = vpop.f32.mrb[0].mxu0
          %v6257 = vadd.f32 %v6068, %v6256
          %v6258 = vpop.f32.mrb[0].mxu0
          %6259 = vmatprep.mubr.f32.mxu0 0.0
          %6260 = vmatmul.mubr.f32.gmra.mrb[0].mxu0 %v6040
          %v6261 = vpop.f32.mrb[0].mxu0
          %v6262 = vadd.f32 %v6068, %v6261
          %v6263 = vpop.f32.mrb[0].mxu0
          %6264 = vmatprep.mubr.f32.mxu0 0.0
          %6265 = vmatmul.mubr.f32.gmra.mrb[0].mxu0 %v6041
          %v6266 = vpop.f32.mrb[0].mxu0
          %v6267 = vadd.f32 %v6068, %v6266
          %v6268 = vpop.f32.mrb[0].mxu0
          %6269 = vmatprep.mubr.f32.mxu0 0.0
          %6270 = vmatmul.mubr.f32.gmra.mrb[0].mxu0 %v6042
          %v6271 = vpop.f32.mrb[0].mxu0
          %v6272 = vadd.f32 %v6068, %v6271
          %v6273 = vpop.f32.mrb[0].mxu0
          %6274 = vmatprep.mubr.f32.mxu0 0.0
          %6275 = vmatmul.mubr.f32.gmra.mrb[0].mxu0 %v6043
          %v6276 = vpop.f32.mrb[0].mxu0
          %v6277 = vadd.f32 %v6068, %v6276
          %v6278 = vpop.f32.mrb[0].mxu0
          %6279 = vmatprep.mubr.f32.mxu0 0.0
          %6280 = vmatmul.mubr.f32.gmra.mrb[0].mxu0 %v6044
          %v6281 = vpop.f32.mrb[0].mxu0
          %v6282 = vadd.f32 %v6068, %v6281
          %v6283 = vpop.f32.mrb[0].mxu0
          %6284 = vmatprep.mubr.f32.mxu0 0.0
          %6285 = vmatmul.mubr.f32.gmra.mrb[0].mxu0 %v6045
          %v6286 = vpop.f32.mrb[0].mxu0
          %v6287 = vadd.f32 %v6068, %v6286
          %v6288 = vpop.f32.mrb[0].mxu0
          %6289 = vmatprep.mubr.f32.mxu0 0.0
          %6290 = vmatmul.mubr.f32.gmra.mrb[0].mxu0 %v6046
          %v6291 = vpop.f32.mrb[0].mxu0
          %v6292 = vadd.f32 %v6068, %v6291
          %v6293 = vpop.f32.mrb[0].mxu0
          %6294 = vdwg.mxu0
          %6295 = vst [vmem:[%s777] sm:$0xff] %v6137
          %6296 = vst [vmem:[%s777 + $0x8] sm:$0xff] %v6142
          %6297 = vst [vmem:[%s777 + $0x10] sm:$0xff] %v6147
          %6298 = vst [vmem:[%s777 + $0x18] sm:$0xff] %v6152
          %6299 = vst [vmem:[%s777 + $0x20] sm:$0xff] %v6157
          %6300 = vst [vmem:[%s777 + $0x28] sm:$0xff] %v6162
          %6301 = vst [vmem:[%s777 + $0x30] sm:$0xff] %v6167
          %6302 = vst [vmem:[%s777 + $0x38] sm:$0xff] %v6172
          %6303 = vst [vmem:[%s777 + $0x40] sm:$0xff] %v6177
          %6304 = vst [vmem:[%s777 + $0x48] sm:$0xff] %v6182
          %6305 = vst [vmem:[%s777 + $0x50] sm:$0xff] %v6187
          %6306 = vst [vmem:[%s777 + $0x58] sm:$0xff] %v6192
          %6307 = vst [vmem:[%s777 + $0x60] sm:$0xff] %v6197
          %6308 = vst [vmem:[%s777 + $0x68] sm:$0xff] %v6202
          %6309 = vst [vmem:[%s777 + $0x70] sm:$0xff] %v6207
          %6310 = vst [vmem:[%s777 + $0x78] sm:$0xff] %v6212
          %6311 = vst [vmem:[%s777 + $0x80] sm:$0xff] %v6217
          %6312 = vst [vmem:[%s777 + $0x88] sm:$0xff] %v6222
          %6313 = vst [vmem:[%s777 + $0x90] sm:$0xff] %v6227
          %6314 = vst [vmem:[%s777 + $0x98] sm:$0xff] %v6232
          %6315 = vst [vmem:[%s777 + $0xa0] sm:$0xff] %v6237
          %6316 = vst [vmem:[%s777 + $0xa8] sm:$0xff] %v6242
          %6317 = vst [vmem:[%s777 + $0xb0] sm:$0xff] %v6247
          %6318 = vst [vmem:[%s777 + $0xb8] sm:$0xff] %v6252
          %6319 = vst [vmem:[%s777 + $0xc0] sm:$0xff] %v6257
          %6320 = vst [vmem:[%s777 + $0xc8] sm:$0xff] %v6262
          %6321 = vst [vmem:[%s777 + $0xd0] sm:$0xff] %v6267
          %6322 = vst [vmem:[%s777 + $0xd8] sm:$0xff] %v6272
          %6323 = vst [vmem:[%s777 + $0xe0] sm:$0xff] %v6277
          %6324 = vst [vmem:[%s777 + $0xe8] sm:$0xff] %v6282
          %6325 = vst [vmem:[%s777 + $0xf0] sm:$0xff] %v6287
          %6326 = vst [vmem:[%s777 + $0xf8] sm:$0xff] %v6292
        $region162: #{attention_forward.3} parent=141 // pred_fallthru
          _
        %s6327 = sand.u32 %s174, 1
        %s6328 = scalar_lea.sflag [#allocation9], %s6327
        %s6329 = sand.u32 %s174, 1
        %s6330 = smul.addr %s6329, 256
        %s6331 = scalar_lea.vmem [#allocation8], %s6330
        // Predicated region
        $region163: #{attention_forward.3} parent=141 // pred_check
          %p6332 = pneg %p184
        $region164: #{attention_forward.3} parent=141 // pred_check_branch
          %6334 = sbr.rel (%p6332) target = $region166
        $region165: #{attention_forward.3} parent=141 // pred_region
          %s6335 = smul.u32 32, %s25
          %s6337 = ssub.s32 4096, 4096
          %6338 = vsyncadd %s6328, %s6337
          %s6339 = smul.addr %s24, 32
          %s6340 = sadd.s32 %s6335, %s6339
          %s6341 = smul.addr %s6340, 128
          %s6342 = scalar_lea.hbm %s5, %s6341
          %s6343 = sshll.u32 %s6331, 4
          %s6344 = int_to_ptr.vmem [resolvable:$true] %s6343
          %6349 = dma.vmem_to_hbm [thread:$0]  %s6344, 4096, %s6342, %s6328, 128, 128, 8
        $region166: #{attention_forward.3} parent=141 // pred_fallthru
          _
      $region142: #{attention_forward.3} parent=5 // pred_fallthru
        _
      %p6350 = scmp.le.s32.totalorder 2, %s14
      // Predicated region
      $region167: #{attention_forward.3} parent=5 // pred_check
        %p6351 = pneg %p6350
      $region168: #{attention_forward.3} parent=5 // pred_check_branch
        %6353 = sbr.rel (%p6351) target = $region170
      $region169: #{attention_forward.3} parent=5 // pred_region
        %s6354 = ssub.s32 %s14, 2
        // Predicated region
        $region171: #{attention_forward.3} parent=169 // pred_check
          %p6355 = pneg %p190
        $region172: #{attention_forward.3} parent=169 // pred_check_branch
          %6357 = sbr.rel (%p6355) target = $region174
        $region173: #{attention_forward.3} parent=169 // pred_region
          %s6358 = sand.u32 %s175, 1
          %s6359 = scalar_lea.sflag [#allocation9], %s6358
          %s6360 = sand.u32 %s175, 1
          %s6361 = smul.addr %s6360, 256
          %s6362 = scalar_lea.vmem [#allocation8], %s6361
          %6363 = dma.done %s6359, 4096
        $region174: #{attention_forward.3} parent=169 // pred_fallthru
          _
      $region170: #{attention_forward.3} parent=5 // pred_fallthru
        _
    $region6: #{attention_forward.3} parent=1 // loop_footer
      %s18 = sadd.s32 1, %s14
    $region7: #{attention_forward.3} parent=1 // loop_footer_branch
      %13 = sbr.rel target = $region3
    $region8: #{attention_forward.3} parent=1 // loop_exit
      _
    %6364 = vsyncpa [#allocation9], 1
    %s6365 = scalar_lea.sflag [#allocation9], 1
    %6366 = vsyncpa %s6365, 1

</llo_original>
